<compile_context>
chip_gen: v7x
topology: tpu7x:2x2x1
jax: 0.10.0
libtpu: 0.0.40
codegen_flags: <defaults>
</compile_context>

<pallas_src>
import functools

import jax
import jax.numpy as jnp
from jax import lax
from jax.experimental import pallas as pl
from jax.experimental.pallas import tpu as pltpu

TM = 512  # max row tile for all (rows, feat) kernels


def _row_tile(m, tm_max=TM):
    """Pick a row tile: TM when there are many rows, else round m up to a multiple of 8."""
    tm = tm_max if m >= tm_max else ((m + 7) // 8) * 8
    mp = ((m + tm - 1) // tm) * tm
    return tm, mp


def _pad_rows_to(x, mp):
    m = x.shape[0]
    if m != mp:
        x = jnp.pad(x, ((0, mp - m),) + ((0, 0),) * (x.ndim - 1))
    return x


# ----------------------------------------------------------------------------
# Fused matmul kernel: X@W + b [+ residual] [+ act] [+ layernorm]
# ----------------------------------------------------------------------------
def _mm_fused_kernel(*refs, act, has_residual, has_ln, eps):
    it = iter(refs)
    x_ref = next(it)
    w_ref = next(it)
    b_ref = next(it)
    r_ref = next(it) if has_residual else None
    if has_ln:
        g_ref = next(it)
        beta_ref = next(it)
    o_ref = next(it)

    acc = jnp.dot(x_ref[...].astype(jnp.bfloat16), w_ref[...],
                  preferred_element_type=jnp.float32)
    acc = acc + b_ref[...]
    if has_residual:
        acc = acc + r_ref[...]
    if act == "relu":
        acc = jnp.maximum(acc, 0.0)
    elif act == "gelu":
        # TODO(synk): PyTorch nn.GELU defaults to exact erf; tanh approximation used here.
        acc = jax.nn.gelu(acc, approximate=True)
    if has_ln:
        mu = jnp.mean(acc, axis=-1, keepdims=True)
        var = jnp.mean(jnp.square(acc - mu), axis=-1, keepdims=True)
        acc = (acc - mu) * lax.rsqrt(var + eps) * g_ref[...] + beta_ref[...]
    o_ref[...] = acc.astype(o_ref.dtype)


def matmul_fused(x, w_bf16, b, *, act="none", residual=None, ln=None, eps=1e-5):
    """(M, K) @ (K, N) + b, optional residual add, relu/gelu, layernorm epilogues.

    x, residual: f32; w_bf16: bf16 weight; b: f32 bias; ln: (gamma, beta) or None.
    Tiled over rows; weight block stays resident per call.
    """
    M, K = x.shape
    N = w_bf16.shape[1]
    tm, Mp = _row_tile(M)
    xp = _pad_rows_to(x, Mp)

    inputs = [xp, w_bf16, b.reshape(1, N)]
    in_specs = [
        pl.BlockSpec((tm, K), lambda i: (i, 0)),
        pl.BlockSpec((K, N), lambda i: (0, 0)),
        pl.BlockSpec((1, N), lambda i: (0, 0)),
    ]
    if residual is not None:
        inputs.append(_pad_rows_to(residual, Mp))
        in_specs.append(pl.BlockSpec((tm, N), lambda i: (i, 0)))
    if ln is not None:
        g, beta = ln
        inputs += [g.reshape(1, N), beta.reshape(1, N)]
        in_specs += [pl.BlockSpec((1, N), lambda i: (0, 0)),
                     pl.BlockSpec((1, N), lambda i: (0, 0))]

    out = pl.pallas_call(
        functools.partial(_mm_fused_kernel, act=act,
                          has_residual=residual is not None,
                          has_ln=ln is not None, eps=eps),
        out_shape=jax.ShapeDtypeStruct((Mp, N), jnp.float32),
        grid=(Mp // tm,),
        in_specs=in_specs,
        out_specs=pl.BlockSpec((tm, N), lambda i: (i, 0)),
        compiler_params=pltpu.CompilerParams(
            dimension_semantics=("parallel",),
            vmem_limit_bytes=32 * 1024 * 1024),
    )(*inputs)
    return out[:M]


# ----------------------------------------------------------------------------
# MaxPool 3x3 stride 2 pad 1 (window gather in XLA, 9-way max in a gridded kernel)
# ----------------------------------------------------------------------------
def _max9_kernel(x_ref, o_ref):
    o_ref[...] = jnp.max(x_ref[...], axis=0)


def maxpool3x3_s2_p1(x_nhwc):
    N, H, W, C = x_nhwc.shape
    xp = jnp.pad(x_nhwc, ((0, 0), (1, 1), (1, 1), (0, 0)),
                 constant_values=-jnp.inf)
    Ho = (H + 2 - 3) // 2 + 1
    Wo = (W + 2 - 3) // 2 + 1
    views = []
    for i in range(3):
        for j in range(3):
            views.append(xp[:, i:i + 2 * (Ho - 1) + 1:2,
                            j:j + 2 * (Wo - 1) + 1:2, :])
    M = N * Ho * Wo
    stk = jnp.stack(views, axis=0).reshape(9, M, C)
    tm, Mp = _row_tile(M)
    stk = jnp.pad(stk, ((0, 0), (0, Mp - M), (0, 0))) if Mp != M else stk
    out = pl.pallas_call(
        _max9_kernel,
        out_shape=jax.ShapeDtypeStruct((Mp, C), jnp.float32),
        grid=(Mp // tm,),
        in_specs=[pl.BlockSpec((9, tm, C), lambda i: (0, i, 0))],
        out_specs=pl.BlockSpec((tm, C), lambda i: (i, 0)),
        compiler_params=pltpu.CompilerParams(dimension_semantics=("parallel",)),
    )(stk)
    return out[:M].reshape(N, Ho, Wo, C)


# ----------------------------------------------------------------------------
# Multi-head self-attention: one grid step per batch element, all heads in-kernel
# ----------------------------------------------------------------------------
def _attn_kernel(qkv_ref, o_ref, *, heads, dim_head, scale):
    x = qkv_ref[0]                                  # (T, 3*heads*dh), packed [q|k|v]
    inner = heads * dim_head
    outs = []
    for h in range(heads):
        lo, hi = h * dim_head, (h + 1) * dim_head
        q = x[:, lo:hi].astype(jnp.bfloat16)
        k = x[:, inner + lo:inner + hi].astype(jnp.bfloat16)
        v = x[:, 2 * inner + lo:2 * inner + hi].astype(jnp.bfloat16)
        s = lax.dot_general(q, k, (((1,), (1,)), ((), ())),
                            preferred_element_type=jnp.float32) * scale
        m = jnp.max(s, axis=-1, keepdims=True)
        p = jnp.exp(s - m)
        l = jnp.sum(p, axis=-1, keepdims=True)
        o = jnp.dot(p.astype(jnp.bfloat16), v, preferred_element_type=jnp.float32)
        outs.append(o * pl.reciprocal(l, approx=True))
    o_ref[0] = jnp.concatenate(outs, axis=-1)


def mhsa_attention(qkv, heads, dim_head):
    """qkv: (B, T, 3*heads*dh) packed as [q heads | k heads | v heads] -> (B, T, heads*dh)."""
    B, T, I3 = qkv.shape
    inner = heads * dim_head
    scale = dim_head ** -0.5
    return pl.pallas_call(
        functools.partial(_attn_kernel, heads=heads, dim_head=dim_head, scale=scale),
        out_shape=jax.ShapeDtypeStruct((B, T, inner), jnp.float32),
        grid=(B,),
        in_specs=[pl.BlockSpec((1, T, I3), lambda i: (i, 0, 0))],
        out_specs=pl.BlockSpec((1, T, inner), lambda i: (i, 0, 0)),
        compiler_params=pltpu.CompilerParams(dimension_semantics=("parallel",)),
    )(qkv)


# ----------------------------------------------------------------------------
# Conv (im2col) + folded BatchNorm, ResNet pieces
# ----------------------------------------------------------------------------
def _im2col(x_nhwc, kh, kw, stride, pad):
    # TODO(synk): 3x3/7x7 im2col still materializes kh*kw shifted copies in HBM;
    # a halo-BlockSpec / manual-DMA in-kernel gather would cut this traffic ~9x.
    N, H, W, C = x_nhwc.shape
    xp = jnp.pad(x_nhwc, ((0, 0), (pad, pad), (pad, pad), (0, 0)))
    Ho = (H + 2 * pad - kh) // stride + 1
    Wo = (W + 2 * pad - kw) // stride + 1
    cols = []
    for i in range(kh):
        for j in range(kw):
            cols.append(xp[:, i:i + stride * (Ho - 1) + 1:stride,
                           j:j + stride * (Wo - 1) + 1:stride, :])
    patches = jnp.concatenate(cols, axis=-1)          # (N, Ho, Wo, kh*kw*C)
    return patches.reshape(N * Ho * Wo, kh * kw * C), Ho, Wo


def conv_bn_act(x_nhwc, w_oihw, bn_scale, bn_shift, *, stride=1, pad=0,
                act="relu", residual=None):
    """conv2d (no bias) + folded BatchNorm(eval) + optional residual-add + ReLU."""
    Cout, Cin, kh, kw = w_oihw.shape
    wf = w_oihw * bn_scale[:, None, None, None]
    wf = jnp.transpose(wf, (2, 3, 1, 0)).reshape(kh * kw * Cin, Cout)
    wf = wf.astype(jnp.bfloat16)
    N = x_nhwc.shape[0]
    if kh == 1 and kw == 1 and stride == 1 and pad == 0:
        H, W = x_nhwc.shape[1], x_nhwc.shape[2]
        cols, Ho, Wo = x_nhwc.reshape(N * H * W, Cin), H, W
    else:
        cols, Ho, Wo = _im2col(x_nhwc, kh, kw, stride, pad)
    res_flat = residual.reshape(-1, Cout) if residual is not None else None
    y = matmul_fused(cols, wf, bn_shift, act=act, residual=res_flat)
    return y.reshape(N, Ho, Wo, Cout)


def bottleneck(x, p, has_down):
    if has_down:
        idn = conv_bn_act(x, p["wd"], p["sd"], p["bd"], act="none")
    else:
        idn = x
    out = conv_bn_act(x, p["w1"], p["s1"], p["b1"], act="relu")
    out = conv_bn_act(out, p["w2"], p["s2"], p["b2"], pad=1, act="relu")
    # conv3 + BN + residual add + ReLU fused in one kernel epilogue
    out = conv_bn_act(out, p["w3"], p["s3"], p["b3"], act="relu", residual=idn)
    return out


# ----------------------------------------------------------------------------
# ViT pieces
# ----------------------------------------------------------------------------
def transformer_block(x, p, heads, dim_head):
    """Post-norm transformer block (self-attention-cv TransformerBlock, dropout=0)."""
    B, T, D = x.shape
    inner = heads * dim_head
    flat = x.reshape(B * T, D)
    qkv = matmul_fused(flat, p["wqkv"], jnp.zeros((3 * inner,), jnp.float32))
    o = mhsa_attention(qkv.reshape(B, T, 3 * inner), heads, dim_head)
    o = o.reshape(B * T, inner)
    # W_0 projection + residual + LayerNorm fused
    y = matmul_fused(o, p["w0"], jnp.zeros((D,), jnp.float32),
                     residual=flat, ln=(p["ln1_g"], p["ln1_b"]))
    h1 = matmul_fused(y, p["fc1_w"], p["fc1_b"], act="gelu")
    # fc2 + residual + LayerNorm fused
    out = matmul_fused(h1, p["fc2_w"], p["fc2_b"],
                       residual=y, ln=(p["ln2_g"], p["ln2_b"]))
    return out.reshape(B, T, D)


def vit_forward(feat_nhwc, p, heads, dim_head):
    N, H, W, C = feat_nhwc.shape
    # patch_dim = 1: 'b c (x) (y) -> b (x y) c'
    tok = feat_nhwc.reshape(N * H * W, C)
    x = matmul_fused(tok, p["proj_w"], p["proj_b"])            # project_patches
    dim = x.shape[-1]
    x = x.reshape(N, H * W, dim)
    cls = jnp.broadcast_to(p["cls"], (N, 1, dim))
    x = jnp.concatenate([cls, x], axis=1)                      # (N, T+1, dim)
    x = x + p["pos"]                                           # pos_emb1D (dropout=0)
    for blk in p["blocks"]:
        x = transformer_block(x, blk, heads, dim_head)
    cls_out = x[:, 0, :]
    return matmul_fused(cls_out, p["head_w"], p["head_b"])     # mlp_head


# ----------------------------------------------------------------------------
# Full forward
# ----------------------------------------------------------------------------
def resnet50_vit_forward(x_nchw, params, *, img_dim, heads, dim_head):
    b, c, h, w = x_nchw.shape
    assert c == 3, f"Insert input with 3 inp channels, {c} received."
    assert img_dim == h == w, f"Insert input with {img_dim} dimensions."
    x = jnp.transpose(x_nchw, (0, 2, 3, 1))                    # NCHW -> NHWC
    # --- resnet50 children[:5]: conv1 / bn1 / relu / maxpool / layer1 ---
    st = params["stem"]
    y = conv_bn_act(x, st["conv1_w"], st["bn1_s"], st["bn1_b"],
                    stride=2, pad=3, act="relu")
    y = maxpool3x3_s2_p1(y)
    for i, bp in enumerate(params["layer1"]):
        y = bottleneck(y, bp, has_down=(i == 0))
    # --- ViT ---
    return vit_forward(y, params["vit"], heads, dim_head)


# ----------------------------------------------------------------------------
# Deterministic parameter init (shapes follow the PyTorch module)
# ----------------------------------------------------------------------------
def init_params(key, *, img_dim, dim, blocks, heads, dim_head,
                dim_linear_block, num_classes):
    keys = iter(jax.random.split(key, 256))

    def conv_w(cout, cin, kh, kw):
        std = 1.0 / jnp.sqrt(cin * kh * kw)
        return jax.random.normal(next(keys), (cout, cin, kh, kw), jnp.float32) * std

    def lin(cin, cout):
        std = 1.0 / jnp.sqrt(cin)
        w = (jax.random.normal(next(keys), (cin, cout), jnp.float32) * std
             ).astype(jnp.bfloat16)
        b = jax.random.normal(next(keys), (cout,), jnp.float32) * std
        return w, b

    def bn(c):  # inference BN folded to per-channel (scale, shift)
        gamma = 1.0 + 0.1 * jax.random.normal(next(keys), (c,), jnp.float32)
        beta = 0.1 * jax.random.normal(next(keys), (c,), jnp.float32)
        mean = 0.1 * jax.random.normal(next(keys), (c,), jnp.float32)
        var = 0.5 + jax.random.uniform(next(keys), (c,), jnp.float32)
        scale = gamma / jnp.sqrt(var + 1e-5)
        return scale, beta - mean * scale

    # ---- resnet stem + layer1 (3 bottlenecks, width 64, expansion 4) ----
    s1, b1 = bn(64)
    stem = {"conv1_w": conv_w(64, 3, 7, 7), "bn1_s": s1, "bn1_b": b1}
    layer1 = []
    for blk_i in range(3):
        cin = 64 if blk_i == 0 else 256
        p = {}
        p["w1"] = conv_w(64, cin, 1, 1); p["s1"], p["b1"] = bn(64)
        p["w2"] = conv_w(64, 64, 3, 3);  p["s2"], p["b2"] = bn(64)
        p["w3"] = conv_w(256, 64, 1, 1); p["s3"], p["b3"] = bn(256)
        if blk_i == 0:
            p["wd"] = conv_w(256, 64, 1, 1); p["sd"], p["bd"] = bn(256)
        layer1.append(p)

    # ---- ViT (in_channels=256, patch_dim=1, feat_dim=img_dim//4) ----
    feat_dim = img_dim // 4
    tokens = feat_dim * feat_dim
    inner = heads * dim_head
    proj_w, proj_b = lin(256, dim)
    vit = {
        "proj_w": proj_w, "proj_b": proj_b,
        "cls": jax.random.normal(next(keys), (1, 1, dim), jnp.float32) * 0.02,
        "pos": jax.random.normal(next(keys), (tokens + 1, dim), jnp.float32) * 0.02,
        "blocks": [],
    }
    for _ in range(blocks):
        blk = {}
        # packed qkv weight, column layout [q heads*dh | k heads*dh | v heads*dh]
        blk["wqkv"] = (jax.random.normal(next(keys), (dim, inner * 3), jnp.float32)
                       / jnp.sqrt(dim)).astype(jnp.bfloat16)
        blk["w0"] = (jax.random.normal(next(keys), (inner, dim), jnp.float32)
                     / jnp.sqrt(inner)).astype(jnp.bfloat16)
        blk["ln1_g"] = 1.0 + 0.02 * jax.random.normal(next(keys), (dim,), jnp.float32)
        blk["ln1_b"] = 0.02 * jax.random.normal(next(keys), (dim,), jnp.float32)
        blk["fc1_w"], blk["fc1_b"] = lin(dim, dim_linear_block)
        blk["fc2_w"], blk["fc2_b"] = lin(dim_linear_block, dim)
        blk["ln2_g"] = 1.0 + 0.02 * jax.random.normal(next(keys), (dim,), jnp.float32)
        blk["ln2_b"] = 0.02 * jax.random.normal(next(keys), (dim,), jnp.float32)
        vit["blocks"].append(blk)
    vit["head_w"], vit["head_b"] = lin(dim, num_classes)
    return {"stem": stem, "layer1": layer1, "vit": vit}


# ----------------------------------------------------------------------------
if __name__ == "__main__":
    IMG_DIM = 32          # spatial image size (feat_dim = 8, tokens = 64)
    BATCH = 2
    DIM = 64              # ViT embed dim (small for the demo)
    BLOCKS = 2
    HEADS = 2
    DIM_HEAD = 16
    DIM_LINEAR_BLOCK = 128
    NUM_CLASSES = 10

    key = jax.random.PRNGKey(0)
    kx, kp = jax.random.split(key)
    x = jax.random.normal(kx, (BATCH, 3, IMG_DIM, IMG_DIM), jnp.float32)  # NCHW
    params = init_params(kp, img_dim=IMG_DIM, dim=DIM, blocks=BLOCKS,
                         heads=HEADS, dim_head=DIM_HEAD,
                         dim_linear_block=DIM_LINEAR_BLOCK,
                         num_classes=NUM_CLASSES)

    fwd = jax.jit(functools.partial(resnet50_vit_forward, img_dim=IMG_DIM,
                                    heads=HEADS, dim_head=DIM_HEAD))
    logits = fwd(x, params)
    jax.block_until_ready(logits)
    assert logits.shape == (BATCH, NUM_CLASSES), logits.shape
    assert bool(jnp.all(jnp.isfinite(logits)))
    print("KERNEL_OK")
</pallas_src>

<mosaic_0001>
module attributes {stable_mosaic.version = 11 : i64} {
  func.func @_mm_fused_kernel(%arg0: i32, %arg1: memref<512x147xf32, #tpu.memory_space<vmem>>, %arg2: memref<147x64xbf16, #tpu.memory_space<vmem>>, %arg3: memref<1x64xf32, #tpu.memory_space<vmem>>, %arg4: memref<512x64xf32, #tpu.memory_space<vmem>>) attributes {dimension_semantics = [#tpu.dimension_semantics<parallel>], iteration_bounds = array<i64: 1>, scalar_prefetch = 0 : i64, scratch_operands = 0 : i64, tpu.core_type = #tpu.core_type<tc>, window_params = [{transform_indices = @transform_0, window_bounds = array<i64: 512, 147>}, {pipeline_mode = #tpu.pipeline_mode<synchronous>, transform_indices = @transform_1, window_bounds = array<i64: 147, 64>}, {pipeline_mode = #tpu.pipeline_mode<synchronous>, transform_indices = @transform_2, window_bounds = array<i64: 1, 64>}, {transform_indices = @transform_3, window_bounds = array<i64: 512, 64>}]} {
    %c0 = arith.constant 0 : index
    %c0_0 = arith.constant 0 : index
    %0 = vector.load %arg1[%c0, %c0_0] : memref<512x147xf32, #tpu.memory_space<vmem>>, vector<512x147xf32>
    %1 = arith.truncf %0 : vector<512x147xf32> to vector<512x147xbf16>
    %c0_1 = arith.constant 0 : index
    %c0_2 = arith.constant 0 : index
    %2 = vector.load %arg2[%c0_1, %c0_2] : memref<147x64xbf16, #tpu.memory_space<vmem>>, vector<147x64xbf16>
    %cst = arith.constant dense<0.000000e+00> : vector<512x64xf32>
    %3 = tpu.matmul %1, %2, %cst {dimension_numbers = #tpu.dot_dimension_numbers<[1], [0], [0], [1], [0, 0, 1, 1], [], []>} : vector<512x147xbf16>, vector<147x64xbf16>, vector<512x64xf32> -> vector<512x64xf32>
    %c0_3 = arith.constant 0 : index
    %c0_4 = arith.constant 0 : index
    %4 = vector.load %arg3[%c0_3, %c0_4] : memref<1x64xf32, #tpu.memory_space<vmem>>, vector<1x64xf32>
    %5 = vector.broadcast %4 : vector<1x64xf32> to vector<512x64xf32>
    %6 = arith.addf %3, %5 : vector<512x64xf32>
    %cst_5 = arith.constant 0.000000e+00 : f32
    %7 = vector.broadcast %cst_5 : f32 to vector<512x64xf32>
    %8 = arith.maximumf %6, %7 : vector<512x64xf32>
    %c0_6 = arith.constant 0 : index
    %c0_7 = arith.constant 0 : index
    %9 = vector.load %arg4[%c0_6, %c0_7] : memref<512x64xf32, #tpu.memory_space<vmem>>, vector<512x64xf32>
    tpu.vector_store %arg4[%c0_6, %c0_7], %8 {strides = array<i32>} : memref<512x64xf32, #tpu.memory_space<vmem>>, vector<512x64xf32>,
    return
  }
  func.func @transform_0(%arg0: i32) -> (i32, i32) {
    %c0_i32 = arith.constant 0 : i32
    %c0_i32_0 = arith.constant 0 : i32
    return %arg0, %c0_i32 : i32, i32
  }
  func.func @transform_1(%arg0: i32) -> (i32, i32) {
    %c0_i32 = arith.constant 0 : i32
    %c0_i32_0 = arith.constant 0 : i32
    %c0_i32_1 = arith.constant 0 : i32
    return %c0_i32, %c0_i32_0 : i32, i32
  }
  func.func @transform_2(%arg0: i32) -> (i32, i32) {
    %c0_i32 = arith.constant 0 : i32
    %c0_i32_0 = arith.constant 0 : i32
    %c0_i32_1 = arith.constant 0 : i32
    return %c0_i32, %c0_i32_0 : i32, i32
  }
  func.func @transform_3(%arg0: i32) -> (i32, i32) {
    %c0_i32 = arith.constant 0 : i32
    %c0_i32_0 = arith.constant 0 : i32
    return %arg0, %c0_i32 : i32, i32
  }
}

module attributes {stable_mosaic.version = 11 : i64} {
  func.func @_mm_fused_kernel(%arg0: i32, %arg1: memref<128x64xf32, #tpu.memory_space<vmem>>, %arg2: memref<64x64xbf16, #tpu.memory_space<vmem>>, %arg3: memref<1x64xf32, #tpu.memory_space<vmem>>, %arg4: memref<128x64xf32, #tpu.memory_space<vmem>>) attributes {dimension_semantics = [#tpu.dimension_semantics<parallel>], iteration_bounds = array<i64: 1>, scalar_prefetch = 0 : i64, scratch_operands = 0 : i64, tpu.core_type = #tpu.core_type<tc>, window_params = [{transform_indices = @transform_0, window_bounds = array<i64: 128, 64>}, {pipeline_mode = #tpu.pipeline_mode<synchronous>, transform_indices = @transform_1, window_bounds = array<i64: 64, 64>}, {pipeline_mode = #tpu.pipeline_mode<synchronous>, transform_indices = @transform_2, window_bounds = array<i64: 1, 64>}, {transform_indices = @transform_3, window_bounds = array<i64: 128, 64>}]} {
    %c0 = arith.constant 0 : index
    %c0_0 = arith.constant 0 : index
    %0 = vector.load %arg1[%c0, %c0_0] : memref<128x64xf32, #tpu.memory_space<vmem>>, vector<128x64xf32>
    %1 = arith.truncf %0 : vector<128x64xf32> to vector<128x64xbf16>
    %c0_1 = arith.constant 0 : index
    %c0_2 = arith.constant 0 : index
    %2 = vector.load %arg2[%c0_1, %c0_2] : memref<64x64xbf16, #tpu.memory_space<vmem>>, vector<64x64xbf16>
    %cst = arith.constant dense<0.000000e+00> : vector<128x64xf32>
    %3 = tpu.matmul %1, %2, %cst {dimension_numbers = #tpu.dot_dimension_numbers<[1], [0], [0], [1], [0, 0, 1, 1], [], []>} : vector<128x64xbf16>, vector<64x64xbf16>, vector<128x64xf32> -> vector<128x64xf32>
    %c0_3 = arith.constant 0 : index
    %c0_4 = arith.constant 0 : index
    %4 = vector.load %arg3[%c0_3, %c0_4] : memref<1x64xf32, #tpu.memory_space<vmem>>, vector<1x64xf32>
    %5 = vector.broadcast %4 : vector<1x64xf32> to vector<128x64xf32>
    %6 = arith.addf %3, %5 : vector<128x64xf32>
    %cst_5 = arith.constant 0.000000e+00 : f32
    %7 = vector.broadcast %cst_5 : f32 to vector<128x64xf32>
    %8 = arith.maximumf %6, %7 : vector<128x64xf32>
    %c0_6 = arith.constant 0 : index
    %c0_7 = arith.constant 0 : index
    %9 = vector.load %arg4[%c0_6, %c0_7] : memref<128x64xf32, #tpu.memory_space<vmem>>, vector<128x64xf32>
    tpu.vector_store %arg4[%c0_6, %c0_7], %8 {strides = array<i32>} : memref<128x64xf32, #tpu.memory_space<vmem>>, vector<128x64xf32>,
    return
  }
  func.func @transform_0(%arg0: i32) -> (i32, i32) {
    %c0_i32 = arith.constant 0 : i32
    %c0_i32_0 = arith.constant 0 : i32
    return %arg0, %c0_i32 : i32, i32
  }
  func.func @transform_1(%arg0: i32) -> (i32, i32) {
    %c0_i32 = arith.constant 0 : i32
    %c0_i32_0 = arith.constant 0 : i32
    %c0_i32_1 = arith.constant 0 : i32
    return %c0_i32, %c0_i32_0 : i32, i32
  }
  func.func @transform_2(%arg0: i32) -> (i32, i32) {
    %c0_i32 = arith.constant 0 : i32
    %c0_i32_0 = arith.constant 0 : i32
    %c0_i32_1 = arith.constant 0 : i32
    return %c0_i32, %c0_i32_0 : i32, i32
  }
  func.func @transform_3(%arg0: i32) -> (i32, i32) {
    %c0_i32 = arith.constant 0 : i32
    %c0_i32_0 = arith.constant 0 : i32
    return %arg0, %c0_i32 : i32, i32
  }
}

module attributes {stable_mosaic.version = 11 : i64} {
  func.func @_max9_kernel(%arg0: i32, %arg1: memref<9x128x64xf32, #tpu.memory_space<vmem>>, %arg2: memref<128x64xf32, #tpu.memory_space<vmem>>) attributes {dimension_semantics = [#tpu.dimension_semantics<parallel>], iteration_bounds = array<i64: 1>, scalar_prefetch = 0 : i64, scratch_operands = 0 : i64, tpu.core_type = #tpu.core_type<tc>, window_params = [{transform_indices = @transform_0, window_bounds = array<i64: 9, 128, 64>}, {transform_indices = @transform_1, window_bounds = array<i64: 128, 64>}]} {
    %c0 = arith.constant 0 : index
    %c0_0 = arith.constant 0 : index
    %c0_1 = arith.constant 0 : index
    %0 = vector.load %arg1[%c0, %c0_0, %c0_1] : memref<9x128x64xf32, #tpu.memory_space<vmem>>, vector<9x128x64xf32>
    %cst = arith.constant dense<0xFF800000> : vector<128x64xf32>
    %1 = vector.multi_reduction <maximumf>, %0, %cst [0] : vector<9x128x64xf32> to vector<128x64xf32>
    %c0_2 = arith.constant 0 : index
    %c0_3 = arith.constant 0 : index
    %2 = vector.load %arg2[%c0_2, %c0_3] : memref<128x64xf32, #tpu.memory_space<vmem>>, vector<128x64xf32>
    tpu.vector_store %arg2[%c0_2, %c0_3], %1 {strides = array<i32>} : memref<128x64xf32, #tpu.memory_space<vmem>>, vector<128x64xf32>,
    return
  }
  func.func @transform_0(%arg0: i32) -> (i32, i32, i32) {
    %c0_i32 = arith.constant 0 : i32
    %c0_i32_0 = arith.constant 0 : i32
    %c0_i32_1 = arith.constant 0 : i32
    return %c0_i32, %arg0, %c0_i32_0 : i32, i32, i32
  }
  func.func @transform_1(%arg0: i32) -> (i32, i32) {
    %c0_i32 = arith.constant 0 : i32
    %c0_i32_0 = arith.constant 0 : i32
    return %arg0, %c0_i32 : i32, i32
  }
}

module attributes {stable_mosaic.version = 11 : i64} {
  func.func @_mm_fused_kernel(%arg0: i32, %arg1: memref<128x64xf32, #tpu.memory_space<vmem>>, %arg2: memref<64x256xbf16, #tpu.memory_space<vmem>>, %arg3: memref<1x256xf32, #tpu.memory_space<vmem>>, %arg4: memref<128x256xf32, #tpu.memory_space<vmem>>) attributes {dimension_semantics = [#tpu.dimension_semantics<parallel>], iteration_bounds = array<i64: 1>, scalar_prefetch = 0 : i64, scratch_operands = 0 : i64, tpu.core_type = #tpu.core_type<tc>, window_params = [{transform_indices = @transform_0, window_bounds = array<i64: 128, 64>}, {pipeline_mode = #tpu.pipeline_mode<synchronous>, transform_indices = @transform_1, window_bounds = array<i64: 64, 256>}, {pipeline_mode = #tpu.pipeline_mode<synchronous>, transform_indices = @transform_2, window_bounds = array<i64: 1, 256>}, {transform_indices = @transform_3, window_bounds = array<i64: 128, 256>}]} {
    %c0 = arith.constant 0 : index
    %c0_0 = arith.constant 0 : index
    %0 = vector.load %arg1[%c0, %c0_0] : memref<128x64xf32, #tpu.memory_space<vmem>>, vector<128x64xf32>
    %1 = arith.truncf %0 : vector<128x64xf32> to vector<128x64xbf16>
    %c0_1 = arith.constant 0 : index
    %c0_2 = arith.constant 0 : index
    %2 = vector.load %arg2[%c0_1, %c0_2] : memref<64x256xbf16, #tpu.memory_space<vmem>>, vector<64x256xbf16>
    %cst = arith.constant dense<0.000000e+00> : vector<128x256xf32>
    %3 = tpu.matmul %1, %2, %cst {dimension_numbers = #tpu.dot_dimension_numbers<[1], [0], [0], [1], [0, 0, 1, 1], [], []>} : vector<128x64xbf16>, vector<64x256xbf16>, vector<128x256xf32> -> vector<128x256xf32>
    %c0_3 = arith.constant 0 : index
    %c0_4 = arith.constant 0 : index
    %4 = vector.load %arg3[%c0_3, %c0_4] : memref<1x256xf32, #tpu.memory_space<vmem>>, vector<1x256xf32>
    %5 = vector.broadcast %4 : vector<1x256xf32> to vector<128x256xf32>
    %6 = arith.addf %3, %5 : vector<128x256xf32>
    %c0_5 = arith.constant 0 : index
    %c0_6 = arith.constant 0 : index
    %7 = vector.load %arg4[%c0_5, %c0_6] : memref<128x256xf32, #tpu.memory_space<vmem>>, vector<128x256xf32>
    tpu.vector_store %arg4[%c0_5, %c0_6], %6 {strides = array<i32>} : memref<128x256xf32, #tpu.memory_space<vmem>>, vector<128x256xf32>,
    return
  }
  func.func @transform_0(%arg0: i32) -> (i32, i32) {
    %c0_i32 = arith.constant 0 : i32
    %c0_i32_0 = arith.constant 0 : i32
    return %arg0, %c0_i32 : i32, i32
  }
  func.func @transform_1(%arg0: i32) -> (i32, i32) {
    %c0_i32 = arith.constant 0 : i32
    %c0_i32_0 = arith.constant 0 : i32
    %c0_i32_1 = arith.constant 0 : i32
    return %c0_i32, %c0_i32_0 : i32, i32
  }
  func.func @transform_2(%arg0: i32) -> (i32, i32) {
    %c0_i32 = arith.constant 0 : i32
    %c0_i32_0 = arith.constant 0 : i32
    %c0_i32_1 = arith.constant 0 : i32
    return %c0_i32, %c0_i32_0 : i32, i32
  }
  func.func @transform_3(%arg0: i32) -> (i32, i32) {
    %c0_i32 = arith.constant 0 : i32
    %c0_i32_0 = arith.constant 0 : i32
    return %arg0, %c0_i32 : i32, i32
  }
}

module attributes {stable_mosaic.version = 11 : i64} {
  func.func @_mm_fused_kernel(%arg0: i32, %arg1: memref<128x576xf32, #tpu.memory_space<vmem>>, %arg2: memref<576x64xbf16, #tpu.memory_space<vmem>>, %arg3: memref<1x64xf32, #tpu.memory_space<vmem>>, %arg4: memref<128x64xf32, #tpu.memory_space<vmem>>) attributes {dimension_semantics = [#tpu.dimension_semantics<parallel>], iteration_bounds = array<i64: 1>, scalar_prefetch = 0 : i64, scratch_operands = 0 : i64, tpu.core_type = #tpu.core_type<tc>, window_params = [{transform_indices = @transform_0, window_bounds = array<i64: 128, 576>}, {pipeline_mode = #tpu.pipeline_mode<synchronous>, transform_indices = @transform_1, window_bounds = array<i64: 576, 64>}, {pipeline_mode = #tpu.pipeline_mode<synchronous>, transform_indices = @transform_2, window_bounds = array<i64: 1, 64>}, {transform_indices = @transform_3, window_bounds = array<i64: 128, 64>}]} {
    %c0 = arith.constant 0 : index
    %c0_0 = arith.constant 0 : index
    %0 = vector.load %arg1[%c0, %c0_0] : memref<128x576xf32, #tpu.memory_space<vmem>>, vector<128x576xf32>
    %1 = arith.truncf %0 : vector<128x576xf32> to vector<128x576xbf16>
    %c0_1 = arith.constant 0 : index
    %c0_2 = arith.constant 0 : index
    %2 = vector.load %arg2[%c0_1, %c0_2] : memref<576x64xbf16, #tpu.memory_space<vmem>>, vector<576x64xbf16>
    %cst = arith.constant dense<0.000000e+00> : vector<128x64xf32>
    %3 = tpu.matmul %1, %2, %cst {dimension_numbers = #tpu.dot_dimension_numbers<[1], [0], [0], [1], [0, 0, 1, 1], [], []>} : vector<128x576xbf16>, vector<576x64xbf16>, vector<128x64xf32> -> vector<128x64xf32>
    %c0_3 = arith.constant 0 : index
    %c0_4 = arith.constant 0 : index
    %4 = vector.load %arg3[%c0_3, %c0_4] : memref<1x64xf32, #tpu.memory_space<vmem>>, vector<1x64xf32>
    %5 = vector.broadcast %4 : vector<1x64xf32> to vector<128x64xf32>
    %6 = arith.addf %3, %5 : vector<128x64xf32>
    %cst_5 = arith.constant 0.000000e+00 : f32
    %7 = vector.broadcast %cst_5 : f32 to vector<128x64xf32>
    %8 = arith.maximumf %6, %7 : vector<128x64xf32>
    %c0_6 = arith.constant 0 : index
    %c0_7 = arith.constant 0 : index
    %9 = vector.load %arg4[%c0_6, %c0_7] : memref<128x64xf32, #tpu.memory_space<vmem>>, vector<128x64xf32>
    tpu.vector_store %arg4[%c0_6, %c0_7], %8 {strides = array<i32>} : memref<128x64xf32, #tpu.memory_space<vmem>>, vector<128x64xf32>,
    return
  }
  func.func @transform_0(%arg0: i32) -> (i32, i32) {
    %c0_i32 = arith.constant 0 : i32
    %c0_i32_0 = arith.constant 0 : i32
    return %arg0, %c0_i32 : i32, i32
  }
  func.func @transform_1(%arg0: i32) -> (i32, i32) {
    %c0_i32 = arith.constant 0 : i32
    %c0_i32_0 = arith.constant 0 : i32
    %c0_i32_1 = arith.constant 0 : i32
    return %c0_i32, %c0_i32_0 : i32, i32
  }
  func.func @transform_2(%arg0: i32) -> (i32, i32) {
    %c0_i32 = arith.constant 0 : i32
    %c0_i32_0 = arith.constant 0 : i32
    %c0_i32_1 = arith.constant 0 : i32
    return %c0_i32, %c0_i32_0 : i32, i32
  }
  func.func @transform_3(%arg0: i32) -> (i32, i32) {
    %c0_i32 = arith.constant 0 : i32
    %c0_i32_0 = arith.constant 0 : i32
    return %arg0, %c0_i32 : i32, i32
  }
}

module attributes {stable_mosaic.version = 11 : i64} {
  func.func @_mm_fused_kernel(%arg0: i32, %arg1: memref<128x256xf32, #tpu.memory_space<vmem>>, %arg2: memref<256x64xbf16, #tpu.memory_space<vmem>>, %arg3: memref<1x64xf32, #tpu.memory_space<vmem>>, %arg4: memref<128x64xf32, #tpu.memory_space<vmem>>) attributes {dimension_semantics = [#tpu.dimension_semantics<parallel>], iteration_bounds = array<i64: 1>, scalar_prefetch = 0 : i64, scratch_operands = 0 : i64, tpu.core_type = #tpu.core_type<tc>, window_params = [{transform_indices = @transform_0, window_bounds = array<i64: 128, 256>}, {pipeline_mode = #tpu.pipeline_mode<synchronous>, transform_indices = @transform_1, window_bounds = array<i64: 256, 64>}, {pipeline_mode = #tpu.pipeline_mode<synchronous>, transform_indices = @transform_2, window_bounds = array<i64: 1, 64>}, {transform_indices = @transform_3, window_bounds = array<i64: 128, 64>}]} {
    %c0 = arith.constant 0 : index
    %c0_0 = arith.constant 0 : index
    %0 = vector.load %arg1[%c0, %c0_0] : memref<128x256xf32, #tpu.memory_space<vmem>>, vector<128x256xf32>
    %1 = arith.truncf %0 : vector<128x256xf32> to vector<128x256xbf16>
    %c0_1 = arith.constant 0 : index
    %c0_2 = arith.constant 0 : index
    %2 = vector.load %arg2[%c0_1, %c0_2] : memref<256x64xbf16, #tpu.memory_space<vmem>>, vector<256x64xbf16>
    %cst = arith.constant dense<0.000000e+00> : vector<128x64xf32>
    %3 = tpu.matmul %1, %2, %cst {dimension_numbers = #tpu.dot_dimension_numbers<[1], [0], [0], [1], [0, 0, 1, 1], [], []>} : vector<128x256xbf16>, vector<256x64xbf16>, vector<128x64xf32> -> vector<128x64xf32>
    %c0_3 = arith.constant 0 : index
    %c0_4 = arith.constant 0 : index
    %4 = vector.load %arg3[%c0_3, %c0_4] : memref<1x64xf32, #tpu.memory_space<vmem>>, vector<1x64xf32>
    %5 = vector.broadcast %4 : vector<1x64xf32> to vector<128x64xf32>
    %6 = arith.addf %3, %5 : vector<128x64xf32>
    %cst_5 = arith.constant 0.000000e+00 : f32
    %7 = vector.broadcast %cst_5 : f32 to vector<128x64xf32>
    %8 = arith.maximumf %6, %7 : vector<128x64xf32>
    %c0_6 = arith.constant 0 : index
    %c0_7 = arith.constant 0 : index
    %9 = vector.load %arg4[%c0_6, %c0_7] : memref<128x64xf32, #tpu.memory_space<vmem>>, vector<128x64xf32>
    tpu.vector_store %arg4[%c0_6, %c0_7], %8 {strides = array<i32>} : memref<128x64xf32, #tpu.memory_space<vmem>>, vector<128x64xf32>,
    return
  }
  func.func @transform_0(%arg0: i32) -> (i32, i32) {
    %c0_i32 = arith.constant 0 : i32
    %c0_i32_0 = arith.constant 0 : i32
    return %arg0, %c0_i32 : i32, i32
  }
  func.func @transform_1(%arg0: i32) -> (i32, i32) {
    %c0_i32 = arith.constant 0 : i32
    %c0_i32_0 = arith.constant 0 : i32
    %c0_i32_1 = arith.constant 0 : i32
    return %c0_i32, %c0_i32_0 : i32, i32
  }
  func.func @transform_2(%arg0: i32) -> (i32, i32) {
    %c0_i32 = arith.constant 0 : i32
    %c0_i32_0 = arith.constant 0 : i32
    %c0_i32_1 = arith.constant 0 : i32
    return %c0_i32, %c0_i32_0 : i32, i32
  }
  func.func @transform_3(%arg0: i32) -> (i32, i32) {
    %c0_i32 = arith.constant 0 : i32
    %c0_i32_0 = arith.constant 0 : i32
    return %arg0, %c0_i32 : i32, i32
  }
}

module attributes {stable_mosaic.version = 11 : i64} {
  func.func @_mm_fused_kernel(%arg0: i32, %arg1: memref<128x64xf32, #tpu.memory_space<vmem>>, %arg2: memref<64x256xbf16, #tpu.memory_space<vmem>>, %arg3: memref<1x256xf32, #tpu.memory_space<vmem>>, %arg4: memref<128x256xf32, #tpu.memory_space<vmem>>, %arg5: memref<128x256xf32, #tpu.memory_space<vmem>>) attributes {dimension_semantics = [#tpu.dimension_semantics<parallel>], iteration_bounds = array<i64: 1>, scalar_prefetch = 0 : i64, scratch_operands = 0 : i64, tpu.core_type = #tpu.core_type<tc>, window_params = [{transform_indices = @transform_0, window_bounds = array<i64: 128, 64>}, {pipeline_mode = #tpu.pipeline_mode<synchronous>, transform_indices = @transform_1, window_bounds = array<i64: 64, 256>}, {pipeline_mode = #tpu.pipeline_mode<synchronous>, transform_indices = @transform_2, window_bounds = array<i64: 1, 256>}, {transform_indices = @transform_3, window_bounds = array<i64: 128, 256>}, {transform_indices = @transform_4, window_bounds = array<i64: 128, 256>}]} {
    %c0 = arith.constant 0 : index
    %c0_0 = arith.constant 0 : index
    %0 = vector.load %arg1[%c0, %c0_0] : memref<128x64xf32, #tpu.memory_space<vmem>>, vector<128x64xf32>
    %1 = arith.truncf %0 : vector<128x64xf32> to vector<128x64xbf16>
    %c0_1 = arith.constant 0 : index
    %c0_2 = arith.constant 0 : index
    %2 = vector.load %arg2[%c0_1, %c0_2] : memref<64x256xbf16, #tpu.memory_space<vmem>>, vector<64x256xbf16>
    %cst = arith.constant dense<0.000000e+00> : vector<128x256xf32>
    %3 = tpu.matmul %1, %2, %cst {dimension_numbers = #tpu.dot_dimension_numbers<[1], [0], [0], [1], [0, 0, 1, 1], [], []>} : vector<128x64xbf16>, vector<64x256xbf16>, vector<128x256xf32> -> vector<128x256xf32>
    %c0_3 = arith.constant 0 : index
    %c0_4 = arith.constant 0 : index
    %4 = vector.load %arg3[%c0_3, %c0_4] : memref<1x256xf32, #tpu.memory_space<vmem>>, vector<1x256xf32>
    %5 = vector.broadcast %4 : vector<1x256xf32> to vector<128x256xf32>
    %6 = arith.addf %3, %5 : vector<128x256xf32>
    %c0_5 = arith.constant 0 : index
    %c0_6 = arith.constant 0 : index
    %7 = vector.load %arg4[%c0_5, %c0_6] : memref<128x256xf32, #tpu.memory_space<vmem>>, vector<128x256xf32>
    %8 = arith.addf %6, %7 : vector<128x256xf32>
    %cst_7 = arith.constant 0.000000e+00 : f32
    %9 = vector.broadcast %cst_7 : f32 to vector<128x256xf32>
    %10 = arith.maximumf %8, %9 : vector<128x256xf32>
    %c0_8 = arith.constant 0 : index
    %c0_9 = arith.constant 0 : index
    %11 = vector.load %arg5[%c0_8, %c0_9] : memref<128x256xf32, #tpu.memory_space<vmem>>, vector<128x256xf32>
    tpu.vector_store %arg5[%c0_8, %c0_9], %10 {strides = array<i32>} : memref<128x256xf32, #tpu.memory_space<vmem>>, vector<128x256xf32>,
    return
  }
  func.func @transform_0(%arg0: i32) -> (i32, i32) {
    %c0_i32 = arith.constant 0 : i32
    %c0_i32_0 = arith.constant 0 : i32
    return %arg0, %c0_i32 : i32, i32
  }
  func.func @transform_1(%arg0: i32) -> (i32, i32) {
    %c0_i32 = arith.constant 0 : i32
    %c0_i32_0 = arith.constant 0 : i32
    %c0_i32_1 = arith.constant 0 : i32
    return %c0_i32, %c0_i32_0 : i32, i32
  }
  func.func @transform_2(%arg0: i32) -> (i32, i32) {
    %c0_i32 = arith.constant 0 : i32
    %c0_i32_0 = arith.constant 0 : i32
    %c0_i32_1 = arith.constant 0 : i32
    return %c0_i32, %c0_i32_0 : i32, i32
  }
  func.func @transform_3(%arg0: i32) -> (i32, i32) {
    %c0_i32 = arith.constant 0 : i32
    %c0_i32_0 = arith.constant 0 : i32
    return %arg0, %c0_i32 : i32, i32
  }
  func.func @transform_4(%arg0: i32) -> (i32, i32) {
    %c0_i32 = arith.constant 0 : i32
    %c0_i32_0 = arith.constant 0 : i32
    return %arg0, %c0_i32 : i32, i32
  }
}

module attributes {stable_mosaic.version = 11 : i64} {
  func.func @_mm_fused_kernel(%arg0: i32, %arg1: memref<128x256xf32, #tpu.memory_space<vmem>>, %arg2: memref<256x64xbf16, #tpu.memory_space<vmem>>, %arg3: memref<1x64xf32, #tpu.memory_space<vmem>>, %arg4: memref<128x64xf32, #tpu.memory_space<vmem>>) attributes {dimension_semantics = [#tpu.dimension_semantics<parallel>], iteration_bounds = array<i64: 1>, scalar_prefetch = 0 : i64, scratch_operands = 0 : i64, tpu.core_type = #tpu.core_type<tc>, window_params = [{transform_indices = @transform_0, window_bounds = array<i64: 128, 256>}, {pipeline_mode = #tpu.pipeline_mode<synchronous>, transform_indices = @transform_1, window_bounds = array<i64: 256, 64>}, {pipeline_mode = #tpu.pipeline_mode<synchronous>, transform_indices = @transform_2, window_bounds = array<i64: 1, 64>}, {transform_indices = @transform_3, window_bounds = array<i64: 128, 64>}]} {
    %c0 = arith.constant 0 : index
    %c0_0 = arith.constant 0 : index
    %0 = vector.load %arg1[%c0, %c0_0] : memref<128x256xf32, #tpu.memory_space<vmem>>, vector<128x256xf32>
    %1 = arith.truncf %0 : vector<128x256xf32> to vector<128x256xbf16>
    %c0_1 = arith.constant 0 : index
    %c0_2 = arith.constant 0 : index
    %2 = vector.load %arg2[%c0_1, %c0_2] : memref<256x64xbf16, #tpu.memory_space<vmem>>, vector<256x64xbf16>
    %cst = arith.constant dense<0.000000e+00> : vector<128x64xf32>
    %3 = tpu.matmul %1, %2, %cst {dimension_numbers = #tpu.dot_dimension_numbers<[1], [0], [0], [1], [0, 0, 1, 1], [], []>} : vector<128x256xbf16>, vector<256x64xbf16>, vector<128x64xf32> -> vector<128x64xf32>
    %c0_3 = arith.constant 0 : index
    %c0_4 = arith.constant 0 : index
    %4 = vector.load %arg3[%c0_3, %c0_4] : memref<1x64xf32, #tpu.memory_space<vmem>>, vector<1x64xf32>
    %5 = vector.broadcast %4 : vector<1x64xf32> to vector<128x64xf32>
    %6 = arith.addf %3, %5 : vector<128x64xf32>
    %c0_5 = arith.constant 0 : index
    %c0_6 = arith.constant 0 : index
    %7 = vector.load %arg4[%c0_5, %c0_6] : memref<128x64xf32, #tpu.memory_space<vmem>>, vector<128x64xf32>
    tpu.vector_store %arg4[%c0_5, %c0_6], %6 {strides = array<i32>} : memref<128x64xf32, #tpu.memory_space<vmem>>, vector<128x64xf32>,
    return
  }
  func.func @transform_0(%arg0: i32) -> (i32, i32) {
    %c0_i32 = arith.constant 0 : i32
    %c0_i32_0 = arith.constant 0 : i32
    return %arg0, %c0_i32 : i32, i32
  }
  func.func @transform_1(%arg0: i32) -> (i32, i32) {
    %c0_i32 = arith.constant 0 : i32
    %c0_i32_0 = arith.constant 0 : i32
    %c0_i32_1 = arith.constant 0 : i32
    return %c0_i32, %c0_i32_0 : i32, i32
  }
  func.func @transform_2(%arg0: i32) -> (i32, i32) {
    %c0_i32 = arith.constant 0 : i32
    %c0_i32_0 = arith.constant 0 : i32
    %c0_i32_1 = arith.constant 0 : i32
    return %c0_i32, %c0_i32_0 : i32, i32
  }
  func.func @transform_3(%arg0: i32) -> (i32, i32) {
    %c0_i32 = arith.constant 0 : i32
    %c0_i32_0 = arith.constant 0 : i32
    return %arg0, %c0_i32 : i32, i32
  }
}

module attributes {stable_mosaic.version = 11 : i64} {
  func.func @_mm_fused_kernel(%arg0: i32, %arg1: memref<136x64xf32, #tpu.memory_space<vmem>>, %arg2: memref<64x96xbf16, #tpu.memory_space<vmem>>, %arg3: memref<1x96xf32, #tpu.memory_space<vmem>>, %arg4: memref<136x96xf32, #tpu.memory_space<vmem>>) attributes {dimension_semantics = [#tpu.dimension_semantics<parallel>], iteration_bounds = array<i64: 1>, scalar_prefetch = 0 : i64, scratch_operands = 0 : i64, tpu.core_type = #tpu.core_type<tc>, window_params = [{transform_indices = @transform_0, window_bounds = array<i64: 136, 64>}, {pipeline_mode = #tpu.pipeline_mode<synchronous>, transform_indices = @transform_1, window_bounds = array<i64: 64, 96>}, {pipeline_mode = #tpu.pipeline_mode<synchronous>, transform_indices = @transform_2, window_bounds = array<i64: 1, 96>}, {transform_indices = @transform_3, window_bounds = array<i64: 136, 96>}]} {
    %c0 = arith.constant 0 : index
    %c0_0 = arith.constant 0 : index
    %0 = vector.load %arg1[%c0, %c0_0] : memref<136x64xf32, #tpu.memory_space<vmem>>, vector<136x64xf32>
    %1 = arith.truncf %0 : vector<136x64xf32> to vector<136x64xbf16>
    %c0_1 = arith.constant 0 : index
    %c0_2 = arith.constant 0 : index
    %2 = vector.load %arg2[%c0_1, %c0_2] : memref<64x96xbf16, #tpu.memory_space<vmem>>, vector<64x96xbf16>
    %cst = arith.constant dense<0.000000e+00> : vector<136x96xf32>
    %3 = tpu.matmul %1, %2, %cst {dimension_numbers = #tpu.dot_dimension_numbers<[1], [0], [0], [1], [0, 0, 1, 1], [], []>} : vector<136x64xbf16>, vector<64x96xbf16>, vector<136x96xf32> -> vector<136x96xf32>
    %c0_3 = arith.constant 0 : index
    %c0_4 = arith.constant 0 : index
    %4 = vector.load %arg3[%c0_3, %c0_4] : memref<1x96xf32, #tpu.memory_space<vmem>>, vector<1x96xf32>
    %5 = vector.broadcast %4 : vector<1x96xf32> to vector<136x96xf32>
    %6 = arith.addf %3, %5 : vector<136x96xf32>
    %c0_5 = arith.constant 0 : index
    %c0_6 = arith.constant 0 : index
    %7 = vector.load %arg4[%c0_5, %c0_6] : memref<136x96xf32, #tpu.memory_space<vmem>>, vector<136x96xf32>
    tpu.vector_store %arg4[%c0_5, %c0_6], %6 {strides = array<i32>} : memref<136x96xf32, #tpu.memory_space<vmem>>, vector<136x96xf32>,
    return
  }
  func.func @transform_0(%arg0: i32) -> (i32, i32) {
    %c0_i32 = arith.constant 0 : i32
    %c0_i32_0 = arith.constant 0 : i32
    return %arg0, %c0_i32 : i32, i32
  }
  func.func @transform_1(%arg0: i32) -> (i32, i32) {
    %c0_i32 = arith.constant 0 : i32
    %c0_i32_0 = arith.constant 0 : i32
    %c0_i32_1 = arith.constant 0 : i32
    return %c0_i32, %c0_i32_0 : i32, i32
  }
  func.func @transform_2(%arg0: i32) -> (i32, i32) {
    %c0_i32 = arith.constant 0 : i32
    %c0_i32_0 = arith.constant 0 : i32
    %c0_i32_1 = arith.constant 0 : i32
    return %c0_i32, %c0_i32_0 : i32, i32
  }
  func.func @transform_3(%arg0: i32) -> (i32, i32) {
    %c0_i32 = arith.constant 0 : i32
    %c0_i32_0 = arith.constant 0 : i32
    return %arg0, %c0_i32 : i32, i32
  }
}

module attributes {stable_mosaic.version = 11 : i64} {
  func.func @_attn_kernel(%arg0: i32, %arg1: memref<1x65x96xf32, #tpu.memory_space<vmem>>, %arg2: memref<1x65x32xf32, #tpu.memory_space<vmem>>) attributes {dimension_semantics = [#tpu.dimension_semantics<parallel>], iteration_bounds = array<i64: 2>, scalar_prefetch = 0 : i64, scratch_operands = 0 : i64, tpu.core_type = #tpu.core_type<tc>, window_params = [{transform_indices = @transform_0, window_bounds = array<i64: 1, 65, 96>}, {transform_indices = @transform_1, window_bounds = array<i64: 1, 65, 32>}]} {
    %c0 = arith.constant 0 : index
    %c0_0 = arith.constant 0 : index
    %c0_1 = arith.constant 0 : index
    %0 = vector.load %arg1[%c0, %c0_0, %c0_1] : memref<1x65x96xf32, #tpu.memory_space<vmem>>, vector<1x65x96xf32>
    %1 = vector.shape_cast %0 : vector<1x65x96xf32> to vector<65x96xf32>
    %2 = vector.extract_strided_slice %1 {offsets = [0, 0], sizes = [65, 16], strides = [1, 1]} : vector<65x96xf32> to vector<65x16xf32>
    %3 = arith.truncf %2 : vector<65x16xf32> to vector<65x16xbf16>
    %4 = vector.extract_strided_slice %1 {offsets = [0, 32], sizes = [65, 16], strides = [1, 1]} : vector<65x96xf32> to vector<65x16xf32>
    %5 = arith.truncf %4 : vector<65x16xf32> to vector<65x16xbf16>
    %6 = vector.extract_strided_slice %1 {offsets = [0, 64], sizes = [65, 16], strides = [1, 1]} : vector<65x96xf32> to vector<65x16xf32>
    %7 = arith.truncf %6 : vector<65x16xf32> to vector<65x16xbf16>
    %cst = arith.constant dense<0.000000e+00> : vector<65x65xf32>
    %8 = tpu.matmul %3, %5, %cst {dimension_numbers = #tpu.dot_dimension_numbers<[1], [1], [0], [0], [0, 0, 1, 0], [], []>} : vector<65x16xbf16>, vector<65x16xbf16>, vector<65x65xf32> -> vector<65x65xf32>
    %cst_2 = arith.constant 2.500000e-01 : f32
    %9 = vector.broadcast %cst_2 : f32 to vector<65x65xf32>
    %10 = arith.mulf %8, %9 : vector<65x65xf32>
    %cst_3 = arith.constant dense<0xFF800000> : vector<65xf32>
    %11 = vector.multi_reduction <maximumf>, %10, %cst_3 [1] : vector<65x65xf32> to vector<65xf32>
    %12 = vector.shape_cast %11 : vector<65xf32> to vector<65x1xf32>
    %13 = vector.broadcast %12 : vector<65x1xf32> to vector<65x65xf32>
    %14 = arith.subf %10, %13 : vector<65x65xf32>
    %15 = math.exp %14 : vector<65x65xf32>
    %cst_4 = arith.constant dense<0.000000e+00> : vector<65xf32>
    %16 = vector.multi_reduction <add>, %15, %cst_4 [1] : vector<65x65xf32> to vector<65xf32>
    %17 = vector.shape_cast %16 : vector<65xf32> to vector<65x1xf32>
    %18 = arith.truncf %15 : vector<65x65xf32> to vector<65x65xbf16>
    %cst_5 = arith.constant dense<0.000000e+00> : vector<65x16xf32>
    %19 = tpu.matmul %18, %7, %cst_5 {dimension_numbers = #tpu.dot_dimension_numbers<[1], [0], [0], [1], [0, 0, 1, 1], [], []>} : vector<65x65xbf16>, vector<65x16xbf16>, vector<65x16xf32> -> vector<65x16xf32>
    %20 = tpu.reciprocal %17 {approx = true} : vector<65x1xf32> -> vector<65x1xf32>
    %21 = vector.broadcast %20 : vector<65x1xf32> to vector<65x16xf32>
    %22 = arith.mulf %19, %21 : vector<65x16xf32>
    %23 = vector.extract_strided_slice %1 {offsets = [0, 16], sizes = [65, 16], strides = [1, 1]} : vector<65x96xf32> to vector<65x16xf32>
    %24 = arith.truncf %23 : vector<65x16xf32> to vector<65x16xbf16>
    %25 = vector.extract_strided_slice %1 {offsets = [0, 48], sizes = [65, 16], strides = [1, 1]} : vector<65x96xf32> to vector<65x16xf32>
    %26 = arith.truncf %25 : vector<65x16xf32> to vector<65x16xbf16>
    %27 = vector.extract_strided_slice %1 {offsets = [0, 80], sizes = [65, 16], strides = [1, 1]} : vector<65x96xf32> to vector<65x16xf32>
    %28 = arith.truncf %27 : vector<65x16xf32> to vector<65x16xbf16>
    %cst_6 = arith.constant dense<0.000000e+00> : vector<65x65xf32>
    %29 = tpu.matmul %24, %26, %cst_6 {dimension_numbers = #tpu.dot_dimension_numbers<[1], [1], [0], [0], [0, 0, 1, 0], [], []>} : vector<65x16xbf16>, vector<65x16xbf16>, vector<65x65xf32> -> vector<65x65xf32>
    %cst_7 = arith.constant 2.500000e-01 : f32
    %30 = vector.broadcast %cst_7 : f32 to vector<65x65xf32>
    %31 = arith.mulf %29, %30 : vector<65x65xf32>
    %cst_8 = arith.constant dense<0xFF800000> : vector<65xf32>
    %32 = vector.multi_reduction <maximumf>, %31, %cst_8 [1] : vector<65x65xf32> to vector<65xf32>
    %33 = vector.shape_cast %32 : vector<65xf32> to vector<65x1xf32>
    %34 = vector.broadcast %33 : vector<65x1xf32> to vector<65x65xf32>
    %35 = arith.subf %31, %34 : vector<65x65xf32>
    %36 = math.exp %35 : vector<65x65xf32>
    %cst_9 = arith.constant dense<0.000000e+00> : vector<65xf32>
    %37 = vector.multi_reduction <add>, %36, %cst_9 [1] : vector<65x65xf32> to vector<65xf32>
    %38 = vector.shape_cast %37 : vector<65xf32> to vector<65x1xf32>
    %39 = arith.truncf %36 : vector<65x65xf32> to vector<65x65xbf16>
    %cst_10 = arith.constant dense<0.000000e+00> : vector<65x16xf32>
    %40 = tpu.matmul %39, %28, %cst_10 {dimension_numbers = #tpu.dot_dimension_numbers<[1], [0], [0], [1], [0, 0, 1, 1], [], []>} : vector<65x65xbf16>, vector<65x16xbf16>, vector<65x16xf32> -> vector<65x16xf32>
    %41 = tpu.reciprocal %38 {approx = true} : vector<65x1xf32> -> vector<65x1xf32>
    %42 = vector.broadcast %41 : vector<65x1xf32> to vector<65x16xf32>
    %43 = arith.mulf %40, %42 : vector<65x16xf32>
    %44 = tpu.concatenate %22, %43 in 1 : vector<65x16xf32>, vector<65x16xf32> -> vector<65x32xf32>
    %c0_11 = arith.constant 0 : index
    %c0_12 = arith.constant 0 : index
    %c0_13 = arith.constant 0 : index
    %45 = vector.load %arg2[%c0_11, %c0_12, %c0_13] : memref<1x65x32xf32, #tpu.memory_space<vmem>>, vector<1x65x32xf32>
    %46 = vector.shape_cast %45 : vector<1x65x32xf32> to vector<65x32xf32>
    %47 = vector.shape_cast %44 : vector<65x32xf32> to vector<1x65x32xf32>
    tpu.vector_store %arg2[%c0_11, %c0_12, %c0_13], %47 {strides = array<i32>} : memref<1x65x32xf32, #tpu.memory_space<vmem>>, vector<1x65x32xf32>,
    return
  }
  func.func @transform_0(%arg0: i32) -> (i32, i32, i32) {
    %c0_i32 = arith.constant 0 : i32
    %c0_i32_0 = arith.constant 0 : i32
    %c0_i32_1 = arith.constant 0 : i32
    return %arg0, %c0_i32, %c0_i32_0 : i32, i32, i32
  }
  func.func @transform_1(%arg0: i32) -> (i32, i32, i32) {
    %c0_i32 = arith.constant 0 : i32
    %c0_i32_0 = arith.constant 0 : i32
    %c0_i32_1 = arith.constant 0 : i32
    return %arg0, %c0_i32, %c0_i32_0 : i32, i32, i32
  }
}

module attributes {stable_mosaic.version = 11 : i64} {
  func.func @_mm_fused_kernel(%arg0: i32, %arg1: memref<136x32xf32, #tpu.memory_space<vmem>>, %arg2: memref<32x64xbf16, #tpu.memory_space<vmem>>, %arg3: memref<1x64xf32, #tpu.memory_space<vmem>>, %arg4: memref<136x64xf32, #tpu.memory_space<vmem>>, %arg5: memref<1x64xf32, #tpu.memory_space<vmem>>, %arg6: memref<1x64xf32, #tpu.memory_space<vmem>>, %arg7: memref<136x64xf32, #tpu.memory_space<vmem>>) attributes {dimension_semantics = [#tpu.dimension_semantics<parallel>], iteration_bounds = array<i64: 1>, scalar_prefetch = 0 : i64, scratch_operands = 0 : i64, tpu.core_type = #tpu.core_type<tc>, window_params = [{transform_indices = @transform_0, window_bounds = array<i64: 136, 32>}, {pipeline_mode = #tpu.pipeline_mode<synchronous>, transform_indices = @transform_1, window_bounds = array<i64: 32, 64>}, {pipeline_mode = #tpu.pipeline_mode<synchronous>, transform_indices = @transform_2, window_bounds = array<i64: 1, 64>}, {transform_indices = @transform_3, window_bounds = array<i64: 136, 64>}, {pipeline_mode = #tpu.pipeline_mode<synchronous>, transform_indices = @transform_4, window_bounds = array<i64: 1, 64>}, {pipeline_mode = #tpu.pipeline_mode<synchronous>, transform_indices = @transform_5, window_bounds = array<i64: 1, 64>}, {transform_indices = @transform_6, window_bounds = array<i64: 136, 64>}]} {
    %c0 = arith.constant 0 : index
    %c0_0 = arith.constant 0 : index
    %0 = vector.load %arg1[%c0, %c0_0] : memref<136x32xf32, #tpu.memory_space<vmem>>, vector<136x32xf32>
    %1 = arith.truncf %0 : vector<136x32xf32> to vector<136x32xbf16>
    %c0_1 = arith.constant 0 : index
    %c0_2 = arith.constant 0 : index
    %2 = vector.load %arg2[%c0_1, %c0_2] : memref<32x64xbf16, #tpu.memory_space<vmem>>, vector<32x64xbf16>
    %cst = arith.constant dense<0.000000e+00> : vector<136x64xf32>
    %3 = tpu.matmul %1, %2, %cst {dimension_numbers = #tpu.dot_dimension_numbers<[1], [0], [0], [1], [0, 0, 1, 1], [], []>} : vector<136x32xbf16>, vector<32x64xbf16>, vector<136x64xf32> -> vector<136x64xf32>
    %c0_3 = arith.constant 0 : index
    %c0_4 = arith.constant 0 : index
    %4 = vector.load %arg3[%c0_3, %c0_4] : memref<1x64xf32, #tpu.memory_space<vmem>>, vector<1x64xf32>
    %5 = vector.broadcast %4 : vector<1x64xf32> to vector<136x64xf32>
    %6 = arith.addf %3, %5 : vector<136x64xf32>
    %c0_5 = arith.constant 0 : index
    %c0_6 = arith.constant 0 : index
    %7 = vector.load %arg4[%c0_5, %c0_6] : memref<136x64xf32, #tpu.memory_space<vmem>>, vector<136x64xf32>
    %8 = arith.addf %6, %7 : vector<136x64xf32>
    %cst_7 = arith.constant dense<0.000000e+00> : vector<136xf32>
    %9 = vector.multi_reduction <add>, %8, %cst_7 [1] : vector<136x64xf32> to vector<136xf32>
    %10 = vector.shape_cast %9 : vector<136xf32> to vector<136x1xf32>
    %cst_8 = arith.constant 6.400000e+01 : f32
    %11 = vector.broadcast %cst_8 : f32 to vector<136x1xf32>
    %12 = arith.divf %10, %11 : vector<136x1xf32>
    %13 = vector.broadcast %12 : vector<136x1xf32> to vector<136x64xf32>
    %14 = arith.subf %8, %13 : vector<136x64xf32>
    %15 = arith.mulf %14, %14 : vector<136x64xf32>
    %cst_9 = arith.constant dense<0.000000e+00> : vector<136xf32>
    %16 = vector.multi_reduction <add>, %15, %cst_9 [1] : vector<136x64xf32> to vector<136xf32>
    %17 = vector.shape_cast %16 : vector<136xf32> to vector<136x1xf32>
    %cst_10 = arith.constant 6.400000e+01 : f32
    %18 = vector.broadcast %cst_10 : f32 to vector<136x1xf32>
    %19 = arith.divf %17, %18 : vector<136x1xf32>
    %20 = vector.broadcast %12 : vector<136x1xf32> to vector<136x64xf32>
    %21 = arith.subf %8, %20 : vector<136x64xf32>
    %cst_11 = arith.constant 9.99999974E-6 : f32
    %22 = vector.broadcast %cst_11 : f32 to vector<136x1xf32>
    %23 = arith.addf %19, %22 : vector<136x1xf32>
    %24 = math.rsqrt %23 : vector<136x1xf32>
    %25 = vector.broadcast %24 : vector<136x1xf32> to vector<136x64xf32>
    %26 = arith.mulf %21, %25 : vector<136x64xf32>
    %c0_12 = arith.constant 0 : index
    %c0_13 = arith.constant 0 : index
    %27 = vector.load %arg5[%c0_12, %c0_13] : memref<1x64xf32, #tpu.memory_space<vmem>>, vector<1x64xf32>
    %28 = vector.broadcast %27 : vector<1x64xf32> to vector<136x64xf32>
    %29 = arith.mulf %26, %28 : vector<136x64xf32>
    %c0_14 = arith.constant 0 : index
    %c0_15 = arith.constant 0 : index
    %30 = vector.load %arg6[%c0_14, %c0_15] : memref<1x64xf32, #tpu.memory_space<vmem>>, vector<1x64xf32>
    %31 = vector.broadcast %30 : vector<1x64xf32> to vector<136x64xf32>
    %32 = arith.addf %29, %31 : vector<136x64xf32>
    %c0_16 = arith.constant 0 : index
    %c0_17 = arith.constant 0 : index
    %33 = vector.load %arg7[%c0_16, %c0_17] : memref<136x64xf32, #tpu.memory_space<vmem>>, vector<136x64xf32>
    tpu.vector_store %arg7[%c0_16, %c0_17], %32 {strides = array<i32>} : memref<136x64xf32, #tpu.memory_space<vmem>>, vector<136x64xf32>,
    return
  }
  func.func @transform_0(%arg0: i32) -> (i32, i32) {
    %c0_i32 = arith.constant 0 : i32
    %c0_i32_0 = arith.constant 0 : i32
    return %arg0, %c0_i32 : i32, i32
  }
  func.func @transform_1(%arg0: i32) -> (i32, i32) {
    %c0_i32 = arith.constant 0 : i32
    %c0_i32_0 = arith.constant 0 : i32
    %c0_i32_1 = arith.constant 0 : i32
    return %c0_i32, %c0_i32_0 : i32, i32
  }
  func.func @transform_2(%arg0: i32) -> (i32, i32) {
    %c0_i32 = arith.constant 0 : i32
    %c0_i32_0 = arith.constant 0 : i32
    %c0_i32_1 = arith.constant 0 : i32
    return %c0_i32, %c0_i32_0 : i32, i32
  }
  func.func @transform_3(%arg0: i32) -> (i32, i32) {
    %c0_i32 = arith.constant 0 : i32
    %c0_i32_0 = arith.constant 0 : i32
    return %arg0, %c0_i32 : i32, i32
  }
  func.func @transform_4(%arg0: i32) -> (i32, i32) {
    %c0_i32 = arith.constant 0 : i32
    %c0_i32_0 = arith.constant 0 : i32
    %c0_i32_1 = arith.constant 0 : i32
    return %c0_i32, %c0_i32_0 : i32, i32
  }
  func.func @transform_5(%arg0: i32) -> (i32, i32) {
    %c0_i32 = arith.constant 0 : i32
    %c0_i32_0 = arith.constant 0 : i32
    %c0_i32_1 = arith.constant 0 : i32
    return %c0_i32, %c0_i32_0 : i32, i32
  }
  func.func @transform_6(%arg0: i32) -> (i32, i32) {
    %c0_i32 = arith.constant 0 : i32
    %c0_i32_0 = arith.constant 0 : i32
    return %arg0, %c0_i32 : i32, i32
  }
}

module attributes {stable_mosaic.version = 11 : i64} {
  func.func @_mm_fused_kernel(%arg0: i32, %arg1: memref<136x64xf32, #tpu.memory_space<vmem>>, %arg2: memref<64x128xbf16, #tpu.memory_space<vmem>>, %arg3: memref<1x128xf32, #tpu.memory_space<vmem>>, %arg4: memref<136x128xf32, #tpu.memory_space<vmem>>) attributes {dimension_semantics = [#tpu.dimension_semantics<parallel>], iteration_bounds = array<i64: 1>, scalar_prefetch = 0 : i64, scratch_operands = 0 : i64, tpu.core_type = #tpu.core_type<tc>, window_params = [{transform_indices = @transform_0, window_bounds = array<i64: 136, 64>}, {pipeline_mode = #tpu.pipeline_mode<synchronous>, transform_indices = @transform_1, window_bounds = array<i64: 64, 128>}, {pipeline_mode = #tpu.pipeline_mode<synchronous>, transform_indices = @transform_2, window_bounds = array<i64: 1, 128>}, {transform_indices = @transform_3, window_bounds = array<i64: 136, 128>}]} {
    %c0 = arith.constant 0 : index
    %c0_0 = arith.constant 0 : index
    %0 = vector.load %arg1[%c0, %c0_0] : memref<136x64xf32, #tpu.memory_space<vmem>>, vector<136x64xf32>
    %1 = arith.truncf %0 : vector<136x64xf32> to vector<136x64xbf16>
    %c0_1 = arith.constant 0 : index
    %c0_2 = arith.constant 0 : index
    %2 = vector.load %arg2[%c0_1, %c0_2] : memref<64x128xbf16, #tpu.memory_space<vmem>>, vector<64x128xbf16>
    %cst = arith.constant dense<0.000000e+00> : vector<136x128xf32>
    %3 = tpu.matmul %1, %2, %cst {dimension_numbers = #tpu.dot_dimension_numbers<[1], [0], [0], [1], [0, 0, 1, 1], [], []>} : vector<136x64xbf16>, vector<64x128xbf16>, vector<136x128xf32> -> vector<136x128xf32>
    %c0_3 = arith.constant 0 : index
    %c0_4 = arith.constant 0 : index
    %4 = vector.load %arg3[%c0_3, %c0_4] : memref<1x128xf32, #tpu.memory_space<vmem>>, vector<1x128xf32>
    %5 = vector.broadcast %4 : vector<1x128xf32> to vector<136x128xf32>
    %6 = arith.addf %3, %5 : vector<136x128xf32>
    %7 = arith.mulf %6, %6 : vector<136x128xf32>
    %8 = arith.mulf %6, %7 : vector<136x128xf32>
    %cst_5 = arith.constant 4.471500e-02 : f32
    %9 = vector.broadcast %cst_5 : f32 to vector<136x128xf32>
    %10 = arith.mulf %9, %8 : vector<136x128xf32>
    %11 = arith.addf %6, %10 : vector<136x128xf32>
    %cst_6 = arith.constant 0.797884583 : f32
    %12 = vector.broadcast %cst_6 : f32 to vector<136x128xf32>
    %13 = arith.mulf %12, %11 : vector<136x128xf32>
    %14 = math.tanh %13 : vector<136x128xf32>
    %cst_7 = arith.constant 1.000000e+00 : f32
    %15 = vector.broadcast %cst_7 : f32 to vector<136x128xf32>
    %16 = arith.addf %15, %14 : vector<136x128xf32>
    %cst_8 = arith.constant 5.000000e-01 : f32
    %17 = vector.broadcast %cst_8 : f32 to vector<136x128xf32>
    %18 = arith.mulf %17, %16 : vector<136x128xf32>
    %19 = arith.mulf %6, %18 : vector<136x128xf32>
    %c0_9 = arith.constant 0 : index
    %c0_10 = arith.constant 0 : index
    %20 = vector.load %arg4[%c0_9, %c0_10] : memref<136x128xf32, #tpu.memory_space<vmem>>, vector<136x128xf32>
    tpu.vector_store %arg4[%c0_9, %c0_10], %19 {strides = array<i32>} : memref<136x128xf32, #tpu.memory_space<vmem>>, vector<136x128xf32>,
    return
  }
  func.func @transform_0(%arg0: i32) -> (i32, i32) {
    %c0_i32 = arith.constant 0 : i32
    %c0_i32_0 = arith.constant 0 : i32
    return %arg0, %c0_i32 : i32, i32
  }
  func.func @transform_1(%arg0: i32) -> (i32, i32) {
    %c0_i32 = arith.constant 0 : i32
    %c0_i32_0 = arith.constant 0 : i32
    %c0_i32_1 = arith.constant 0 : i32
    return %c0_i32, %c0_i32_0 : i32, i32
  }
  func.func @transform_2(%arg0: i32) -> (i32, i32) {
    %c0_i32 = arith.constant 0 : i32
    %c0_i32_0 = arith.constant 0 : i32
    %c0_i32_1 = arith.constant 0 : i32
    return %c0_i32, %c0_i32_0 : i32, i32
  }
  func.func @transform_3(%arg0: i32) -> (i32, i32) {
    %c0_i32 = arith.constant 0 : i32
    %c0_i32_0 = arith.constant 0 : i32
    return %arg0, %c0_i32 : i32, i32
  }
}

module attributes {stable_mosaic.version = 11 : i64} {
  func.func @_mm_fused_kernel(%arg0: i32, %arg1: memref<136x128xf32, #tpu.memory_space<vmem>>, %arg2: memref<128x64xbf16, #tpu.memory_space<vmem>>, %arg3: memref<1x64xf32, #tpu.memory_space<vmem>>, %arg4: memref<136x64xf32, #tpu.memory_space<vmem>>, %arg5: memref<1x64xf32, #tpu.memory_space<vmem>>, %arg6: memref<1x64xf32, #tpu.memory_space<vmem>>, %arg7: memref<136x64xf32, #tpu.memory_space<vmem>>) attributes {dimension_semantics = [#tpu.dimension_semantics<parallel>], iteration_bounds = array<i64: 1>, scalar_prefetch = 0 : i64, scratch_operands = 0 : i64, tpu.core_type = #tpu.core_type<tc>, window_params = [{transform_indices = @transform_0, window_bounds = array<i64: 136, 128>}, {pipeline_mode = #tpu.pipeline_mode<synchronous>, transform_indices = @transform_1, window_bounds = array<i64: 128, 64>}, {pipeline_mode = #tpu.pipeline_mode<synchronous>, transform_indices = @transform_2, window_bounds = array<i64: 1, 64>}, {transform_indices = @transform_3, window_bounds = array<i64: 136, 64>}, {pipeline_mode = #tpu.pipeline_mode<synchronous>, transform_indices = @transform_4, window_bounds = array<i64: 1, 64>}, {pipeline_mode = #tpu.pipeline_mode<synchronous>, transform_indices = @transform_5, window_bounds = array<i64: 1, 64>}, {transform_indices = @transform_6, window_bounds = array<i64: 136, 64>}]} {
    %c0 = arith.constant 0 : index
    %c0_0 = arith.constant 0 : index
    %0 = vector.load %arg1[%c0, %c0_0] : memref<136x128xf32, #tpu.memory_space<vmem>>, vector<136x128xf32>
    %1 = arith.truncf %0 : vector<136x128xf32> to vector<136x128xbf16>
    %c0_1 = arith.constant 0 : index
    %c0_2 = arith.constant 0 : index
    %2 = vector.load %arg2[%c0_1, %c0_2] : memref<128x64xbf16, #tpu.memory_space<vmem>>, vector<128x64xbf16>
    %cst = arith.constant dense<0.000000e+00> : vector<136x64xf32>
    %3 = tpu.matmul %1, %2, %cst {dimension_numbers = #tpu.dot_dimension_numbers<[1], [0], [0], [1], [0, 0, 1, 1], [], []>} : vector<136x128xbf16>, vector<128x64xbf16>, vector<136x64xf32> -> vector<136x64xf32>
    %c0_3 = arith.constant 0 : index
    %c0_4 = arith.constant 0 : index
    %4 = vector.load %arg3[%c0_3, %c0_4] : memref<1x64xf32, #tpu.memory_space<vmem>>, vector<1x64xf32>
    %5 = vector.broadcast %4 : vector<1x64xf32> to vector<136x64xf32>
    %6 = arith.addf %3, %5 : vector<136x64xf32>
    %c0_5 = arith.constant 0 : index
    %c0_6 = arith.constant 0 : index
    %7 = vector.load %arg4[%c0_5, %c0_6] : memref<136x64xf32, #tpu.memory_space<vmem>>, vector<136x64xf32>
    %8 = arith.addf %6, %7 : vector<136x64xf32>
    %cst_7 = arith.constant dense<0.000000e+00> : vector<136xf32>
    %9 = vector.multi_reduction <add>, %8, %cst_7 [1] : vector<136x64xf32> to vector<136xf32>
    %10 = vector.shape_cast %9 : vector<136xf32> to vector<136x1xf32>
    %cst_8 = arith.constant 6.400000e+01 : f32
    %11 = vector.broadcast %cst_8 : f32 to vector<136x1xf32>
    %12 = arith.divf %10, %11 : vector<136x1xf32>
    %13 = vector.broadcast %12 : vector<136x1xf32> to vector<136x64xf32>
    %14 = arith.subf %8, %13 : vector<136x64xf32>
    %15 = arith.mulf %14, %14 : vector<136x64xf32>
    %cst_9 = arith.constant dense<0.000000e+00> : vector<136xf32>
    %16 = vector.multi_reduction <add>, %15, %cst_9 [1] : vector<136x64xf32> to vector<136xf32>
    %17 = vector.shape_cast %16 : vector<136xf32> to vector<136x1xf32>
    %cst_10 = arith.constant 6.400000e+01 : f32
    %18 = vector.broadcast %cst_10 : f32 to vector<136x1xf32>
    %19 = arith.divf %17, %18 : vector<136x1xf32>
    %20 = vector.broadcast %12 : vector<136x1xf32> to vector<136x64xf32>
    %21 = arith.subf %8, %20 : vector<136x64xf32>
    %cst_11 = arith.constant 9.99999974E-6 : f32
    %22 = vector.broadcast %cst_11 : f32 to vector<136x1xf32>
    %23 = arith.addf %19, %22 : vector<136x1xf32>
    %24 = math.rsqrt %23 : vector<136x1xf32>
    %25 = vector.broadcast %24 : vector<136x1xf32> to vector<136x64xf32>
    %26 = arith.mulf %21, %25 : vector<136x64xf32>
    %c0_12 = arith.constant 0 : index
    %c0_13 = arith.constant 0 : index
    %27 = vector.load %arg5[%c0_12, %c0_13] : memref<1x64xf32, #tpu.memory_space<vmem>>, vector<1x64xf32>
    %28 = vector.broadcast %27 : vector<1x64xf32> to vector<136x64xf32>
    %29 = arith.mulf %26, %28 : vector<136x64xf32>
    %c0_14 = arith.constant 0 : index
    %c0_15 = arith.constant 0 : index
    %30 = vector.load %arg6[%c0_14, %c0_15] : memref<1x64xf32, #tpu.memory_space<vmem>>, vector<1x64xf32>
    %31 = vector.broadcast %30 : vector<1x64xf32> to vector<136x64xf32>
    %32 = arith.addf %29, %31 : vector<136x64xf32>
    %c0_16 = arith.constant 0 : index
    %c0_17 = arith.constant 0 : index
    %33 = vector.load %arg7[%c0_16, %c0_17] : memref<136x64xf32, #tpu.memory_space<vmem>>, vector<136x64xf32>
    tpu.vector_store %arg7[%c0_16, %c0_17], %32 {strides = array<i32>} : memref<136x64xf32, #tpu.memory_space<vmem>>, vector<136x64xf32>,
    return
  }
  func.func @transform_0(%arg0: i32) -> (i32, i32) {
    %c0_i32 = arith.constant 0 : i32
    %c0_i32_0 = arith.constant 0 : i32
    return %arg0, %c0_i32 : i32, i32
  }
  func.func @transform_1(%arg0: i32) -> (i32, i32) {
    %c0_i32 = arith.constant 0 : i32
    %c0_i32_0 = arith.constant 0 : i32
    %c0_i32_1 = arith.constant 0 : i32
    return %c0_i32, %c0_i32_0 : i32, i32
  }
  func.func @transform_2(%arg0: i32) -> (i32, i32) {
    %c0_i32 = arith.constant 0 : i32
    %c0_i32_0 = arith.constant 0 : i32
    %c0_i32_1 = arith.constant 0 : i32
    return %c0_i32, %c0_i32_0 : i32, i32
  }
  func.func @transform_3(%arg0: i32) -> (i32, i32) {
    %c0_i32 = arith.constant 0 : i32
    %c0_i32_0 = arith.constant 0 : i32
    return %arg0, %c0_i32 : i32, i32
  }
  func.func @transform_4(%arg0: i32) -> (i32, i32) {
    %c0_i32 = arith.constant 0 : i32
    %c0_i32_0 = arith.constant 0 : i32
    %c0_i32_1 = arith.constant 0 : i32
    return %c0_i32, %c0_i32_0 : i32, i32
  }
  func.func @transform_5(%arg0: i32) -> (i32, i32) {
    %c0_i32 = arith.constant 0 : i32
    %c0_i32_0 = arith.constant 0 : i32
    %c0_i32_1 = arith.constant 0 : i32
    return %c0_i32, %c0_i32_0 : i32, i32
  }
  func.func @transform_6(%arg0: i32) -> (i32, i32) {
    %c0_i32 = arith.constant 0 : i32
    %c0_i32_0 = arith.constant 0 : i32
    return %arg0, %c0_i32 : i32, i32
  }
}

module attributes {stable_mosaic.version = 11 : i64} {
  func.func @_mm_fused_kernel(%arg0: i32, %arg1: memref<8x64xf32, #tpu.memory_space<vmem>>, %arg2: memref<64x10xbf16, #tpu.memory_space<vmem>>, %arg3: memref<1x10xf32, #tpu.memory_space<vmem>>, %arg4: memref<8x10xf32, #tpu.memory_space<vmem>>) attributes {dimension_semantics = [#tpu.dimension_semantics<parallel>], iteration_bounds = array<i64: 1>, scalar_prefetch = 0 : i64, scratch_operands = 0 : i64, tpu.core_type = #tpu.core_type<tc>, window_params = [{transform_indices = @transform_0, window_bounds = array<i64: 8, 64>}, {pipeline_mode = #tpu.pipeline_mode<synchronous>, transform_indices = @transform_1, window_bounds = array<i64: 64, 10>}, {pipeline_mode = #tpu.pipeline_mode<synchronous>, transform_indices = @transform_2, window_bounds = array<i64: 1, 10>}, {transform_indices = @transform_3, window_bounds = array<i64: 8, 10>}]} {
    %c0 = arith.constant 0 : index
    %c0_0 = arith.constant 0 : index
    %0 = vector.load %arg1[%c0, %c0_0] : memref<8x64xf32, #tpu.memory_space<vmem>>, vector<8x64xf32>
    %1 = arith.truncf %0 : vector<8x64xf32> to vector<8x64xbf16>
    %c0_1 = arith.constant 0 : index
    %c0_2 = arith.constant 0 : index
    %2 = vector.load %arg2[%c0_1, %c0_2] : memref<64x10xbf16, #tpu.memory_space<vmem>>, vector<64x10xbf16>
    %cst = arith.constant dense<0.000000e+00> : vector<8x10xf32>
    %3 = tpu.matmul %1, %2, %cst {dimension_numbers = #tpu.dot_dimension_numbers<[1], [0], [0], [1], [0, 0, 1, 1], [], []>} : vector<8x64xbf16>, vector<64x10xbf16>, vector<8x10xf32> -> vector<8x10xf32>
    %c0_3 = arith.constant 0 : index
    %c0_4 = arith.constant 0 : index
    %4 = vector.load %arg3[%c0_3, %c0_4] : memref<1x10xf32, #tpu.memory_space<vmem>>, vector<1x10xf32>
    %5 = vector.broadcast %4 : vector<1x10xf32> to vector<8x10xf32>
    %6 = arith.addf %3, %5 : vector<8x10xf32>
    %c0_5 = arith.constant 0 : index
    %c0_6 = arith.constant 0 : index
    %7 = vector.load %arg4[%c0_5, %c0_6] : memref<8x10xf32, #tpu.memory_space<vmem>>, vector<8x10xf32>
    tpu.vector_store %arg4[%c0_5, %c0_6], %6 {strides = array<i32>} : memref<8x10xf32, #tpu.memory_space<vmem>>, vector<8x10xf32>,
    return
  }
  func.func @transform_0(%arg0: i32) -> (i32, i32) {
    %c0_i32 = arith.constant 0 : i32
    %c0_i32_0 = arith.constant 0 : i32
    return %arg0, %c0_i32 : i32, i32
  }
  func.func @transform_1(%arg0: i32) -> (i32, i32) {
    %c0_i32 = arith.constant 0 : i32
    %c0_i32_0 = arith.constant 0 : i32
    %c0_i32_1 = arith.constant 0 : i32
    return %c0_i32, %c0_i32_0 : i32, i32
  }
  func.func @transform_2(%arg0: i32) -> (i32, i32) {
    %c0_i32 = arith.constant 0 : i32
    %c0_i32_0 = arith.constant 0 : i32
    %c0_i32_1 = arith.constant 0 : i32
    return %c0_i32, %c0_i32_0 : i32, i32
  }
  func.func @transform_3(%arg0: i32) -> (i32, i32) {
    %c0_i32 = arith.constant 0 : i32
    %c0_i32_0 = arith.constant 0 : i32
    return %arg0, %c0_i32 : i32, i32
  }
}

</mosaic_0001>

<llo_original>
// kernel: resnet50_vit_forward.27
$region0: #{resnet50_vit_forward.27}
  #allocation0 [shape = 'u32[]', space=smem, size = 0x4, offset = 0x4, fixed_abs, tag = 'smem constant byte address 0x4 - core index']
  #allocation1 [shape = 'u32[144,128]{1,0:T(1,128)}', space=vmem, size = 0x12000, scoped, tag = 'internal scratch']
  %s0 = inlined_call_operand.vmem [shape: f32[128,64], index: 0, kind: input, shape index: {}]
  %s1 = inlined_call_operand.vmem [shape: bf16[64,64], index: 1, kind: input, shape index: {}]
  %s2 = inlined_call_operand.vmem [shape: f32[1,64], index: 2, kind: input, shape index: {}]
  %s3 = inlined_call_operand.vmem [shape: f32[128,64], index: 3, kind: output, shape index: {}]
  %s4 = sld [smem:[#allocation0]]
  $region22: #{resnet50_vit_forward.27} parent=0
    _
  %s6 = ssub.s32 1, %s4
  %s7 = scalar_select 0, %s6, %s4
  // Predicated region
  $region2: #{resnet50_vit_forward.27} parent=0 // pred_check
    _
  $region3: #{resnet50_vit_forward.27} parent=0 // pred_check_branch
    %9 = sbr.rel (0) target = $region5
  $region4: #{resnet50_vit_forward.27} parent=0 // pred_region
    _
  $region5: #{resnet50_vit_forward.27} parent=0 // pred_fallthru
    _
  // Predicated region
  $region6: #{resnet50_vit_forward.27} parent=0 // pred_check
    _
  $region7: #{resnet50_vit_forward.27} parent=0 // pred_check_branch
    %11 = sbr.rel (0) target = $region9
  $region8: #{resnet50_vit_forward.27} parent=0 // pred_region
    _
  $region9: #{resnet50_vit_forward.27} parent=0 // pred_fallthru
    _
  // Predicated region
  $region10: #{resnet50_vit_forward.27} parent=0 // pred_check
    _
  $region11: #{resnet50_vit_forward.27} parent=0 // pred_check_branch
    %13 = sbr.rel (0) target = $region13
  $region12: #{resnet50_vit_forward.27} parent=0 // pred_region
    _
  $region13: #{resnet50_vit_forward.27} parent=0 // pred_fallthru
    _
  %v15 = vld [vmem:[%s0] sm:$0xff]
  %v16 = vld [vmem:[%s0 + $0x8] sm:$0xff]
  %v17 = vld [vmem:[%s0 + $0x10] sm:$0xff]
  %v18 = vld [vmem:[%s0 + $0x18] sm:$0xff]
  %v19 = vld [vmem:[%s0 + $0x20] sm:$0xff]
  %v20 = vld [vmem:[%s0 + $0x28] sm:$0xff]
  %v21 = vld [vmem:[%s0 + $0x30] sm:$0xff]
  %v22 = vld [vmem:[%s0 + $0x38] sm:$0xff]
  %v23 = vld [vmem:[%s0 + $0x40] sm:$0xff]
  %v24 = vld [vmem:[%s0 + $0x48] sm:$0xff]
  %v25 = vld [vmem:[%s0 + $0x50] sm:$0xff]
  %v26 = vld [vmem:[%s0 + $0x58] sm:$0xff]
  %v27 = vld [vmem:[%s0 + $0x60] sm:$0xff]
  %v28 = vld [vmem:[%s0 + $0x68] sm:$0xff]
  %v29 = vld [vmem:[%s0 + $0x70] sm:$0xff]
  %v30 = vld [vmem:[%s0 + $0x78] sm:$0xff]
  %v31 = vpack.c.bf16 %v16, %v15
  %v32 = vpack.c.bf16 %v18, %v17
  %v33 = vpack.c.bf16 %v20, %v19
  %v34 = vpack.c.bf16 %v22, %v21
  %v35 = vpack.c.bf16 %v24, %v23
  %v36 = vpack.c.bf16 %v26, %v25
  %v37 = vpack.c.bf16 %v28, %v27
  %v38 = vpack.c.bf16 %v30, %v29
  %v39 = vld [vmem:[%s1] sm:$0xf]
  %v40 = vld [vmem:[%s1 + $0x4] sm:$0xf]
  %v41 = vld [vmem:[%s1 + $0x8] sm:$0xf]
  %v42 = vld [vmem:[%s1 + $0xc] sm:$0xf]
  %v43 = vld [vmem:[%s1 + $0x10] sm:$0xf]
  %v44 = vld [vmem:[%s1 + $0x14] sm:$0xf]
  %v45 = vld [vmem:[%s1 + $0x18] sm:$0xf]
  %v46 = vld [vmem:[%s1 + $0x1c] sm:$0xf]
  %v47 = vld [vmem:[%s2] sm:$0x1]
  %v49 = vlaneseq
  %v50 = vshrl.u32 %v49, 7
  %v51 = vsub.s32 0, %v50
  %v52 = vrot.slane %v47, %v51
  %v62 = vunpack.c.l.b16 %v39
  %v63 = vunpack.c.l.b16 %v40
  %v64 = vunpack.c.l.b16 %v41
  %v65 = vunpack.c.l.b16 %v42
  %v66 = vunpack.c.l.b16 %v43
  %v67 = vunpack.c.l.b16 %v44
  %v68 = vunpack.c.l.b16 %v45
  %v69 = vunpack.c.l.b16 %v46
  %v70 = vpack.c.b16 %v63, %v62
  %v71 = vpack.c.b16 %v65, %v64
  %v72 = vpack.c.b16 %v67, %v66
  %v73 = vpack.c.b16 %v69, %v68
  %vm78 = vcmask 523264
  %v80 = vsel %vm78, %v31, 0
  %v83 = vsel %vm78, %v32, 0
  %v86 = vsel %vm78, %v33, 0
  %v89 = vsel %vm78, %v34, 0
  %v92 = vsel %vm78, %v35, 0
  %v95 = vsel %vm78, %v36, 0
  %v98 = vsel %vm78, %v37, 0
  %v101 = vsel %vm78, %v38, 0
  %103 = vmatprep.subr.bf16.mxu0 0
  %104 = vmatpush1.bf16.msra.mxu0 %v70
  %105 = vmatprep.subr.bf16.mxu0 0
  %106 = vmatpush1.bf16.msra.mxu0 %v71
  %107 = vmatprep.subr.bf16.mxu0 0
  %108 = vmatpush1.bf16.msra.mxu0 %v72
  %109 = vmatprep.subr.bf16.mxu0 0
  %110 = vmatpush1.bf16.msra.mxu0 %v73
  %111 = vmatprep.subr.bf16.mxu0 0
  %112 = vmatpush1.bf16.msra.mxu0 0
  %113 = vmatprep.subr.bf16.mxu0 0
  %114 = vmatpush1.bf16.msra.mxu0 0
  %115 = vmatprep.subr.bf16.mxu0 0
  %116 = vmatpush1.bf16.msra.mxu0 0
  %117 = vmatprep.subr.bf16.mxu0 0
  %118 = vmatpush1.bf16.msra.mxu0 0
  %119 = vmatprep.subr.bf16.mxu0 0
  %120 = vmatpush1.bf16.msra.mxu0 0
  %121 = vmatprep.subr.bf16.mxu0 0
  %122 = vmatpush1.bf16.msra.mxu0 0
  %123 = vmatprep.subr.bf16.mxu0 0
  %124 = vmatpush1.bf16.msra.mxu0 0
  %125 = vmatprep.subr.bf16.mxu0 0
  %126 = vmatpush1.bf16.msra.mxu0 0
  %127 = vmatprep.subr.bf16.mxu0 0
  %128 = vmatpush1.bf16.msra.mxu0 0
  %129 = vmatprep.subr.bf16.mxu0 0
  %130 = vmatpush1.bf16.msra.mxu0 0
  %131 = vmatprep.subr.bf16.mxu0 0
  %132 = vmatpush1.bf16.msra.mxu0 0
  %133 = vmatprep.subr.bf16.mxu0 0
  %134 = vmatpush1.bf16.msra.mxu0 0
  %135 = vmatprep.mubr.bf16.mxu0 0
  %136 = vmatmul.mubr.bf16.gmra.mrb[0].mxu0 %v80
  %v137 = vpop.f32.mrb[0].mxu0
  %v138 = vadd.f32 %v52, %v137
  %v139 = vpop.f32.mrb[0].mxu0
  %v140 = vpop.f32.mrb[0].mxu0
  %v141 = vadd.f32 %v52, %v140
  %v142 = vpop.f32.mrb[0].mxu0
  %143 = vmatprep.mubr.bf16.mxu0 0
  %144 = vmatmul.mubr.bf16.gmra.mrb[0].mxu0 %v83
  %v145 = vpop.f32.mrb[0].mxu0
  %v146 = vadd.f32 %v52, %v145
  %v147 = vpop.f32.mrb[0].mxu0
  %v148 = vpop.f32.mrb[0].mxu0
  %v149 = vadd.f32 %v52, %v148
  %v150 = vpop.f32.mrb[0].mxu0
  %151 = vmatprep.mubr.bf16.mxu0 0
  %152 = vmatmul.mubr.bf16.gmra.mrb[0].mxu0 %v86
  %v153 = vpop.f32.mrb[0].mxu0
  %v154 = vadd.f32 %v52, %v153
  %v155 = vpop.f32.mrb[0].mxu0
  %v156 = vpop.f32.mrb[0].mxu0
  %v157 = vadd.f32 %v52, %v156
  %v158 = vpop.f32.mrb[0].mxu0
  %159 = vmatprep.mubr.bf16.mxu0 0
  %160 = vmatmul.mubr.bf16.gmra.mrb[0].mxu0 %v89
  %v161 = vpop.f32.mrb[0].mxu0
  %v162 = vadd.f32 %v52, %v161
  %v163 = vpop.f32.mrb[0].mxu0
  %v164 = vpop.f32.mrb[0].mxu0
  %v165 = vadd.f32 %v52, %v164
  %v166 = vpop.f32.mrb[0].mxu0
  %167 = vmatprep.mubr.bf16.mxu0 0
  %168 = vmatmul.mubr.bf16.gmra.mrb[0].mxu0 %v92
  %v169 = vpop.f32.mrb[0].mxu0
  %v170 = vadd.f32 %v52, %v169
  %v171 = vpop.f32.mrb[0].mxu0
  %v172 = vpop.f32.mrb[0].mxu0
  %v173 = vadd.f32 %v52, %v172
  %v174 = vpop.f32.mrb[0].mxu0
  %175 = vmatprep.mubr.bf16.mxu0 0
  %176 = vmatmul.mubr.bf16.gmra.mrb[0].mxu0 %v95
  %v177 = vpop.f32.mrb[0].mxu0
  %v178 = vadd.f32 %v52, %v177
  %v179 = vpop.f32.mrb[0].mxu0
  %v180 = vpop.f32.mrb[0].mxu0
  %v181 = vadd.f32 %v52, %v180
  %v182 = vpop.f32.mrb[0].mxu0
  %183 = vmatprep.mubr.bf16.mxu0 0
  %184 = vmatmul.mubr.bf16.gmra.mrb[0].mxu0 %v98
  %v185 = vpop.f32.mrb[0].mxu0
  %v186 = vadd.f32 %v52, %v185
  %v187 = vpop.f32.mrb[0].mxu0
  %v188 = vpop.f32.mrb[0].mxu0
  %v189 = vadd.f32 %v52, %v188
  %v190 = vpop.f32.mrb[0].mxu0
  %191 = vmatprep.mubr.bf16.mxu0 0
  %192 = vmatmul.mubr.bf16.gmra.mrb[0].mxu0 %v101
  %v193 = vpop.f32.mrb[0].mxu0
  %v194 = vadd.f32 %v52, %v193
  %v195 = vpop.f32.mrb[0].mxu0
  %v196 = vpop.f32.mrb[0].mxu0
  %v197 = vadd.f32 %v52, %v196
  %v198 = vpop.f32.mrb[0].mxu0
  %199 = vdwg.mxu0
  %v200 = vmax.f32 %v138, 0.0
  %v201 = vmax.f32 %v141, 0.0
  %v202 = vmax.f32 %v146, 0.0
  %v203 = vmax.f32 %v149, 0.0
  %v204 = vmax.f32 %v154, 0.0
  %v205 = vmax.f32 %v157, 0.0
  %v206 = vmax.f32 %v162, 0.0
  %v207 = vmax.f32 %v165, 0.0
  %v208 = vmax.f32 %v170, 0.0
  %v209 = vmax.f32 %v173, 0.0
  %v210 = vmax.f32 %v178, 0.0
  %v211 = vmax.f32 %v181, 0.0
  %v212 = vmax.f32 %v186, 0.0
  %v213 = vmax.f32 %v189, 0.0
  %v214 = vmax.f32 %v194, 0.0
  %v215 = vmax.f32 %v197, 0.0
  %216 = vst.msk [vmem:[%s3] sm:$0xff] %vm78, %v200
  %217 = vst.msk [vmem:[%s3 + $0x8] sm:$0xff] %vm78, %v201
  %218 = vst.msk [vmem:[%s3 + $0x10] sm:$0xff] %vm78, %v202
  %219 = vst.msk [vmem:[%s3 + $0x18] sm:$0xff] %vm78, %v203
  %220 = vst.msk [vmem:[%s3 + $0x20] sm:$0xff] %vm78, %v204
  %221 = vst.msk [vmem:[%s3 + $0x28] sm:$0xff] %vm78, %v205
  %222 = vst.msk [vmem:[%s3 + $0x30] sm:$0xff] %vm78, %v206
  %223 = vst.msk [vmem:[%s3 + $0x38] sm:$0xff] %vm78, %v207
  %224 = vst.msk [vmem:[%s3 + $0x40] sm:$0xff] %vm78, %v208
  %225 = vst.msk [vmem:[%s3 + $0x48] sm:$0xff] %vm78, %v209
  %226 = vst.msk [vmem:[%s3 + $0x50] sm:$0xff] %vm78, %v210
  %227 = vst.msk [vmem:[%s3 + $0x58] sm:$0xff] %vm78, %v211
  %228 = vst.msk [vmem:[%s3 + $0x60] sm:$0xff] %vm78, %v212
  %229 = vst.msk [vmem:[%s3 + $0x68] sm:$0xff] %vm78, %v213
  %230 = vst.msk [vmem:[%s3 + $0x70] sm:$0xff] %vm78, %v214
  %231 = vst.msk [vmem:[%s3 + $0x78] sm:$0xff] %vm78, %v215
  // Predicated region
  $region14: #{resnet50_vit_forward.27} parent=0 // pred_check
    _
  $region15: #{resnet50_vit_forward.27} parent=0 // pred_check_branch
    %233 = sbr.rel (0) target = $region17
  $region16: #{resnet50_vit_forward.27} parent=0 // pred_region
    _
  $region17: #{resnet50_vit_forward.27} parent=0 // pred_fallthru
    _
  // Predicated region
  $region18: #{resnet50_vit_forward.27} parent=0 // pred_check
    _
  $region19: #{resnet50_vit_forward.27} parent=0 // pred_check_branch
    %235 = sbr.rel (0) target = $region21
  $region20: #{resnet50_vit_forward.27} parent=0 // pred_region
    _
  $region21: #{resnet50_vit_forward.27} parent=0 // pred_fallthru
    _

// kernel: resnet50_vit_forward.24
$region0: #{resnet50_vit_forward.24}
  #allocation0 [shape = 'u32[]', space=smem, size = 0x4, offset = 0x4, fixed_abs, tag = 'smem constant byte address 0x4 - core index']
  #allocation1 [shape = 'u32[144,128]{1,0:T(1,128)}', space=vmem, size = 0x12000, scoped, tag = 'internal scratch']
  %s0 = inlined_call_operand.vmem [shape: f32[512,147], index: 0, kind: input, shape index: {}]
  %s1 = inlined_call_operand.vmem [shape: bf16[147,64], index: 1, kind: input, shape index: {}]
  %s2 = inlined_call_operand.vmem [shape: f32[1,64], index: 2, kind: input, shape index: {}]
  %s3 = inlined_call_operand.vmem [shape: f32[512,64], index: 3, kind: output, shape index: {}]
  %s4 = sld [smem:[#allocation0]]
  $region22: #{resnet50_vit_forward.24} parent=0
    _
  %s6 = ssub.s32 1, %s4
  %s7 = scalar_select 0, %s6, %s4
  // Predicated region
  $region2: #{resnet50_vit_forward.24} parent=0 // pred_check
    _
  $region3: #{resnet50_vit_forward.24} parent=0 // pred_check_branch
    %9 = sbr.rel (0) target = $region5
  $region4: #{resnet50_vit_forward.24} parent=0 // pred_region
    _
  $region5: #{resnet50_vit_forward.24} parent=0 // pred_fallthru
    _
  // Predicated region
  $region6: #{resnet50_vit_forward.24} parent=0 // pred_check
    _
  $region7: #{resnet50_vit_forward.24} parent=0 // pred_check_branch
    %11 = sbr.rel (0) target = $region9
  $region8: #{resnet50_vit_forward.24} parent=0 // pred_region
    _
  $region9: #{resnet50_vit_forward.24} parent=0 // pred_fallthru
    _
  // Predicated region
  $region10: #{resnet50_vit_forward.24} parent=0 // pred_check
    _
  $region11: #{resnet50_vit_forward.24} parent=0 // pred_check_branch
    %13 = sbr.rel (0) target = $region13
  $region12: #{resnet50_vit_forward.24} parent=0 // pred_region
    _
  $region13: #{resnet50_vit_forward.24} parent=0 // pred_fallthru
    _
  %v15 = vld [vmem:[%s0] sm:$0xff]
  %v16 = vld [vmem:[%s0 + $0x8] sm:$0xff]
  %v17 = vld [vmem:[%s0 + $0x10] sm:$0xff]
  %v18 = vld [vmem:[%s0 + $0x18] sm:$0xff]
  %v19 = vld [vmem:[%s0 + $0x20] sm:$0xff]
  %v20 = vld [vmem:[%s0 + $0x28] sm:$0xff]
  %v21 = vld [vmem:[%s0 + $0x30] sm:$0xff]
  %v22 = vld [vmem:[%s0 + $0x38] sm:$0xff]
  %v23 = vld [vmem:[%s0 + $0x40] sm:$0xff]
  %v24 = vld [vmem:[%s0 + $0x48] sm:$0xff]
  %v25 = vld [vmem:[%s0 + $0x50] sm:$0xff]
  %v26 = vld [vmem:[%s0 + $0x58] sm:$0xff]
  %v27 = vld [vmem:[%s0 + $0x60] sm:$0xff]
  %v28 = vld [vmem:[%s0 + $0x68] sm:$0xff]
  %v29 = vld [vmem:[%s0 + $0x70] sm:$0xff]
  %v30 = vld [vmem:[%s0 + $0x78] sm:$0xff]
  %v31 = vld [vmem:[%s0 + $0x80] sm:$0xff]
  %v32 = vld [vmem:[%s0 + $0x88] sm:$0xff]
  %v33 = vld [vmem:[%s0 + $0x90] sm:$0xff]
  %v34 = vld [vmem:[%s0 + $0x98] sm:$0xff]
  %v35 = vld [vmem:[%s0 + $0xa0] sm:$0xff]
  %v36 = vld [vmem:[%s0 + $0xa8] sm:$0xff]
  %v37 = vld [vmem:[%s0 + $0xb0] sm:$0xff]
  %v38 = vld [vmem:[%s0 + $0xb8] sm:$0xff]
  %v39 = vld [vmem:[%s0 + $0xc0] sm:$0xff]
  %v40 = vld [vmem:[%s0 + $0xc8] sm:$0xff]
  %v41 = vld [vmem:[%s0 + $0xd0] sm:$0xff]
  %v42 = vld [vmem:[%s0 + $0xd8] sm:$0xff]
  %v43 = vld [vmem:[%s0 + $0xe0] sm:$0xff]
  %v44 = vld [vmem:[%s0 + $0xe8] sm:$0xff]
  %v45 = vld [vmem:[%s0 + $0xf0] sm:$0xff]
  %v46 = vld [vmem:[%s0 + $0xf8] sm:$0xff]
  %v47 = vld [vmem:[%s0 + $0x100] sm:$0xff]
  %v48 = vld [vmem:[%s0 + $0x108] sm:$0xff]
  %v49 = vld [vmem:[%s0 + $0x110] sm:$0xff]
  %v50 = vld [vmem:[%s0 + $0x118] sm:$0xff]
  %v51 = vld [vmem:[%s0 + $0x120] sm:$0xff]
  %v52 = vld [vmem:[%s0 + $0x128] sm:$0xff]
  %v53 = vld [vmem:[%s0 + $0x130] sm:$0xff]
  %v54 = vld [vmem:[%s0 + $0x138] sm:$0xff]
  %v55 = vld [vmem:[%s0 + $0x140] sm:$0xff]
  %v56 = vld [vmem:[%s0 + $0x148] sm:$0xff]
  %v57 = vld [vmem:[%s0 + $0x150] sm:$0xff]
  %v58 = vld [vmem:[%s0 + $0x158] sm:$0xff]
  %v59 = vld [vmem:[%s0 + $0x160] sm:$0xff]
  %v60 = vld [vmem:[%s0 + $0x168] sm:$0xff]
  %v61 = vld [vmem:[%s0 + $0x170] sm:$0xff]
  %v62 = vld [vmem:[%s0 + $0x178] sm:$0xff]
  %v63 = vld [vmem:[%s0 + $0x180] sm:$0xff]
  %v64 = vld [vmem:[%s0 + $0x188] sm:$0xff]
  %v65 = vld [vmem:[%s0 + $0x190] sm:$0xff]
  %v66 = vld [vmem:[%s0 + $0x198] sm:$0xff]
  %v67 = vld [vmem:[%s0 + $0x1a0] sm:$0xff]
  %v68 = vld [vmem:[%s0 + $0x1a8] sm:$0xff]
  %v69 = vld [vmem:[%s0 + $0x1b0] sm:$0xff]
  %v70 = vld [vmem:[%s0 + $0x1b8] sm:$0xff]
  %v71 = vld [vmem:[%s0 + $0x1c0] sm:$0xff]
  %v72 = vld [vmem:[%s0 + $0x1c8] sm:$0xff]
  %v73 = vld [vmem:[%s0 + $0x1d0] sm:$0xff]
  %v74 = vld [vmem:[%s0 + $0x1d8] sm:$0xff]
  %v75 = vld [vmem:[%s0 + $0x1e0] sm:$0xff]
  %v76 = vld [vmem:[%s0 + $0x1e8] sm:$0xff]
  %v77 = vld [vmem:[%s0 + $0x1f0] sm:$0xff]
  %v78 = vld [vmem:[%s0 + $0x1f8] sm:$0xff]
  %v79 = vld [vmem:[%s0 + $0x200] sm:$0xff]
  %v80 = vld [vmem:[%s0 + $0x208] sm:$0xff]
  %v81 = vld [vmem:[%s0 + $0x210] sm:$0xff]
  %v82 = vld [vmem:[%s0 + $0x218] sm:$0xff]
  %v83 = vld [vmem:[%s0 + $0x220] sm:$0xff]
  %v84 = vld [vmem:[%s0 + $0x228] sm:$0xff]
  %v85 = vld [vmem:[%s0 + $0x230] sm:$0xff]
  %v86 = vld [vmem:[%s0 + $0x238] sm:$0xff]
  %v87 = vld [vmem:[%s0 + $0x240] sm:$0xff]
  %v88 = vld [vmem:[%s0 + $0x248] sm:$0xff]
  %v89 = vld [vmem:[%s0 + $0x250] sm:$0xff]
  %v90 = vld [vmem:[%s0 + $0x258] sm:$0xff]
  %v91 = vld [vmem:[%s0 + $0x260] sm:$0xff]
  %v92 = vld [vmem:[%s0 + $0x268] sm:$0xff]
  %v93 = vld [vmem:[%s0 + $0x270] sm:$0xff]
  %v94 = vld [vmem:[%s0 + $0x278] sm:$0xff]
  %v95 = vld [vmem:[%s0 + $0x280] sm:$0xff]
  %v96 = vld [vmem:[%s0 + $0x288] sm:$0xff]
  %v97 = vld [vmem:[%s0 + $0x290] sm:$0xff]
  %v98 = vld [vmem:[%s0 + $0x298] sm:$0xff]
  %v99 = vld [vmem:[%s0 + $0x2a0] sm:$0xff]
  %v100 = vld [vmem:[%s0 + $0x2a8] sm:$0xff]
  %v101 = vld [vmem:[%s0 + $0x2b0] sm:$0xff]
  %v102 = vld [vmem:[%s0 + $0x2b8] sm:$0xff]
  %v103 = vld [vmem:[%s0 + $0x2c0] sm:$0xff]
  %v104 = vld [vmem:[%s0 + $0x2c8] sm:$0xff]
  %v105 = vld [vmem:[%s0 + $0x2d0] sm:$0xff]
  %v106 = vld [vmem:[%s0 + $0x2d8] sm:$0xff]
  %v107 = vld [vmem:[%s0 + $0x2e0] sm:$0xff]
  %v108 = vld [vmem:[%s0 + $0x2e8] sm:$0xff]
  %v109 = vld [vmem:[%s0 + $0x2f0] sm:$0xff]
  %v110 = vld [vmem:[%s0 + $0x2f8] sm:$0xff]
  %v111 = vld [vmem:[%s0 + $0x300] sm:$0xff]
  %v112 = vld [vmem:[%s0 + $0x308] sm:$0xff]
  %v113 = vld [vmem:[%s0 + $0x310] sm:$0xff]
  %v114 = vld [vmem:[%s0 + $0x318] sm:$0xff]
  %v115 = vld [vmem:[%s0 + $0x320] sm:$0xff]
  %v116 = vld [vmem:[%s0 + $0x328] sm:$0xff]
  %v117 = vld [vmem:[%s0 + $0x330] sm:$0xff]
  %v118 = vld [vmem:[%s0 + $0x338] sm:$0xff]
  %v119 = vld [vmem:[%s0 + $0x340] sm:$0xff]
  %v120 = vld [vmem:[%s0 + $0x348] sm:$0xff]
  %v121 = vld [vmem:[%s0 + $0x350] sm:$0xff]
  %v122 = vld [vmem:[%s0 + $0x358] sm:$0xff]
  %v123 = vld [vmem:[%s0 + $0x360] sm:$0xff]
  %v124 = vld [vmem:[%s0 + $0x368] sm:$0xff]
  %v125 = vld [vmem:[%s0 + $0x370] sm:$0xff]
  %v126 = vld [vmem:[%s0 + $0x378] sm:$0xff]
  %v127 = vld [vmem:[%s0 + $0x380] sm:$0xff]
  %v128 = vld [vmem:[%s0 + $0x388] sm:$0xff]
  %v129 = vld [vmem:[%s0 + $0x390] sm:$0xff]
  %v130 = vld [vmem:[%s0 + $0x398] sm:$0xff]
  %v131 = vld [vmem:[%s0 + $0x3a0] sm:$0xff]
  %v132 = vld [vmem:[%s0 + $0x3a8] sm:$0xff]
  %v133 = vld [vmem:[%s0 + $0x3b0] sm:$0xff]
  %v134 = vld [vmem:[%s0 + $0x3b8] sm:$0xff]
  %v135 = vld [vmem:[%s0 + $0x3c0] sm:$0xff]
  %v136 = vld [vmem:[%s0 + $0x3c8] sm:$0xff]
  %v137 = vld [vmem:[%s0 + $0x3d0] sm:$0xff]
  %v138 = vld [vmem:[%s0 + $0x3d8] sm:$0xff]
  %v139 = vld [vmem:[%s0 + $0x3e0] sm:$0xff]
  %v140 = vld [vmem:[%s0 + $0x3e8] sm:$0xff]
  %v141 = vld [vmem:[%s0 + $0x3f0] sm:$0xff]
  %v142 = vld [vmem:[%s0 + $0x3f8] sm:$0xff]
  %v143 = vpack.c.bf16 %v17, %v15
  %v144 = vpack.c.bf16 %v18, %v16
  %v145 = vpack.c.bf16 %v21, %v19
  %v146 = vpack.c.bf16 %v22, %v20
  %v147 = vpack.c.bf16 %v25, %v23
  %v148 = vpack.c.bf16 %v26, %v24
  %v149 = vpack.c.bf16 %v29, %v27
  %v150 = vpack.c.bf16 %v30, %v28
  %v151 = vpack.c.bf16 %v33, %v31
  %v152 = vpack.c.bf16 %v34, %v32
  %v153 = vpack.c.bf16 %v37, %v35
  %v154 = vpack.c.bf16 %v38, %v36
  %v155 = vpack.c.bf16 %v41, %v39
  %v156 = vpack.c.bf16 %v42, %v40
  %v157 = vpack.c.bf16 %v45, %v43
  %v158 = vpack.c.bf16 %v46, %v44
  %v159 = vpack.c.bf16 %v49, %v47
  %v160 = vpack.c.bf16 %v50, %v48
  %v161 = vpack.c.bf16 %v53, %v51
  %v162 = vpack.c.bf16 %v54, %v52
  %v163 = vpack.c.bf16 %v57, %v55
  %v164 = vpack.c.bf16 %v58, %v56
  %v165 = vpack.c.bf16 %v61, %v59
  %v166 = vpack.c.bf16 %v62, %v60
  %v167 = vpack.c.bf16 %v65, %v63
  %v168 = vpack.c.bf16 %v66, %v64
  %v169 = vpack.c.bf16 %v69, %v67
  %v170 = vpack.c.bf16 %v70, %v68
  %v171 = vpack.c.bf16 %v73, %v71
  %v172 = vpack.c.bf16 %v74, %v72
  %v173 = vpack.c.bf16 %v77, %v75
  %v174 = vpack.c.bf16 %v78, %v76
  %v175 = vpack.c.bf16 %v81, %v79
  %v176 = vpack.c.bf16 %v82, %v80
  %v177 = vpack.c.bf16 %v85, %v83
  %v178 = vpack.c.bf16 %v86, %v84
  %v179 = vpack.c.bf16 %v89, %v87
  %v180 = vpack.c.bf16 %v90, %v88
  %v181 = vpack.c.bf16 %v93, %v91
  %v182 = vpack.c.bf16 %v94, %v92
  %v183 = vpack.c.bf16 %v97, %v95
  %v184 = vpack.c.bf16 %v98, %v96
  %v185 = vpack.c.bf16 %v101, %v99
  %v186 = vpack.c.bf16 %v102, %v100
  %v187 = vpack.c.bf16 %v105, %v103
  %v188 = vpack.c.bf16 %v106, %v104
  %v189 = vpack.c.bf16 %v109, %v107
  %v190 = vpack.c.bf16 %v110, %v108
  %v191 = vpack.c.bf16 %v113, %v111
  %v192 = vpack.c.bf16 %v114, %v112
  %v193 = vpack.c.bf16 %v117, %v115
  %v194 = vpack.c.bf16 %v118, %v116
  %v195 = vpack.c.bf16 %v121, %v119
  %v196 = vpack.c.bf16 %v122, %v120
  %v197 = vpack.c.bf16 %v125, %v123
  %v198 = vpack.c.bf16 %v126, %v124
  %v199 = vpack.c.bf16 %v129, %v127
  %v200 = vpack.c.bf16 %v130, %v128
  %v201 = vpack.c.bf16 %v133, %v131
  %v202 = vpack.c.bf16 %v134, %v132
  %v203 = vpack.c.bf16 %v137, %v135
  %v204 = vpack.c.bf16 %v138, %v136
  %v205 = vpack.c.bf16 %v141, %v139
  %v206 = vpack.c.bf16 %v142, %v140
  %v207 = vld [vmem:[%s1] sm:$0xf]
  %v208 = vld [vmem:[%s1 + $0x4] sm:$0xf]
  %v209 = vld [vmem:[%s1 + $0x8] sm:$0xf]
  %v210 = vld [vmem:[%s1 + $0xc] sm:$0xf]
  %v211 = vld [vmem:[%s1 + $0x10] sm:$0xf]
  %v212 = vld [vmem:[%s1 + $0x14] sm:$0xf]
  %v213 = vld [vmem:[%s1 + $0x18] sm:$0xf]
  %v214 = vld [vmem:[%s1 + $0x1c] sm:$0xf]
  %v215 = vld [vmem:[%s1 + $0x20] sm:$0xf]
  %v216 = vld [vmem:[%s1 + $0x24] sm:$0xf]
  %v217 = vld [vmem:[%s1 + $0x28] sm:$0xf]
  %v218 = vld [vmem:[%s1 + $0x2c] sm:$0xf]
  %v219 = vld [vmem:[%s1 + $0x30] sm:$0xf]
  %v220 = vld [vmem:[%s1 + $0x34] sm:$0xf]
  %v221 = vld [vmem:[%s1 + $0x38] sm:$0xf]
  %v222 = vld [vmem:[%s1 + $0x3c] sm:$0xf]
  %v223 = vld [vmem:[%s1 + $0x40] sm:$0xf]
  %v224 = vld [vmem:[%s1 + $0x44] sm:$0xf]
  %v225 = vld [vmem:[%s1 + $0x48] sm:$0x3]
  %v226 = vld [vmem:[%s2] sm:$0x1]
  %v228 = vlaneseq
  %v229 = vshrl.u32 %v228, 7
  %v230 = vsub.s32 0, %v229
  %v231 = vrot.slane %v226, %v230
  %v252 = vunpack.c.l.b16 %v207
  %v253 = vunpack.c.l.b16 %v208
  %v254 = vunpack.c.l.b16 %v209
  %v255 = vunpack.c.l.b16 %v210
  %v256 = vunpack.c.l.b16 %v211
  %v257 = vunpack.c.l.b16 %v212
  %v258 = vunpack.c.l.b16 %v213
  %v259 = vunpack.c.l.b16 %v214
  %v260 = vunpack.c.l.b16 %v215
  %v261 = vunpack.c.l.b16 %v216
  %v262 = vunpack.c.l.b16 %v217
  %v263 = vunpack.c.l.b16 %v218
  %v264 = vunpack.c.l.b16 %v219
  %v265 = vunpack.c.l.b16 %v220
  %v266 = vunpack.c.l.b16 %v221
  %v267 = vunpack.c.l.b16 %v222
  %v268 = vunpack.c.l.b16 %v223
  %v269 = vunpack.c.l.b16 %v224
  %v270 = vunpack.c.l.b16 %v225
  %v271 = vpack.c.b16 %v253, %v252
  %v272 = vpack.c.b16 %v255, %v254
  %v273 = vpack.c.b16 %v257, %v256
  %v274 = vpack.c.b16 %v259, %v258
  %v275 = vpack.c.b16 %v261, %v260
  %v276 = vpack.c.b16 %v263, %v262
  %v277 = vpack.c.b16 %v265, %v264
  %v278 = vpack.c.b16 %v267, %v266
  %v279 = vpack.c.b16 %v269, %v268
  %v280 = vpack.c.b16 %v270, %v270
  %vm290 = vcmask 154624
  %v292 = vsel %vm290, %v144, 0
  %v295 = vsel %vm290, %v146, 0
  %v298 = vsel %vm290, %v148, 0
  %v301 = vsel %vm290, %v150, 0
  %v304 = vsel %vm290, %v152, 0
  %v307 = vsel %vm290, %v154, 0
  %v310 = vsel %vm290, %v156, 0
  %v313 = vsel %vm290, %v158, 0
  %v316 = vsel %vm290, %v160, 0
  %v319 = vsel %vm290, %v162, 0
  %v322 = vsel %vm290, %v164, 0
  %v325 = vsel %vm290, %v166, 0
  %v328 = vsel %vm290, %v168, 0
  %v331 = vsel %vm290, %v170, 0
  %v334 = vsel %vm290, %v172, 0
  %v337 = vsel %vm290, %v174, 0
  %v340 = vsel %vm290, %v176, 0
  %v343 = vsel %vm290, %v178, 0
  %v346 = vsel %vm290, %v180, 0
  %v349 = vsel %vm290, %v182, 0
  %v352 = vsel %vm290, %v184, 0
  %v355 = vsel %vm290, %v186, 0
  %v358 = vsel %vm290, %v188, 0
  %v361 = vsel %vm290, %v190, 0
  %v364 = vsel %vm290, %v192, 0
  %v367 = vsel %vm290, %v194, 0
  %v370 = vsel %vm290, %v196, 0
  %v373 = vsel %vm290, %v198, 0
  %v376 = vsel %vm290, %v200, 0
  %v379 = vsel %vm290, %v202, 0
  %v382 = vsel %vm290, %v204, 0
  %v385 = vsel %vm290, %v206, 0
  %vm387 = vcmask 1040384
  %vm388 = vcmask 1041408
  %v389 = vsel %vm387, 4294967295, 65535
  %v390 = vsel %vm388, %v389, 0
  %v392 = vand.u32 %v280, %v390
  %394 = vmatprep.subr.bf16.mxu0 0
  %395 = vmatpush1.bf16.msra.mxu0 %v271
  %396 = vmatprep.subr.bf16.mxu0 0
  %397 = vmatpush1.bf16.msra.mxu0 %v272
  %398 = vmatprep.subr.bf16.mxu0 0
  %399 = vmatpush1.bf16.msra.mxu0 %v273
  %400 = vmatprep.subr.bf16.mxu0 0
  %401 = vmatpush1.bf16.msra.mxu0 %v274
  %402 = vmatprep.subr.bf16.mxu0 0
  %403 = vmatpush1.bf16.msra.mxu0 %v275
  %404 = vmatprep.subr.bf16.mxu0 0
  %405 = vmatpush1.bf16.msra.mxu0 %v276
  %406 = vmatprep.subr.bf16.mxu0 0
  %407 = vmatpush1.bf16.msra.mxu0 %v277
  %408 = vmatprep.subr.bf16.mxu0 0
  %409 = vmatpush1.bf16.msra.mxu0 %v278
  %410 = vmatprep.subr.bf16.mxu0 0
  %411 = vmatpush1.bf16.msra.mxu0 %v279
  %412 = vmatprep.subr.bf16.mxu0 0
  %413 = vmatpush1.bf16.msra.mxu0 %v392
  %414 = vmatprep.subr.bf16.mxu0 0
  %415 = vmatpush1.bf16.msra.mxu0 0
  %416 = vmatprep.subr.bf16.mxu0 0
  %417 = vmatpush1.bf16.msra.mxu0 0
  %418 = vmatprep.subr.bf16.mxu0 0
  %419 = vmatpush1.bf16.msra.mxu0 0
  %420 = vmatprep.subr.bf16.mxu0 0
  %421 = vmatpush1.bf16.msra.mxu0 0
  %422 = vmatprep.subr.bf16.mxu0 0
  %423 = vmatpush1.bf16.msra.mxu0 0
  %424 = vmatprep.subr.bf16.mxu0 0
  %425 = vmatpush1.bf16.msra.mxu0 0
  %426 = vmatprep.mubr.bf16.mxu0 %v292
  %427 = vmatmul.mubr.bf16.gmra.mrb[0].mxu0 %v143
  %v428 = vpop.f32.mrb[0].mxu0
  %v429 = vadd.f32 %v231, %v428
  %v430 = vpop.f32.mrb[0].mxu0
  %v431 = vpop.f32.mrb[0].mxu0
  %v432 = vadd.f32 %v231, %v431
  %v433 = vpop.f32.mrb[0].mxu0
  %434 = vmatprep.mubr.bf16.mxu0 %v295
  %435 = vmatmul.mubr.bf16.gmra.mrb[0].mxu0 %v145
  %v436 = vpop.f32.mrb[0].mxu0
  %v437 = vadd.f32 %v231, %v436
  %v438 = vpop.f32.mrb[0].mxu0
  %v439 = vpop.f32.mrb[0].mxu0
  %v440 = vadd.f32 %v231, %v439
  %v441 = vpop.f32.mrb[0].mxu0
  %442 = vmatprep.mubr.bf16.mxu0 %v298
  %443 = vmatmul.mubr.bf16.gmra.mrb[0].mxu0 %v147
  %v444 = vpop.f32.mrb[0].mxu0
  %v445 = vadd.f32 %v231, %v444
  %v446 = vpop.f32.mrb[0].mxu0
  %v447 = vpop.f32.mrb[0].mxu0
  %v448 = vadd.f32 %v231, %v447
  %v449 = vpop.f32.mrb[0].mxu0
  %450 = vmatprep.mubr.bf16.mxu0 %v301
  %451 = vmatmul.mubr.bf16.gmra.mrb[0].mxu0 %v149
  %v452 = vpop.f32.mrb[0].mxu0
  %v453 = vadd.f32 %v231, %v452
  %v454 = vpop.f32.mrb[0].mxu0
  %v455 = vpop.f32.mrb[0].mxu0
  %v456 = vadd.f32 %v231, %v455
  %v457 = vpop.f32.mrb[0].mxu0
  %458 = vmatprep.mubr.bf16.mxu0 %v304
  %459 = vmatmul.mubr.bf16.gmra.mrb[0].mxu0 %v151
  %v460 = vpop.f32.mrb[0].mxu0
  %v461 = vadd.f32 %v231, %v460
  %v462 = vpop.f32.mrb[0].mxu0
  %v463 = vpop.f32.mrb[0].mxu0
  %v464 = vadd.f32 %v231, %v463
  %v465 = vpop.f32.mrb[0].mxu0
  %466 = vmatprep.mubr.bf16.mxu0 %v307
  %467 = vmatmul.mubr.bf16.gmra.mrb[0].mxu0 %v153
  %v468 = vpop.f32.mrb[0].mxu0
  %v469 = vadd.f32 %v231, %v468
  %v470 = vpop.f32.mrb[0].mxu0
  %v471 = vpop.f32.mrb[0].mxu0
  %v472 = vadd.f32 %v231, %v471
  %v473 = vpop.f32.mrb[0].mxu0
  %474 = vmatprep.mubr.bf16.mxu0 %v310
  %475 = vmatmul.mubr.bf16.gmra.mrb[0].mxu0 %v155
  %v476 = vpop.f32.mrb[0].mxu0
  %v477 = vadd.f32 %v231, %v476
  %v478 = vpop.f32.mrb[0].mxu0
  %v479 = vpop.f32.mrb[0].mxu0
  %v480 = vadd.f32 %v231, %v479
  %v481 = vpop.f32.mrb[0].mxu0
  %482 = vmatprep.mubr.bf16.mxu0 %v313
  %483 = vmatmul.mubr.bf16.gmra.mrb[0].mxu0 %v157
  %v484 = vpop.f32.mrb[0].mxu0
  %v485 = vadd.f32 %v231, %v484
  %v486 = vpop.f32.mrb[0].mxu0
  %v487 = vpop.f32.mrb[0].mxu0
  %v488 = vadd.f32 %v231, %v487
  %v489 = vpop.f32.mrb[0].mxu0
  %490 = vmatprep.mubr.bf16.mxu0 %v316
  %491 = vmatmul.mubr.bf16.gmra.mrb[0].mxu0 %v159
  %v492 = vpop.f32.mrb[0].mxu0
  %v493 = vadd.f32 %v231, %v492
  %v494 = vpop.f32.mrb[0].mxu0
  %v495 = vpop.f32.mrb[0].mxu0
  %v496 = vadd.f32 %v231, %v495
  %v497 = vpop.f32.mrb[0].mxu0
  %498 = vmatprep.mubr.bf16.mxu0 %v319
  %499 = vmatmul.mubr.bf16.gmra.mrb[0].mxu0 %v161
  %v500 = vpop.f32.mrb[0].mxu0
  %v501 = vadd.f32 %v231, %v500
  %v502 = vpop.f32.mrb[0].mxu0
  %v503 = vpop.f32.mrb[0].mxu0
  %v504 = vadd.f32 %v231, %v503
  %v505 = vpop.f32.mrb[0].mxu0
  %506 = vmatprep.mubr.bf16.mxu0 %v322
  %507 = vmatmul.mubr.bf16.gmra.mrb[0].mxu0 %v163
  %v508 = vpop.f32.mrb[0].mxu0
  %v509 = vadd.f32 %v231, %v508
  %v510 = vpop.f32.mrb[0].mxu0
  %v511 = vpop.f32.mrb[0].mxu0
  %v512 = vadd.f32 %v231, %v511
  %v513 = vpop.f32.mrb[0].mxu0
  %514 = vmatprep.mubr.bf16.mxu0 %v325
  %515 = vmatmul.mubr.bf16.gmra.mrb[0].mxu0 %v165
  %v516 = vpop.f32.mrb[0].mxu0
  %v517 = vadd.f32 %v231, %v516
  %v518 = vpop.f32.mrb[0].mxu0
  %v519 = vpop.f32.mrb[0].mxu0
  %v520 = vadd.f32 %v231, %v519
  %v521 = vpop.f32.mrb[0].mxu0
  %522 = vmatprep.mubr.bf16.mxu0 %v328
  %523 = vmatmul.mubr.bf16.gmra.mrb[0].mxu0 %v167
  %v524 = vpop.f32.mrb[0].mxu0
  %v525 = vadd.f32 %v231, %v524
  %v526 = vpop.f32.mrb[0].mxu0
  %v527 = vpop.f32.mrb[0].mxu0
  %v528 = vadd.f32 %v231, %v527
  %v529 = vpop.f32.mrb[0].mxu0
  %530 = vmatprep.mubr.bf16.mxu0 %v331
  %531 = vmatmul.mubr.bf16.gmra.mrb[0].mxu0 %v169
  %v532 = vpop.f32.mrb[0].mxu0
  %v533 = vadd.f32 %v231, %v532
  %v534 = vpop.f32.mrb[0].mxu0
  %v535 = vpop.f32.mrb[0].mxu0
  %v536 = vadd.f32 %v231, %v535
  %v537 = vpop.f32.mrb[0].mxu0
  %538 = vmatprep.mubr.bf16.mxu0 %v334
  %539 = vmatmul.mubr.bf16.gmra.mrb[0].mxu0 %v171
  %v540 = vpop.f32.mrb[0].mxu0
  %v541 = vadd.f32 %v231, %v540
  %v542 = vpop.f32.mrb[0].mxu0
  %v543 = vpop.f32.mrb[0].mxu0
  %v544 = vadd.f32 %v231, %v543
  %v545 = vpop.f32.mrb[0].mxu0
  %546 = vmatprep.mubr.bf16.mxu0 %v337
  %547 = vmatmul.mubr.bf16.gmra.mrb[0].mxu0 %v173
  %v548 = vpop.f32.mrb[0].mxu0
  %v549 = vadd.f32 %v231, %v548
  %v550 = vpop.f32.mrb[0].mxu0
  %v551 = vpop.f32.mrb[0].mxu0
  %v552 = vadd.f32 %v231, %v551
  %v553 = vpop.f32.mrb[0].mxu0
  %554 = vmatprep.mubr.bf16.mxu0 %v340
  %555 = vmatmul.mubr.bf16.gmra.mrb[0].mxu0 %v175
  %v556 = vpop.f32.mrb[0].mxu0
  %v557 = vadd.f32 %v231, %v556
  %v558 = vpop.f32.mrb[0].mxu0
  %v559 = vpop.f32.mrb[0].mxu0
  %v560 = vadd.f32 %v231, %v559
  %v561 = vpop.f32.mrb[0].mxu0
  %562 = vmatprep.mubr.bf16.mxu0 %v343
  %563 = vmatmul.mubr.bf16.gmra.mrb[0].mxu0 %v177
  %v564 = vpop.f32.mrb[0].mxu0
  %v565 = vadd.f32 %v231, %v564
  %v566 = vpop.f32.mrb[0].mxu0
  %v567 = vpop.f32.mrb[0].mxu0
  %v568 = vadd.f32 %v231, %v567
  %v569 = vpop.f32.mrb[0].mxu0
  %570 = vmatprep.mubr.bf16.mxu0 %v346
  %571 = vmatmul.mubr.bf16.gmra.mrb[0].mxu0 %v179
  %v572 = vpop.f32.mrb[0].mxu0
  %v573 = vadd.f32 %v231, %v572
  %v574 = vpop.f32.mrb[0].mxu0
  %v575 = vpop.f32.mrb[0].mxu0
  %v576 = vadd.f32 %v231, %v575
  %v577 = vpop.f32.mrb[0].mxu0
  %578 = vmatprep.mubr.bf16.mxu0 %v349
  %579 = vmatmul.mubr.bf16.gmra.mrb[0].mxu0 %v181
  %v580 = vpop.f32.mrb[0].mxu0
  %v581 = vadd.f32 %v231, %v580
  %v582 = vpop.f32.mrb[0].mxu0
  %v583 = vpop.f32.mrb[0].mxu0
  %v584 = vadd.f32 %v231, %v583
  %v585 = vpop.f32.mrb[0].mxu0
  %586 = vmatprep.mubr.bf16.mxu0 %v352
  %587 = vmatmul.mubr.bf16.gmra.mrb[0].mxu0 %v183
  %v588 = vpop.f32.mrb[0].mxu0
  %v589 = vadd.f32 %v231, %v588
  %v590 = vpop.f32.mrb[0].mxu0
  %v591 = vpop.f32.mrb[0].mxu0
  %v592 = vadd.f32 %v231, %v591
  %v593 = vpop.f32.mrb[0].mxu0
  %594 = vmatprep.mubr.bf16.mxu0 %v355
  %595 = vmatmul.mubr.bf16.gmra.mrb[0].mxu0 %v185
  %v596 = vpop.f32.mrb[0].mxu0
  %v597 = vadd.f32 %v231, %v596
  %v598 = vpop.f32.mrb[0].mxu0
  %v599 = vpop.f32.mrb[0].mxu0
  %v600 = vadd.f32 %v231, %v599
  %v601 = vpop.f32.mrb[0].mxu0
  %602 = vmatprep.mubr.bf16.mxu0 %v358
  %603 = vmatmul.mubr.bf16.gmra.mrb[0].mxu0 %v187
  %v604 = vpop.f32.mrb[0].mxu0
  %v605 = vadd.f32 %v231, %v604
  %v606 = vpop.f32.mrb[0].mxu0
  %v607 = vpop.f32.mrb[0].mxu0
  %v608 = vadd.f32 %v231, %v607
  %v609 = vpop.f32.mrb[0].mxu0
  %610 = vmatprep.mubr.bf16.mxu0 %v361
  %611 = vmatmul.mubr.bf16.gmra.mrb[0].mxu0 %v189
  %v612 = vpop.f32.mrb[0].mxu0
  %v613 = vadd.f32 %v231, %v612
  %v614 = vpop.f32.mrb[0].mxu0
  %v615 = vpop.f32.mrb[0].mxu0
  %v616 = vadd.f32 %v231, %v615
  %v617 = vpop.f32.mrb[0].mxu0
  %618 = vmatprep.mubr.bf16.mxu0 %v364
  %619 = vmatmul.mubr.bf16.gmra.mrb[0].mxu0 %v191
  %v620 = vpop.f32.mrb[0].mxu0
  %v621 = vadd.f32 %v231, %v620
  %v622 = vpop.f32.mrb[0].mxu0
  %v623 = vpop.f32.mrb[0].mxu0
  %v624 = vadd.f32 %v231, %v623
  %v625 = vpop.f32.mrb[0].mxu0
  %626 = vmatprep.mubr.bf16.mxu0 %v367
  %627 = vmatmul.mubr.bf16.gmra.mrb[0].mxu0 %v193
  %v628 = vpop.f32.mrb[0].mxu0
  %v629 = vadd.f32 %v231, %v628
  %v630 = vpop.f32.mrb[0].mxu0
  %v631 = vpop.f32.mrb[0].mxu0
  %v632 = vadd.f32 %v231, %v631
  %v633 = vpop.f32.mrb[0].mxu0
  %634 = vmatprep.mubr.bf16.mxu0 %v370
  %635 = vmatmul.mubr.bf16.gmra.mrb[0].mxu0 %v195
  %v636 = vpop.f32.mrb[0].mxu0
  %v637 = vadd.f32 %v231, %v636
  %v638 = vpop.f32.mrb[0].mxu0
  %v639 = vpop.f32.mrb[0].mxu0
  %v640 = vadd.f32 %v231, %v639
  %v641 = vpop.f32.mrb[0].mxu0
  %642 = vmatprep.mubr.bf16.mxu0 %v373
  %643 = vmatmul.mubr.bf16.gmra.mrb[0].mxu0 %v197
  %v644 = vpop.f32.mrb[0].mxu0
  %v645 = vadd.f32 %v231, %v644
  %v646 = vpop.f32.mrb[0].mxu0
  %v647 = vpop.f32.mrb[0].mxu0
  %v648 = vadd.f32 %v231, %v647
  %v649 = vpop.f32.mrb[0].mxu0
  %650 = vmatprep.mubr.bf16.mxu0 %v376
  %651 = vmatmul.mubr.bf16.gmra.mrb[0].mxu0 %v199
  %v652 = vpop.f32.mrb[0].mxu0
  %v653 = vadd.f32 %v231, %v652
  %v654 = vpop.f32.mrb[0].mxu0
  %v655 = vpop.f32.mrb[0].mxu0
  %v656 = vadd.f32 %v231, %v655
  %v657 = vpop.f32.mrb[0].mxu0
  %658 = vmatprep.mubr.bf16.mxu0 %v379
  %659 = vmatmul.mubr.bf16.gmra.mrb[0].mxu0 %v201
  %v660 = vpop.f32.mrb[0].mxu0
  %v661 = vadd.f32 %v231, %v660
  %v662 = vpop.f32.mrb[0].mxu0
  %v663 = vpop.f32.mrb[0].mxu0
  %v664 = vadd.f32 %v231, %v663
  %v665 = vpop.f32.mrb[0].mxu0
  %666 = vmatprep.mubr.bf16.mxu0 %v382
  %667 = vmatmul.mubr.bf16.gmra.mrb[0].mxu0 %v203
  %v668 = vpop.f32.mrb[0].mxu0
  %v669 = vadd.f32 %v231, %v668
  %v670 = vpop.f32.mrb[0].mxu0
  %v671 = vpop.f32.mrb[0].mxu0
  %v672 = vadd.f32 %v231, %v671
  %v673 = vpop.f32.mrb[0].mxu0
  %674 = vmatprep.mubr.bf16.mxu0 %v385
  %675 = vmatmul.mubr.bf16.gmra.mrb[0].mxu0 %v205
  %v676 = vpop.f32.mrb[0].mxu0
  %v677 = vadd.f32 %v231, %v676
  %v678 = vpop.f32.mrb[0].mxu0
  %v679 = vpop.f32.mrb[0].mxu0
  %v680 = vadd.f32 %v231, %v679
  %v681 = vpop.f32.mrb[0].mxu0
  %682 = vdwg.mxu0
  %v683 = vmax.f32 %v429, 0.0
  %v684 = vmax.f32 %v432, 0.0
  %v685 = vmax.f32 %v437, 0.0
  %v686 = vmax.f32 %v440, 0.0
  %v687 = vmax.f32 %v445, 0.0
  %v688 = vmax.f32 %v448, 0.0
  %v689 = vmax.f32 %v453, 0.0
  %v690 = vmax.f32 %v456, 0.0
  %v691 = vmax.f32 %v461, 0.0
  %v692 = vmax.f32 %v464, 0.0
  %v693 = vmax.f32 %v469, 0.0
  %v694 = vmax.f32 %v472, 0.0
  %v695 = vmax.f32 %v477, 0.0
  %v696 = vmax.f32 %v480, 0.0
  %v697 = vmax.f32 %v485, 0.0
  %v698 = vmax.f32 %v488, 0.0
  %v699 = vmax.f32 %v493, 0.0
  %v700 = vmax.f32 %v496, 0.0
  %v701 = vmax.f32 %v501, 0.0
  %v702 = vmax.f32 %v504, 0.0
  %v703 = vmax.f32 %v509, 0.0
  %v704 = vmax.f32 %v512, 0.0
  %v705 = vmax.f32 %v517, 0.0
  %v706 = vmax.f32 %v520, 0.0
  %v707 = vmax.f32 %v525, 0.0
  %v708 = vmax.f32 %v528, 0.0
  %v709 = vmax.f32 %v533, 0.0
  %v710 = vmax.f32 %v536, 0.0
  %v711 = vmax.f32 %v541, 0.0
  %v712 = vmax.f32 %v544, 0.0
  %v713 = vmax.f32 %v549, 0.0
  %v714 = vmax.f32 %v552, 0.0
  %v715 = vmax.f32 %v557, 0.0
  %v716 = vmax.f32 %v560, 0.0
  %v717 = vmax.f32 %v565, 0.0
  %v718 = vmax.f32 %v568, 0.0
  %v719 = vmax.f32 %v573, 0.0
  %v720 = vmax.f32 %v576, 0.0
  %v721 = vmax.f32 %v581, 0.0
  %v722 = vmax.f32 %v584, 0.0
  %v723 = vmax.f32 %v589, 0.0
  %v724 = vmax.f32 %v592, 0.0
  %v725 = vmax.f32 %v597, 0.0
  %v726 = vmax.f32 %v600, 0.0
  %v727 = vmax.f32 %v605, 0.0
  %v728 = vmax.f32 %v608, 0.0
  %v729 = vmax.f32 %v613, 0.0
  %v730 = vmax.f32 %v616, 0.0
  %v731 = vmax.f32 %v621, 0.0
  %v732 = vmax.f32 %v624, 0.0
  %v733 = vmax.f32 %v629, 0.0
  %v734 = vmax.f32 %v632, 0.0
  %v735 = vmax.f32 %v637, 0.0
  %v736 = vmax.f32 %v640, 0.0
  %v737 = vmax.f32 %v645, 0.0
  %v738 = vmax.f32 %v648, 0.0
  %v739 = vmax.f32 %v653, 0.0
  %v740 = vmax.f32 %v656, 0.0
  %v741 = vmax.f32 %v661, 0.0
  %v742 = vmax.f32 %v664, 0.0
  %v743 = vmax.f32 %v669, 0.0
  %v744 = vmax.f32 %v672, 0.0
  %v745 = vmax.f32 %v677, 0.0
  %v746 = vmax.f32 %v680, 0.0
  %vm747 = vcmask 523264
  %748 = vst.msk [vmem:[%s3] sm:$0xff] %vm747, %v683
  %749 = vst.msk [vmem:[%s3 + $0x8] sm:$0xff] %vm747, %v684
  %750 = vst.msk [vmem:[%s3 + $0x10] sm:$0xff] %vm747, %v685
  %751 = vst.msk [vmem:[%s3 + $0x18] sm:$0xff] %vm747, %v686
  %752 = vst.msk [vmem:[%s3 + $0x20] sm:$0xff] %vm747, %v687
  %753 = vst.msk [vmem:[%s3 + $0x28] sm:$0xff] %vm747, %v688
  %754 = vst.msk [vmem:[%s3 + $0x30] sm:$0xff] %vm747, %v689
  %755 = vst.msk [vmem:[%s3 + $0x38] sm:$0xff] %vm747, %v690
  %756 = vst.msk [vmem:[%s3 + $0x40] sm:$0xff] %vm747, %v691
  %757 = vst.msk [vmem:[%s3 + $0x48] sm:$0xff] %vm747, %v692
  %758 = vst.msk [vmem:[%s3 + $0x50] sm:$0xff] %vm747, %v693
  %759 = vst.msk [vmem:[%s3 + $0x58] sm:$0xff] %vm747, %v694
  %760 = vst.msk [vmem:[%s3 + $0x60] sm:$0xff] %vm747, %v695
  %761 = vst.msk [vmem:[%s3 + $0x68] sm:$0xff] %vm747, %v696
  %762 = vst.msk [vmem:[%s3 + $0x70] sm:$0xff] %vm747, %v697
  %763 = vst.msk [vmem:[%s3 + $0x78] sm:$0xff] %vm747, %v698
  %764 = vst.msk [vmem:[%s3 + $0x80] sm:$0xff] %vm747, %v699
  %765 = vst.msk [vmem:[%s3 + $0x88] sm:$0xff] %vm747, %v700
  %766 = vst.msk [vmem:[%s3 + $0x90] sm:$0xff] %vm747, %v701
  %767 = vst.msk [vmem:[%s3 + $0x98] sm:$0xff] %vm747, %v702
  %768 = vst.msk [vmem:[%s3 + $0xa0] sm:$0xff] %vm747, %v703
  %769 = vst.msk [vmem:[%s3 + $0xa8] sm:$0xff] %vm747, %v704
  %770 = vst.msk [vmem:[%s3 + $0xb0] sm:$0xff] %vm747, %v705
  %771 = vst.msk [vmem:[%s3 + $0xb8] sm:$0xff] %vm747, %v706
  %772 = vst.msk [vmem:[%s3 + $0xc0] sm:$0xff] %vm747, %v707
  %773 = vst.msk [vmem:[%s3 + $0xc8] sm:$0xff] %vm747, %v708
  %774 = vst.msk [vmem:[%s3 + $0xd0] sm:$0xff] %vm747, %v709
  %775 = vst.msk [vmem:[%s3 + $0xd8] sm:$0xff] %vm747, %v710
  %776 = vst.msk [vmem:[%s3 + $0xe0] sm:$0xff] %vm747, %v711
  %777 = vst.msk [vmem:[%s3 + $0xe8] sm:$0xff] %vm747, %v712
  %778 = vst.msk [vmem:[%s3 + $0xf0] sm:$0xff] %vm747, %v713
  %779 = vst.msk [vmem:[%s3 + $0xf8] sm:$0xff] %vm747, %v714
  %780 = vst.msk [vmem:[%s3 + $0x100] sm:$0xff] %vm747, %v715
  %781 = vst.msk [vmem:[%s3 + $0x108] sm:$0xff] %vm747, %v716
  %782 = vst.msk [vmem:[%s3 + $0x110] sm:$0xff] %vm747, %v717
  %783 = vst.msk [vmem:[%s3 + $0x118] sm:$0xff] %vm747, %v718
  %784 = vst.msk [vmem:[%s3 + $0x120] sm:$0xff] %vm747, %v719
  %785 = vst.msk [vmem:[%s3 + $0x128] sm:$0xff] %vm747, %v720
  %786 = vst.msk [vmem:[%s3 + $0x130] sm:$0xff] %vm747, %v721
  %787 = vst.msk [vmem:[%s3 + $0x138] sm:$0xff] %vm747, %v722
  %788 = vst.msk [vmem:[%s3 + $0x140] sm:$0xff] %vm747, %v723
  %789 = vst.msk [vmem:[%s3 + $0x148] sm:$0xff] %vm747, %v724
  %790 = vst.msk [vmem:[%s3 + $0x150] sm:$0xff] %vm747, %v725
  %791 = vst.msk [vmem:[%s3 + $0x158] sm:$0xff] %vm747, %v726
  %792 = vst.msk [vmem:[%s3 + $0x160] sm:$0xff] %vm747, %v727
  %793 = vst.msk [vmem:[%s3 + $0x168] sm:$0xff] %vm747, %v728
  %794 = vst.msk [vmem:[%s3 + $0x170] sm:$0xff] %vm747, %v729
  %795 = vst.msk [vmem:[%s3 + $0x178] sm:$0xff] %vm747, %v730
  %796 = vst.msk [vmem:[%s3 + $0x180] sm:$0xff] %vm747, %v731
  %797 = vst.msk [vmem:[%s3 + $0x188] sm:$0xff] %vm747, %v732
  %798 = vst.msk [vmem:[%s3 + $0x190] sm:$0xff] %vm747, %v733
  %799 = vst.msk [vmem:[%s3 + $0x198] sm:$0xff] %vm747, %v734
  %800 = vst.msk [vmem:[%s3 + $0x1a0] sm:$0xff] %vm747, %v735
  %801 = vst.msk [vmem:[%s3 + $0x1a8] sm:$0xff] %vm747, %v736
  %802 = vst.msk [vmem:[%s3 + $0x1b0] sm:$0xff] %vm747, %v737
  %803 = vst.msk [vmem:[%s3 + $0x1b8] sm:$0xff] %vm747, %v738
  %804 = vst.msk [vmem:[%s3 + $0x1c0] sm:$0xff] %vm747, %v739
  %805 = vst.msk [vmem:[%s3 + $0x1c8] sm:$0xff] %vm747, %v740
  %806 = vst.msk [vmem:[%s3 + $0x1d0] sm:$0xff] %vm747, %v741
  %807 = vst.msk [vmem:[%s3 + $0x1d8] sm:$0xff] %vm747, %v742
  %808 = vst.msk [vmem:[%s3 + $0x1e0] sm:$0xff] %vm747, %v743
  %809 = vst.msk [vmem:[%s3 + $0x1e8] sm:$0xff] %vm747, %v744
  %810 = vst.msk [vmem:[%s3 + $0x1f0] sm:$0xff] %vm747, %v745
  %811 = vst.msk [vmem:[%s3 + $0x1f8] sm:$0xff] %vm747, %v746
  // Predicated region
  $region14: #{resnet50_vit_forward.24} parent=0 // pred_check
    _
  $region15: #{resnet50_vit_forward.24} parent=0 // pred_check_branch
    %813 = sbr.rel (0) target = $region17
  $region16: #{resnet50_vit_forward.24} parent=0 // pred_region
    _
  $region17: #{resnet50_vit_forward.24} parent=0 // pred_fallthru
    _
  // Predicated region
  $region18: #{resnet50_vit_forward.24} parent=0 // pred_check
    _
  $region19: #{resnet50_vit_forward.24} parent=0 // pred_check_branch
    %815 = sbr.rel (0) target = $region21
  $region20: #{resnet50_vit_forward.24} parent=0 // pred_region
    _
  $region21: #{resnet50_vit_forward.24} parent=0 // pred_fallthru
    _

// kernel: resnet50_vit_forward.25
$region0: #{resnet50_vit_forward.25}
  #allocation0 [shape = 'u32[]', space=smem, size = 0x4, offset = 0x4, fixed_abs, tag = 'smem constant byte address 0x4 - core index']
  #allocation1 [shape = 'u32[144,128]{1,0:T(1,128)}', space=vmem, size = 0x12000, scoped, tag = 'internal scratch']
  %s0 = inlined_call_operand.vmem [shape: f32[9,128,64], index: 0, kind: input, shape index: {}]
  %s1 = inlined_call_operand.vmem [shape: f32[128,64], index: 1, kind: output, shape index: {}]
  %s2 = sld [smem:[#allocation0]]
  $region14: #{resnet50_vit_forward.25} parent=0
    _
  %s4 = ssub.s32 1, %s2
  %s5 = scalar_select 0, %s4, %s2
  // Predicated region
  $region2: #{resnet50_vit_forward.25} parent=0 // pred_check
    _
  $region3: #{resnet50_vit_forward.25} parent=0 // pred_check_branch
    %7 = sbr.rel (0) target = $region5
  $region4: #{resnet50_vit_forward.25} parent=0 // pred_region
    _
  $region5: #{resnet50_vit_forward.25} parent=0 // pred_fallthru
    _
  %v8 = vld [vmem:[%s0] sm:$0xff]
  %v9 = vld [vmem:[%s0 + $0x8] sm:$0xff]
  %v10 = vld [vmem:[%s0 + $0x10] sm:$0xff]
  %v11 = vld [vmem:[%s0 + $0x18] sm:$0xff]
  %v12 = vld [vmem:[%s0 + $0x20] sm:$0xff]
  %v13 = vld [vmem:[%s0 + $0x28] sm:$0xff]
  %v14 = vld [vmem:[%s0 + $0x30] sm:$0xff]
  %v15 = vld [vmem:[%s0 + $0x38] sm:$0xff]
  %v16 = vld [vmem:[%s0 + $0x40] sm:$0xff]
  %v17 = vld [vmem:[%s0 + $0x48] sm:$0xff]
  %v18 = vld [vmem:[%s0 + $0x50] sm:$0xff]
  %v19 = vld [vmem:[%s0 + $0x58] sm:$0xff]
  %v20 = vld [vmem:[%s0 + $0x60] sm:$0xff]
  %v21 = vld [vmem:[%s0 + $0x68] sm:$0xff]
  %v22 = vld [vmem:[%s0 + $0x70] sm:$0xff]
  %v23 = vld [vmem:[%s0 + $0x78] sm:$0xff]
  %v24 = vld [vmem:[%s0 + $0x80] sm:$0xff]
  %v25 = vld [vmem:[%s0 + $0x88] sm:$0xff]
  %v26 = vld [vmem:[%s0 + $0x90] sm:$0xff]
  %v27 = vld [vmem:[%s0 + $0x98] sm:$0xff]
  %v28 = vld [vmem:[%s0 + $0xa0] sm:$0xff]
  %v29 = vld [vmem:[%s0 + $0xa8] sm:$0xff]
  %v30 = vld [vmem:[%s0 + $0xb0] sm:$0xff]
  %v31 = vld [vmem:[%s0 + $0xb8] sm:$0xff]
  %v32 = vld [vmem:[%s0 + $0xc0] sm:$0xff]
  %v33 = vld [vmem:[%s0 + $0xc8] sm:$0xff]
  %v34 = vld [vmem:[%s0 + $0xd0] sm:$0xff]
  %v35 = vld [vmem:[%s0 + $0xd8] sm:$0xff]
  %v36 = vld [vmem:[%s0 + $0xe0] sm:$0xff]
  %v37 = vld [vmem:[%s0 + $0xe8] sm:$0xff]
  %v38 = vld [vmem:[%s0 + $0xf0] sm:$0xff]
  %v39 = vld [vmem:[%s0 + $0xf8] sm:$0xff]
  %v40 = vld [vmem:[%s0 + $0x100] sm:$0xff]
  %v41 = vld [vmem:[%s0 + $0x108] sm:$0xff]
  %v42 = vld [vmem:[%s0 + $0x110] sm:$0xff]
  %v43 = vld [vmem:[%s0 + $0x118] sm:$0xff]
  %v44 = vld [vmem:[%s0 + $0x120] sm:$0xff]
  %v45 = vld [vmem:[%s0 + $0x128] sm:$0xff]
  %v46 = vld [vmem:[%s0 + $0x130] sm:$0xff]
  %v47 = vld [vmem:[%s0 + $0x138] sm:$0xff]
  %v48 = vld [vmem:[%s0 + $0x140] sm:$0xff]
  %v49 = vld [vmem:[%s0 + $0x148] sm:$0xff]
  %v50 = vld [vmem:[%s0 + $0x150] sm:$0xff]
  %v51 = vld [vmem:[%s0 + $0x158] sm:$0xff]
  %v52 = vld [vmem:[%s0 + $0x160] sm:$0xff]
  %v53 = vld [vmem:[%s0 + $0x168] sm:$0xff]
  %v54 = vld [vmem:[%s0 + $0x170] sm:$0xff]
  %v55 = vld [vmem:[%s0 + $0x178] sm:$0xff]
  %v56 = vld [vmem:[%s0 + $0x180] sm:$0xff]
  %v57 = vld [vmem:[%s0 + $0x188] sm:$0xff]
  %v58 = vld [vmem:[%s0 + $0x190] sm:$0xff]
  %v59 = vld [vmem:[%s0 + $0x198] sm:$0xff]
  %v60 = vld [vmem:[%s0 + $0x1a0] sm:$0xff]
  %v61 = vld [vmem:[%s0 + $0x1a8] sm:$0xff]
  %v62 = vld [vmem:[%s0 + $0x1b0] sm:$0xff]
  %v63 = vld [vmem:[%s0 + $0x1b8] sm:$0xff]
  %v64 = vld [vmem:[%s0 + $0x1c0] sm:$0xff]
  %v65 = vld [vmem:[%s0 + $0x1c8] sm:$0xff]
  %v66 = vld [vmem:[%s0 + $0x1d0] sm:$0xff]
  %v67 = vld [vmem:[%s0 + $0x1d8] sm:$0xff]
  %v68 = vld [vmem:[%s0 + $0x1e0] sm:$0xff]
  %v69 = vld [vmem:[%s0 + $0x1e8] sm:$0xff]
  %v70 = vld [vmem:[%s0 + $0x1f0] sm:$0xff]
  %v71 = vld [vmem:[%s0 + $0x1f8] sm:$0xff]
  %v72 = vld [vmem:[%s0 + $0x200] sm:$0xff]
  %v73 = vld [vmem:[%s0 + $0x208] sm:$0xff]
  %v74 = vld [vmem:[%s0 + $0x210] sm:$0xff]
  %v75 = vld [vmem:[%s0 + $0x218] sm:$0xff]
  %v76 = vld [vmem:[%s0 + $0x220] sm:$0xff]
  %v77 = vld [vmem:[%s0 + $0x228] sm:$0xff]
  %v78 = vld [vmem:[%s0 + $0x230] sm:$0xff]
  %v79 = vld [vmem:[%s0 + $0x238] sm:$0xff]
  %v80 = vld [vmem:[%s0 + $0x240] sm:$0xff]
  %v81 = vld [vmem:[%s0 + $0x248] sm:$0xff]
  %v82 = vld [vmem:[%s0 + $0x250] sm:$0xff]
  %v83 = vld [vmem:[%s0 + $0x258] sm:$0xff]
  %v84 = vld [vmem:[%s0 + $0x260] sm:$0xff]
  %v85 = vld [vmem:[%s0 + $0x268] sm:$0xff]
  %v86 = vld [vmem:[%s0 + $0x270] sm:$0xff]
  %v87 = vld [vmem:[%s0 + $0x278] sm:$0xff]
  %v88 = vld [vmem:[%s0 + $0x280] sm:$0xff]
  %v89 = vld [vmem:[%s0 + $0x288] sm:$0xff]
  %v90 = vld [vmem:[%s0 + $0x290] sm:$0xff]
  %v91 = vld [vmem:[%s0 + $0x298] sm:$0xff]
  %v92 = vld [vmem:[%s0 + $0x2a0] sm:$0xff]
  %v93 = vld [vmem:[%s0 + $0x2a8] sm:$0xff]
  %v94 = vld [vmem:[%s0 + $0x2b0] sm:$0xff]
  %v95 = vld [vmem:[%s0 + $0x2b8] sm:$0xff]
  %v96 = vld [vmem:[%s0 + $0x2c0] sm:$0xff]
  %v97 = vld [vmem:[%s0 + $0x2c8] sm:$0xff]
  %v98 = vld [vmem:[%s0 + $0x2d0] sm:$0xff]
  %v99 = vld [vmem:[%s0 + $0x2d8] sm:$0xff]
  %v100 = vld [vmem:[%s0 + $0x2e0] sm:$0xff]
  %v101 = vld [vmem:[%s0 + $0x2e8] sm:$0xff]
  %v102 = vld [vmem:[%s0 + $0x2f0] sm:$0xff]
  %v103 = vld [vmem:[%s0 + $0x2f8] sm:$0xff]
  %v104 = vld [vmem:[%s0 + $0x300] sm:$0xff]
  %v105 = vld [vmem:[%s0 + $0x308] sm:$0xff]
  %v106 = vld [vmem:[%s0 + $0x310] sm:$0xff]
  %v107 = vld [vmem:[%s0 + $0x318] sm:$0xff]
  %v108 = vld [vmem:[%s0 + $0x320] sm:$0xff]
  %v109 = vld [vmem:[%s0 + $0x328] sm:$0xff]
  %v110 = vld [vmem:[%s0 + $0x330] sm:$0xff]
  %v111 = vld [vmem:[%s0 + $0x338] sm:$0xff]
  %v112 = vld [vmem:[%s0 + $0x340] sm:$0xff]
  %v113 = vld [vmem:[%s0 + $0x348] sm:$0xff]
  %v114 = vld [vmem:[%s0 + $0x350] sm:$0xff]
  %v115 = vld [vmem:[%s0 + $0x358] sm:$0xff]
  %v116 = vld [vmem:[%s0 + $0x360] sm:$0xff]
  %v117 = vld [vmem:[%s0 + $0x368] sm:$0xff]
  %v118 = vld [vmem:[%s0 + $0x370] sm:$0xff]
  %v119 = vld [vmem:[%s0 + $0x378] sm:$0xff]
  %v120 = vld [vmem:[%s0 + $0x380] sm:$0xff]
  %v121 = vld [vmem:[%s0 + $0x388] sm:$0xff]
  %v122 = vld [vmem:[%s0 + $0x390] sm:$0xff]
  %v123 = vld [vmem:[%s0 + $0x398] sm:$0xff]
  %v124 = vld [vmem:[%s0 + $0x3a0] sm:$0xff]
  %v125 = vld [vmem:[%s0 + $0x3a8] sm:$0xff]
  %v126 = vld [vmem:[%s0 + $0x3b0] sm:$0xff]
  %v127 = vld [vmem:[%s0 + $0x3b8] sm:$0xff]
  %v128 = vld [vmem:[%s0 + $0x3c0] sm:$0xff]
  %v129 = vld [vmem:[%s0 + $0x3c8] sm:$0xff]
  %v130 = vld [vmem:[%s0 + $0x3d0] sm:$0xff]
  %v131 = vld [vmem:[%s0 + $0x3d8] sm:$0xff]
  %v132 = vld [vmem:[%s0 + $0x3e0] sm:$0xff]
  %v133 = vld [vmem:[%s0 + $0x3e8] sm:$0xff]
  %v134 = vld [vmem:[%s0 + $0x3f0] sm:$0xff]
  %v135 = vld [vmem:[%s0 + $0x3f8] sm:$0xff]
  %v136 = vld [vmem:[%s0 + $0x400] sm:$0xff]
  %v137 = vld [vmem:[%s0 + $0x408] sm:$0xff]
  %v138 = vld [vmem:[%s0 + $0x410] sm:$0xff]
  %v139 = vld [vmem:[%s0 + $0x418] sm:$0xff]
  %v140 = vld [vmem:[%s0 + $0x420] sm:$0xff]
  %v141 = vld [vmem:[%s0 + $0x428] sm:$0xff]
  %v142 = vld [vmem:[%s0 + $0x430] sm:$0xff]
  %v143 = vld [vmem:[%s0 + $0x438] sm:$0xff]
  %v144 = vld [vmem:[%s0 + $0x440] sm:$0xff]
  %v145 = vld [vmem:[%s0 + $0x448] sm:$0xff]
  %v146 = vld [vmem:[%s0 + $0x450] sm:$0xff]
  %v147 = vld [vmem:[%s0 + $0x458] sm:$0xff]
  %v148 = vld [vmem:[%s0 + $0x460] sm:$0xff]
  %v149 = vld [vmem:[%s0 + $0x468] sm:$0xff]
  %v150 = vld [vmem:[%s0 + $0x470] sm:$0xff]
  %v151 = vld [vmem:[%s0 + $0x478] sm:$0xff]
  %vm152 = vcmask 523264
  %v153 = vsel %vm152, %v8, -inf
  %v154 = vsel %vm152, %v24, -inf
  %v155 = vmax.f32 %v153, %v154
  %v156 = vsel %vm152, %v40, -inf
  %v157 = vmax.f32 %v155, %v156
  %v158 = vsel %vm152, %v56, -inf
  %v159 = vmax.f32 %v157, %v158
  %v160 = vsel %vm152, %v72, -inf
  %v161 = vmax.f32 %v159, %v160
  %v162 = vsel %vm152, %v88, -inf
  %v163 = vmax.f32 %v161, %v162
  %v164 = vsel %vm152, %v104, -inf
  %v165 = vmax.f32 %v163, %v164
  %v166 = vsel %vm152, %v120, -inf
  %v167 = vmax.f32 %v165, %v166
  %v168 = vsel %vm152, %v136, -inf
  %v169 = vmax.f32 %v167, %v168
  %v170 = vsel %vm152, %v9, -inf
  %v171 = vsel %vm152, %v25, -inf
  %v172 = vmax.f32 %v170, %v171
  %v173 = vsel %vm152, %v41, -inf
  %v174 = vmax.f32 %v172, %v173
  %v175 = vsel %vm152, %v57, -inf
  %v176 = vmax.f32 %v174, %v175
  %v177 = vsel %vm152, %v73, -inf
  %v178 = vmax.f32 %v176, %v177
  %v179 = vsel %vm152, %v89, -inf
  %v180 = vmax.f32 %v178, %v179
  %v181 = vsel %vm152, %v105, -inf
  %v182 = vmax.f32 %v180, %v181
  %v183 = vsel %vm152, %v121, -inf
  %v184 = vmax.f32 %v182, %v183
  %v185 = vsel %vm152, %v137, -inf
  %v186 = vmax.f32 %v184, %v185
  %v187 = vsel %vm152, %v10, -inf
  %v188 = vsel %vm152, %v26, -inf
  %v189 = vmax.f32 %v187, %v188
  %v190 = vsel %vm152, %v42, -inf
  %v191 = vmax.f32 %v189, %v190
  %v192 = vsel %vm152, %v58, -inf
  %v193 = vmax.f32 %v191, %v192
  %v194 = vsel %vm152, %v74, -inf
  %v195 = vmax.f32 %v193, %v194
  %v196 = vsel %vm152, %v90, -inf
  %v197 = vmax.f32 %v195, %v196
  %v198 = vsel %vm152, %v106, -inf
  %v199 = vmax.f32 %v197, %v198
  %v200 = vsel %vm152, %v122, -inf
  %v201 = vmax.f32 %v199, %v200
  %v202 = vsel %vm152, %v138, -inf
  %v203 = vmax.f32 %v201, %v202
  %v204 = vsel %vm152, %v11, -inf
  %v205 = vsel %vm152, %v27, -inf
  %v206 = vmax.f32 %v204, %v205
  %v207 = vsel %vm152, %v43, -inf
  %v208 = vmax.f32 %v206, %v207
  %v209 = vsel %vm152, %v59, -inf
  %v210 = vmax.f32 %v208, %v209
  %v211 = vsel %vm152, %v75, -inf
  %v212 = vmax.f32 %v210, %v211
  %v213 = vsel %vm152, %v91, -inf
  %v214 = vmax.f32 %v212, %v213
  %v215 = vsel %vm152, %v107, -inf
  %v216 = vmax.f32 %v214, %v215
  %v217 = vsel %vm152, %v123, -inf
  %v218 = vmax.f32 %v216, %v217
  %v219 = vsel %vm152, %v139, -inf
  %v220 = vmax.f32 %v218, %v219
  %v221 = vsel %vm152, %v12, -inf
  %v222 = vsel %vm152, %v28, -inf
  %v223 = vmax.f32 %v221, %v222
  %v224 = vsel %vm152, %v44, -inf
  %v225 = vmax.f32 %v223, %v224
  %v226 = vsel %vm152, %v60, -inf
  %v227 = vmax.f32 %v225, %v226
  %v228 = vsel %vm152, %v76, -inf
  %v229 = vmax.f32 %v227, %v228
  %v230 = vsel %vm152, %v92, -inf
  %v231 = vmax.f32 %v229, %v230
  %v232 = vsel %vm152, %v108, -inf
  %v233 = vmax.f32 %v231, %v232
  %v234 = vsel %vm152, %v124, -inf
  %v235 = vmax.f32 %v233, %v234
  %v236 = vsel %vm152, %v140, -inf
  %v237 = vmax.f32 %v235, %v236
  %v238 = vsel %vm152, %v13, -inf
  %v239 = vsel %vm152, %v29, -inf
  %v240 = vmax.f32 %v238, %v239
  %v241 = vsel %vm152, %v45, -inf
  %v242 = vmax.f32 %v240, %v241
  %v243 = vsel %vm152, %v61, -inf
  %v244 = vmax.f32 %v242, %v243
  %v245 = vsel %vm152, %v77, -inf
  %v246 = vmax.f32 %v244, %v245
  %v247 = vsel %vm152, %v93, -inf
  %v248 = vmax.f32 %v246, %v247
  %v249 = vsel %vm152, %v109, -inf
  %v250 = vmax.f32 %v248, %v249
  %v251 = vsel %vm152, %v125, -inf
  %v252 = vmax.f32 %v250, %v251
  %v253 = vsel %vm152, %v141, -inf
  %v254 = vmax.f32 %v252, %v253
  %v255 = vsel %vm152, %v14, -inf
  %v256 = vsel %vm152, %v30, -inf
  %v257 = vmax.f32 %v255, %v256
  %v258 = vsel %vm152, %v46, -inf
  %v259 = vmax.f32 %v257, %v258
  %v260 = vsel %vm152, %v62, -inf
  %v261 = vmax.f32 %v259, %v260
  %v262 = vsel %vm152, %v78, -inf
  %v263 = vmax.f32 %v261, %v262
  %v264 = vsel %vm152, %v94, -inf
  %v265 = vmax.f32 %v263, %v264
  %v266 = vsel %vm152, %v110, -inf
  %v267 = vmax.f32 %v265, %v266
  %v268 = vsel %vm152, %v126, -inf
  %v269 = vmax.f32 %v267, %v268
  %v270 = vsel %vm152, %v142, -inf
  %v271 = vmax.f32 %v269, %v270
  %v272 = vsel %vm152, %v15, -inf
  %v273 = vsel %vm152, %v31, -inf
  %v274 = vmax.f32 %v272, %v273
  %v275 = vsel %vm152, %v47, -inf
  %v276 = vmax.f32 %v274, %v275
  %v277 = vsel %vm152, %v63, -inf
  %v278 = vmax.f32 %v276, %v277
  %v279 = vsel %vm152, %v79, -inf
  %v280 = vmax.f32 %v278, %v279
  %v281 = vsel %vm152, %v95, -inf
  %v282 = vmax.f32 %v280, %v281
  %v283 = vsel %vm152, %v111, -inf
  %v284 = vmax.f32 %v282, %v283
  %v285 = vsel %vm152, %v127, -inf
  %v286 = vmax.f32 %v284, %v285
  %v287 = vsel %vm152, %v143, -inf
  %v288 = vmax.f32 %v286, %v287
  %v289 = vsel %vm152, %v16, -inf
  %v290 = vsel %vm152, %v32, -inf
  %v291 = vmax.f32 %v289, %v290
  %v292 = vsel %vm152, %v48, -inf
  %v293 = vmax.f32 %v291, %v292
  %v294 = vsel %vm152, %v64, -inf
  %v295 = vmax.f32 %v293, %v294
  %v296 = vsel %vm152, %v80, -inf
  %v297 = vmax.f32 %v295, %v296
  %v298 = vsel %vm152, %v96, -inf
  %v299 = vmax.f32 %v297, %v298
  %v300 = vsel %vm152, %v112, -inf
  %v301 = vmax.f32 %v299, %v300
  %v302 = vsel %vm152, %v128, -inf
  %v303 = vmax.f32 %v301, %v302
  %v304 = vsel %vm152, %v144, -inf
  %v305 = vmax.f32 %v303, %v304
  %v306 = vsel %vm152, %v17, -inf
  %v307 = vsel %vm152, %v33, -inf
  %v308 = vmax.f32 %v306, %v307
  %v309 = vsel %vm152, %v49, -inf
  %v310 = vmax.f32 %v308, %v309
  %v311 = vsel %vm152, %v65, -inf
  %v312 = vmax.f32 %v310, %v311
  %v313 = vsel %vm152, %v81, -inf
  %v314 = vmax.f32 %v312, %v313
  %v315 = vsel %vm152, %v97, -inf
  %v316 = vmax.f32 %v314, %v315
  %v317 = vsel %vm152, %v113, -inf
  %v318 = vmax.f32 %v316, %v317
  %v319 = vsel %vm152, %v129, -inf
  %v320 = vmax.f32 %v318, %v319
  %v321 = vsel %vm152, %v145, -inf
  %v322 = vmax.f32 %v320, %v321
  %v323 = vsel %vm152, %v18, -inf
  %v324 = vsel %vm152, %v34, -inf
  %v325 = vmax.f32 %v323, %v324
  %v326 = vsel %vm152, %v50, -inf
  %v327 = vmax.f32 %v325, %v326
  %v328 = vsel %vm152, %v66, -inf
  %v329 = vmax.f32 %v327, %v328
  %v330 = vsel %vm152, %v82, -inf
  %v331 = vmax.f32 %v329, %v330
  %v332 = vsel %vm152, %v98, -inf
  %v333 = vmax.f32 %v331, %v332
  %v334 = vsel %vm152, %v114, -inf
  %v335 = vmax.f32 %v333, %v334
  %v336 = vsel %vm152, %v130, -inf
  %v337 = vmax.f32 %v335, %v336
  %v338 = vsel %vm152, %v146, -inf
  %v339 = vmax.f32 %v337, %v338
  %v340 = vsel %vm152, %v19, -inf
  %v341 = vsel %vm152, %v35, -inf
  %v342 = vmax.f32 %v340, %v341
  %v343 = vsel %vm152, %v51, -inf
  %v344 = vmax.f32 %v342, %v343
  %v345 = vsel %vm152, %v67, -inf
  %v346 = vmax.f32 %v344, %v345
  %v347 = vsel %vm152, %v83, -inf
  %v348 = vmax.f32 %v346, %v347
  %v349 = vsel %vm152, %v99, -inf
  %v350 = vmax.f32 %v348, %v349
  %v351 = vsel %vm152, %v115, -inf
  %v352 = vmax.f32 %v350, %v351
  %v353 = vsel %vm152, %v131, -inf
  %v354 = vmax.f32 %v352, %v353
  %v355 = vsel %vm152, %v147, -inf
  %v356 = vmax.f32 %v354, %v355
  %v357 = vsel %vm152, %v20, -inf
  %v358 = vsel %vm152, %v36, -inf
  %v359 = vmax.f32 %v357, %v358
  %v360 = vsel %vm152, %v52, -inf
  %v361 = vmax.f32 %v359, %v360
  %v362 = vsel %vm152, %v68, -inf
  %v363 = vmax.f32 %v361, %v362
  %v364 = vsel %vm152, %v84, -inf
  %v365 = vmax.f32 %v363, %v364
  %v366 = vsel %vm152, %v100, -inf
  %v367 = vmax.f32 %v365, %v366
  %v368 = vsel %vm152, %v116, -inf
  %v369 = vmax.f32 %v367, %v368
  %v370 = vsel %vm152, %v132, -inf
  %v371 = vmax.f32 %v369, %v370
  %v372 = vsel %vm152, %v148, -inf
  %v373 = vmax.f32 %v371, %v372
  %v374 = vsel %vm152, %v21, -inf
  %v375 = vsel %vm152, %v37, -inf
  %v376 = vmax.f32 %v374, %v375
  %v377 = vsel %vm152, %v53, -inf
  %v378 = vmax.f32 %v376, %v377
  %v379 = vsel %vm152, %v69, -inf
  %v380 = vmax.f32 %v378, %v379
  %v381 = vsel %vm152, %v85, -inf
  %v382 = vmax.f32 %v380, %v381
  %v383 = vsel %vm152, %v101, -inf
  %v384 = vmax.f32 %v382, %v383
  %v385 = vsel %vm152, %v117, -inf
  %v386 = vmax.f32 %v384, %v385
  %v387 = vsel %vm152, %v133, -inf
  %v388 = vmax.f32 %v386, %v387
  %v389 = vsel %vm152, %v149, -inf
  %v390 = vmax.f32 %v388, %v389
  %v391 = vsel %vm152, %v22, -inf
  %v392 = vsel %vm152, %v38, -inf
  %v393 = vmax.f32 %v391, %v392
  %v394 = vsel %vm152, %v54, -inf
  %v395 = vmax.f32 %v393, %v394
  %v396 = vsel %vm152, %v70, -inf
  %v397 = vmax.f32 %v395, %v396
  %v398 = vsel %vm152, %v86, -inf
  %v399 = vmax.f32 %v397, %v398
  %v400 = vsel %vm152, %v102, -inf
  %v401 = vmax.f32 %v399, %v400
  %v402 = vsel %vm152, %v118, -inf
  %v403 = vmax.f32 %v401, %v402
  %v404 = vsel %vm152, %v134, -inf
  %v405 = vmax.f32 %v403, %v404
  %v406 = vsel %vm152, %v150, -inf
  %v407 = vmax.f32 %v405, %v406
  %v408 = vsel %vm152, %v23, -inf
  %v409 = vsel %vm152, %v39, -inf
  %v410 = vmax.f32 %v408, %v409
  %v411 = vsel %vm152, %v55, -inf
  %v412 = vmax.f32 %v410, %v411
  %v413 = vsel %vm152, %v71, -inf
  %v414 = vmax.f32 %v412, %v413
  %v415 = vsel %vm152, %v87, -inf
  %v416 = vmax.f32 %v414, %v415
  %v417 = vsel %vm152, %v103, -inf
  %v418 = vmax.f32 %v416, %v417
  %v419 = vsel %vm152, %v119, -inf
  %v420 = vmax.f32 %v418, %v419
  %v421 = vsel %vm152, %v135, -inf
  %v422 = vmax.f32 %v420, %v421
  %v423 = vsel %vm152, %v151, -inf
  %v424 = vmax.f32 %v422, %v423
  %425 = vst.msk [vmem:[%s1] sm:$0xff] %vm152, %v169
  %426 = vst.msk [vmem:[%s1 + $0x8] sm:$0xff] %vm152, %v186
  %427 = vst.msk [vmem:[%s1 + $0x10] sm:$0xff] %vm152, %v203
  %428 = vst.msk [vmem:[%s1 + $0x18] sm:$0xff] %vm152, %v220
  %429 = vst.msk [vmem:[%s1 + $0x20] sm:$0xff] %vm152, %v237
  %430 = vst.msk [vmem:[%s1 + $0x28] sm:$0xff] %vm152, %v254
  %431 = vst.msk [vmem:[%s1 + $0x30] sm:$0xff] %vm152, %v271
  %432 = vst.msk [vmem:[%s1 + $0x38] sm:$0xff] %vm152, %v288
  %433 = vst.msk [vmem:[%s1 + $0x40] sm:$0xff] %vm152, %v305
  %434 = vst.msk [vmem:[%s1 + $0x48] sm:$0xff] %vm152, %v322
  %435 = vst.msk [vmem:[%s1 + $0x50] sm:$0xff] %vm152, %v339
  %436 = vst.msk [vmem:[%s1 + $0x58] sm:$0xff] %vm152, %v356
  %437 = vst.msk [vmem:[%s1 + $0x60] sm:$0xff] %vm152, %v373
  %438 = vst.msk [vmem:[%s1 + $0x68] sm:$0xff] %vm152, %v390
  %439 = vst.msk [vmem:[%s1 + $0x70] sm:$0xff] %vm152, %v407
  %440 = vst.msk [vmem:[%s1 + $0x78] sm:$0xff] %vm152, %v424
  // Predicated region
  $region6: #{resnet50_vit_forward.25} parent=0 // pred_check
    _
  $region7: #{resnet50_vit_forward.25} parent=0 // pred_check_branch
    %442 = sbr.rel (0) target = $region9
  $region8: #{resnet50_vit_forward.25} parent=0 // pred_region
    _
  $region9: #{resnet50_vit_forward.25} parent=0 // pred_fallthru
    _
  // Predicated region
  $region10: #{resnet50_vit_forward.25} parent=0 // pred_check
    _
  $region11: #{resnet50_vit_forward.25} parent=0 // pred_check_branch
    %444 = sbr.rel (0) target = $region13
  $region12: #{resnet50_vit_forward.25} parent=0 // pred_region
    _
  $region13: #{resnet50_vit_forward.25} parent=0 // pred_fallthru
    _

// kernel: resnet50_vit_forward.26
$region0: #{resnet50_vit_forward.26}
  #allocation0 [shape = 'u32[]', space=smem, size = 0x4, offset = 0x4, fixed_abs, tag = 'smem constant byte address 0x4 - core index']
  #allocation1 [shape = 'u32[144,128]{1,0:T(1,128)}', space=vmem, size = 0x12000, scoped, tag = 'internal scratch']
  %s0 = inlined_call_operand.vmem [shape: f32[128,64], index: 0, kind: input, shape index: {}]
  %s1 = inlined_call_operand.vmem [shape: bf16[64,256], index: 1, kind: input, shape index: {}]
  %s2 = inlined_call_operand.vmem [shape: f32[1,256], index: 2, kind: input, shape index: {}]
  %s3 = inlined_call_operand.vmem [shape: f32[128,256], index: 3, kind: output, shape index: {}]
  %s4 = sld [smem:[#allocation0]]
  $region22: #{resnet50_vit_forward.26} parent=0
    _
  %s6 = ssub.s32 1, %s4
  %s7 = scalar_select 0, %s6, %s4
  // Predicated region
  $region2: #{resnet50_vit_forward.26} parent=0 // pred_check
    _
  $region3: #{resnet50_vit_forward.26} parent=0 // pred_check_branch
    %9 = sbr.rel (0) target = $region5
  $region4: #{resnet50_vit_forward.26} parent=0 // pred_region
    _
  $region5: #{resnet50_vit_forward.26} parent=0 // pred_fallthru
    _
  // Predicated region
  $region6: #{resnet50_vit_forward.26} parent=0 // pred_check
    _
  $region7: #{resnet50_vit_forward.26} parent=0 // pred_check_branch
    %11 = sbr.rel (0) target = $region9
  $region8: #{resnet50_vit_forward.26} parent=0 // pred_region
    _
  $region9: #{resnet50_vit_forward.26} parent=0 // pred_fallthru
    _
  // Predicated region
  $region10: #{resnet50_vit_forward.26} parent=0 // pred_check
    _
  $region11: #{resnet50_vit_forward.26} parent=0 // pred_check_branch
    %13 = sbr.rel (0) target = $region13
  $region12: #{resnet50_vit_forward.26} parent=0 // pred_region
    _
  $region13: #{resnet50_vit_forward.26} parent=0 // pred_fallthru
    _
  %v15 = vld [vmem:[%s0] sm:$0xff]
  %v16 = vld [vmem:[%s0 + $0x8] sm:$0xff]
  %v17 = vld [vmem:[%s0 + $0x10] sm:$0xff]
  %v18 = vld [vmem:[%s0 + $0x18] sm:$0xff]
  %v19 = vld [vmem:[%s0 + $0x20] sm:$0xff]
  %v20 = vld [vmem:[%s0 + $0x28] sm:$0xff]
  %v21 = vld [vmem:[%s0 + $0x30] sm:$0xff]
  %v22 = vld [vmem:[%s0 + $0x38] sm:$0xff]
  %v23 = vld [vmem:[%s0 + $0x40] sm:$0xff]
  %v24 = vld [vmem:[%s0 + $0x48] sm:$0xff]
  %v25 = vld [vmem:[%s0 + $0x50] sm:$0xff]
  %v26 = vld [vmem:[%s0 + $0x58] sm:$0xff]
  %v27 = vld [vmem:[%s0 + $0x60] sm:$0xff]
  %v28 = vld [vmem:[%s0 + $0x68] sm:$0xff]
  %v29 = vld [vmem:[%s0 + $0x70] sm:$0xff]
  %v30 = vld [vmem:[%s0 + $0x78] sm:$0xff]
  %v31 = vpack.c.bf16 %v16, %v15
  %v32 = vpack.c.bf16 %v18, %v17
  %v33 = vpack.c.bf16 %v20, %v19
  %v34 = vpack.c.bf16 %v22, %v21
  %v35 = vpack.c.bf16 %v24, %v23
  %v36 = vpack.c.bf16 %v26, %v25
  %v37 = vpack.c.bf16 %v28, %v27
  %v38 = vpack.c.bf16 %v30, %v29
  %v39 = vld [vmem:[%s1] sm:$0xff]
  %v40 = vld [vmem:[%s1 + $0x8] sm:$0xff]
  %v41 = vld [vmem:[%s1 + $0x10] sm:$0xff]
  %v42 = vld [vmem:[%s1 + $0x18] sm:$0xff]
  %v43 = vld [vmem:[%s1 + $0x20] sm:$0xff]
  %v44 = vld [vmem:[%s1 + $0x28] sm:$0xff]
  %v45 = vld [vmem:[%s1 + $0x30] sm:$0xff]
  %v46 = vld [vmem:[%s1 + $0x38] sm:$0xff]
  %v47 = vld [vmem:[%s2] sm:$0x3]
  %v49 = vlaneseq
  %v50 = vshrl.u32 %v49, 7
  %v51 = vsub.s32 0, %v50
  %v52 = vrot.slane %v47, %v51
  %v53 = vlaneseq
  %v54 = vshrl.u32 %v53, 7
  %v55 = vsub.s32 1, %v54
  %v56 = vrot.slane %v47, %v55
  %v67 = vunpack.c.l.b16 %v39
  %v68 = vunpack.c.h.b16 %v39
  %v69 = vunpack.c.l.b16 %v40
  %v70 = vunpack.c.h.b16 %v40
  %v71 = vunpack.c.l.b16 %v41
  %v72 = vunpack.c.h.b16 %v41
  %v73 = vunpack.c.l.b16 %v42
  %v74 = vunpack.c.h.b16 %v42
  %v75 = vunpack.c.l.b16 %v43
  %v76 = vunpack.c.h.b16 %v43
  %v77 = vunpack.c.l.b16 %v44
  %v78 = vunpack.c.h.b16 %v44
  %v79 = vunpack.c.l.b16 %v45
  %v80 = vunpack.c.h.b16 %v45
  %v81 = vunpack.c.l.b16 %v46
  %v82 = vunpack.c.h.b16 %v46
  %v83 = vpack.c.b16 %v69, %v67
  %v84 = vpack.c.b16 %v70, %v68
  %v85 = vpack.c.b16 %v73, %v71
  %v86 = vpack.c.b16 %v74, %v72
  %v87 = vpack.c.b16 %v77, %v75
  %v88 = vpack.c.b16 %v78, %v76
  %v89 = vpack.c.b16 %v81, %v79
  %v90 = vpack.c.b16 %v82, %v80
  %vm99 = vcmask 523264
  %v101 = vsel %vm99, %v31, 0
  %v104 = vsel %vm99, %v32, 0
  %v107 = vsel %vm99, %v33, 0
  %v110 = vsel %vm99, %v34, 0
  %v113 = vsel %vm99, %v35, 0
  %v116 = vsel %vm99, %v36, 0
  %v119 = vsel %vm99, %v37, 0
  %v122 = vsel %vm99, %v38, 0
  %124 = vmatprep.subr.bf16.mxu0 %v84
  %125 = vmatpush1.bf16.msra.mxu0 %v83
  %126 = vmatprep.subr.bf16.mxu0 %v86
  %127 = vmatpush1.bf16.msra.mxu0 %v85
  %128 = vmatprep.subr.bf16.mxu0 %v88
  %129 = vmatpush1.bf16.msra.mxu0 %v87
  %130 = vmatprep.subr.bf16.mxu0 %v90
  %131 = vmatpush1.bf16.msra.mxu0 %v89
  %132 = vmatprep.subr.bf16.mxu0 0
  %133 = vmatpush1.bf16.msra.mxu0 0
  %134 = vmatprep.subr.bf16.mxu0 0
  %135 = vmatpush1.bf16.msra.mxu0 0
  %136 = vmatprep.subr.bf16.mxu0 0
  %137 = vmatpush1.bf16.msra.mxu0 0
  %138 = vmatprep.subr.bf16.mxu0 0
  %139 = vmatpush1.bf16.msra.mxu0 0
  %140 = vmatprep.subr.bf16.mxu0 0
  %141 = vmatpush1.bf16.msra.mxu0 0
  %142 = vmatprep.subr.bf16.mxu0 0
  %143 = vmatpush1.bf16.msra.mxu0 0
  %144 = vmatprep.subr.bf16.mxu0 0
  %145 = vmatpush1.bf16.msra.mxu0 0
  %146 = vmatprep.subr.bf16.mxu0 0
  %147 = vmatpush1.bf16.msra.mxu0 0
  %148 = vmatprep.subr.bf16.mxu0 0
  %149 = vmatpush1.bf16.msra.mxu0 0
  %150 = vmatprep.subr.bf16.mxu0 0
  %151 = vmatpush1.bf16.msra.mxu0 0
  %152 = vmatprep.subr.bf16.mxu0 0
  %153 = vmatpush1.bf16.msra.mxu0 0
  %154 = vmatprep.subr.bf16.mxu0 0
  %155 = vmatpush1.bf16.msra.mxu0 0
  %156 = vmatprep.mubr.bf16.mxu0 0
  %157 = vmatmul.mubr.bf16.gmra.mrb[0].mxu0 %v101
  %v158 = vpop.f32.mrb[0].mxu0
  %v159 = vadd.f32 %v52, %v158
  %v160 = vpop.f32.mrb[0].mxu0
  %v161 = vadd.f32 %v56, %v160
  %v162 = vpop.f32.mrb[0].mxu0
  %v163 = vadd.f32 %v52, %v162
  %v164 = vpop.f32.mrb[0].mxu0
  %v165 = vadd.f32 %v56, %v164
  %166 = vmatprep.mubr.bf16.mxu0 0
  %167 = vmatmul.mubr.bf16.gmra.mrb[0].mxu0 %v104
  %v168 = vpop.f32.mrb[0].mxu0
  %v169 = vadd.f32 %v52, %v168
  %v170 = vpop.f32.mrb[0].mxu0
  %v171 = vadd.f32 %v56, %v170
  %v172 = vpop.f32.mrb[0].mxu0
  %v173 = vadd.f32 %v52, %v172
  %v174 = vpop.f32.mrb[0].mxu0
  %v175 = vadd.f32 %v56, %v174
  %176 = vmatprep.mubr.bf16.mxu0 0
  %177 = vmatmul.mubr.bf16.gmra.mrb[0].mxu0 %v107
  %v178 = vpop.f32.mrb[0].mxu0
  %v179 = vadd.f32 %v52, %v178
  %v180 = vpop.f32.mrb[0].mxu0
  %v181 = vadd.f32 %v56, %v180
  %v182 = vpop.f32.mrb[0].mxu0
  %v183 = vadd.f32 %v52, %v182
  %v184 = vpop.f32.mrb[0].mxu0
  %v185 = vadd.f32 %v56, %v184
  %186 = vmatprep.mubr.bf16.mxu0 0
  %187 = vmatmul.mubr.bf16.gmra.mrb[0].mxu0 %v110
  %v188 = vpop.f32.mrb[0].mxu0
  %v189 = vadd.f32 %v52, %v188
  %v190 = vpop.f32.mrb[0].mxu0
  %v191 = vadd.f32 %v56, %v190
  %v192 = vpop.f32.mrb[0].mxu0
  %v193 = vadd.f32 %v52, %v192
  %v194 = vpop.f32.mrb[0].mxu0
  %v195 = vadd.f32 %v56, %v194
  %196 = vmatprep.mubr.bf16.mxu0 0
  %197 = vmatmul.mubr.bf16.gmra.mrb[0].mxu0 %v113
  %v198 = vpop.f32.mrb[0].mxu0
  %v199 = vadd.f32 %v52, %v198
  %v200 = vpop.f32.mrb[0].mxu0
  %v201 = vadd.f32 %v56, %v200
  %v202 = vpop.f32.mrb[0].mxu0
  %v203 = vadd.f32 %v52, %v202
  %v204 = vpop.f32.mrb[0].mxu0
  %v205 = vadd.f32 %v56, %v204
  %206 = vmatprep.mubr.bf16.mxu0 0
  %207 = vmatmul.mubr.bf16.gmra.mrb[0].mxu0 %v116
  %v208 = vpop.f32.mrb[0].mxu0
  %v209 = vadd.f32 %v52, %v208
  %v210 = vpop.f32.mrb[0].mxu0
  %v211 = vadd.f32 %v56, %v210
  %v212 = vpop.f32.mrb[0].mxu0
  %v213 = vadd.f32 %v52, %v212
  %v214 = vpop.f32.mrb[0].mxu0
  %v215 = vadd.f32 %v56, %v214
  %216 = vmatprep.mubr.bf16.mxu0 0
  %217 = vmatmul.mubr.bf16.gmra.mrb[0].mxu0 %v119
  %v218 = vpop.f32.mrb[0].mxu0
  %v219 = vadd.f32 %v52, %v218
  %v220 = vpop.f32.mrb[0].mxu0
  %v221 = vadd.f32 %v56, %v220
  %v222 = vpop.f32.mrb[0].mxu0
  %v223 = vadd.f32 %v52, %v222
  %v224 = vpop.f32.mrb[0].mxu0
  %v225 = vadd.f32 %v56, %v224
  %226 = vmatprep.mubr.bf16.mxu0 0
  %227 = vmatmul.mubr.bf16.gmra.mrb[0].mxu0 %v122
  %v228 = vpop.f32.mrb[0].mxu0
  %v229 = vadd.f32 %v52, %v228
  %v230 = vpop.f32.mrb[0].mxu0
  %v231 = vadd.f32 %v56, %v230
  %v232 = vpop.f32.mrb[0].mxu0
  %v233 = vadd.f32 %v52, %v232
  %v234 = vpop.f32.mrb[0].mxu0
  %v235 = vadd.f32 %v56, %v234
  %236 = vdwg.mxu0
  %237 = vst [vmem:[%s3] sm:$0xff] %v159
  %238 = vst [vmem:[%s3 + $0x8] sm:$0xff] %v161
  %239 = vst [vmem:[%s3 + $0x10] sm:$0xff] %v163
  %240 = vst [vmem:[%s3 + $0x18] sm:$0xff] %v165
  %241 = vst [vmem:[%s3 + $0x20] sm:$0xff] %v169
  %242 = vst [vmem:[%s3 + $0x28] sm:$0xff] %v171
  %243 = vst [vmem:[%s3 + $0x30] sm:$0xff] %v173
  %244 = vst [vmem:[%s3 + $0x38] sm:$0xff] %v175
  %245 = vst [vmem:[%s3 + $0x40] sm:$0xff] %v179
  %246 = vst [vmem:[%s3 + $0x48] sm:$0xff] %v181
  %247 = vst [vmem:[%s3 + $0x50] sm:$0xff] %v183
  %248 = vst [vmem:[%s3 + $0x58] sm:$0xff] %v185
  %249 = vst [vmem:[%s3 + $0x60] sm:$0xff] %v189
  %250 = vst [vmem:[%s3 + $0x68] sm:$0xff] %v191
  %251 = vst [vmem:[%s3 + $0x70] sm:$0xff] %v193
  %252 = vst [vmem:[%s3 + $0x78] sm:$0xff] %v195
  %253 = vst [vmem:[%s3 + $0x80] sm:$0xff] %v199
  %254 = vst [vmem:[%s3 + $0x88] sm:$0xff] %v201
  %255 = vst [vmem:[%s3 + $0x90] sm:$0xff] %v203
  %256 = vst [vmem:[%s3 + $0x98] sm:$0xff] %v205
  %257 = vst [vmem:[%s3 + $0xa0] sm:$0xff] %v209
  %258 = vst [vmem:[%s3 + $0xa8] sm:$0xff] %v211
  %259 = vst [vmem:[%s3 + $0xb0] sm:$0xff] %v213
  %260 = vst [vmem:[%s3 + $0xb8] sm:$0xff] %v215
  %261 = vst [vmem:[%s3 + $0xc0] sm:$0xff] %v219
  %262 = vst [vmem:[%s3 + $0xc8] sm:$0xff] %v221
  %263 = vst [vmem:[%s3 + $0xd0] sm:$0xff] %v223
  %264 = vst [vmem:[%s3 + $0xd8] sm:$0xff] %v225
  %265 = vst [vmem:[%s3 + $0xe0] sm:$0xff] %v229
  %266 = vst [vmem:[%s3 + $0xe8] sm:$0xff] %v231
  %267 = vst [vmem:[%s3 + $0xf0] sm:$0xff] %v233
  %268 = vst [vmem:[%s3 + $0xf8] sm:$0xff] %v235
  // Predicated region
  $region14: #{resnet50_vit_forward.26} parent=0 // pred_check
    _
  $region15: #{resnet50_vit_forward.26} parent=0 // pred_check_branch
    %270 = sbr.rel (0) target = $region17
  $region16: #{resnet50_vit_forward.26} parent=0 // pred_region
    _
  $region17: #{resnet50_vit_forward.26} parent=0 // pred_fallthru
    _
  // Predicated region
  $region18: #{resnet50_vit_forward.26} parent=0 // pred_check
    _
  $region19: #{resnet50_vit_forward.26} parent=0 // pred_check_branch
    %272 = sbr.rel (0) target = $region21
  $region20: #{resnet50_vit_forward.26} parent=0 // pred_region
    _
  $region21: #{resnet50_vit_forward.26} parent=0 // pred_fallthru
    _

// kernel: resnet50_vit_forward.28
$region0: #{resnet50_vit_forward.28}
  #allocation0 [shape = 'u32[]', space=smem, size = 0x4, offset = 0x4, fixed_abs, tag = 'smem constant byte address 0x4 - core index']
  #allocation1 [shape = 'u32[144,128]{1,0:T(1,128)}', space=vmem, size = 0x12000, scoped, tag = 'internal scratch']
  %s0 = inlined_call_operand.vmem [shape: f32[128,576], index: 0, kind: input, shape index: {}]
  %s1 = inlined_call_operand.vmem [shape: bf16[576,64], index: 1, kind: input, shape index: {}]
  %s2 = inlined_call_operand.vmem [shape: f32[1,64], index: 2, kind: input, shape index: {}]
  %s3 = inlined_call_operand.vmem [shape: f32[128,64], index: 3, kind: output, shape index: {}]
  %s4 = sld [smem:[#allocation0]]
  $region22: #{resnet50_vit_forward.28} parent=0
    _
  %s6 = ssub.s32 1, %s4
  %s7 = scalar_select 0, %s6, %s4
  // Predicated region
  $region2: #{resnet50_vit_forward.28} parent=0 // pred_check
    _
  $region3: #{resnet50_vit_forward.28} parent=0 // pred_check_branch
    %9 = sbr.rel (0) target = $region5
  $region4: #{resnet50_vit_forward.28} parent=0 // pred_region
    _
  $region5: #{resnet50_vit_forward.28} parent=0 // pred_fallthru
    _
  // Predicated region
  $region6: #{resnet50_vit_forward.28} parent=0 // pred_check
    _
  $region7: #{resnet50_vit_forward.28} parent=0 // pred_check_branch
    %11 = sbr.rel (0) target = $region9
  $region8: #{resnet50_vit_forward.28} parent=0 // pred_region
    _
  $region9: #{resnet50_vit_forward.28} parent=0 // pred_fallthru
    _
  // Predicated region
  $region10: #{resnet50_vit_forward.28} parent=0 // pred_check
    _
  $region11: #{resnet50_vit_forward.28} parent=0 // pred_check_branch
    %13 = sbr.rel (0) target = $region13
  $region12: #{resnet50_vit_forward.28} parent=0 // pred_region
    _
  $region13: #{resnet50_vit_forward.28} parent=0 // pred_fallthru
    _
  %v15 = vld [vmem:[%s0] sm:$0xff]
  %v16 = vld [vmem:[%s0 + $0x8] sm:$0xff]
  %v17 = vld [vmem:[%s0 + $0x10] sm:$0xff]
  %v18 = vld [vmem:[%s0 + $0x18] sm:$0xff]
  %v19 = vld [vmem:[%s0 + $0x20] sm:$0xff]
  %v20 = vld [vmem:[%s0 + $0x28] sm:$0xff]
  %v21 = vld [vmem:[%s0 + $0x30] sm:$0xff]
  %v22 = vld [vmem:[%s0 + $0x38] sm:$0xff]
  %v23 = vld [vmem:[%s0 + $0x40] sm:$0xff]
  %v24 = vld [vmem:[%s0 + $0x48] sm:$0xff]
  %v25 = vld [vmem:[%s0 + $0x50] sm:$0xff]
  %v26 = vld [vmem:[%s0 + $0x58] sm:$0xff]
  %v27 = vld [vmem:[%s0 + $0x60] sm:$0xff]
  %v28 = vld [vmem:[%s0 + $0x68] sm:$0xff]
  %v29 = vld [vmem:[%s0 + $0x70] sm:$0xff]
  %v30 = vld [vmem:[%s0 + $0x78] sm:$0xff]
  %v31 = vld [vmem:[%s0 + $0x80] sm:$0xff]
  %v32 = vld [vmem:[%s0 + $0x88] sm:$0xff]
  %v33 = vld [vmem:[%s0 + $0x90] sm:$0xff]
  %v34 = vld [vmem:[%s0 + $0x98] sm:$0xff]
  %v35 = vld [vmem:[%s0 + $0xa0] sm:$0xff]
  %v36 = vld [vmem:[%s0 + $0xa8] sm:$0xff]
  %v37 = vld [vmem:[%s0 + $0xb0] sm:$0xff]
  %v38 = vld [vmem:[%s0 + $0xb8] sm:$0xff]
  %v39 = vld [vmem:[%s0 + $0xc0] sm:$0xff]
  %v40 = vld [vmem:[%s0 + $0xc8] sm:$0xff]
  %v41 = vld [vmem:[%s0 + $0xd0] sm:$0xff]
  %v42 = vld [vmem:[%s0 + $0xd8] sm:$0xff]
  %v43 = vld [vmem:[%s0 + $0xe0] sm:$0xff]
  %v44 = vld [vmem:[%s0 + $0xe8] sm:$0xff]
  %v45 = vld [vmem:[%s0 + $0xf0] sm:$0xff]
  %v46 = vld [vmem:[%s0 + $0xf8] sm:$0xff]
  %v47 = vld [vmem:[%s0 + $0x100] sm:$0xff]
  %v48 = vld [vmem:[%s0 + $0x108] sm:$0xff]
  %v49 = vld [vmem:[%s0 + $0x110] sm:$0xff]
  %v50 = vld [vmem:[%s0 + $0x118] sm:$0xff]
  %v51 = vld [vmem:[%s0 + $0x120] sm:$0xff]
  %v52 = vld [vmem:[%s0 + $0x128] sm:$0xff]
  %v53 = vld [vmem:[%s0 + $0x130] sm:$0xff]
  %v54 = vld [vmem:[%s0 + $0x138] sm:$0xff]
  %v55 = vld [vmem:[%s0 + $0x140] sm:$0xff]
  %v56 = vld [vmem:[%s0 + $0x148] sm:$0xff]
  %v57 = vld [vmem:[%s0 + $0x150] sm:$0xff]
  %v58 = vld [vmem:[%s0 + $0x158] sm:$0xff]
  %v59 = vld [vmem:[%s0 + $0x160] sm:$0xff]
  %v60 = vld [vmem:[%s0 + $0x168] sm:$0xff]
  %v61 = vld [vmem:[%s0 + $0x170] sm:$0xff]
  %v62 = vld [vmem:[%s0 + $0x178] sm:$0xff]
  %v63 = vld [vmem:[%s0 + $0x180] sm:$0xff]
  %v64 = vld [vmem:[%s0 + $0x188] sm:$0xff]
  %v65 = vld [vmem:[%s0 + $0x190] sm:$0xff]
  %v66 = vld [vmem:[%s0 + $0x198] sm:$0xff]
  %v67 = vld [vmem:[%s0 + $0x1a0] sm:$0xff]
  %v68 = vld [vmem:[%s0 + $0x1a8] sm:$0xff]
  %v69 = vld [vmem:[%s0 + $0x1b0] sm:$0xff]
  %v70 = vld [vmem:[%s0 + $0x1b8] sm:$0xff]
  %v71 = vld [vmem:[%s0 + $0x1c0] sm:$0xff]
  %v72 = vld [vmem:[%s0 + $0x1c8] sm:$0xff]
  %v73 = vld [vmem:[%s0 + $0x1d0] sm:$0xff]
  %v74 = vld [vmem:[%s0 + $0x1d8] sm:$0xff]
  %v75 = vld [vmem:[%s0 + $0x1e0] sm:$0xff]
  %v76 = vld [vmem:[%s0 + $0x1e8] sm:$0xff]
  %v77 = vld [vmem:[%s0 + $0x1f0] sm:$0xff]
  %v78 = vld [vmem:[%s0 + $0x1f8] sm:$0xff]
  %v79 = vld [vmem:[%s0 + $0x200] sm:$0xff]
  %v80 = vld [vmem:[%s0 + $0x208] sm:$0xff]
  %v81 = vld [vmem:[%s0 + $0x210] sm:$0xff]
  %v82 = vld [vmem:[%s0 + $0x218] sm:$0xff]
  %v83 = vld [vmem:[%s0 + $0x220] sm:$0xff]
  %v84 = vld [vmem:[%s0 + $0x228] sm:$0xff]
  %v85 = vld [vmem:[%s0 + $0x230] sm:$0xff]
  %v86 = vld [vmem:[%s0 + $0x238] sm:$0xff]
  %v87 = vld [vmem:[%s0 + $0x240] sm:$0xff]
  %v88 = vld [vmem:[%s0 + $0x248] sm:$0xff]
  %v89 = vld [vmem:[%s0 + $0x250] sm:$0xff]
  %v90 = vld [vmem:[%s0 + $0x258] sm:$0xff]
  %v91 = vld [vmem:[%s0 + $0x260] sm:$0xff]
  %v92 = vld [vmem:[%s0 + $0x268] sm:$0xff]
  %v93 = vld [vmem:[%s0 + $0x270] sm:$0xff]
  %v94 = vld [vmem:[%s0 + $0x278] sm:$0xff]
  %v95 = vpack.c.bf16 %v20, %v15
  %v96 = vpack.c.bf16 %v21, %v16
  %v97 = vpack.c.bf16 %v22, %v17
  %v98 = vpack.c.bf16 %v23, %v18
  %v99 = vpack.c.bf16 %v24, %v19
  %v100 = vpack.c.bf16 %v30, %v25
  %v101 = vpack.c.bf16 %v31, %v26
  %v102 = vpack.c.bf16 %v32, %v27
  %v103 = vpack.c.bf16 %v33, %v28
  %v104 = vpack.c.bf16 %v34, %v29
  %v105 = vpack.c.bf16 %v40, %v35
  %v106 = vpack.c.bf16 %v41, %v36
  %v107 = vpack.c.bf16 %v42, %v37
  %v108 = vpack.c.bf16 %v43, %v38
  %v109 = vpack.c.bf16 %v44, %v39
  %v110 = vpack.c.bf16 %v50, %v45
  %v111 = vpack.c.bf16 %v51, %v46
  %v112 = vpack.c.bf16 %v52, %v47
  %v113 = vpack.c.bf16 %v53, %v48
  %v114 = vpack.c.bf16 %v54, %v49
  %v115 = vpack.c.bf16 %v60, %v55
  %v116 = vpack.c.bf16 %v61, %v56
  %v117 = vpack.c.bf16 %v62, %v57
  %v118 = vpack.c.bf16 %v63, %v58
  %v119 = vpack.c.bf16 %v64, %v59
  %v120 = vpack.c.bf16 %v70, %v65
  %v121 = vpack.c.bf16 %v71, %v66
  %v122 = vpack.c.bf16 %v72, %v67
  %v123 = vpack.c.bf16 %v73, %v68
  %v124 = vpack.c.bf16 %v74, %v69
  %v125 = vpack.c.bf16 %v80, %v75
  %v126 = vpack.c.bf16 %v81, %v76
  %v127 = vpack.c.bf16 %v82, %v77
  %v128 = vpack.c.bf16 %v83, %v78
  %v129 = vpack.c.bf16 %v84, %v79
  %v130 = vpack.c.bf16 %v90, %v85
  %v131 = vpack.c.bf16 %v91, %v86
  %v132 = vpack.c.bf16 %v92, %v87
  %v133 = vpack.c.bf16 %v93, %v88
  %v134 = vpack.c.bf16 %v94, %v89
  %v135 = vld [vmem:[%s1] sm:$0xf]
  %v136 = vld [vmem:[%s1 + $0x4] sm:$0xf]
  %v137 = vld [vmem:[%s1 + $0x8] sm:$0xf]
  %v138 = vld [vmem:[%s1 + $0xc] sm:$0xf]
  %v139 = vld [vmem:[%s1 + $0x10] sm:$0xf]
  %v140 = vld [vmem:[%s1 + $0x14] sm:$0xf]
  %v141 = vld [vmem:[%s1 + $0x18] sm:$0xf]
  %v142 = vld [vmem:[%s1 + $0x1c] sm:$0xf]
  %v143 = vld [vmem:[%s1 + $0x20] sm:$0xf]
  %v144 = vld [vmem:[%s1 + $0x24] sm:$0xf]
  %v145 = vld [vmem:[%s1 + $0x28] sm:$0xf]
  %v146 = vld [vmem:[%s1 + $0x2c] sm:$0xf]
  %v147 = vld [vmem:[%s1 + $0x30] sm:$0xf]
  %v148 = vld [vmem:[%s1 + $0x34] sm:$0xf]
  %v149 = vld [vmem:[%s1 + $0x38] sm:$0xf]
  %v150 = vld [vmem:[%s1 + $0x3c] sm:$0xf]
  %v151 = vld [vmem:[%s1 + $0x40] sm:$0xf]
  %v152 = vld [vmem:[%s1 + $0x44] sm:$0xf]
  %v153 = vld [vmem:[%s1 + $0x48] sm:$0xf]
  %v154 = vld [vmem:[%s1 + $0x4c] sm:$0xf]
  %v155 = vld [vmem:[%s1 + $0x50] sm:$0xf]
  %v156 = vld [vmem:[%s1 + $0x54] sm:$0xf]
  %v157 = vld [vmem:[%s1 + $0x58] sm:$0xf]
  %v158 = vld [vmem:[%s1 + $0x5c] sm:$0xf]
  %v159 = vld [vmem:[%s1 + $0x60] sm:$0xf]
  %v160 = vld [vmem:[%s1 + $0x64] sm:$0xf]
  %v161 = vld [vmem:[%s1 + $0x68] sm:$0xf]
  %v162 = vld [vmem:[%s1 + $0x6c] sm:$0xf]
  %v163 = vld [vmem:[%s1 + $0x70] sm:$0xf]
  %v164 = vld [vmem:[%s1 + $0x74] sm:$0xf]
  %v165 = vld [vmem:[%s1 + $0x78] sm:$0xf]
  %v166 = vld [vmem:[%s1 + $0x7c] sm:$0xf]
  %v167 = vld [vmem:[%s1 + $0x80] sm:$0xf]
  %v168 = vld [vmem:[%s1 + $0x84] sm:$0xf]
  %v169 = vld [vmem:[%s1 + $0x88] sm:$0xf]
  %v170 = vld [vmem:[%s1 + $0x8c] sm:$0xf]
  %v171 = vld [vmem:[%s1 + $0x90] sm:$0xf]
  %v172 = vld [vmem:[%s1 + $0x94] sm:$0xf]
  %v173 = vld [vmem:[%s1 + $0x98] sm:$0xf]
  %v174 = vld [vmem:[%s1 + $0x9c] sm:$0xf]
  %v175 = vld [vmem:[%s1 + $0xa0] sm:$0xf]
  %v176 = vld [vmem:[%s1 + $0xa4] sm:$0xf]
  %v177 = vld [vmem:[%s1 + $0xa8] sm:$0xf]
  %v178 = vld [vmem:[%s1 + $0xac] sm:$0xf]
  %v179 = vld [vmem:[%s1 + $0xb0] sm:$0xf]
  %v180 = vld [vmem:[%s1 + $0xb4] sm:$0xf]
  %v181 = vld [vmem:[%s1 + $0xb8] sm:$0xf]
  %v182 = vld [vmem:[%s1 + $0xbc] sm:$0xf]
  %v183 = vld [vmem:[%s1 + $0xc0] sm:$0xf]
  %v184 = vld [vmem:[%s1 + $0xc4] sm:$0xf]
  %v185 = vld [vmem:[%s1 + $0xc8] sm:$0xf]
  %v186 = vld [vmem:[%s1 + $0xcc] sm:$0xf]
  %v187 = vld [vmem:[%s1 + $0xd0] sm:$0xf]
  %v188 = vld [vmem:[%s1 + $0xd4] sm:$0xf]
  %v189 = vld [vmem:[%s1 + $0xd8] sm:$0xf]
  %v190 = vld [vmem:[%s1 + $0xdc] sm:$0xf]
  %v191 = vld [vmem:[%s1 + $0xe0] sm:$0xf]
  %v192 = vld [vmem:[%s1 + $0xe4] sm:$0xf]
  %v193 = vld [vmem:[%s1 + $0xe8] sm:$0xf]
  %v194 = vld [vmem:[%s1 + $0xec] sm:$0xf]
  %v195 = vld [vmem:[%s1 + $0xf0] sm:$0xf]
  %v196 = vld [vmem:[%s1 + $0xf4] sm:$0xf]
  %v197 = vld [vmem:[%s1 + $0xf8] sm:$0xf]
  %v198 = vld [vmem:[%s1 + $0xfc] sm:$0xf]
  %v199 = vld [vmem:[%s1 + $0x100] sm:$0xf]
  %v200 = vld [vmem:[%s1 + $0x104] sm:$0xf]
  %v201 = vld [vmem:[%s1 + $0x108] sm:$0xf]
  %v202 = vld [vmem:[%s1 + $0x10c] sm:$0xf]
  %v203 = vld [vmem:[%s1 + $0x110] sm:$0xf]
  %v204 = vld [vmem:[%s1 + $0x114] sm:$0xf]
  %v205 = vld [vmem:[%s1 + $0x118] sm:$0xf]
  %v206 = vld [vmem:[%s1 + $0x11c] sm:$0xf]
  %v207 = vld [vmem:[%s2] sm:$0x1]
  %v209 = vlaneseq
  %v210 = vshrl.u32 %v209, 7
  %v211 = vsub.s32 0, %v210
  %v212 = vrot.slane %v207, %v211
  %v286 = vunpack.c.l.b16 %v135
  %v287 = vunpack.c.l.b16 %v136
  %v288 = vunpack.c.l.b16 %v137
  %v289 = vunpack.c.l.b16 %v138
  %v290 = vunpack.c.l.b16 %v139
  %v291 = vunpack.c.l.b16 %v140
  %v292 = vunpack.c.l.b16 %v141
  %v293 = vunpack.c.l.b16 %v142
  %v294 = vunpack.c.l.b16 %v143
  %v295 = vunpack.c.l.b16 %v144
  %v296 = vunpack.c.l.b16 %v145
  %v297 = vunpack.c.l.b16 %v146
  %v298 = vunpack.c.l.b16 %v147
  %v299 = vunpack.c.l.b16 %v148
  %v300 = vunpack.c.l.b16 %v149
  %v301 = vunpack.c.l.b16 %v150
  %v302 = vunpack.c.l.b16 %v151
  %v303 = vunpack.c.l.b16 %v152
  %v304 = vunpack.c.l.b16 %v153
  %v305 = vunpack.c.l.b16 %v154
  %v306 = vunpack.c.l.b16 %v155
  %v307 = vunpack.c.l.b16 %v156
  %v308 = vunpack.c.l.b16 %v157
  %v309 = vunpack.c.l.b16 %v158
  %v310 = vunpack.c.l.b16 %v159
  %v311 = vunpack.c.l.b16 %v160
  %v312 = vunpack.c.l.b16 %v161
  %v313 = vunpack.c.l.b16 %v162
  %v314 = vunpack.c.l.b16 %v163
  %v315 = vunpack.c.l.b16 %v164
  %v316 = vunpack.c.l.b16 %v165
  %v317 = vunpack.c.l.b16 %v166
  %v318 = vunpack.c.l.b16 %v167
  %v319 = vunpack.c.l.b16 %v168
  %v320 = vunpack.c.l.b16 %v169
  %v321 = vunpack.c.l.b16 %v170
  %v322 = vunpack.c.l.b16 %v171
  %v323 = vunpack.c.l.b16 %v172
  %v324 = vunpack.c.l.b16 %v173
  %v325 = vunpack.c.l.b16 %v174
  %v326 = vunpack.c.l.b16 %v175
  %v327 = vunpack.c.l.b16 %v176
  %v328 = vunpack.c.l.b16 %v177
  %v329 = vunpack.c.l.b16 %v178
  %v330 = vunpack.c.l.b16 %v179
  %v331 = vunpack.c.l.b16 %v180
  %v332 = vunpack.c.l.b16 %v181
  %v333 = vunpack.c.l.b16 %v182
  %v334 = vunpack.c.l.b16 %v183
  %v335 = vunpack.c.l.b16 %v184
  %v336 = vunpack.c.l.b16 %v185
  %v337 = vunpack.c.l.b16 %v186
  %v338 = vunpack.c.l.b16 %v187
  %v339 = vunpack.c.l.b16 %v188
  %v340 = vunpack.c.l.b16 %v189
  %v341 = vunpack.c.l.b16 %v190
  %v342 = vunpack.c.l.b16 %v191
  %v343 = vunpack.c.l.b16 %v192
  %v344 = vunpack.c.l.b16 %v193
  %v345 = vunpack.c.l.b16 %v194
  %v346 = vunpack.c.l.b16 %v195
  %v347 = vunpack.c.l.b16 %v196
  %v348 = vunpack.c.l.b16 %v197
  %v349 = vunpack.c.l.b16 %v198
  %v350 = vunpack.c.l.b16 %v199
  %v351 = vunpack.c.l.b16 %v200
  %v352 = vunpack.c.l.b16 %v201
  %v353 = vunpack.c.l.b16 %v202
  %v354 = vunpack.c.l.b16 %v203
  %v355 = vunpack.c.l.b16 %v204
  %v356 = vunpack.c.l.b16 %v205
  %v357 = vunpack.c.l.b16 %v206
  %v358 = vpack.c.b16 %v287, %v286
  %v359 = vpack.c.b16 %v289, %v288
  %v360 = vpack.c.b16 %v291, %v290
  %v361 = vpack.c.b16 %v293, %v292
  %v362 = vpack.c.b16 %v295, %v294
  %v363 = vpack.c.b16 %v297, %v296
  %v364 = vpack.c.b16 %v299, %v298
  %v365 = vpack.c.b16 %v301, %v300
  %v366 = vpack.c.b16 %v303, %v302
  %v367 = vpack.c.b16 %v305, %v304
  %v368 = vpack.c.b16 %v307, %v306
  %v369 = vpack.c.b16 %v309, %v308
  %v370 = vpack.c.b16 %v311, %v310
  %v371 = vpack.c.b16 %v313, %v312
  %v372 = vpack.c.b16 %v315, %v314
  %v373 = vpack.c.b16 %v317, %v316
  %v374 = vpack.c.b16 %v319, %v318
  %v375 = vpack.c.b16 %v321, %v320
  %v376 = vpack.c.b16 %v323, %v322
  %v377 = vpack.c.b16 %v325, %v324
  %v378 = vpack.c.b16 %v327, %v326
  %v379 = vpack.c.b16 %v329, %v328
  %v380 = vpack.c.b16 %v331, %v330
  %v381 = vpack.c.b16 %v333, %v332
  %v382 = vpack.c.b16 %v335, %v334
  %v383 = vpack.c.b16 %v337, %v336
  %v384 = vpack.c.b16 %v339, %v338
  %v385 = vpack.c.b16 %v341, %v340
  %v386 = vpack.c.b16 %v343, %v342
  %v387 = vpack.c.b16 %v345, %v344
  %v388 = vpack.c.b16 %v347, %v346
  %v389 = vpack.c.b16 %v349, %v348
  %v390 = vpack.c.b16 %v351, %v350
  %v391 = vpack.c.b16 %v353, %v352
  %v392 = vpack.c.b16 %v355, %v354
  %v393 = vpack.c.b16 %v357, %v356
  %vm430 = vcmask 523264
  %v432 = vsel %vm430, %v99, 0
  %v435 = vsel %vm430, %v104, 0
  %v438 = vsel %vm430, %v109, 0
  %v441 = vsel %vm430, %v114, 0
  %v444 = vsel %vm430, %v119, 0
  %v447 = vsel %vm430, %v124, 0
  %v450 = vsel %vm430, %v129, 0
  %v453 = vsel %vm430, %v134, 0
  %455 = vmatprep.subr.bf16.mxu0 0
  %456 = vmatpush1.bf16.msra.mxu0 %v358
  %457 = vmatprep.subr.bf16.mxu0 0
  %458 = vmatpush1.bf16.msra.mxu0 %v359
  %459 = vmatprep.subr.bf16.mxu0 0
  %460 = vmatpush1.bf16.msra.mxu0 %v360
  %461 = vmatprep.subr.bf16.mxu0 0
  %462 = vmatpush1.bf16.msra.mxu0 %v361
  %463 = vmatprep.subr.bf16.mxu0 0
  %464 = vmatpush1.bf16.msra.mxu0 %v362
  %465 = vmatprep.subr.bf16.mxu0 0
  %466 = vmatpush1.bf16.msra.mxu0 %v363
  %467 = vmatprep.subr.bf16.mxu0 0
  %468 = vmatpush1.bf16.msra.mxu0 %v364
  %469 = vmatprep.subr.bf16.mxu0 0
  %470 = vmatpush1.bf16.msra.mxu0 %v365
  %471 = vmatprep.subr.bf16.mxu0 0
  %472 = vmatpush1.bf16.msra.mxu0 %v366
  %473 = vmatprep.subr.bf16.mxu0 0
  %474 = vmatpush1.bf16.msra.mxu0 %v367
  %475 = vmatprep.subr.bf16.mxu0 0
  %476 = vmatpush1.bf16.msra.mxu0 %v368
  %477 = vmatprep.subr.bf16.mxu0 0
  %478 = vmatpush1.bf16.msra.mxu0 %v369
  %479 = vmatprep.subr.bf16.mxu0 0
  %480 = vmatpush1.bf16.msra.mxu0 %v370
  %481 = vmatprep.subr.bf16.mxu0 0
  %482 = vmatpush1.bf16.msra.mxu0 %v371
  %483 = vmatprep.subr.bf16.mxu0 0
  %484 = vmatpush1.bf16.msra.mxu0 %v372
  %485 = vmatprep.subr.bf16.mxu0 0
  %486 = vmatpush1.bf16.msra.mxu0 %v373
  %487 = vmatprep.mubr.bf16.mxu0 %v96
  %488 = vmatmul.mubr.bf16.gmra.mrb[0].mxu0 %v95
  %v489 = vpop.f32.mrb[0].mxu0
  %v490 = vadd.f32 %v212, %v489
  %v491 = vpop.f32.mrb[0].mxu0
  %v492 = vpop.f32.mrb[0].mxu0
  %v493 = vadd.f32 %v212, %v492
  %v494 = vpop.f32.mrb[0].mxu0
  %495 = vmatprep.mubr.bf16.mxu0 %v101
  %496 = vmatmul.mubr.bf16.gmra.mrb[0].mxu0 %v100
  %v497 = vpop.f32.mrb[0].mxu0
  %v498 = vadd.f32 %v212, %v497
  %v499 = vpop.f32.mrb[0].mxu0
  %v500 = vpop.f32.mrb[0].mxu0
  %v501 = vadd.f32 %v212, %v500
  %v502 = vpop.f32.mrb[0].mxu0
  %503 = vmatprep.mubr.bf16.mxu0 %v106
  %504 = vmatmul.mubr.bf16.gmra.mrb[0].mxu0 %v105
  %v505 = vpop.f32.mrb[0].mxu0
  %v506 = vadd.f32 %v212, %v505
  %v507 = vpop.f32.mrb[0].mxu0
  %v508 = vpop.f32.mrb[0].mxu0
  %v509 = vadd.f32 %v212, %v508
  %v510 = vpop.f32.mrb[0].mxu0
  %511 = vmatprep.mubr.bf16.mxu0 %v111
  %512 = vmatmul.mubr.bf16.gmra.mrb[0].mxu0 %v110
  %v513 = vpop.f32.mrb[0].mxu0
  %v514 = vadd.f32 %v212, %v513
  %v515 = vpop.f32.mrb[0].mxu0
  %v516 = vpop.f32.mrb[0].mxu0
  %v517 = vadd.f32 %v212, %v516
  %v518 = vpop.f32.mrb[0].mxu0
  %519 = vmatprep.mubr.bf16.mxu0 %v116
  %520 = vmatmul.mubr.bf16.gmra.mrb[0].mxu0 %v115
  %v521 = vpop.f32.mrb[0].mxu0
  %v522 = vadd.f32 %v212, %v521
  %v523 = vpop.f32.mrb[0].mxu0
  %v524 = vpop.f32.mrb[0].mxu0
  %v525 = vadd.f32 %v212, %v524
  %v526 = vpop.f32.mrb[0].mxu0
  %527 = vmatprep.mubr.bf16.mxu0 %v121
  %528 = vmatmul.mubr.bf16.gmra.mrb[0].mxu0 %v120
  %v529 = vpop.f32.mrb[0].mxu0
  %v530 = vadd.f32 %v212, %v529
  %v531 = vpop.f32.mrb[0].mxu0
  %v532 = vpop.f32.mrb[0].mxu0
  %v533 = vadd.f32 %v212, %v532
  %v534 = vpop.f32.mrb[0].mxu0
  %535 = vmatprep.mubr.bf16.mxu0 %v126
  %536 = vmatmul.mubr.bf16.gmra.mrb[0].mxu0 %v125
  %v537 = vpop.f32.mrb[0].mxu0
  %v538 = vadd.f32 %v212, %v537
  %v539 = vpop.f32.mrb[0].mxu0
  %v540 = vpop.f32.mrb[0].mxu0
  %v541 = vadd.f32 %v212, %v540
  %v542 = vpop.f32.mrb[0].mxu0
  %543 = vmatprep.mubr.bf16.mxu0 %v131
  %544 = vmatmul.mubr.bf16.gmra.mrb[0].mxu0 %v130
  %v545 = vpop.f32.mrb[0].mxu0
  %v546 = vadd.f32 %v212, %v545
  %v547 = vpop.f32.mrb[0].mxu0
  %v548 = vpop.f32.mrb[0].mxu0
  %v549 = vadd.f32 %v212, %v548
  %v550 = vpop.f32.mrb[0].mxu0
  %551 = vdwg.mxu0
  %552 = vmatprep.subr.bf16.mxu0 0
  %553 = vmatpush1.bf16.msra.mxu0 %v374
  %554 = vmatprep.subr.bf16.mxu0 0
  %555 = vmatpush1.bf16.msra.mxu0 %v375
  %556 = vmatprep.subr.bf16.mxu0 0
  %557 = vmatpush1.bf16.msra.mxu0 %v376
  %558 = vmatprep.subr.bf16.mxu0 0
  %559 = vmatpush1.bf16.msra.mxu0 %v377
  %560 = vmatprep.subr.bf16.mxu0 0
  %561 = vmatpush1.bf16.msra.mxu0 %v378
  %562 = vmatprep.subr.bf16.mxu0 0
  %563 = vmatpush1.bf16.msra.mxu0 %v379
  %564 = vmatprep.subr.bf16.mxu0 0
  %565 = vmatpush1.bf16.msra.mxu0 %v380
  %566 = vmatprep.subr.bf16.mxu0 0
  %567 = vmatpush1.bf16.msra.mxu0 %v381
  %568 = vmatprep.subr.bf16.mxu0 0
  %569 = vmatpush1.bf16.msra.mxu0 %v382
  %570 = vmatprep.subr.bf16.mxu0 0
  %571 = vmatpush1.bf16.msra.mxu0 %v383
  %572 = vmatprep.subr.bf16.mxu0 0
  %573 = vmatpush1.bf16.msra.mxu0 %v384
  %574 = vmatprep.subr.bf16.mxu0 0
  %575 = vmatpush1.bf16.msra.mxu0 %v385
  %576 = vmatprep.subr.bf16.mxu0 0
  %577 = vmatpush1.bf16.msra.mxu0 %v386
  %578 = vmatprep.subr.bf16.mxu0 0
  %579 = vmatpush1.bf16.msra.mxu0 %v387
  %580 = vmatprep.subr.bf16.mxu0 0
  %581 = vmatpush1.bf16.msra.mxu0 %v388
  %582 = vmatprep.subr.bf16.mxu0 0
  %583 = vmatpush1.bf16.msra.mxu0 %v389
  %584 = vmatprep.mubr.bf16.mxu0 %v98
  %585 = vmatmul.mubr.bf16.gmra.mrb[0].mxu0 %v97
  %v586 = vpop.f32.mrb[0].mxu0
  %v587 = vadd.f32 %v490, %v586
  %v588 = vpop.f32.mrb[0].mxu0
  %v589 = vpop.f32.mrb[0].mxu0
  %v590 = vadd.f32 %v493, %v589
  %v591 = vpop.f32.mrb[0].mxu0
  %592 = vmatprep.mubr.bf16.mxu0 %v103
  %593 = vmatmul.mubr.bf16.gmra.mrb[0].mxu0 %v102
  %v594 = vpop.f32.mrb[0].mxu0
  %v595 = vadd.f32 %v498, %v594
  %v596 = vpop.f32.mrb[0].mxu0
  %v597 = vpop.f32.mrb[0].mxu0
  %v598 = vadd.f32 %v501, %v597
  %v599 = vpop.f32.mrb[0].mxu0
  %600 = vmatprep.mubr.bf16.mxu0 %v108
  %601 = vmatmul.mubr.bf16.gmra.mrb[0].mxu0 %v107
  %v602 = vpop.f32.mrb[0].mxu0
  %v603 = vadd.f32 %v506, %v602
  %v604 = vpop.f32.mrb[0].mxu0
  %v605 = vpop.f32.mrb[0].mxu0
  %v606 = vadd.f32 %v509, %v605
  %v607 = vpop.f32.mrb[0].mxu0
  %608 = vmatprep.mubr.bf16.mxu0 %v113
  %609 = vmatmul.mubr.bf16.gmra.mrb[0].mxu0 %v112
  %v610 = vpop.f32.mrb[0].mxu0
  %v611 = vadd.f32 %v514, %v610
  %v612 = vpop.f32.mrb[0].mxu0
  %v613 = vpop.f32.mrb[0].mxu0
  %v614 = vadd.f32 %v517, %v613
  %v615 = vpop.f32.mrb[0].mxu0
  %616 = vmatprep.mubr.bf16.mxu0 %v118
  %617 = vmatmul.mubr.bf16.gmra.mrb[0].mxu0 %v117
  %v618 = vpop.f32.mrb[0].mxu0
  %v619 = vadd.f32 %v522, %v618
  %v620 = vpop.f32.mrb[0].mxu0
  %v621 = vpop.f32.mrb[0].mxu0
  %v622 = vadd.f32 %v525, %v621
  %v623 = vpop.f32.mrb[0].mxu0
  %624 = vmatprep.mubr.bf16.mxu0 %v123
  %625 = vmatmul.mubr.bf16.gmra.mrb[0].mxu0 %v122
  %v626 = vpop.f32.mrb[0].mxu0
  %v627 = vadd.f32 %v530, %v626
  %v628 = vpop.f32.mrb[0].mxu0
  %v629 = vpop.f32.mrb[0].mxu0
  %v630 = vadd.f32 %v533, %v629
  %v631 = vpop.f32.mrb[0].mxu0
  %632 = vmatprep.mubr.bf16.mxu0 %v128
  %633 = vmatmul.mubr.bf16.gmra.mrb[0].mxu0 %v127
  %v634 = vpop.f32.mrb[0].mxu0
  %v635 = vadd.f32 %v538, %v634
  %v636 = vpop.f32.mrb[0].mxu0
  %v637 = vpop.f32.mrb[0].mxu0
  %v638 = vadd.f32 %v541, %v637
  %v639 = vpop.f32.mrb[0].mxu0
  %640 = vmatprep.mubr.bf16.mxu0 %v133
  %641 = vmatmul.mubr.bf16.gmra.mrb[0].mxu0 %v132
  %v642 = vpop.f32.mrb[0].mxu0
  %v643 = vadd.f32 %v546, %v642
  %v644 = vpop.f32.mrb[0].mxu0
  %v645 = vpop.f32.mrb[0].mxu0
  %v646 = vadd.f32 %v549, %v645
  %v647 = vpop.f32.mrb[0].mxu0
  %648 = vdwg.mxu0
  %649 = vmatprep.subr.bf16.mxu0 0
  %650 = vmatpush1.bf16.msra.mxu0 %v390
  %651 = vmatprep.subr.bf16.mxu0 0
  %652 = vmatpush1.bf16.msra.mxu0 %v391
  %653 = vmatprep.subr.bf16.mxu0 0
  %654 = vmatpush1.bf16.msra.mxu0 %v392
  %655 = vmatprep.subr.bf16.mxu0 0
  %656 = vmatpush1.bf16.msra.mxu0 %v393
  %657 = vmatprep.subr.bf16.mxu0 0
  %658 = vmatpush1.bf16.msra.mxu0 0
  %659 = vmatprep.subr.bf16.mxu0 0
  %660 = vmatpush1.bf16.msra.mxu0 0
  %661 = vmatprep.subr.bf16.mxu0 0
  %662 = vmatpush1.bf16.msra.mxu0 0
  %663 = vmatprep.subr.bf16.mxu0 0
  %664 = vmatpush1.bf16.msra.mxu0 0
  %665 = vmatprep.subr.bf16.mxu0 0
  %666 = vmatpush1.bf16.msra.mxu0 0
  %667 = vmatprep.subr.bf16.mxu0 0
  %668 = vmatpush1.bf16.msra.mxu0 0
  %669 = vmatprep.subr.bf16.mxu0 0
  %670 = vmatpush1.bf16.msra.mxu0 0
  %671 = vmatprep.subr.bf16.mxu0 0
  %672 = vmatpush1.bf16.msra.mxu0 0
  %673 = vmatprep.subr.bf16.mxu0 0
  %674 = vmatpush1.bf16.msra.mxu0 0
  %675 = vmatprep.subr.bf16.mxu0 0
  %676 = vmatpush1.bf16.msra.mxu0 0
  %677 = vmatprep.subr.bf16.mxu0 0
  %678 = vmatpush1.bf16.msra.mxu0 0
  %679 = vmatprep.subr.bf16.mxu0 0
  %680 = vmatpush1.bf16.msra.mxu0 0
  %681 = vmatprep.mubr.bf16.mxu0 0
  %682 = vmatmul.mubr.bf16.gmra.mrb[0].mxu0 %v432
  %v683 = vpop.f32.mrb[0].mxu0
  %v684 = vadd.f32 %v587, %v683
  %v685 = vpop.f32.mrb[0].mxu0
  %v686 = vpop.f32.mrb[0].mxu0
  %v687 = vadd.f32 %v590, %v686
  %v688 = vpop.f32.mrb[0].mxu0
  %689 = vmatprep.mubr.bf16.mxu0 0
  %690 = vmatmul.mubr.bf16.gmra.mrb[0].mxu0 %v435
  %v691 = vpop.f32.mrb[0].mxu0
  %v692 = vadd.f32 %v595, %v691
  %v693 = vpop.f32.mrb[0].mxu0
  %v694 = vpop.f32.mrb[0].mxu0
  %v695 = vadd.f32 %v598, %v694
  %v696 = vpop.f32.mrb[0].mxu0
  %697 = vmatprep.mubr.bf16.mxu0 0
  %698 = vmatmul.mubr.bf16.gmra.mrb[0].mxu0 %v438
  %v699 = vpop.f32.mrb[0].mxu0
  %v700 = vadd.f32 %v603, %v699
  %v701 = vpop.f32.mrb[0].mxu0
  %v702 = vpop.f32.mrb[0].mxu0
  %v703 = vadd.f32 %v606, %v702
  %v704 = vpop.f32.mrb[0].mxu0
  %705 = vmatprep.mubr.bf16.mxu0 0
  %706 = vmatmul.mubr.bf16.gmra.mrb[0].mxu0 %v441
  %v707 = vpop.f32.mrb[0].mxu0
  %v708 = vadd.f32 %v611, %v707
  %v709 = vpop.f32.mrb[0].mxu0
  %v710 = vpop.f32.mrb[0].mxu0
  %v711 = vadd.f32 %v614, %v710
  %v712 = vpop.f32.mrb[0].mxu0
  %713 = vmatprep.mubr.bf16.mxu0 0
  %714 = vmatmul.mubr.bf16.gmra.mrb[0].mxu0 %v444
  %v715 = vpop.f32.mrb[0].mxu0
  %v716 = vadd.f32 %v619, %v715
  %v717 = vpop.f32.mrb[0].mxu0
  %v718 = vpop.f32.mrb[0].mxu0
  %v719 = vadd.f32 %v622, %v718
  %v720 = vpop.f32.mrb[0].mxu0
  %721 = vmatprep.mubr.bf16.mxu0 0
  %722 = vmatmul.mubr.bf16.gmra.mrb[0].mxu0 %v447
  %v723 = vpop.f32.mrb[0].mxu0
  %v724 = vadd.f32 %v627, %v723
  %v725 = vpop.f32.mrb[0].mxu0
  %v726 = vpop.f32.mrb[0].mxu0
  %v727 = vadd.f32 %v630, %v726
  %v728 = vpop.f32.mrb[0].mxu0
  %729 = vmatprep.mubr.bf16.mxu0 0
  %730 = vmatmul.mubr.bf16.gmra.mrb[0].mxu0 %v450
  %v731 = vpop.f32.mrb[0].mxu0
  %v732 = vadd.f32 %v635, %v731
  %v733 = vpop.f32.mrb[0].mxu0
  %v734 = vpop.f32.mrb[0].mxu0
  %v735 = vadd.f32 %v638, %v734
  %v736 = vpop.f32.mrb[0].mxu0
  %737 = vmatprep.mubr.bf16.mxu0 0
  %738 = vmatmul.mubr.bf16.gmra.mrb[0].mxu0 %v453
  %v739 = vpop.f32.mrb[0].mxu0
  %v740 = vadd.f32 %v643, %v739
  %v741 = vpop.f32.mrb[0].mxu0
  %v742 = vpop.f32.mrb[0].mxu0
  %v743 = vadd.f32 %v646, %v742
  %v744 = vpop.f32.mrb[0].mxu0
  %745 = vdwg.mxu0
  %v746 = vmax.f32 %v684, 0.0
  %v747 = vmax.f32 %v687, 0.0
  %v748 = vmax.f32 %v692, 0.0
  %v749 = vmax.f32 %v695, 0.0
  %v750 = vmax.f32 %v700, 0.0
  %v751 = vmax.f32 %v703, 0.0
  %v752 = vmax.f32 %v708, 0.0
  %v753 = vmax.f32 %v711, 0.0
  %v754 = vmax.f32 %v716, 0.0
  %v755 = vmax.f32 %v719, 0.0
  %v756 = vmax.f32 %v724, 0.0
  %v757 = vmax.f32 %v727, 0.0
  %v758 = vmax.f32 %v732, 0.0
  %v759 = vmax.f32 %v735, 0.0
  %v760 = vmax.f32 %v740, 0.0
  %v761 = vmax.f32 %v743, 0.0
  %762 = vst.msk [vmem:[%s3] sm:$0xff] %vm430, %v746
  %763 = vst.msk [vmem:[%s3 + $0x8] sm:$0xff] %vm430, %v747
  %764 = vst.msk [vmem:[%s3 + $0x10] sm:$0xff] %vm430, %v748
  %765 = vst.msk [vmem:[%s3 + $0x18] sm:$0xff] %vm430, %v749
  %766 = vst.msk [vmem:[%s3 + $0x20] sm:$0xff] %vm430, %v750
  %767 = vst.msk [vmem:[%s3 + $0x28] sm:$0xff] %vm430, %v751
  %768 = vst.msk [vmem:[%s3 + $0x30] sm:$0xff] %vm430, %v752
  %769 = vst.msk [vmem:[%s3 + $0x38] sm:$0xff] %vm430, %v753
  %770 = vst.msk [vmem:[%s3 + $0x40] sm:$0xff] %vm430, %v754
  %771 = vst.msk [vmem:[%s3 + $0x48] sm:$0xff] %vm430, %v755
  %772 = vst.msk [vmem:[%s3 + $0x50] sm:$0xff] %vm430, %v756
  %773 = vst.msk [vmem:[%s3 + $0x58] sm:$0xff] %vm430, %v757
  %774 = vst.msk [vmem:[%s3 + $0x60] sm:$0xff] %vm430, %v758
  %775 = vst.msk [vmem:[%s3 + $0x68] sm:$0xff] %vm430, %v759
  %776 = vst.msk [vmem:[%s3 + $0x70] sm:$0xff] %vm430, %v760
  %777 = vst.msk [vmem:[%s3 + $0x78] sm:$0xff] %vm430, %v761
  // Predicated region
  $region14: #{resnet50_vit_forward.28} parent=0 // pred_check
    _
  $region15: #{resnet50_vit_forward.28} parent=0 // pred_check_branch
    %779 = sbr.rel (0) target = $region17
  $region16: #{resnet50_vit_forward.28} parent=0 // pred_region
    _
  $region17: #{resnet50_vit_forward.28} parent=0 // pred_fallthru
    _
  // Predicated region
  $region18: #{resnet50_vit_forward.28} parent=0 // pred_check
    _
  $region19: #{resnet50_vit_forward.28} parent=0 // pred_check_branch
    %781 = sbr.rel (0) target = $region21
  $region20: #{resnet50_vit_forward.28} parent=0 // pred_region
    _
  $region21: #{resnet50_vit_forward.28} parent=0 // pred_fallthru
    _

// kernel: resnet50_vit_forward.30
$region0: #{resnet50_vit_forward.30}
  #allocation0 [shape = 'u32[]', space=smem, size = 0x4, offset = 0x4, fixed_abs, tag = 'smem constant byte address 0x4 - core index']
  #allocation1 [shape = 'u32[144,128]{1,0:T(1,128)}', space=vmem, size = 0x12000, scoped, tag = 'internal scratch']
  %s0 = inlined_call_operand.vmem [shape: f32[128,256], index: 0, kind: input, shape index: {}]
  %s1 = inlined_call_operand.vmem [shape: bf16[256,64], index: 1, kind: input, shape index: {}]
  %s2 = inlined_call_operand.vmem [shape: f32[1,64], index: 2, kind: input, shape index: {}]
  %s3 = inlined_call_operand.vmem [shape: f32[128,64], index: 3, kind: output, shape index: {}]
  %s4 = sld [smem:[#allocation0]]
  $region22: #{resnet50_vit_forward.30} parent=0
    _
  %s6 = ssub.s32 1, %s4
  %s7 = scalar_select 0, %s6, %s4
  // Predicated region
  $region2: #{resnet50_vit_forward.30} parent=0 // pred_check
    _
  $region3: #{resnet50_vit_forward.30} parent=0 // pred_check_branch
    %9 = sbr.rel (0) target = $region5
  $region4: #{resnet50_vit_forward.30} parent=0 // pred_region
    _
  $region5: #{resnet50_vit_forward.30} parent=0 // pred_fallthru
    _
  // Predicated region
  $region6: #{resnet50_vit_forward.30} parent=0 // pred_check
    _
  $region7: #{resnet50_vit_forward.30} parent=0 // pred_check_branch
    %11 = sbr.rel (0) target = $region9
  $region8: #{resnet50_vit_forward.30} parent=0 // pred_region
    _
  $region9: #{resnet50_vit_forward.30} parent=0 // pred_fallthru
    _
  // Predicated region
  $region10: #{resnet50_vit_forward.30} parent=0 // pred_check
    _
  $region11: #{resnet50_vit_forward.30} parent=0 // pred_check_branch
    %13 = sbr.rel (0) target = $region13
  $region12: #{resnet50_vit_forward.30} parent=0 // pred_region
    _
  $region13: #{resnet50_vit_forward.30} parent=0 // pred_fallthru
    _
  %v15 = vld [vmem:[%s0] sm:$0xff]
  %v16 = vld [vmem:[%s0 + $0x8] sm:$0xff]
  %v17 = vld [vmem:[%s0 + $0x10] sm:$0xff]
  %v18 = vld [vmem:[%s0 + $0x18] sm:$0xff]
  %v19 = vld [vmem:[%s0 + $0x20] sm:$0xff]
  %v20 = vld [vmem:[%s0 + $0x28] sm:$0xff]
  %v21 = vld [vmem:[%s0 + $0x30] sm:$0xff]
  %v22 = vld [vmem:[%s0 + $0x38] sm:$0xff]
  %v23 = vld [vmem:[%s0 + $0x40] sm:$0xff]
  %v24 = vld [vmem:[%s0 + $0x48] sm:$0xff]
  %v25 = vld [vmem:[%s0 + $0x50] sm:$0xff]
  %v26 = vld [vmem:[%s0 + $0x58] sm:$0xff]
  %v27 = vld [vmem:[%s0 + $0x60] sm:$0xff]
  %v28 = vld [vmem:[%s0 + $0x68] sm:$0xff]
  %v29 = vld [vmem:[%s0 + $0x70] sm:$0xff]
  %v30 = vld [vmem:[%s0 + $0x78] sm:$0xff]
  %v31 = vld [vmem:[%s0 + $0x80] sm:$0xff]
  %v32 = vld [vmem:[%s0 + $0x88] sm:$0xff]
  %v33 = vld [vmem:[%s0 + $0x90] sm:$0xff]
  %v34 = vld [vmem:[%s0 + $0x98] sm:$0xff]
  %v35 = vld [vmem:[%s0 + $0xa0] sm:$0xff]
  %v36 = vld [vmem:[%s0 + $0xa8] sm:$0xff]
  %v37 = vld [vmem:[%s0 + $0xb0] sm:$0xff]
  %v38 = vld [vmem:[%s0 + $0xb8] sm:$0xff]
  %v39 = vld [vmem:[%s0 + $0xc0] sm:$0xff]
  %v40 = vld [vmem:[%s0 + $0xc8] sm:$0xff]
  %v41 = vld [vmem:[%s0 + $0xd0] sm:$0xff]
  %v42 = vld [vmem:[%s0 + $0xd8] sm:$0xff]
  %v43 = vld [vmem:[%s0 + $0xe0] sm:$0xff]
  %v44 = vld [vmem:[%s0 + $0xe8] sm:$0xff]
  %v45 = vld [vmem:[%s0 + $0xf0] sm:$0xff]
  %v46 = vld [vmem:[%s0 + $0xf8] sm:$0xff]
  %v47 = vpack.c.bf16 %v17, %v15
  %v48 = vpack.c.bf16 %v18, %v16
  %v49 = vpack.c.bf16 %v21, %v19
  %v50 = vpack.c.bf16 %v22, %v20
  %v51 = vpack.c.bf16 %v25, %v23
  %v52 = vpack.c.bf16 %v26, %v24
  %v53 = vpack.c.bf16 %v29, %v27
  %v54 = vpack.c.bf16 %v30, %v28
  %v55 = vpack.c.bf16 %v33, %v31
  %v56 = vpack.c.bf16 %v34, %v32
  %v57 = vpack.c.bf16 %v37, %v35
  %v58 = vpack.c.bf16 %v38, %v36
  %v59 = vpack.c.bf16 %v41, %v39
  %v60 = vpack.c.bf16 %v42, %v40
  %v61 = vpack.c.bf16 %v45, %v43
  %v62 = vpack.c.bf16 %v46, %v44
  %v63 = vld [vmem:[%s1] sm:$0xf]
  %v64 = vld [vmem:[%s1 + $0x4] sm:$0xf]
  %v65 = vld [vmem:[%s1 + $0x8] sm:$0xf]
  %v66 = vld [vmem:[%s1 + $0xc] sm:$0xf]
  %v67 = vld [vmem:[%s1 + $0x10] sm:$0xf]
  %v68 = vld [vmem:[%s1 + $0x14] sm:$0xf]
  %v69 = vld [vmem:[%s1 + $0x18] sm:$0xf]
  %v70 = vld [vmem:[%s1 + $0x1c] sm:$0xf]
  %v71 = vld [vmem:[%s1 + $0x20] sm:$0xf]
  %v72 = vld [vmem:[%s1 + $0x24] sm:$0xf]
  %v73 = vld [vmem:[%s1 + $0x28] sm:$0xf]
  %v74 = vld [vmem:[%s1 + $0x2c] sm:$0xf]
  %v75 = vld [vmem:[%s1 + $0x30] sm:$0xf]
  %v76 = vld [vmem:[%s1 + $0x34] sm:$0xf]
  %v77 = vld [vmem:[%s1 + $0x38] sm:$0xf]
  %v78 = vld [vmem:[%s1 + $0x3c] sm:$0xf]
  %v79 = vld [vmem:[%s1 + $0x40] sm:$0xf]
  %v80 = vld [vmem:[%s1 + $0x44] sm:$0xf]
  %v81 = vld [vmem:[%s1 + $0x48] sm:$0xf]
  %v82 = vld [vmem:[%s1 + $0x4c] sm:$0xf]
  %v83 = vld [vmem:[%s1 + $0x50] sm:$0xf]
  %v84 = vld [vmem:[%s1 + $0x54] sm:$0xf]
  %v85 = vld [vmem:[%s1 + $0x58] sm:$0xf]
  %v86 = vld [vmem:[%s1 + $0x5c] sm:$0xf]
  %v87 = vld [vmem:[%s1 + $0x60] sm:$0xf]
  %v88 = vld [vmem:[%s1 + $0x64] sm:$0xf]
  %v89 = vld [vmem:[%s1 + $0x68] sm:$0xf]
  %v90 = vld [vmem:[%s1 + $0x6c] sm:$0xf]
  %v91 = vld [vmem:[%s1 + $0x70] sm:$0xf]
  %v92 = vld [vmem:[%s1 + $0x74] sm:$0xf]
  %v93 = vld [vmem:[%s1 + $0x78] sm:$0xf]
  %v94 = vld [vmem:[%s1 + $0x7c] sm:$0xf]
  %v95 = vld [vmem:[%s2] sm:$0x1]
  %v97 = vlaneseq
  %v98 = vshrl.u32 %v97, 7
  %v99 = vsub.s32 0, %v98
  %v100 = vrot.slane %v95, %v99
  %v134 = vunpack.c.l.b16 %v63
  %v135 = vunpack.c.l.b16 %v64
  %v136 = vunpack.c.l.b16 %v65
  %v137 = vunpack.c.l.b16 %v66
  %v138 = vunpack.c.l.b16 %v67
  %v139 = vunpack.c.l.b16 %v68
  %v140 = vunpack.c.l.b16 %v69
  %v141 = vunpack.c.l.b16 %v70
  %v142 = vunpack.c.l.b16 %v71
  %v143 = vunpack.c.l.b16 %v72
  %v144 = vunpack.c.l.b16 %v73
  %v145 = vunpack.c.l.b16 %v74
  %v146 = vunpack.c.l.b16 %v75
  %v147 = vunpack.c.l.b16 %v76
  %v148 = vunpack.c.l.b16 %v77
  %v149 = vunpack.c.l.b16 %v78
  %v150 = vunpack.c.l.b16 %v79
  %v151 = vunpack.c.l.b16 %v80
  %v152 = vunpack.c.l.b16 %v81
  %v153 = vunpack.c.l.b16 %v82
  %v154 = vunpack.c.l.b16 %v83
  %v155 = vunpack.c.l.b16 %v84
  %v156 = vunpack.c.l.b16 %v85
  %v157 = vunpack.c.l.b16 %v86
  %v158 = vunpack.c.l.b16 %v87
  %v159 = vunpack.c.l.b16 %v88
  %v160 = vunpack.c.l.b16 %v89
  %v161 = vunpack.c.l.b16 %v90
  %v162 = vunpack.c.l.b16 %v91
  %v163 = vunpack.c.l.b16 %v92
  %v164 = vunpack.c.l.b16 %v93
  %v165 = vunpack.c.l.b16 %v94
  %v166 = vpack.c.b16 %v135, %v134
  %v167 = vpack.c.b16 %v137, %v136
  %v168 = vpack.c.b16 %v139, %v138
  %v169 = vpack.c.b16 %v141, %v140
  %v170 = vpack.c.b16 %v143, %v142
  %v171 = vpack.c.b16 %v145, %v144
  %v172 = vpack.c.b16 %v147, %v146
  %v173 = vpack.c.b16 %v149, %v148
  %v174 = vpack.c.b16 %v151, %v150
  %v175 = vpack.c.b16 %v153, %v152
  %v176 = vpack.c.b16 %v155, %v154
  %v177 = vpack.c.b16 %v157, %v156
  %v178 = vpack.c.b16 %v159, %v158
  %v179 = vpack.c.b16 %v161, %v160
  %v180 = vpack.c.b16 %v163, %v162
  %v181 = vpack.c.b16 %v165, %v164
  %198 = vmatprep.subr.bf16.mxu0 0
  %199 = vmatpush1.bf16.msra.mxu0 %v166
  %200 = vmatprep.subr.bf16.mxu0 0
  %201 = vmatpush1.bf16.msra.mxu0 %v167
  %202 = vmatprep.subr.bf16.mxu0 0
  %203 = vmatpush1.bf16.msra.mxu0 %v168
  %204 = vmatprep.subr.bf16.mxu0 0
  %205 = vmatpush1.bf16.msra.mxu0 %v169
  %206 = vmatprep.subr.bf16.mxu0 0
  %207 = vmatpush1.bf16.msra.mxu0 %v170
  %208 = vmatprep.subr.bf16.mxu0 0
  %209 = vmatpush1.bf16.msra.mxu0 %v171
  %210 = vmatprep.subr.bf16.mxu0 0
  %211 = vmatpush1.bf16.msra.mxu0 %v172
  %212 = vmatprep.subr.bf16.mxu0 0
  %213 = vmatpush1.bf16.msra.mxu0 %v173
  %214 = vmatprep.subr.bf16.mxu0 0
  %215 = vmatpush1.bf16.msra.mxu0 %v174
  %216 = vmatprep.subr.bf16.mxu0 0
  %217 = vmatpush1.bf16.msra.mxu0 %v175
  %218 = vmatprep.subr.bf16.mxu0 0
  %219 = vmatpush1.bf16.msra.mxu0 %v176
  %220 = vmatprep.subr.bf16.mxu0 0
  %221 = vmatpush1.bf16.msra.mxu0 %v177
  %222 = vmatprep.subr.bf16.mxu0 0
  %223 = vmatpush1.bf16.msra.mxu0 %v178
  %224 = vmatprep.subr.bf16.mxu0 0
  %225 = vmatpush1.bf16.msra.mxu0 %v179
  %226 = vmatprep.subr.bf16.mxu0 0
  %227 = vmatpush1.bf16.msra.mxu0 %v180
  %228 = vmatprep.subr.bf16.mxu0 0
  %229 = vmatpush1.bf16.msra.mxu0 %v181
  %230 = vmatprep.mubr.bf16.mxu0 %v48
  %231 = vmatmul.mubr.bf16.gmra.mrb[0].mxu0 %v47
  %v232 = vpop.f32.mrb[0].mxu0
  %v233 = vadd.f32 %v100, %v232
  %v234 = vpop.f32.mrb[0].mxu0
  %v235 = vpop.f32.mrb[0].mxu0
  %v236 = vadd.f32 %v100, %v235
  %v237 = vpop.f32.mrb[0].mxu0
  %238 = vmatprep.mubr.bf16.mxu0 %v50
  %239 = vmatmul.mubr.bf16.gmra.mrb[0].mxu0 %v49
  %v240 = vpop.f32.mrb[0].mxu0
  %v241 = vadd.f32 %v100, %v240
  %v242 = vpop.f32.mrb[0].mxu0
  %v243 = vpop.f32.mrb[0].mxu0
  %v244 = vadd.f32 %v100, %v243
  %v245 = vpop.f32.mrb[0].mxu0
  %246 = vmatprep.mubr.bf16.mxu0 %v52
  %247 = vmatmul.mubr.bf16.gmra.mrb[0].mxu0 %v51
  %v248 = vpop.f32.mrb[0].mxu0
  %v249 = vadd.f32 %v100, %v248
  %v250 = vpop.f32.mrb[0].mxu0
  %v251 = vpop.f32.mrb[0].mxu0
  %v252 = vadd.f32 %v100, %v251
  %v253 = vpop.f32.mrb[0].mxu0
  %254 = vmatprep.mubr.bf16.mxu0 %v54
  %255 = vmatmul.mubr.bf16.gmra.mrb[0].mxu0 %v53
  %v256 = vpop.f32.mrb[0].mxu0
  %v257 = vadd.f32 %v100, %v256
  %v258 = vpop.f32.mrb[0].mxu0
  %v259 = vpop.f32.mrb[0].mxu0
  %v260 = vadd.f32 %v100, %v259
  %v261 = vpop.f32.mrb[0].mxu0
  %262 = vmatprep.mubr.bf16.mxu0 %v56
  %263 = vmatmul.mubr.bf16.gmra.mrb[0].mxu0 %v55
  %v264 = vpop.f32.mrb[0].mxu0
  %v265 = vadd.f32 %v100, %v264
  %v266 = vpop.f32.mrb[0].mxu0
  %v267 = vpop.f32.mrb[0].mxu0
  %v268 = vadd.f32 %v100, %v267
  %v269 = vpop.f32.mrb[0].mxu0
  %270 = vmatprep.mubr.bf16.mxu0 %v58
  %271 = vmatmul.mubr.bf16.gmra.mrb[0].mxu0 %v57
  %v272 = vpop.f32.mrb[0].mxu0
  %v273 = vadd.f32 %v100, %v272
  %v274 = vpop.f32.mrb[0].mxu0
  %v275 = vpop.f32.mrb[0].mxu0
  %v276 = vadd.f32 %v100, %v275
  %v277 = vpop.f32.mrb[0].mxu0
  %278 = vmatprep.mubr.bf16.mxu0 %v60
  %279 = vmatmul.mubr.bf16.gmra.mrb[0].mxu0 %v59
  %v280 = vpop.f32.mrb[0].mxu0
  %v281 = vadd.f32 %v100, %v280
  %v282 = vpop.f32.mrb[0].mxu0
  %v283 = vpop.f32.mrb[0].mxu0
  %v284 = vadd.f32 %v100, %v283
  %v285 = vpop.f32.mrb[0].mxu0
  %286 = vmatprep.mubr.bf16.mxu0 %v62
  %287 = vmatmul.mubr.bf16.gmra.mrb[0].mxu0 %v61
  %v288 = vpop.f32.mrb[0].mxu0
  %v289 = vadd.f32 %v100, %v288
  %v290 = vpop.f32.mrb[0].mxu0
  %v291 = vpop.f32.mrb[0].mxu0
  %v292 = vadd.f32 %v100, %v291
  %v293 = vpop.f32.mrb[0].mxu0
  %294 = vdwg.mxu0
  %v295 = vmax.f32 %v233, 0.0
  %v296 = vmax.f32 %v236, 0.0
  %v297 = vmax.f32 %v241, 0.0
  %v298 = vmax.f32 %v244, 0.0
  %v299 = vmax.f32 %v249, 0.0
  %v300 = vmax.f32 %v252, 0.0
  %v301 = vmax.f32 %v257, 0.0
  %v302 = vmax.f32 %v260, 0.0
  %v303 = vmax.f32 %v265, 0.0
  %v304 = vmax.f32 %v268, 0.0
  %v305 = vmax.f32 %v273, 0.0
  %v306 = vmax.f32 %v276, 0.0
  %v307 = vmax.f32 %v281, 0.0
  %v308 = vmax.f32 %v284, 0.0
  %v309 = vmax.f32 %v289, 0.0
  %v310 = vmax.f32 %v292, 0.0
  %vm311 = vcmask 523264
  %312 = vst.msk [vmem:[%s3] sm:$0xff] %vm311, %v295
  %313 = vst.msk [vmem:[%s3 + $0x8] sm:$0xff] %vm311, %v296
  %314 = vst.msk [vmem:[%s3 + $0x10] sm:$0xff] %vm311, %v297
  %315 = vst.msk [vmem:[%s3 + $0x18] sm:$0xff] %vm311, %v298
  %316 = vst.msk [vmem:[%s3 + $0x20] sm:$0xff] %vm311, %v299
  %317 = vst.msk [vmem:[%s3 + $0x28] sm:$0xff] %vm311, %v300
  %318 = vst.msk [vmem:[%s3 + $0x30] sm:$0xff] %vm311, %v301
  %319 = vst.msk [vmem:[%s3 + $0x38] sm:$0xff] %vm311, %v302
  %320 = vst.msk [vmem:[%s3 + $0x40] sm:$0xff] %vm311, %v303
  %321 = vst.msk [vmem:[%s3 + $0x48] sm:$0xff] %vm311, %v304
  %322 = vst.msk [vmem:[%s3 + $0x50] sm:$0xff] %vm311, %v305
  %323 = vst.msk [vmem:[%s3 + $0x58] sm:$0xff] %vm311, %v306
  %324 = vst.msk [vmem:[%s3 + $0x60] sm:$0xff] %vm311, %v307
  %325 = vst.msk [vmem:[%s3 + $0x68] sm:$0xff] %vm311, %v308
  %326 = vst.msk [vmem:[%s3 + $0x70] sm:$0xff] %vm311, %v309
  %327 = vst.msk [vmem:[%s3 + $0x78] sm:$0xff] %vm311, %v310
  // Predicated region
  $region14: #{resnet50_vit_forward.30} parent=0 // pred_check
    _
  $region15: #{resnet50_vit_forward.30} parent=0 // pred_check_branch
    %329 = sbr.rel (0) target = $region17
  $region16: #{resnet50_vit_forward.30} parent=0 // pred_region
    _
  $region17: #{resnet50_vit_forward.30} parent=0 // pred_fallthru
    _
  // Predicated region
  $region18: #{resnet50_vit_forward.30} parent=0 // pred_check
    _
  $region19: #{resnet50_vit_forward.30} parent=0 // pred_check_branch
    %331 = sbr.rel (0) target = $region21
  $region20: #{resnet50_vit_forward.30} parent=0 // pred_region
    _
  $region21: #{resnet50_vit_forward.30} parent=0 // pred_fallthru
    _

// kernel: resnet50_vit_forward.29
$region0: #{resnet50_vit_forward.29}
  #allocation0 [shape = 'u32[]', space=smem, size = 0x4, offset = 0x4, fixed_abs, tag = 'smem constant byte address 0x4 - core index']
  #allocation1 [shape = 'u32[144,128]{1,0:T(1,128)}', space=vmem, size = 0x12000, scoped, tag = 'internal scratch']
  %s0 = inlined_call_operand.vmem [shape: f32[128,64], index: 0, kind: input, shape index: {}]
  %s1 = inlined_call_operand.vmem [shape: bf16[64,256], index: 1, kind: input, shape index: {}]
  %s2 = inlined_call_operand.vmem [shape: f32[1,256], index: 2, kind: input, shape index: {}]
  %s3 = inlined_call_operand.vmem [shape: f32[128,256], index: 3, kind: input, shape index: {}]
  %s4 = inlined_call_operand.vmem [shape: f32[128,256], index: 4, kind: output, shape index: {}]
  %s5 = sld [smem:[#allocation0]]
  $region26: #{resnet50_vit_forward.29} parent=0
    _
  %s7 = ssub.s32 1, %s5
  %s8 = scalar_select 0, %s7, %s5
  // Predicated region
  $region2: #{resnet50_vit_forward.29} parent=0 // pred_check
    _
  $region3: #{resnet50_vit_forward.29} parent=0 // pred_check_branch
    %10 = sbr.rel (0) target = $region5
  $region4: #{resnet50_vit_forward.29} parent=0 // pred_region
    _
  $region5: #{resnet50_vit_forward.29} parent=0 // pred_fallthru
    _
  // Predicated region
  $region6: #{resnet50_vit_forward.29} parent=0 // pred_check
    _
  $region7: #{resnet50_vit_forward.29} parent=0 // pred_check_branch
    %12 = sbr.rel (0) target = $region9
  $region8: #{resnet50_vit_forward.29} parent=0 // pred_region
    _
  $region9: #{resnet50_vit_forward.29} parent=0 // pred_fallthru
    _
  // Predicated region
  $region10: #{resnet50_vit_forward.29} parent=0 // pred_check
    _
  $region11: #{resnet50_vit_forward.29} parent=0 // pred_check_branch
    %14 = sbr.rel (0) target = $region13
  $region12: #{resnet50_vit_forward.29} parent=0 // pred_region
    _
  $region13: #{resnet50_vit_forward.29} parent=0 // pred_fallthru
    _
  // Predicated region
  $region14: #{resnet50_vit_forward.29} parent=0 // pred_check
    _
  $region15: #{resnet50_vit_forward.29} parent=0 // pred_check_branch
    %16 = sbr.rel (0) target = $region17
  $region16: #{resnet50_vit_forward.29} parent=0 // pred_region
    _
  $region17: #{resnet50_vit_forward.29} parent=0 // pred_fallthru
    _
  %v18 = vld [vmem:[%s0] sm:$0xff]
  %v19 = vld [vmem:[%s0 + $0x8] sm:$0xff]
  %v20 = vld [vmem:[%s0 + $0x10] sm:$0xff]
  %v21 = vld [vmem:[%s0 + $0x18] sm:$0xff]
  %v22 = vld [vmem:[%s0 + $0x20] sm:$0xff]
  %v23 = vld [vmem:[%s0 + $0x28] sm:$0xff]
  %v24 = vld [vmem:[%s0 + $0x30] sm:$0xff]
  %v25 = vld [vmem:[%s0 + $0x38] sm:$0xff]
  %v26 = vld [vmem:[%s0 + $0x40] sm:$0xff]
  %v27 = vld [vmem:[%s0 + $0x48] sm:$0xff]
  %v28 = vld [vmem:[%s0 + $0x50] sm:$0xff]
  %v29 = vld [vmem:[%s0 + $0x58] sm:$0xff]
  %v30 = vld [vmem:[%s0 + $0x60] sm:$0xff]
  %v31 = vld [vmem:[%s0 + $0x68] sm:$0xff]
  %v32 = vld [vmem:[%s0 + $0x70] sm:$0xff]
  %v33 = vld [vmem:[%s0 + $0x78] sm:$0xff]
  %v34 = vpack.c.bf16 %v19, %v18
  %v35 = vpack.c.bf16 %v21, %v20
  %v36 = vpack.c.bf16 %v23, %v22
  %v37 = vpack.c.bf16 %v25, %v24
  %v38 = vpack.c.bf16 %v27, %v26
  %v39 = vpack.c.bf16 %v29, %v28
  %v40 = vpack.c.bf16 %v31, %v30
  %v41 = vpack.c.bf16 %v33, %v32
  %v42 = vld [vmem:[%s1] sm:$0xff]
  %v43 = vld [vmem:[%s1 + $0x8] sm:$0xff]
  %v44 = vld [vmem:[%s1 + $0x10] sm:$0xff]
  %v45 = vld [vmem:[%s1 + $0x18] sm:$0xff]
  %v46 = vld [vmem:[%s1 + $0x20] sm:$0xff]
  %v47 = vld [vmem:[%s1 + $0x28] sm:$0xff]
  %v48 = vld [vmem:[%s1 + $0x30] sm:$0xff]
  %v49 = vld [vmem:[%s1 + $0x38] sm:$0xff]
  %v50 = vld [vmem:[%s2] sm:$0x3]
  %v52 = vlaneseq
  %v53 = vshrl.u32 %v52, 7
  %v54 = vsub.s32 0, %v53
  %v55 = vrot.slane %v50, %v54
  %v56 = vlaneseq
  %v57 = vshrl.u32 %v56, 7
  %v58 = vsub.s32 1, %v57
  %v59 = vrot.slane %v50, %v58
  %v70 = vunpack.c.l.b16 %v42
  %v71 = vunpack.c.h.b16 %v42
  %v72 = vunpack.c.l.b16 %v43
  %v73 = vunpack.c.h.b16 %v43
  %v74 = vunpack.c.l.b16 %v44
  %v75 = vunpack.c.h.b16 %v44
  %v76 = vunpack.c.l.b16 %v45
  %v77 = vunpack.c.h.b16 %v45
  %v78 = vunpack.c.l.b16 %v46
  %v79 = vunpack.c.h.b16 %v46
  %v80 = vunpack.c.l.b16 %v47
  %v81 = vunpack.c.h.b16 %v47
  %v82 = vunpack.c.l.b16 %v48
  %v83 = vunpack.c.h.b16 %v48
  %v84 = vunpack.c.l.b16 %v49
  %v85 = vunpack.c.h.b16 %v49
  %v86 = vpack.c.b16 %v72, %v70
  %v87 = vpack.c.b16 %v73, %v71
  %v88 = vpack.c.b16 %v76, %v74
  %v89 = vpack.c.b16 %v77, %v75
  %v90 = vpack.c.b16 %v80, %v78
  %v91 = vpack.c.b16 %v81, %v79
  %v92 = vpack.c.b16 %v84, %v82
  %v93 = vpack.c.b16 %v85, %v83
  %vm102 = vcmask 523264
  %v104 = vsel %vm102, %v34, 0
  %v107 = vsel %vm102, %v35, 0
  %v110 = vsel %vm102, %v36, 0
  %v113 = vsel %vm102, %v37, 0
  %v116 = vsel %vm102, %v38, 0
  %v119 = vsel %vm102, %v39, 0
  %v122 = vsel %vm102, %v40, 0
  %v125 = vsel %vm102, %v41, 0
  %127 = vmatprep.subr.bf16.mxu0 %v87
  %128 = vmatpush1.bf16.msra.mxu0 %v86
  %129 = vmatprep.subr.bf16.mxu0 %v89
  %130 = vmatpush1.bf16.msra.mxu0 %v88
  %131 = vmatprep.subr.bf16.mxu0 %v91
  %132 = vmatpush1.bf16.msra.mxu0 %v90
  %133 = vmatprep.subr.bf16.mxu0 %v93
  %134 = vmatpush1.bf16.msra.mxu0 %v92
  %135 = vmatprep.subr.bf16.mxu0 0
  %136 = vmatpush1.bf16.msra.mxu0 0
  %137 = vmatprep.subr.bf16.mxu0 0
  %138 = vmatpush1.bf16.msra.mxu0 0
  %139 = vmatprep.subr.bf16.mxu0 0
  %140 = vmatpush1.bf16.msra.mxu0 0
  %141 = vmatprep.subr.bf16.mxu0 0
  %142 = vmatpush1.bf16.msra.mxu0 0
  %143 = vmatprep.subr.bf16.mxu0 0
  %144 = vmatpush1.bf16.msra.mxu0 0
  %145 = vmatprep.subr.bf16.mxu0 0
  %146 = vmatpush1.bf16.msra.mxu0 0
  %147 = vmatprep.subr.bf16.mxu0 0
  %148 = vmatpush1.bf16.msra.mxu0 0
  %149 = vmatprep.subr.bf16.mxu0 0
  %150 = vmatpush1.bf16.msra.mxu0 0
  %151 = vmatprep.subr.bf16.mxu0 0
  %152 = vmatpush1.bf16.msra.mxu0 0
  %153 = vmatprep.subr.bf16.mxu0 0
  %154 = vmatpush1.bf16.msra.mxu0 0
  %155 = vmatprep.subr.bf16.mxu0 0
  %156 = vmatpush1.bf16.msra.mxu0 0
  %157 = vmatprep.subr.bf16.mxu0 0
  %158 = vmatpush1.bf16.msra.mxu0 0
  %159 = vmatprep.mubr.bf16.mxu0 0
  %160 = vmatmul.mubr.bf16.gmra.mrb[0].mxu0 %v104
  %v161 = vpop.f32.mrb[0].mxu0
  %v162 = vadd.f32 %v55, %v161
  %v163 = vpop.f32.mrb[0].mxu0
  %v164 = vadd.f32 %v59, %v163
  %v165 = vpop.f32.mrb[0].mxu0
  %v166 = vadd.f32 %v55, %v165
  %v167 = vpop.f32.mrb[0].mxu0
  %v168 = vadd.f32 %v59, %v167
  %169 = vmatprep.mubr.bf16.mxu0 0
  %170 = vmatmul.mubr.bf16.gmra.mrb[0].mxu0 %v107
  %v171 = vpop.f32.mrb[0].mxu0
  %v172 = vadd.f32 %v55, %v171
  %v173 = vpop.f32.mrb[0].mxu0
  %v174 = vadd.f32 %v59, %v173
  %v175 = vpop.f32.mrb[0].mxu0
  %v176 = vadd.f32 %v55, %v175
  %v177 = vpop.f32.mrb[0].mxu0
  %v178 = vadd.f32 %v59, %v177
  %179 = vmatprep.mubr.bf16.mxu0 0
  %180 = vmatmul.mubr.bf16.gmra.mrb[0].mxu0 %v110
  %v181 = vpop.f32.mrb[0].mxu0
  %v182 = vadd.f32 %v55, %v181
  %v183 = vpop.f32.mrb[0].mxu0
  %v184 = vadd.f32 %v59, %v183
  %v185 = vpop.f32.mrb[0].mxu0
  %v186 = vadd.f32 %v55, %v185
  %v187 = vpop.f32.mrb[0].mxu0
  %v188 = vadd.f32 %v59, %v187
  %189 = vmatprep.mubr.bf16.mxu0 0
  %190 = vmatmul.mubr.bf16.gmra.mrb[0].mxu0 %v113
  %v191 = vpop.f32.mrb[0].mxu0
  %v192 = vadd.f32 %v55, %v191
  %v193 = vpop.f32.mrb[0].mxu0
  %v194 = vadd.f32 %v59, %v193
  %v195 = vpop.f32.mrb[0].mxu0
  %v196 = vadd.f32 %v55, %v195
  %v197 = vpop.f32.mrb[0].mxu0
  %v198 = vadd.f32 %v59, %v197
  %199 = vmatprep.mubr.bf16.mxu0 0
  %200 = vmatmul.mubr.bf16.gmra.mrb[0].mxu0 %v116
  %v201 = vpop.f32.mrb[0].mxu0
  %v202 = vadd.f32 %v55, %v201
  %v203 = vpop.f32.mrb[0].mxu0
  %v204 = vadd.f32 %v59, %v203
  %v205 = vpop.f32.mrb[0].mxu0
  %v206 = vadd.f32 %v55, %v205
  %v207 = vpop.f32.mrb[0].mxu0
  %v208 = vadd.f32 %v59, %v207
  %209 = vmatprep.mubr.bf16.mxu0 0
  %210 = vmatmul.mubr.bf16.gmra.mrb[0].mxu0 %v119
  %v211 = vpop.f32.mrb[0].mxu0
  %v212 = vadd.f32 %v55, %v211
  %v213 = vpop.f32.mrb[0].mxu0
  %v214 = vadd.f32 %v59, %v213
  %v215 = vpop.f32.mrb[0].mxu0
  %v216 = vadd.f32 %v55, %v215
  %v217 = vpop.f32.mrb[0].mxu0
  %v218 = vadd.f32 %v59, %v217
  %219 = vmatprep.mubr.bf16.mxu0 0
  %220 = vmatmul.mubr.bf16.gmra.mrb[0].mxu0 %v122
  %v221 = vpop.f32.mrb[0].mxu0
  %v222 = vadd.f32 %v55, %v221
  %v223 = vpop.f32.mrb[0].mxu0
  %v224 = vadd.f32 %v59, %v223
  %v225 = vpop.f32.mrb[0].mxu0
  %v226 = vadd.f32 %v55, %v225
  %v227 = vpop.f32.mrb[0].mxu0
  %v228 = vadd.f32 %v59, %v227
  %229 = vmatprep.mubr.bf16.mxu0 0
  %230 = vmatmul.mubr.bf16.gmra.mrb[0].mxu0 %v125
  %v231 = vpop.f32.mrb[0].mxu0
  %v232 = vadd.f32 %v55, %v231
  %v233 = vpop.f32.mrb[0].mxu0
  %v234 = vadd.f32 %v59, %v233
  %v235 = vpop.f32.mrb[0].mxu0
  %v236 = vadd.f32 %v55, %v235
  %v237 = vpop.f32.mrb[0].mxu0
  %v238 = vadd.f32 %v59, %v237
  %239 = vdwg.mxu0
  %v240 = vld [vmem:[%s3] sm:$0xff]
  %v241 = vld [vmem:[%s3 + $0x8] sm:$0xff]
  %v242 = vld [vmem:[%s3 + $0x10] sm:$0xff]
  %v243 = vld [vmem:[%s3 + $0x18] sm:$0xff]
  %v244 = vld [vmem:[%s3 + $0x20] sm:$0xff]
  %v245 = vld [vmem:[%s3 + $0x28] sm:$0xff]
  %v246 = vld [vmem:[%s3 + $0x30] sm:$0xff]
  %v247 = vld [vmem:[%s3 + $0x38] sm:$0xff]
  %v248 = vld [vmem:[%s3 + $0x40] sm:$0xff]
  %v249 = vld [vmem:[%s3 + $0x48] sm:$0xff]
  %v250 = vld [vmem:[%s3 + $0x50] sm:$0xff]
  %v251 = vld [vmem:[%s3 + $0x58] sm:$0xff]
  %v252 = vld [vmem:[%s3 + $0x60] sm:$0xff]
  %v253 = vld [vmem:[%s3 + $0x68] sm:$0xff]
  %v254 = vld [vmem:[%s3 + $0x70] sm:$0xff]
  %v255 = vld [vmem:[%s3 + $0x78] sm:$0xff]
  %v256 = vld [vmem:[%s3 + $0x80] sm:$0xff]
  %v257 = vld [vmem:[%s3 + $0x88] sm:$0xff]
  %v258 = vld [vmem:[%s3 + $0x90] sm:$0xff]
  %v259 = vld [vmem:[%s3 + $0x98] sm:$0xff]
  %v260 = vld [vmem:[%s3 + $0xa0] sm:$0xff]
  %v261 = vld [vmem:[%s3 + $0xa8] sm:$0xff]
  %v262 = vld [vmem:[%s3 + $0xb0] sm:$0xff]
  %v263 = vld [vmem:[%s3 + $0xb8] sm:$0xff]
  %v264 = vld [vmem:[%s3 + $0xc0] sm:$0xff]
  %v265 = vld [vmem:[%s3 + $0xc8] sm:$0xff]
  %v266 = vld [vmem:[%s3 + $0xd0] sm:$0xff]
  %v267 = vld [vmem:[%s3 + $0xd8] sm:$0xff]
  %v268 = vld [vmem:[%s3 + $0xe0] sm:$0xff]
  %v269 = vld [vmem:[%s3 + $0xe8] sm:$0xff]
  %v270 = vld [vmem:[%s3 + $0xf0] sm:$0xff]
  %v271 = vld [vmem:[%s3 + $0xf8] sm:$0xff]
  %v272 = vadd.f32 %v162, %v240
  %v273 = vadd.f32 %v164, %v241
  %v274 = vadd.f32 %v166, %v242
  %v275 = vadd.f32 %v168, %v243
  %v276 = vadd.f32 %v172, %v244
  %v277 = vadd.f32 %v174, %v245
  %v278 = vadd.f32 %v176, %v246
  %v279 = vadd.f32 %v178, %v247
  %v280 = vadd.f32 %v182, %v248
  %v281 = vadd.f32 %v184, %v249
  %v282 = vadd.f32 %v186, %v250
  %v283 = vadd.f32 %v188, %v251
  %v284 = vadd.f32 %v192, %v252
  %v285 = vadd.f32 %v194, %v253
  %v286 = vadd.f32 %v196, %v254
  %v287 = vadd.f32 %v198, %v255
  %v288 = vadd.f32 %v202, %v256
  %v289 = vadd.f32 %v204, %v257
  %v290 = vadd.f32 %v206, %v258
  %v291 = vadd.f32 %v208, %v259
  %v292 = vadd.f32 %v212, %v260
  %v293 = vadd.f32 %v214, %v261
  %v294 = vadd.f32 %v216, %v262
  %v295 = vadd.f32 %v218, %v263
  %v296 = vadd.f32 %v222, %v264
  %v297 = vadd.f32 %v224, %v265
  %v298 = vadd.f32 %v226, %v266
  %v299 = vadd.f32 %v228, %v267
  %v300 = vadd.f32 %v232, %v268
  %v301 = vadd.f32 %v234, %v269
  %v302 = vadd.f32 %v236, %v270
  %v303 = vadd.f32 %v238, %v271
  %v304 = vmax.f32 %v272, 0.0
  %v305 = vmax.f32 %v273, 0.0
  %v306 = vmax.f32 %v274, 0.0
  %v307 = vmax.f32 %v275, 0.0
  %v308 = vmax.f32 %v276, 0.0
  %v309 = vmax.f32 %v277, 0.0
  %v310 = vmax.f32 %v278, 0.0
  %v311 = vmax.f32 %v279, 0.0
  %v312 = vmax.f32 %v280, 0.0
  %v313 = vmax.f32 %v281, 0.0
  %v314 = vmax.f32 %v282, 0.0
  %v315 = vmax.f32 %v283, 0.0
  %v316 = vmax.f32 %v284, 0.0
  %v317 = vmax.f32 %v285, 0.0
  %v318 = vmax.f32 %v286, 0.0
  %v319 = vmax.f32 %v287, 0.0
  %v320 = vmax.f32 %v288, 0.0
  %v321 = vmax.f32 %v289, 0.0
  %v322 = vmax.f32 %v290, 0.0
  %v323 = vmax.f32 %v291, 0.0
  %v324 = vmax.f32 %v292, 0.0
  %v325 = vmax.f32 %v293, 0.0
  %v326 = vmax.f32 %v294, 0.0
  %v327 = vmax.f32 %v295, 0.0
  %v328 = vmax.f32 %v296, 0.0
  %v329 = vmax.f32 %v297, 0.0
  %v330 = vmax.f32 %v298, 0.0
  %v331 = vmax.f32 %v299, 0.0
  %v332 = vmax.f32 %v300, 0.0
  %v333 = vmax.f32 %v301, 0.0
  %v334 = vmax.f32 %v302, 0.0
  %v335 = vmax.f32 %v303, 0.0
  %336 = vst [vmem:[%s4] sm:$0xff] %v304
  %337 = vst [vmem:[%s4 + $0x8] sm:$0xff] %v305
  %338 = vst [vmem:[%s4 + $0x10] sm:$0xff] %v306
  %339 = vst [vmem:[%s4 + $0x18] sm:$0xff] %v307
  %340 = vst [vmem:[%s4 + $0x20] sm:$0xff] %v308
  %341 = vst [vmem:[%s4 + $0x28] sm:$0xff] %v309
  %342 = vst [vmem:[%s4 + $0x30] sm:$0xff] %v310
  %343 = vst [vmem:[%s4 + $0x38] sm:$0xff] %v311
  %344 = vst [vmem:[%s4 + $0x40] sm:$0xff] %v312
  %345 = vst [vmem:[%s4 + $0x48] sm:$0xff] %v313
  %346 = vst [vmem:[%s4 + $0x50] sm:$0xff] %v314
  %347 = vst [vmem:[%s4 + $0x58] sm:$0xff] %v315
  %348 = vst [vmem:[%s4 + $0x60] sm:$0xff] %v316
  %349 = vst [vmem:[%s4 + $0x68] sm:$0xff] %v317
  %350 = vst [vmem:[%s4 + $0x70] sm:$0xff] %v318
  %351 = vst [vmem:[%s4 + $0x78] sm:$0xff] %v319
  %352 = vst [vmem:[%s4 + $0x80] sm:$0xff] %v320
  %353 = vst [vmem:[%s4 + $0x88] sm:$0xff] %v321
  %354 = vst [vmem:[%s4 + $0x90] sm:$0xff] %v322
  %355 = vst [vmem:[%s4 + $0x98] sm:$0xff] %v323
  %356 = vst [vmem:[%s4 + $0xa0] sm:$0xff] %v324
  %357 = vst [vmem:[%s4 + $0xa8] sm:$0xff] %v325
  %358 = vst [vmem:[%s4 + $0xb0] sm:$0xff] %v326
  %359 = vst [vmem:[%s4 + $0xb8] sm:$0xff] %v327
  %360 = vst [vmem:[%s4 + $0xc0] sm:$0xff] %v328
  %361 = vst [vmem:[%s4 + $0xc8] sm:$0xff] %v329
  %362 = vst [vmem:[%s4 + $0xd0] sm:$0xff] %v330
  %363 = vst [vmem:[%s4 + $0xd8] sm:$0xff] %v331
  %364 = vst [vmem:[%s4 + $0xe0] sm:$0xff] %v332
  %365 = vst [vmem:[%s4 + $0xe8] sm:$0xff] %v333
  %366 = vst [vmem:[%s4 + $0xf0] sm:$0xff] %v334
  %367 = vst [vmem:[%s4 + $0xf8] sm:$0xff] %v335
  // Predicated region
  $region18: #{resnet50_vit_forward.29} parent=0 // pred_check
    _
  $region19: #{resnet50_vit_forward.29} parent=0 // pred_check_branch
    %369 = sbr.rel (0) target = $region21
  $region20: #{resnet50_vit_forward.29} parent=0 // pred_region
    _
  $region21: #{resnet50_vit_forward.29} parent=0 // pred_fallthru
    _
  // Predicated region
  $region22: #{resnet50_vit_forward.29} parent=0 // pred_check
    _
  $region23: #{resnet50_vit_forward.29} parent=0 // pred_check_branch
    %371 = sbr.rel (0) target = $region25
  $region24: #{resnet50_vit_forward.29} parent=0 // pred_region
    _
  $region25: #{resnet50_vit_forward.29} parent=0 // pred_fallthru
    _

// kernel: resnet50_vit_forward.36
$region0: #{resnet50_vit_forward.36}
  #allocation0 [shape = 'u32[]', space=smem, size = 0x4, offset = 0x4, fixed_abs, tag = 'smem constant byte address 0x4 - core index']
  #allocation1 [shape = 'u32[144,128]{1,0:T(1,128)}', space=vmem, size = 0x12000, scoped, tag = 'internal scratch']
  %s0 = inlined_call_operand.vmem [shape: f32[128,256], index: 0, kind: input, shape index: {}]
  %s1 = inlined_call_operand.vmem [shape: bf16[256,64], index: 1, kind: input, shape index: {}]
  %s2 = inlined_call_operand.vmem [shape: f32[1,64], index: 2, kind: input, shape index: {}]
  %s3 = inlined_call_operand.vmem [shape: f32[128,64], index: 3, kind: output, shape index: {}]
  %s4 = sld [smem:[#allocation0]]
  $region22: #{resnet50_vit_forward.36} parent=0
    _
  %s6 = ssub.s32 1, %s4
  %s7 = scalar_select 0, %s6, %s4
  // Predicated region
  $region2: #{resnet50_vit_forward.36} parent=0 // pred_check
    _
  $region3: #{resnet50_vit_forward.36} parent=0 // pred_check_branch
    %9 = sbr.rel (0) target = $region5
  $region4: #{resnet50_vit_forward.36} parent=0 // pred_region
    _
  $region5: #{resnet50_vit_forward.36} parent=0 // pred_fallthru
    _
  // Predicated region
  $region6: #{resnet50_vit_forward.36} parent=0 // pred_check
    _
  $region7: #{resnet50_vit_forward.36} parent=0 // pred_check_branch
    %11 = sbr.rel (0) target = $region9
  $region8: #{resnet50_vit_forward.36} parent=0 // pred_region
    _
  $region9: #{resnet50_vit_forward.36} parent=0 // pred_fallthru
    _
  // Predicated region
  $region10: #{resnet50_vit_forward.36} parent=0 // pred_check
    _
  $region11: #{resnet50_vit_forward.36} parent=0 // pred_check_branch
    %13 = sbr.rel (0) target = $region13
  $region12: #{resnet50_vit_forward.36} parent=0 // pred_region
    _
  $region13: #{resnet50_vit_forward.36} parent=0 // pred_fallthru
    _
  %v15 = vld [vmem:[%s0] sm:$0xff]
  %v16 = vld [vmem:[%s0 + $0x8] sm:$0xff]
  %v17 = vld [vmem:[%s0 + $0x10] sm:$0xff]
  %v18 = vld [vmem:[%s0 + $0x18] sm:$0xff]
  %v19 = vld [vmem:[%s0 + $0x20] sm:$0xff]
  %v20 = vld [vmem:[%s0 + $0x28] sm:$0xff]
  %v21 = vld [vmem:[%s0 + $0x30] sm:$0xff]
  %v22 = vld [vmem:[%s0 + $0x38] sm:$0xff]
  %v23 = vld [vmem:[%s0 + $0x40] sm:$0xff]
  %v24 = vld [vmem:[%s0 + $0x48] sm:$0xff]
  %v25 = vld [vmem:[%s0 + $0x50] sm:$0xff]
  %v26 = vld [vmem:[%s0 + $0x58] sm:$0xff]
  %v27 = vld [vmem:[%s0 + $0x60] sm:$0xff]
  %v28 = vld [vmem:[%s0 + $0x68] sm:$0xff]
  %v29 = vld [vmem:[%s0 + $0x70] sm:$0xff]
  %v30 = vld [vmem:[%s0 + $0x78] sm:$0xff]
  %v31 = vld [vmem:[%s0 + $0x80] sm:$0xff]
  %v32 = vld [vmem:[%s0 + $0x88] sm:$0xff]
  %v33 = vld [vmem:[%s0 + $0x90] sm:$0xff]
  %v34 = vld [vmem:[%s0 + $0x98] sm:$0xff]
  %v35 = vld [vmem:[%s0 + $0xa0] sm:$0xff]
  %v36 = vld [vmem:[%s0 + $0xa8] sm:$0xff]
  %v37 = vld [vmem:[%s0 + $0xb0] sm:$0xff]
  %v38 = vld [vmem:[%s0 + $0xb8] sm:$0xff]
  %v39 = vld [vmem:[%s0 + $0xc0] sm:$0xff]
  %v40 = vld [vmem:[%s0 + $0xc8] sm:$0xff]
  %v41 = vld [vmem:[%s0 + $0xd0] sm:$0xff]
  %v42 = vld [vmem:[%s0 + $0xd8] sm:$0xff]
  %v43 = vld [vmem:[%s0 + $0xe0] sm:$0xff]
  %v44 = vld [vmem:[%s0 + $0xe8] sm:$0xff]
  %v45 = vld [vmem:[%s0 + $0xf0] sm:$0xff]
  %v46 = vld [vmem:[%s0 + $0xf8] sm:$0xff]
  %v47 = vpack.c.bf16 %v17, %v15
  %v48 = vpack.c.bf16 %v18, %v16
  %v49 = vpack.c.bf16 %v21, %v19
  %v50 = vpack.c.bf16 %v22, %v20
  %v51 = vpack.c.bf16 %v25, %v23
  %v52 = vpack.c.bf16 %v26, %v24
  %v53 = vpack.c.bf16 %v29, %v27
  %v54 = vpack.c.bf16 %v30, %v28
  %v55 = vpack.c.bf16 %v33, %v31
  %v56 = vpack.c.bf16 %v34, %v32
  %v57 = vpack.c.bf16 %v37, %v35
  %v58 = vpack.c.bf16 %v38, %v36
  %v59 = vpack.c.bf16 %v41, %v39
  %v60 = vpack.c.bf16 %v42, %v40
  %v61 = vpack.c.bf16 %v45, %v43
  %v62 = vpack.c.bf16 %v46, %v44
  %v63 = vld [vmem:[%s1] sm:$0xf]
  %v64 = vld [vmem:[%s1 + $0x4] sm:$0xf]
  %v65 = vld [vmem:[%s1 + $0x8] sm:$0xf]
  %v66 = vld [vmem:[%s1 + $0xc] sm:$0xf]
  %v67 = vld [vmem:[%s1 + $0x10] sm:$0xf]
  %v68 = vld [vmem:[%s1 + $0x14] sm:$0xf]
  %v69 = vld [vmem:[%s1 + $0x18] sm:$0xf]
  %v70 = vld [vmem:[%s1 + $0x1c] sm:$0xf]
  %v71 = vld [vmem:[%s1 + $0x20] sm:$0xf]
  %v72 = vld [vmem:[%s1 + $0x24] sm:$0xf]
  %v73 = vld [vmem:[%s1 + $0x28] sm:$0xf]
  %v74 = vld [vmem:[%s1 + $0x2c] sm:$0xf]
  %v75 = vld [vmem:[%s1 + $0x30] sm:$0xf]
  %v76 = vld [vmem:[%s1 + $0x34] sm:$0xf]
  %v77 = vld [vmem:[%s1 + $0x38] sm:$0xf]
  %v78 = vld [vmem:[%s1 + $0x3c] sm:$0xf]
  %v79 = vld [vmem:[%s1 + $0x40] sm:$0xf]
  %v80 = vld [vmem:[%s1 + $0x44] sm:$0xf]
  %v81 = vld [vmem:[%s1 + $0x48] sm:$0xf]
  %v82 = vld [vmem:[%s1 + $0x4c] sm:$0xf]
  %v83 = vld [vmem:[%s1 + $0x50] sm:$0xf]
  %v84 = vld [vmem:[%s1 + $0x54] sm:$0xf]
  %v85 = vld [vmem:[%s1 + $0x58] sm:$0xf]
  %v86 = vld [vmem:[%s1 + $0x5c] sm:$0xf]
  %v87 = vld [vmem:[%s1 + $0x60] sm:$0xf]
  %v88 = vld [vmem:[%s1 + $0x64] sm:$0xf]
  %v89 = vld [vmem:[%s1 + $0x68] sm:$0xf]
  %v90 = vld [vmem:[%s1 + $0x6c] sm:$0xf]
  %v91 = vld [vmem:[%s1 + $0x70] sm:$0xf]
  %v92 = vld [vmem:[%s1 + $0x74] sm:$0xf]
  %v93 = vld [vmem:[%s1 + $0x78] sm:$0xf]
  %v94 = vld [vmem:[%s1 + $0x7c] sm:$0xf]
  %v95 = vld [vmem:[%s2] sm:$0x1]
  %v97 = vlaneseq
  %v98 = vshrl.u32 %v97, 7
  %v99 = vsub.s32 0, %v98
  %v100 = vrot.slane %v95, %v99
  %v134 = vunpack.c.l.b16 %v63
  %v135 = vunpack.c.l.b16 %v64
  %v136 = vunpack.c.l.b16 %v65
  %v137 = vunpack.c.l.b16 %v66
  %v138 = vunpack.c.l.b16 %v67
  %v139 = vunpack.c.l.b16 %v68
  %v140 = vunpack.c.l.b16 %v69
  %v141 = vunpack.c.l.b16 %v70
  %v142 = vunpack.c.l.b16 %v71
  %v143 = vunpack.c.l.b16 %v72
  %v144 = vunpack.c.l.b16 %v73
  %v145 = vunpack.c.l.b16 %v74
  %v146 = vunpack.c.l.b16 %v75
  %v147 = vunpack.c.l.b16 %v76
  %v148 = vunpack.c.l.b16 %v77
  %v149 = vunpack.c.l.b16 %v78
  %v150 = vunpack.c.l.b16 %v79
  %v151 = vunpack.c.l.b16 %v80
  %v152 = vunpack.c.l.b16 %v81
  %v153 = vunpack.c.l.b16 %v82
  %v154 = vunpack.c.l.b16 %v83
  %v155 = vunpack.c.l.b16 %v84
  %v156 = vunpack.c.l.b16 %v85
  %v157 = vunpack.c.l.b16 %v86
  %v158 = vunpack.c.l.b16 %v87
  %v159 = vunpack.c.l.b16 %v88
  %v160 = vunpack.c.l.b16 %v89
  %v161 = vunpack.c.l.b16 %v90
  %v162 = vunpack.c.l.b16 %v91
  %v163 = vunpack.c.l.b16 %v92
  %v164 = vunpack.c.l.b16 %v93
  %v165 = vunpack.c.l.b16 %v94
  %v166 = vpack.c.b16 %v135, %v134
  %v167 = vpack.c.b16 %v137, %v136
  %v168 = vpack.c.b16 %v139, %v138
  %v169 = vpack.c.b16 %v141, %v140
  %v170 = vpack.c.b16 %v143, %v142
  %v171 = vpack.c.b16 %v145, %v144
  %v172 = vpack.c.b16 %v147, %v146
  %v173 = vpack.c.b16 %v149, %v148
  %v174 = vpack.c.b16 %v151, %v150
  %v175 = vpack.c.b16 %v153, %v152
  %v176 = vpack.c.b16 %v155, %v154
  %v177 = vpack.c.b16 %v157, %v156
  %v178 = vpack.c.b16 %v159, %v158
  %v179 = vpack.c.b16 %v161, %v160
  %v180 = vpack.c.b16 %v163, %v162
  %v181 = vpack.c.b16 %v165, %v164
  %198 = vmatprep.subr.bf16.mxu0 0
  %199 = vmatpush1.bf16.msra.mxu0 %v166
  %200 = vmatprep.subr.bf16.mxu0 0
  %201 = vmatpush1.bf16.msra.mxu0 %v167
  %202 = vmatprep.subr.bf16.mxu0 0
  %203 = vmatpush1.bf16.msra.mxu0 %v168
  %204 = vmatprep.subr.bf16.mxu0 0
  %205 = vmatpush1.bf16.msra.mxu0 %v169
  %206 = vmatprep.subr.bf16.mxu0 0
  %207 = vmatpush1.bf16.msra.mxu0 %v170
  %208 = vmatprep.subr.bf16.mxu0 0
  %209 = vmatpush1.bf16.msra.mxu0 %v171
  %210 = vmatprep.subr.bf16.mxu0 0
  %211 = vmatpush1.bf16.msra.mxu0 %v172
  %212 = vmatprep.subr.bf16.mxu0 0
  %213 = vmatpush1.bf16.msra.mxu0 %v173
  %214 = vmatprep.subr.bf16.mxu0 0
  %215 = vmatpush1.bf16.msra.mxu0 %v174
  %216 = vmatprep.subr.bf16.mxu0 0
  %217 = vmatpush1.bf16.msra.mxu0 %v175
  %218 = vmatprep.subr.bf16.mxu0 0
  %219 = vmatpush1.bf16.msra.mxu0 %v176
  %220 = vmatprep.subr.bf16.mxu0 0
  %221 = vmatpush1.bf16.msra.mxu0 %v177
  %222 = vmatprep.subr.bf16.mxu0 0
  %223 = vmatpush1.bf16.msra.mxu0 %v178
  %224 = vmatprep.subr.bf16.mxu0 0
  %225 = vmatpush1.bf16.msra.mxu0 %v179
  %226 = vmatprep.subr.bf16.mxu0 0
  %227 = vmatpush1.bf16.msra.mxu0 %v180
  %228 = vmatprep.subr.bf16.mxu0 0
  %229 = vmatpush1.bf16.msra.mxu0 %v181
  %230 = vmatprep.mubr.bf16.mxu0 %v48
  %231 = vmatmul.mubr.bf16.gmra.mrb[0].mxu0 %v47
  %v232 = vpop.f32.mrb[0].mxu0
  %v233 = vadd.f32 %v100, %v232
  %v234 = vpop.f32.mrb[0].mxu0
  %v235 = vpop.f32.mrb[0].mxu0
  %v236 = vadd.f32 %v100, %v235
  %v237 = vpop.f32.mrb[0].mxu0
  %238 = vmatprep.mubr.bf16.mxu0 %v50
  %239 = vmatmul.mubr.bf16.gmra.mrb[0].mxu0 %v49
  %v240 = vpop.f32.mrb[0].mxu0
  %v241 = vadd.f32 %v100, %v240
  %v242 = vpop.f32.mrb[0].mxu0
  %v243 = vpop.f32.mrb[0].mxu0
  %v244 = vadd.f32 %v100, %v243
  %v245 = vpop.f32.mrb[0].mxu0
  %246 = vmatprep.mubr.bf16.mxu0 %v52
  %247 = vmatmul.mubr.bf16.gmra.mrb[0].mxu0 %v51
  %v248 = vpop.f32.mrb[0].mxu0
  %v249 = vadd.f32 %v100, %v248
  %v250 = vpop.f32.mrb[0].mxu0
  %v251 = vpop.f32.mrb[0].mxu0
  %v252 = vadd.f32 %v100, %v251
  %v253 = vpop.f32.mrb[0].mxu0
  %254 = vmatprep.mubr.bf16.mxu0 %v54
  %255 = vmatmul.mubr.bf16.gmra.mrb[0].mxu0 %v53
  %v256 = vpop.f32.mrb[0].mxu0
  %v257 = vadd.f32 %v100, %v256
  %v258 = vpop.f32.mrb[0].mxu0
  %v259 = vpop.f32.mrb[0].mxu0
  %v260 = vadd.f32 %v100, %v259
  %v261 = vpop.f32.mrb[0].mxu0
  %262 = vmatprep.mubr.bf16.mxu0 %v56
  %263 = vmatmul.mubr.bf16.gmra.mrb[0].mxu0 %v55
  %v264 = vpop.f32.mrb[0].mxu0
  %v265 = vadd.f32 %v100, %v264
  %v266 = vpop.f32.mrb[0].mxu0
  %v267 = vpop.f32.mrb[0].mxu0
  %v268 = vadd.f32 %v100, %v267
  %v269 = vpop.f32.mrb[0].mxu0
  %270 = vmatprep.mubr.bf16.mxu0 %v58
  %271 = vmatmul.mubr.bf16.gmra.mrb[0].mxu0 %v57
  %v272 = vpop.f32.mrb[0].mxu0
  %v273 = vadd.f32 %v100, %v272
  %v274 = vpop.f32.mrb[0].mxu0
  %v275 = vpop.f32.mrb[0].mxu0
  %v276 = vadd.f32 %v100, %v275
  %v277 = vpop.f32.mrb[0].mxu0
  %278 = vmatprep.mubr.bf16.mxu0 %v60
  %279 = vmatmul.mubr.bf16.gmra.mrb[0].mxu0 %v59
  %v280 = vpop.f32.mrb[0].mxu0
  %v281 = vadd.f32 %v100, %v280
  %v282 = vpop.f32.mrb[0].mxu0
  %v283 = vpop.f32.mrb[0].mxu0
  %v284 = vadd.f32 %v100, %v283
  %v285 = vpop.f32.mrb[0].mxu0
  %286 = vmatprep.mubr.bf16.mxu0 %v62
  %287 = vmatmul.mubr.bf16.gmra.mrb[0].mxu0 %v61
  %v288 = vpop.f32.mrb[0].mxu0
  %v289 = vadd.f32 %v100, %v288
  %v290 = vpop.f32.mrb[0].mxu0
  %v291 = vpop.f32.mrb[0].mxu0
  %v292 = vadd.f32 %v100, %v291
  %v293 = vpop.f32.mrb[0].mxu0
  %294 = vdwg.mxu0
  %vm295 = vcmask 523264
  %296 = vst.msk [vmem:[%s3] sm:$0xff] %vm295, %v233
  %297 = vst.msk [vmem:[%s3 + $0x8] sm:$0xff] %vm295, %v236
  %298 = vst.msk [vmem:[%s3 + $0x10] sm:$0xff] %vm295, %v241
  %299 = vst.msk [vmem:[%s3 + $0x18] sm:$0xff] %vm295, %v244
  %300 = vst.msk [vmem:[%s3 + $0x20] sm:$0xff] %vm295, %v249
  %301 = vst.msk [vmem:[%s3 + $0x28] sm:$0xff] %vm295, %v252
  %302 = vst.msk [vmem:[%s3 + $0x30] sm:$0xff] %vm295, %v257
  %303 = vst.msk [vmem:[%s3 + $0x38] sm:$0xff] %vm295, %v260
  %304 = vst.msk [vmem:[%s3 + $0x40] sm:$0xff] %vm295, %v265
  %305 = vst.msk [vmem:[%s3 + $0x48] sm:$0xff] %vm295, %v268
  %306 = vst.msk [vmem:[%s3 + $0x50] sm:$0xff] %vm295, %v273
  %307 = vst.msk [vmem:[%s3 + $0x58] sm:$0xff] %vm295, %v276
  %308 = vst.msk [vmem:[%s3 + $0x60] sm:$0xff] %vm295, %v281
  %309 = vst.msk [vmem:[%s3 + $0x68] sm:$0xff] %vm295, %v284
  %310 = vst.msk [vmem:[%s3 + $0x70] sm:$0xff] %vm295, %v289
  %311 = vst.msk [vmem:[%s3 + $0x78] sm:$0xff] %vm295, %v292
  // Predicated region
  $region14: #{resnet50_vit_forward.36} parent=0 // pred_check
    _
  $region15: #{resnet50_vit_forward.36} parent=0 // pred_check_branch
    %313 = sbr.rel (0) target = $region17
  $region16: #{resnet50_vit_forward.36} parent=0 // pred_region
    _
  $region17: #{resnet50_vit_forward.36} parent=0 // pred_fallthru
    _
  // Predicated region
  $region18: #{resnet50_vit_forward.36} parent=0 // pred_check
    _
  $region19: #{resnet50_vit_forward.36} parent=0 // pred_check_branch
    %315 = sbr.rel (0) target = $region21
  $region20: #{resnet50_vit_forward.36} parent=0 // pred_region
    _
  $region21: #{resnet50_vit_forward.36} parent=0 // pred_fallthru
    _

// kernel: resnet50_vit_forward.37
$region0: #{resnet50_vit_forward.37}
  #allocation0 [shape = 'u32[]', space=smem, size = 0x4, offset = 0x4, fixed_abs, tag = 'smem constant byte address 0x4 - core index']
  #allocation1 [shape = 'u32[144,128]{1,0:T(1,128)}', space=vmem, size = 0x12000, scoped, tag = 'internal scratch']
  %s0 = inlined_call_operand.vmem [shape: f32[136,64], index: 0, kind: input, shape index: {}]
  %s1 = inlined_call_operand.vmem [shape: bf16[64,96], index: 1, kind: input, shape index: {}]
  %s2 = inlined_call_operand.vmem [shape: f32[1,96], index: 2, kind: input, shape index: {}]
  %s3 = inlined_call_operand.vmem [shape: f32[136,96], index: 3, kind: output, shape index: {}]
  %s4 = sld [smem:[#allocation0]]
  $region22: #{resnet50_vit_forward.37} parent=0
    _
  %s6 = ssub.s32 1, %s4
  %s7 = scalar_select 0, %s6, %s4
  // Predicated region
  $region2: #{resnet50_vit_forward.37} parent=0 // pred_check
    _
  $region3: #{resnet50_vit_forward.37} parent=0 // pred_check_branch
    %9 = sbr.rel (0) target = $region5
  $region4: #{resnet50_vit_forward.37} parent=0 // pred_region
    _
  $region5: #{resnet50_vit_forward.37} parent=0 // pred_fallthru
    _
  // Predicated region
  $region6: #{resnet50_vit_forward.37} parent=0 // pred_check
    _
  $region7: #{resnet50_vit_forward.37} parent=0 // pred_check_branch
    %11 = sbr.rel (0) target = $region9
  $region8: #{resnet50_vit_forward.37} parent=0 // pred_region
    _
  $region9: #{resnet50_vit_forward.37} parent=0 // pred_fallthru
    _
  // Predicated region
  $region10: #{resnet50_vit_forward.37} parent=0 // pred_check
    _
  $region11: #{resnet50_vit_forward.37} parent=0 // pred_check_branch
    %13 = sbr.rel (0) target = $region13
  $region12: #{resnet50_vit_forward.37} parent=0 // pred_region
    _
  $region13: #{resnet50_vit_forward.37} parent=0 // pred_fallthru
    _
  %v15 = vld [vmem:[%s0] sm:$0xff]
  %v16 = vld [vmem:[%s0 + $0x8] sm:$0xff]
  %v17 = vld [vmem:[%s0 + $0x10] sm:$0xff]
  %v18 = vld [vmem:[%s0 + $0x18] sm:$0xff]
  %v19 = vld [vmem:[%s0 + $0x20] sm:$0xff]
  %v20 = vld [vmem:[%s0 + $0x28] sm:$0xff]
  %v21 = vld [vmem:[%s0 + $0x30] sm:$0xff]
  %v22 = vld [vmem:[%s0 + $0x38] sm:$0xff]
  %v23 = vld [vmem:[%s0 + $0x40] sm:$0xff]
  %v24 = vld [vmem:[%s0 + $0x48] sm:$0xff]
  %v25 = vld [vmem:[%s0 + $0x50] sm:$0xff]
  %v26 = vld [vmem:[%s0 + $0x58] sm:$0xff]
  %v27 = vld [vmem:[%s0 + $0x60] sm:$0xff]
  %v28 = vld [vmem:[%s0 + $0x68] sm:$0xff]
  %v29 = vld [vmem:[%s0 + $0x70] sm:$0xff]
  %v30 = vld [vmem:[%s0 + $0x78] sm:$0xff]
  %v31 = vld [vmem:[%s0 + $0x80] sm:$0xff]
  %v32 = vpack.c.bf16 %v16, %v15
  %v33 = vpack.c.bf16 %v18, %v17
  %v34 = vpack.c.bf16 %v20, %v19
  %v35 = vpack.c.bf16 %v22, %v21
  %v36 = vpack.c.bf16 %v24, %v23
  %v37 = vpack.c.bf16 %v26, %v25
  %v38 = vpack.c.bf16 %v28, %v27
  %v39 = vpack.c.bf16 %v30, %v29
  %v40 = vpack.c.bf16 %v31, %v31
  %v41 = vld [vmem:[%s1] sm:$0xf]
  %v42 = vld [vmem:[%s1 + $0x4] sm:$0xf]
  %v43 = vld [vmem:[%s1 + $0x8] sm:$0xf]
  %v44 = vld [vmem:[%s1 + $0xc] sm:$0xf]
  %v45 = vld [vmem:[%s1 + $0x10] sm:$0xf]
  %v46 = vld [vmem:[%s1 + $0x14] sm:$0xf]
  %v47 = vld [vmem:[%s1 + $0x18] sm:$0xf]
  %v48 = vld [vmem:[%s1 + $0x1c] sm:$0xf]
  %v49 = vld [vmem:[%s2] sm:$0x1]
  %v51 = vlaneseq
  %v52 = vshrl.u32 %v51, 7
  %v53 = vsub.s32 0, %v52
  %v54 = vrot.slane %v49, %v53
  %v64 = vunpack.c.l.b16 %v41
  %v65 = vunpack.c.l.b16 %v42
  %v66 = vunpack.c.l.b16 %v43
  %v67 = vunpack.c.l.b16 %v44
  %v68 = vunpack.c.l.b16 %v45
  %v69 = vunpack.c.l.b16 %v46
  %v70 = vunpack.c.l.b16 %v47
  %v71 = vunpack.c.l.b16 %v48
  %v72 = vpack.c.b16 %v65, %v64
  %v73 = vpack.c.b16 %v67, %v66
  %v74 = vpack.c.b16 %v69, %v68
  %v75 = vpack.c.b16 %v71, %v70
  %vm80 = vcmask 523264
  %v82 = vsel %vm80, %v32, 0
  %v85 = vsel %vm80, %v33, 0
  %v88 = vsel %vm80, %v34, 0
  %v91 = vsel %vm80, %v35, 0
  %v94 = vsel %vm80, %v36, 0
  %v97 = vsel %vm80, %v37, 0
  %v100 = vsel %vm80, %v38, 0
  %v103 = vsel %vm80, %v39, 0
  %v106 = vsel %vm80, %v40, 0
  %108 = vmatprep.subr.bf16.mxu0 0
  %109 = vmatpush1.bf16.msra.mxu0 %v72
  %110 = vmatprep.subr.bf16.mxu0 0
  %111 = vmatpush1.bf16.msra.mxu0 %v73
  %112 = vmatprep.subr.bf16.mxu0 0
  %113 = vmatpush1.bf16.msra.mxu0 %v74
  %114 = vmatprep.subr.bf16.mxu0 0
  %115 = vmatpush1.bf16.msra.mxu0 %v75
  %116 = vmatprep.subr.bf16.mxu0 0
  %117 = vmatpush1.bf16.msra.mxu0 0
  %118 = vmatprep.subr.bf16.mxu0 0
  %119 = vmatpush1.bf16.msra.mxu0 0
  %120 = vmatprep.subr.bf16.mxu0 0
  %121 = vmatpush1.bf16.msra.mxu0 0
  %122 = vmatprep.subr.bf16.mxu0 0
  %123 = vmatpush1.bf16.msra.mxu0 0
  %124 = vmatprep.subr.bf16.mxu0 0
  %125 = vmatpush1.bf16.msra.mxu0 0
  %126 = vmatprep.subr.bf16.mxu0 0
  %127 = vmatpush1.bf16.msra.mxu0 0
  %128 = vmatprep.subr.bf16.mxu0 0
  %129 = vmatpush1.bf16.msra.mxu0 0
  %130 = vmatprep.subr.bf16.mxu0 0
  %131 = vmatpush1.bf16.msra.mxu0 0
  %132 = vmatprep.subr.bf16.mxu0 0
  %133 = vmatpush1.bf16.msra.mxu0 0
  %134 = vmatprep.subr.bf16.mxu0 0
  %135 = vmatpush1.bf16.msra.mxu0 0
  %136 = vmatprep.subr.bf16.mxu0 0
  %137 = vmatpush1.bf16.msra.mxu0 0
  %138 = vmatprep.subr.bf16.mxu0 0
  %139 = vmatpush1.bf16.msra.mxu0 0
  %140 = vmatprep.mubr.bf16.mxu0 0
  %141 = vmatmul.mubr.bf16.gmra.mrb[0].mxu0 %v82
  %v142 = vpop.f32.mrb[0].mxu0
  %v143 = vadd.f32 %v54, %v142
  %v144 = vpop.f32.mrb[0].mxu0
  %v145 = vpop.f32.mrb[0].mxu0
  %v146 = vadd.f32 %v54, %v145
  %v147 = vpop.f32.mrb[0].mxu0
  %148 = vmatprep.mubr.bf16.mxu0 0
  %149 = vmatmul.mubr.bf16.gmra.mrb[0].mxu0 %v85
  %v150 = vpop.f32.mrb[0].mxu0
  %v151 = vadd.f32 %v54, %v150
  %v152 = vpop.f32.mrb[0].mxu0
  %v153 = vpop.f32.mrb[0].mxu0
  %v154 = vadd.f32 %v54, %v153
  %v155 = vpop.f32.mrb[0].mxu0
  %156 = vmatprep.mubr.bf16.mxu0 0
  %157 = vmatmul.mubr.bf16.gmra.mrb[0].mxu0 %v88
  %v158 = vpop.f32.mrb[0].mxu0
  %v159 = vadd.f32 %v54, %v158
  %v160 = vpop.f32.mrb[0].mxu0
  %v161 = vpop.f32.mrb[0].mxu0
  %v162 = vadd.f32 %v54, %v161
  %v163 = vpop.f32.mrb[0].mxu0
  %164 = vmatprep.mubr.bf16.mxu0 0
  %165 = vmatmul.mubr.bf16.gmra.mrb[0].mxu0 %v91
  %v166 = vpop.f32.mrb[0].mxu0
  %v167 = vadd.f32 %v54, %v166
  %v168 = vpop.f32.mrb[0].mxu0
  %v169 = vpop.f32.mrb[0].mxu0
  %v170 = vadd.f32 %v54, %v169
  %v171 = vpop.f32.mrb[0].mxu0
  %172 = vmatprep.mubr.bf16.mxu0 0
  %173 = vmatmul.mubr.bf16.gmra.mrb[0].mxu0 %v94
  %v174 = vpop.f32.mrb[0].mxu0
  %v175 = vadd.f32 %v54, %v174
  %v176 = vpop.f32.mrb[0].mxu0
  %v177 = vpop.f32.mrb[0].mxu0
  %v178 = vadd.f32 %v54, %v177
  %v179 = vpop.f32.mrb[0].mxu0
  %180 = vmatprep.mubr.bf16.mxu0 0
  %181 = vmatmul.mubr.bf16.gmra.mrb[0].mxu0 %v97
  %v182 = vpop.f32.mrb[0].mxu0
  %v183 = vadd.f32 %v54, %v182
  %v184 = vpop.f32.mrb[0].mxu0
  %v185 = vpop.f32.mrb[0].mxu0
  %v186 = vadd.f32 %v54, %v185
  %v187 = vpop.f32.mrb[0].mxu0
  %188 = vmatprep.mubr.bf16.mxu0 0
  %189 = vmatmul.mubr.bf16.gmra.mrb[0].mxu0 %v100
  %v190 = vpop.f32.mrb[0].mxu0
  %v191 = vadd.f32 %v54, %v190
  %v192 = vpop.f32.mrb[0].mxu0
  %v193 = vpop.f32.mrb[0].mxu0
  %v194 = vadd.f32 %v54, %v193
  %v195 = vpop.f32.mrb[0].mxu0
  %196 = vmatprep.mubr.bf16.mxu0 0
  %197 = vmatmul.mubr.bf16.gmra.mrb[0].mxu0 %v103
  %v198 = vpop.f32.mrb[0].mxu0
  %v199 = vadd.f32 %v54, %v198
  %v200 = vpop.f32.mrb[0].mxu0
  %v201 = vpop.f32.mrb[0].mxu0
  %v202 = vadd.f32 %v54, %v201
  %v203 = vpop.f32.mrb[0].mxu0
  %204 = vmatprep.mubr.bf16.mxu0 0
  %205 = vmatmul.mubr.bf16.gmra.mrb[0].mxu0 %v106
  %v206 = vpop.f32.mrb[0].mxu0
  %v207 = vadd.f32 %v54, %v206
  %v208 = vpop.f32.mrb[0].mxu0
  %v209 = vpop.f32.mrb[0].mxu0
  %v210 = vpop.f32.mrb[0].mxu0
  %211 = vdwg.mxu0
  %vm212 = vcmask 785408
  %213 = vst.msk [vmem:[%s3] sm:$0xff] %vm212, %v143
  %214 = vst.msk [vmem:[%s3 + $0x8] sm:$0xff] %vm212, %v146
  %215 = vst.msk [vmem:[%s3 + $0x10] sm:$0xff] %vm212, %v151
  %216 = vst.msk [vmem:[%s3 + $0x18] sm:$0xff] %vm212, %v154
  %217 = vst.msk [vmem:[%s3 + $0x20] sm:$0xff] %vm212, %v159
  %218 = vst.msk [vmem:[%s3 + $0x28] sm:$0xff] %vm212, %v162
  %219 = vst.msk [vmem:[%s3 + $0x30] sm:$0xff] %vm212, %v167
  %220 = vst.msk [vmem:[%s3 + $0x38] sm:$0xff] %vm212, %v170
  %221 = vst.msk [vmem:[%s3 + $0x40] sm:$0xff] %vm212, %v175
  %222 = vst.msk [vmem:[%s3 + $0x48] sm:$0xff] %vm212, %v178
  %223 = vst.msk [vmem:[%s3 + $0x50] sm:$0xff] %vm212, %v183
  %224 = vst.msk [vmem:[%s3 + $0x58] sm:$0xff] %vm212, %v186
  %225 = vst.msk [vmem:[%s3 + $0x60] sm:$0xff] %vm212, %v191
  %226 = vst.msk [vmem:[%s3 + $0x68] sm:$0xff] %vm212, %v194
  %227 = vst.msk [vmem:[%s3 + $0x70] sm:$0xff] %vm212, %v199
  %228 = vst.msk [vmem:[%s3 + $0x78] sm:$0xff] %vm212, %v202
  %229 = vst.msk [vmem:[%s3 + $0x80] sm:$0xff] %vm212, %v207
  // Predicated region
  $region14: #{resnet50_vit_forward.37} parent=0 // pred_check
    _
  $region15: #{resnet50_vit_forward.37} parent=0 // pred_check_branch
    %231 = sbr.rel (0) target = $region17
  $region16: #{resnet50_vit_forward.37} parent=0 // pred_region
    _
  $region17: #{resnet50_vit_forward.37} parent=0 // pred_fallthru
    _
  // Predicated region
  $region18: #{resnet50_vit_forward.37} parent=0 // pred_check
    _
  $region19: #{resnet50_vit_forward.37} parent=0 // pred_check_branch
    %233 = sbr.rel (0) target = $region21
  $region20: #{resnet50_vit_forward.37} parent=0 // pred_region
    _
  $region21: #{resnet50_vit_forward.37} parent=0 // pred_fallthru
    _

// kernel: resnet50_vit_forward.38
$region0: #{resnet50_vit_forward.38}
  #allocation0 [shape = 'u32[]', space=smem, size = 0x4, offset = 0x4, fixed_abs, tag = 'smem constant byte address 0x4 - core index']
  #allocation1 [shape = 'u32[144,128]{1,0:T(1,128)}', space=vmem, size = 0x12000, scoped, tag = 'internal scratch']
  %s0 = inlined_call_operand.vmem [shape: f32[2,65,96], index: 0, kind: input, shape index: {}]
  %s1 = inlined_call_operand.vmem [shape: f32[2,65,32], index: 1, kind: output, shape index: {}]
  %s2 = sld [smem:[#allocation0]]
  $region37: #{resnet50_vit_forward.38} parent=0
    _
  %s4 = ssub.s32 1, %s2
  %s5 = scalar_select 0, %s4, %s2
  loop: start=0, step=1, limit=4
  $region2: #{resnet50_vit_forward.38} parent=0 // loop_pre_header
    _
  $region3: #{resnet50_vit_forward.38} parent=0 // loop_header
    %s7 = sphi 0, %s11
    %p8 = scmp.ge.s32.totalorder %s7, 4
    %s17 = sphi 0, %s19
    %s20 = sphi 0, %s17
    %s21 = sphi 0, %s20
    %s37 = sphi 0, %s21
    %s43 = sphi 0, %s45
    %s46 = sphi 0, %s43
    %s47 = sphi 0, %s46
    %s63 = sphi 0, %s47
  $region4: #{resnet50_vit_forward.38} parent=0 // loop_header_branch
    %10 = sbr.rel (%p8) target = $region8
  $region5: #{resnet50_vit_forward.38} parent=0 // loop_body
    %s12 = ssub.s32 %s7, 1
    %s13 = ssub.s32 %s7, 2
    %s14 = sadd.s32 %s7, 1
    %s15 = ssub.s32 %s7, %s14
    %p16 = scmp.eq.s32.totalorder %s15, 0
    %s18 = sadd.s32 %s17, 1
    %s19 = scalar_select %p16, %s17, %s18
    %p22 = pneg %p16
    %p23 = scmp.eq.s32.totalorder %s7, 1
    %p24 = por %p22, %p23
    %p25 = scmp.ne.s32.totalorder %s17, %s20
    %p26 = scmp.eq.s32.totalorder %s7, 0
    %p27 = por %p25, %p26
    %p28 = scmp.ne.s32.totalorder %s17, %s20
    %p29 = scmp.eq.s32.totalorder %s12, 1
    %p30 = por %p28, %p29
    %p31 = scmp.ne.s32.totalorder %s20, %s21
    %p32 = scmp.eq.s32.totalorder %s12, 0
    %p33 = por %p31, %p32
    %p34 = scmp.ne.s32.totalorder %s20, %s21
    %p35 = scmp.eq.s32.totalorder %s13, 1
    %p36 = por %p34, %p35
    %p38 = scmp.ne.s32.totalorder %s21, %s37
    %p39 = scmp.eq.s32.totalorder %s13, 0
    %p40 = por %p38, %p39
    %s41 = ssub.s32 %s7, %s14
    %p42 = scmp.eq.s32.totalorder %s41, 0
    %s44 = sadd.s32 %s43, 1
    %s45 = scalar_select %p42, %s43, %s44
    %p48 = pneg %p42
    %p49 = scmp.eq.s32.totalorder %s7, 1
    %p50 = por %p48, %p49
    %p51 = scmp.ne.s32.totalorder %s43, %s46
    %p52 = scmp.eq.s32.totalorder %s7, 0
    %p53 = por %p51, %p52
    %p54 = scmp.ne.s32.totalorder %s43, %s46
    %p55 = scmp.eq.s32.totalorder %s12, 1
    %p56 = por %p54, %p55
    %p57 = scmp.ne.s32.totalorder %s46, %s47
    %p58 = scmp.eq.s32.totalorder %s12, 0
    %p59 = por %p57, %p58
    %p60 = scmp.ne.s32.totalorder %s46, %s47
    %p61 = scmp.eq.s32.totalorder %s13, 1
    %p62 = por %p60, %p61
    %p64 = scmp.ne.s32.totalorder %s47, %s63
    %p65 = scmp.eq.s32.totalorder %s13, 0
    %p66 = por %p64, %p65
    %p67 = scmp.le.s32.totalorder 1, %s7
    %p68 = scmp.lt.s32.totalorder %s7, 3
    %p69 = pnand %p67, %p68
    %p70 = pneg %p69
    // Predicated region
    $region9: #{resnet50_vit_forward.38} parent=5 // pred_check
      _
    $region10: #{resnet50_vit_forward.38} parent=5 // pred_check_branch
      %72 = sbr.rel (%p69) target = $region12
    $region11: #{resnet50_vit_forward.38} parent=5 // pred_region
      %s73 = ssub.s32 %s7, 1
    $region12: #{resnet50_vit_forward.38} parent=5 // pred_fallthru
      _
    %p74 = scmp.lt.s32.totalorder %s7, 2
    // Predicated region
    $region13: #{resnet50_vit_forward.38} parent=5 // pred_check
      %p75 = pneg %p74
    $region14: #{resnet50_vit_forward.38} parent=5 // pred_check_branch
      %77 = sbr.rel (%p75) target = $region16
    $region15: #{resnet50_vit_forward.38} parent=5 // pred_region
      // Predicated region
      $region17: #{resnet50_vit_forward.38} parent=15 // pred_check
        %p78 = pneg %p27
      $region18: #{resnet50_vit_forward.38} parent=15 // pred_check_branch
        %80 = sbr.rel (%p78) target = $region20
      $region19: #{resnet50_vit_forward.38} parent=15 // pred_region
        %p81 = scmp.lt.s32.totalorder %s7, 1
        %s82 = scalar_select %p81, %s7, 1
        %s83 = smul.addr %s82, 9
        %s84 = smul.addr %s83, 8
        %s85 = scalar_lea.vmem %s0, %s84
      $region20: #{resnet50_vit_forward.38} parent=15 // pred_fallthru
        _
    $region16: #{resnet50_vit_forward.38} parent=5 // pred_fallthru
      _
    %p86 = scmp.le.s32.totalorder 1, %s7
    %p87 = scmp.lt.s32.totalorder %s7, 3
    %p88 = pnand %p86, %p87
    %p89 = pneg %p88
    // Predicated region
    $region21: #{resnet50_vit_forward.38} parent=5 // pred_check
      _
    $region22: #{resnet50_vit_forward.38} parent=5 // pred_check_branch
      %91 = sbr.rel (%p88) target = $region24
    $region23: #{resnet50_vit_forward.38} parent=5 // pred_region
      %s92 = ssub.s32 %s7, 1
      %p93 = scmp.lt.s32.totalorder %s12, 1
      %s94 = scalar_select %p93, %s12, 1
      %s95 = smul.addr %s94, 9
      %s96 = smul.addr %s95, 8
      %s97 = scalar_lea.vmem %s0, %s96
      %p98 = pneg %p33
      %p99 = pneg %p30
      %p100 = pneg %p59
      %p101 = pneg %p56
      %p102 = scmp.lt.s32.totalorder %s12, 1
      %s103 = scalar_select %p102, %s12, 1
      %s104 = smul.addr %s103, 9
      %s105 = smul.addr %s104, 8
      %s106 = scalar_lea.vmem %s1, %s105
      %p107 = scmp.lt.s32.totalorder %s12, 1
      %s108 = scalar_select %p107, %s12, 1
      %s109 = smul.addr %s108, 9
      %s110 = smul.addr %s109, 8
      %s111 = scalar_lea.vmem %s0, %s110
      %p112 = scmp.lt.s32.totalorder %s12, 1
      %s113 = scalar_select %p112, %s12, 1
      %s114 = smul.addr %s113, 9
      %s115 = smul.addr %s114, 8
      %s116 = scalar_lea.vmem %s1, %s115
      %v118 = vld [vmem:[%s111] sm:$0xff]
      %v119 = vld [vmem:[%s111 + $0x8] sm:$0xff]
      %v120 = vld [vmem:[%s111 + $0x10] sm:$0xff]
      %v121 = vld [vmem:[%s111 + $0x18] sm:$0xff]
      %v122 = vld [vmem:[%s111 + $0x20] sm:$0xff]
      %v123 = vld [vmem:[%s111 + $0x28] sm:$0xff]
      %v124 = vld [vmem:[%s111 + $0x30] sm:$0xff]
      %v125 = vld [vmem:[%s111 + $0x38] sm:$0xff]
      %v126 = vld [vmem:[%s111 + $0x40] sm:$0x1]
      %v127 = vpack.c.bf16 %v119, %v118
      %v128 = vpack.c.bf16 %v121, %v120
      %v129 = vpack.c.bf16 %v123, %v122
      %v130 = vpack.c.bf16 %v125, %v124
      %v131 = vpack.c.bf16 %v126, %v126
      %137 = vrot.lane.b32.xlu0 %v127, 96
      %v138 = vpop.permute.xlu0 %137
      %139 = vrot.lane.b32.xlu0 %v128, 96
      %v140 = vpop.permute.xlu0 %139
      %141 = vrot.lane.b32.xlu0 %v129, 96
      %v142 = vpop.permute.xlu0 %141
      %143 = vrot.lane.b32.xlu0 %v130, 96
      %v144 = vpop.permute.xlu0 %143
      %145 = vrot.lane.b32.xlu0 %v131, 96
      %v146 = vpop.permute.xlu0 %145
      %vm147 = vcmask 130048
      %v149 = vsel %vm147, %v127, 0
      %v152 = vsel %vm147, %v128, 0
      %v155 = vsel %vm147, %v129, 0
      %v158 = vsel %vm147, %v130, 0
      %v161 = vsel %vm147, %v131, 0
      %v164 = vsel %vm147, %v138, 0
      %v167 = vsel %vm147, %v140, 0
      %v170 = vsel %vm147, %v142, 0
      %v173 = vsel %vm147, %v144, 0
      %v176 = vsel %vm147, %v146, 0
      %178 = vmatprep.subr.bf16.mxu0 0
      %179 = vmatpush1.bf16.xpose.msra.mxu0 %v164
      %180 = vmatprep.subr.bf16.mxu0 0
      %181 = vmatpush1.bf16.xpose.msra.mxu0 %v167
      %182 = vmatprep.subr.bf16.mxu0 0
      %183 = vmatpush1.bf16.xpose.msra.mxu0 %v170
      %184 = vmatprep.subr.bf16.mxu0 0
      %185 = vmatpush1.bf16.xpose.msra.mxu0 %v173
      %186 = vmatprep.subr.bf16.mxu0 0
      %187 = vmatpush1.bf16.xpose.msra.mxu0 %v176
      %188 = vmatprep.subr.bf16.mxu0 0
      %189 = vmatpush1.bf16.xpose.msra.mxu0 0
      %190 = vmatprep.subr.bf16.mxu0 0
      %191 = vmatpush1.bf16.xpose.msra.mxu0 0
      %192 = vmatprep.subr.bf16.mxu0 0
      %193 = vmatpush1.bf16.xpose.msra.mxu0 0
      %194 = vmatprep.subr.bf16.mxu0 0
      %195 = vmatpush1.bf16.xpose.msra.mxu0 0
      %196 = vmatprep.subr.bf16.mxu0 0
      %197 = vmatpush1.bf16.xpose.msra.mxu0 0
      %198 = vmatprep.subr.bf16.mxu0 0
      %199 = vmatpush1.bf16.xpose.msra.mxu0 0
      %200 = vmatprep.subr.bf16.mxu0 0
      %201 = vmatpush1.bf16.xpose.msra.mxu0 0
      %202 = vmatprep.subr.bf16.mxu0 0
      %203 = vmatpush1.bf16.xpose.msra.mxu0 0
      %204 = vmatprep.subr.bf16.mxu0 0
      %205 = vmatpush1.bf16.xpose.msra.mxu0 0
      %206 = vmatprep.subr.bf16.mxu0 0
      %207 = vmatpush1.bf16.xpose.msra.mxu0 0
      %208 = vmatprep.subr.bf16.mxu0 0
      %209 = vmatpush1.bf16.xpose.msra.mxu0 0
      %210 = vmatprep.mubr.bf16.mxu0 0
      %211 = vmatmul.mubr.bf16.gmra.mrb[0].mxu0 %v149
      %v212 = vpop.f32.mrb[0].mxu0
      %v213 = vadd.f32 0.0, %v212
      %v214 = vpop.f32.mrb[0].mxu0
      %v215 = vpop.f32.mrb[0].mxu0
      %v216 = vadd.f32 0.0, %v215
      %v217 = vpop.f32.mrb[0].mxu0
      %218 = vmatprep.mubr.bf16.mxu0 0
      %219 = vmatmul.mubr.bf16.gmra.mrb[0].mxu0 %v152
      %v220 = vpop.f32.mrb[0].mxu0
      %v221 = vadd.f32 0.0, %v220
      %v222 = vpop.f32.mrb[0].mxu0
      %v223 = vpop.f32.mrb[0].mxu0
      %v224 = vadd.f32 0.0, %v223
      %v225 = vpop.f32.mrb[0].mxu0
      %226 = vmatprep.mubr.bf16.mxu0 0
      %227 = vmatmul.mubr.bf16.gmra.mrb[0].mxu0 %v155
      %v228 = vpop.f32.mrb[0].mxu0
      %v229 = vadd.f32 0.0, %v228
      %v230 = vpop.f32.mrb[0].mxu0
      %v231 = vpop.f32.mrb[0].mxu0
      %v232 = vadd.f32 0.0, %v231
      %v233 = vpop.f32.mrb[0].mxu0
      %234 = vmatprep.mubr.bf16.mxu0 0
      %235 = vmatmul.mubr.bf16.gmra.mrb[0].mxu0 %v158
      %v236 = vpop.f32.mrb[0].mxu0
      %v237 = vadd.f32 0.0, %v236
      %v238 = vpop.f32.mrb[0].mxu0
      %v239 = vpop.f32.mrb[0].mxu0
      %v240 = vadd.f32 0.0, %v239
      %v241 = vpop.f32.mrb[0].mxu0
      %242 = vmatprep.mubr.bf16.mxu0 0
      %243 = vmatmul.mubr.bf16.gmra.mrb[0].mxu0 %v161
      %v244 = vpop.f32.mrb[0].mxu0
      %v245 = vadd.f32 0.0, %v244
      %v246 = vpop.f32.mrb[0].mxu0
      %v247 = vpop.f32.mrb[0].mxu0
      %v248 = vpop.f32.mrb[0].mxu0
      %249 = vdwg.mxu0
      %v250 = vmul.f32 %v213, 0.25
      %v251 = vmul.f32 %v216, 0.25
      %v252 = vmul.f32 %v221, 0.25
      %v253 = vmul.f32 %v224, 0.25
      %v254 = vmul.f32 %v229, 0.25
      %v255 = vmul.f32 %v232, 0.25
      %v256 = vmul.f32 %v237, 0.25
      %v257 = vmul.f32 %v240, 0.25
      %v258 = vmul.f32 %v245, 0.25
      %vm259 = vcmask 531456
      %v260 = vsel %vm259, %v250, -inf
      %261 = vmax.xlane.f32.xlu0 %v260
      %v262 = vpop.xlane.xlu0 %261
      %v263 = vsel %vm259, %v251, -inf
      %264 = vmax.xlane.f32.xlu0 %v263
      %v265 = vpop.xlane.xlu0 %264
      %v266 = vsel %vm259, %v252, -inf
      %267 = vmax.xlane.f32.xlu0 %v266
      %v268 = vpop.xlane.xlu0 %267
      %v269 = vsel %vm259, %v253, -inf
      %270 = vmax.xlane.f32.xlu0 %v269
      %v271 = vpop.xlane.xlu0 %270
      %v272 = vsel %vm259, %v254, -inf
      %273 = vmax.xlane.f32.xlu0 %v272
      %v274 = vpop.xlane.xlu0 %273
      %v275 = vsel %vm259, %v255, -inf
      %276 = vmax.xlane.f32.xlu0 %v275
      %v277 = vpop.xlane.xlu0 %276
      %v278 = vsel %vm259, %v256, -inf
      %279 = vmax.xlane.f32.xlu0 %v278
      %v280 = vpop.xlane.xlu0 %279
      %v281 = vsel %vm259, %v257, -inf
      %282 = vmax.xlane.f32.xlu0 %v281
      %v283 = vpop.xlane.xlu0 %282
      %vm284 = vcmask 524288
      %v285 = vsel %vm284, %v258, -inf
      %286 = vmax.xlane.f32.xlu0 %v285
      %v287 = vpop.xlane.xlu0 %286
      %v288 = vsub.f32 %v250, %v262
      %v289 = vsub.f32 %v251, %v265
      %v290 = vsub.f32 %v252, %v268
      %v291 = vsub.f32 %v253, %v271
      %v292 = vsub.f32 %v254, %v274
      %v293 = vsub.f32 %v255, %v277
      %v294 = vsub.f32 %v256, %v280
      %v295 = vsub.f32 %v257, %v283
      %v296 = vsub.f32 %v258, %v287
      %v297 = vmul.f32 %v288, 1.442695
      %v298 = vpow.pop %v297
      %v299 = vmul.f32 %v289, 1.442695
      %v300 = vpow.pop %v299
      %v301 = vmul.f32 %v290, 1.442695
      %v302 = vpow.pop %v301
      %v303 = vmul.f32 %v291, 1.442695
      %v304 = vpow.pop %v303
      %v305 = vmul.f32 %v292, 1.442695
      %v306 = vpow.pop %v305
      %v307 = vmul.f32 %v293, 1.442695
      %v308 = vpow.pop %v307
      %v309 = vmul.f32 %v294, 1.442695
      %v310 = vpow.pop %v309
      %v311 = vmul.f32 %v295, 1.442695
      %v312 = vpow.pop %v311
      %v313 = vmul.f32 %v296, 1.442695
      %v314 = vpow.pop %v313
      %v315 = vsel %vm259, %v298, 0.0
      %316 = vadd.xlane.f32.xlu0 %v315
      %v317 = vpop.xlane.xlu0 %316
      %v318 = vsel %vm259, %v300, 0.0
      %319 = vadd.xlane.f32.xlu0 %v318
      %v320 = vpop.xlane.xlu0 %319
      %v321 = vsel %vm259, %v302, 0.0
      %322 = vadd.xlane.f32.xlu0 %v321
      %v323 = vpop.xlane.xlu0 %322
      %v324 = vsel %vm259, %v304, 0.0
      %325 = vadd.xlane.f32.xlu0 %v324
      %v326 = vpop.xlane.xlu0 %325
      %v327 = vsel %vm259, %v306, 0.0
      %328 = vadd.xlane.f32.xlu0 %v327
      %v329 = vpop.xlane.xlu0 %328
      %v330 = vsel %vm259, %v308, 0.0
      %331 = vadd.xlane.f32.xlu0 %v330
      %v332 = vpop.xlane.xlu0 %331
      %v333 = vsel %vm259, %v310, 0.0
      %334 = vadd.xlane.f32.xlu0 %v333
      %v335 = vpop.xlane.xlu0 %334
      %v336 = vsel %vm259, %v312, 0.0
      %337 = vadd.xlane.f32.xlu0 %v336
      %v338 = vpop.xlane.xlu0 %337
      %v339 = vsel %vm284, %v314, 0.0
      %340 = vadd.xlane.f32.xlu0 %v339
      %v341 = vpop.xlane.xlu0 %340
      %v342 = vpack.c.bf16 %v300, %v298
      %v343 = vpack.c.bf16 %v304, %v302
      %v344 = vpack.c.bf16 %v308, %v306
      %v345 = vpack.c.bf16 %v312, %v310
      %v346 = vpack.c.bf16 %v314, %v314
      %347 = vrot.lane.b32.xlu0 %v127, 64
      %v348 = vpop.permute.xlu0 %347
      %349 = vrot.lane.b32.xlu0 %v128, 64
      %v350 = vpop.permute.xlu0 %349
      %351 = vrot.lane.b32.xlu0 %v129, 64
      %v352 = vpop.permute.xlu0 %351
      %353 = vrot.lane.b32.xlu0 %v130, 64
      %v354 = vpop.permute.xlu0 %353
      %355 = vrot.lane.b32.xlu0 %v131, 64
      %v356 = vpop.permute.xlu0 %355
      %v362 = vsel %vm259, %v342, 0
      %v365 = vsel %vm259, %v343, 0
      %v368 = vsel %vm259, %v344, 0
      %v371 = vsel %vm259, %v345, 0
      %v374 = vsel %vm259, %v346, 0
      %vm376 = vcmask 1040384
      %v377 = vsel 0, 4294967295, 65535
      %v378 = vsel %vm376, %v377, 0
      %v380 = vand.u32 %v356, %v378
      %382 = vmatprep.subr.bf16.mxu0 0
      %383 = vmatpush1.bf16.msra.mxu0 %v348
      %384 = vmatprep.subr.bf16.mxu0 0
      %385 = vmatpush1.bf16.msra.mxu0 %v350
      %386 = vmatprep.subr.bf16.mxu0 0
      %387 = vmatpush1.bf16.msra.mxu0 %v352
      %388 = vmatprep.subr.bf16.mxu0 0
      %389 = vmatpush1.bf16.msra.mxu0 %v354
      %390 = vmatprep.subr.bf16.mxu0 0
      %391 = vmatpush1.bf16.msra.mxu0 %v380
      %392 = vmatprep.subr.bf16.mxu0 0
      %393 = vmatpush1.bf16.msra.mxu0 0
      %394 = vmatprep.subr.bf16.mxu0 0
      %395 = vmatpush1.bf16.msra.mxu0 0
      %396 = vmatprep.subr.bf16.mxu0 0
      %397 = vmatpush1.bf16.msra.mxu0 0
      %398 = vmatprep.subr.bf16.mxu0 0
      %399 = vmatpush1.bf16.msra.mxu0 0
      %400 = vmatprep.subr.bf16.mxu0 0
      %401 = vmatpush1.bf16.msra.mxu0 0
      %402 = vmatprep.subr.bf16.mxu0 0
      %403 = vmatpush1.bf16.msra.mxu0 0
      %404 = vmatprep.subr.bf16.mxu0 0
      %405 = vmatpush1.bf16.msra.mxu0 0
      %406 = vmatprep.subr.bf16.mxu0 0
      %407 = vmatpush1.bf16.msra.mxu0 0
      %408 = vmatprep.subr.bf16.mxu0 0
      %409 = vmatpush1.bf16.msra.mxu0 0
      %410 = vmatprep.subr.bf16.mxu0 0
      %411 = vmatpush1.bf16.msra.mxu0 0
      %412 = vmatprep.subr.bf16.mxu0 0
      %413 = vmatpush1.bf16.msra.mxu0 0
      %414 = vmatprep.mubr.bf16.mxu0 0
      %415 = vmatmul.mubr.bf16.gmra.mrb[0].mxu0 %v362
      %v416 = vpop.f32.mrb[0].mxu0
      %v417 = vadd.f32 0.0, %v416
      %v418 = vpop.f32.mrb[0].mxu0
      %v419 = vpop.f32.mrb[0].mxu0
      %v420 = vadd.f32 0.0, %v419
      %v421 = vpop.f32.mrb[0].mxu0
      %422 = vmatprep.mubr.bf16.mxu0 0
      %423 = vmatmul.mubr.bf16.gmra.mrb[0].mxu0 %v365
      %v424 = vpop.f32.mrb[0].mxu0
      %v425 = vadd.f32 0.0, %v424
      %v426 = vpop.f32.mrb[0].mxu0
      %v427 = vpop.f32.mrb[0].mxu0
      %v428 = vadd.f32 0.0, %v427
      %v429 = vpop.f32.mrb[0].mxu0
      %430 = vmatprep.mubr.bf16.mxu0 0
      %431 = vmatmul.mubr.bf16.gmra.mrb[0].mxu0 %v368
      %v432 = vpop.f32.mrb[0].mxu0
      %v433 = vadd.f32 0.0, %v432
      %v434 = vpop.f32.mrb[0].mxu0
      %v435 = vpop.f32.mrb[0].mxu0
      %v436 = vadd.f32 0.0, %v435
      %v437 = vpop.f32.mrb[0].mxu0
      %438 = vmatprep.mubr.bf16.mxu0 0
      %439 = vmatmul.mubr.bf16.gmra.mrb[0].mxu0 %v371
      %v440 = vpop.f32.mrb[0].mxu0
      %v441 = vadd.f32 0.0, %v440
      %v442 = vpop.f32.mrb[0].mxu0
      %v443 = vpop.f32.mrb[0].mxu0
      %v444 = vadd.f32 0.0, %v443
      %v445 = vpop.f32.mrb[0].mxu0
      %446 = vmatprep.mubr.bf16.mxu0 0
      %447 = vmatmul.mubr.bf16.gmra.mrb[0].mxu0 %v374
      %v448 = vpop.f32.mrb[0].mxu0
      %v449 = vadd.f32 0.0, %v448
      %v450 = vpop.f32.mrb[0].mxu0
      %v451 = vpop.f32.mrb[0].mxu0
      %v452 = vpop.f32.mrb[0].mxu0
      %453 = vdwg.mxu0
      %v454 = vrcp.pop %v317
      %v455 = vrcp.pop %v320
      %v456 = vrcp.pop %v323
      %v457 = vrcp.pop %v326
      %v458 = vrcp.pop %v329
      %v459 = vrcp.pop %v332
      %v460 = vrcp.pop %v335
      %v461 = vrcp.pop %v338
      %v462 = vrcp.pop %v341
      %v463 = vmul.f32 %v417, %v454
      %v464 = vmul.f32 %v420, %v455
      %v465 = vmul.f32 %v425, %v456
      %v466 = vmul.f32 %v428, %v457
      %v467 = vmul.f32 %v433, %v458
      %v468 = vmul.f32 %v436, %v459
      %v469 = vmul.f32 %v441, %v460
      %v470 = vmul.f32 %v444, %v461
      %v471 = vmul.f32 %v449, %v462
      %472 = vrot.lane.b32.xlu0 %v127, 112
      %v473 = vpop.permute.xlu0 %472
      %474 = vrot.lane.b32.xlu0 %v128, 112
      %v475 = vpop.permute.xlu0 %474
      %476 = vrot.lane.b32.xlu0 %v129, 112
      %v477 = vpop.permute.xlu0 %476
      %478 = vrot.lane.b32.xlu0 %v130, 112
      %v479 = vpop.permute.xlu0 %478
      %480 = vrot.lane.b32.xlu0 %v131, 112
      %v481 = vpop.permute.xlu0 %480
      %482 = vrot.lane.b32.xlu0 %v127, 80
      %v483 = vpop.permute.xlu0 %482
      %484 = vrot.lane.b32.xlu0 %v128, 80
      %v485 = vpop.permute.xlu0 %484
      %486 = vrot.lane.b32.xlu0 %v129, 80
      %v487 = vpop.permute.xlu0 %486
      %488 = vrot.lane.b32.xlu0 %v130, 80
      %v489 = vpop.permute.xlu0 %488
      %490 = vrot.lane.b32.xlu0 %v131, 80
      %v491 = vpop.permute.xlu0 %490
      %v493 = vsel %vm147, %v473, 0
      %v496 = vsel %vm147, %v475, 0
      %v499 = vsel %vm147, %v477, 0
      %v502 = vsel %vm147, %v479, 0
      %v505 = vsel %vm147, %v481, 0
      %v508 = vsel %vm147, %v483, 0
      %v511 = vsel %vm147, %v485, 0
      %v514 = vsel %vm147, %v487, 0
      %v517 = vsel %vm147, %v489, 0
      %v520 = vsel %vm147, %v491, 0
      %522 = vmatprep.subr.bf16.mxu0 0
      %523 = vmatpush1.bf16.xpose.msra.mxu0 %v508
      %524 = vmatprep.subr.bf16.mxu0 0
      %525 = vmatpush1.bf16.xpose.msra.mxu0 %v511
      %526 = vmatprep.subr.bf16.mxu0 0
      %527 = vmatpush1.bf16.xpose.msra.mxu0 %v514
      %528 = vmatprep.subr.bf16.mxu0 0
      %529 = vmatpush1.bf16.xpose.msra.mxu0 %v517
      %530 = vmatprep.subr.bf16.mxu0 0
      %531 = vmatpush1.bf16.xpose.msra.mxu0 %v520
      %532 = vmatprep.subr.bf16.mxu0 0
      %533 = vmatpush1.bf16.xpose.msra.mxu0 0
      %534 = vmatprep.subr.bf16.mxu0 0
      %535 = vmatpush1.bf16.xpose.msra.mxu0 0
      %536 = vmatprep.subr.bf16.mxu0 0
      %537 = vmatpush1.bf16.xpose.msra.mxu0 0
      %538 = vmatprep.subr.bf16.mxu0 0
      %539 = vmatpush1.bf16.xpose.msra.mxu0 0
      %540 = vmatprep.subr.bf16.mxu0 0
      %541 = vmatpush1.bf16.xpose.msra.mxu0 0
      %542 = vmatprep.subr.bf16.mxu0 0
      %543 = vmatpush1.bf16.xpose.msra.mxu0 0
      %544 = vmatprep.subr.bf16.mxu0 0
      %545 = vmatpush1.bf16.xpose.msra.mxu0 0
      %546 = vmatprep.subr.bf16.mxu0 0
      %547 = vmatpush1.bf16.xpose.msra.mxu0 0
      %548 = vmatprep.subr.bf16.mxu0 0
      %549 = vmatpush1.bf16.xpose.msra.mxu0 0
      %550 = vmatprep.subr.bf16.mxu0 0
      %551 = vmatpush1.bf16.xpose.msra.mxu0 0
      %552 = vmatprep.subr.bf16.mxu0 0
      %553 = vmatpush1.bf16.xpose.msra.mxu0 0
      %554 = vmatprep.mubr.bf16.mxu0 0
      %555 = vmatmul.mubr.bf16.gmra.mrb[0].mxu0 %v493
      %v556 = vpop.f32.mrb[0].mxu0
      %v557 = vadd.f32 0.0, %v556
      %v558 = vpop.f32.mrb[0].mxu0
      %v559 = vpop.f32.mrb[0].mxu0
      %v560 = vadd.f32 0.0, %v559
      %v561 = vpop.f32.mrb[0].mxu0
      %562 = vmatprep.mubr.bf16.mxu0 0
      %563 = vmatmul.mubr.bf16.gmra.mrb[0].mxu0 %v496
      %v564 = vpop.f32.mrb[0].mxu0
      %v565 = vadd.f32 0.0, %v564
      %v566 = vpop.f32.mrb[0].mxu0
      %v567 = vpop.f32.mrb[0].mxu0
      %v568 = vadd.f32 0.0, %v567
      %v569 = vpop.f32.mrb[0].mxu0
      %570 = vmatprep.mubr.bf16.mxu0 0
      %571 = vmatmul.mubr.bf16.gmra.mrb[0].mxu0 %v499
      %v572 = vpop.f32.mrb[0].mxu0
      %v573 = vadd.f32 0.0, %v572
      %v574 = vpop.f32.mrb[0].mxu0
      %v575 = vpop.f32.mrb[0].mxu0
      %v576 = vadd.f32 0.0, %v575
      %v577 = vpop.f32.mrb[0].mxu0
      %578 = vmatprep.mubr.bf16.mxu0 0
      %579 = vmatmul.mubr.bf16.gmra.mrb[0].mxu0 %v502
      %v580 = vpop.f32.mrb[0].mxu0
      %v581 = vadd.f32 0.0, %v580
      %v582 = vpop.f32.mrb[0].mxu0
      %v583 = vpop.f32.mrb[0].mxu0
      %v584 = vadd.f32 0.0, %v583
      %v585 = vpop.f32.mrb[0].mxu0
      %586 = vmatprep.mubr.bf16.mxu0 0
      %587 = vmatmul.mubr.bf16.gmra.mrb[0].mxu0 %v505
      %v588 = vpop.f32.mrb[0].mxu0
      %v589 = vadd.f32 0.0, %v588
      %v590 = vpop.f32.mrb[0].mxu0
      %v591 = vpop.f32.mrb[0].mxu0
      %v592 = vpop.f32.mrb[0].mxu0
      %593 = vdwg.mxu0
      %v594 = vmul.f32 %v557, 0.25
      %v595 = vmul.f32 %v560, 0.25
      %v596 = vmul.f32 %v565, 0.25
      %v597 = vmul.f32 %v568, 0.25
      %v598 = vmul.f32 %v573, 0.25
      %v599 = vmul.f32 %v576, 0.25
      %v600 = vmul.f32 %v581, 0.25
      %v601 = vmul.f32 %v584, 0.25
      %v602 = vmul.f32 %v589, 0.25
      %v603 = vsel %vm259, %v594, -inf
      %604 = vmax.xlane.f32.xlu0 %v603
      %v605 = vpop.xlane.xlu0 %604
      %v606 = vsel %vm259, %v595, -inf
      %607 = vmax.xlane.f32.xlu0 %v606
      %v608 = vpop.xlane.xlu0 %607
      %v609 = vsel %vm259, %v596, -inf
      %610 = vmax.xlane.f32.xlu0 %v609
      %v611 = vpop.xlane.xlu0 %610
      %v612 = vsel %vm259, %v597, -inf
      %613 = vmax.xlane.f32.xlu0 %v612
      %v614 = vpop.xlane.xlu0 %613
      %v615 = vsel %vm259, %v598, -inf
      %616 = vmax.xlane.f32.xlu0 %v615
      %v617 = vpop.xlane.xlu0 %616
      %v618 = vsel %vm259, %v599, -inf
      %619 = vmax.xlane.f32.xlu0 %v618
      %v620 = vpop.xlane.xlu0 %619
      %v621 = vsel %vm259, %v600, -inf
      %622 = vmax.xlane.f32.xlu0 %v621
      %v623 = vpop.xlane.xlu0 %622
      %v624 = vsel %vm259, %v601, -inf
      %625 = vmax.xlane.f32.xlu0 %v624
      %v626 = vpop.xlane.xlu0 %625
      %v627 = vsel %vm284, %v602, -inf
      %628 = vmax.xlane.f32.xlu0 %v627
      %v629 = vpop.xlane.xlu0 %628
      %v630 = vsub.f32 %v594, %v605
      %v631 = vsub.f32 %v595, %v608
      %v632 = vsub.f32 %v596, %v611
      %v633 = vsub.f32 %v597, %v614
      %v634 = vsub.f32 %v598, %v617
      %v635 = vsub.f32 %v599, %v620
      %v636 = vsub.f32 %v600, %v623
      %v637 = vsub.f32 %v601, %v626
      %v638 = vsub.f32 %v602, %v629
      %v639 = vmul.f32 %v630, 1.442695
      %v640 = vpow.pop %v639
      %v641 = vmul.f32 %v631, 1.442695
      %v642 = vpow.pop %v641
      %v643 = vmul.f32 %v632, 1.442695
      %v644 = vpow.pop %v643
      %v645 = vmul.f32 %v633, 1.442695
      %v646 = vpow.pop %v645
      %v647 = vmul.f32 %v634, 1.442695
      %v648 = vpow.pop %v647
      %v649 = vmul.f32 %v635, 1.442695
      %v650 = vpow.pop %v649
      %v651 = vmul.f32 %v636, 1.442695
      %v652 = vpow.pop %v651
      %v653 = vmul.f32 %v637, 1.442695
      %v654 = vpow.pop %v653
      %v655 = vmul.f32 %v638, 1.442695
      %v656 = vpow.pop %v655
      %v657 = vsel %vm259, %v640, 0.0
      %658 = vadd.xlane.f32.xlu0 %v657
      %v659 = vpop.xlane.xlu0 %658
      %v660 = vsel %vm259, %v642, 0.0
      %661 = vadd.xlane.f32.xlu0 %v660
      %v662 = vpop.xlane.xlu0 %661
      %v663 = vsel %vm259, %v644, 0.0
      %664 = vadd.xlane.f32.xlu0 %v663
      %v665 = vpop.xlane.xlu0 %664
      %v666 = vsel %vm259, %v646, 0.0
      %667 = vadd.xlane.f32.xlu0 %v666
      %v668 = vpop.xlane.xlu0 %667
      %v669 = vsel %vm259, %v648, 0.0
      %670 = vadd.xlane.f32.xlu0 %v669
      %v671 = vpop.xlane.xlu0 %670
      %v672 = vsel %vm259, %v650, 0.0
      %673 = vadd.xlane.f32.xlu0 %v672
      %v674 = vpop.xlane.xlu0 %673
      %v675 = vsel %vm259, %v652, 0.0
      %676 = vadd.xlane.f32.xlu0 %v675
      %v677 = vpop.xlane.xlu0 %676
      %v678 = vsel %vm259, %v654, 0.0
      %679 = vadd.xlane.f32.xlu0 %v678
      %v680 = vpop.xlane.xlu0 %679
      %v681 = vsel %vm284, %v656, 0.0
      %682 = vadd.xlane.f32.xlu0 %v681
      %v683 = vpop.xlane.xlu0 %682
      %v684 = vpack.c.bf16 %v642, %v640
      %v685 = vpack.c.bf16 %v646, %v644
      %v686 = vpack.c.bf16 %v650, %v648
      %v687 = vpack.c.bf16 %v654, %v652
      %v688 = vpack.c.bf16 %v656, %v656
      %689 = vrot.lane.b32.xlu0 %v127, 48
      %v690 = vpop.permute.xlu0 %689
      %691 = vrot.lane.b32.xlu0 %v128, 48
      %v692 = vpop.permute.xlu0 %691
      %693 = vrot.lane.b32.xlu0 %v129, 48
      %v694 = vpop.permute.xlu0 %693
      %695 = vrot.lane.b32.xlu0 %v130, 48
      %v696 = vpop.permute.xlu0 %695
      %697 = vrot.lane.b32.xlu0 %v131, 48
      %v698 = vpop.permute.xlu0 %697
      %v704 = vsel %vm259, %v684, 0
      %v707 = vsel %vm259, %v685, 0
      %v710 = vsel %vm259, %v686, 0
      %v713 = vsel %vm259, %v687, 0
      %v716 = vsel %vm259, %v688, 0
      %v719 = vand.u32 %v698, %v378
      %721 = vmatprep.subr.bf16.mxu0 0
      %722 = vmatpush1.bf16.msra.mxu0 %v690
      %723 = vmatprep.subr.bf16.mxu0 0
      %724 = vmatpush1.bf16.msra.mxu0 %v692
      %725 = vmatprep.subr.bf16.mxu0 0
      %726 = vmatpush1.bf16.msra.mxu0 %v694
      %727 = vmatprep.subr.bf16.mxu0 0
      %728 = vmatpush1.bf16.msra.mxu0 %v696
      %729 = vmatprep.subr.bf16.mxu0 0
      %730 = vmatpush1.bf16.msra.mxu0 %v719
      %731 = vmatprep.subr.bf16.mxu0 0
      %732 = vmatpush1.bf16.msra.mxu0 0
      %733 = vmatprep.subr.bf16.mxu0 0
      %734 = vmatpush1.bf16.msra.mxu0 0
      %735 = vmatprep.subr.bf16.mxu0 0
      %736 = vmatpush1.bf16.msra.mxu0 0
      %737 = vmatprep.subr.bf16.mxu0 0
      %738 = vmatpush1.bf16.msra.mxu0 0
      %739 = vmatprep.subr.bf16.mxu0 0
      %740 = vmatpush1.bf16.msra.mxu0 0
      %741 = vmatprep.subr.bf16.mxu0 0
      %742 = vmatpush1.bf16.msra.mxu0 0
      %743 = vmatprep.subr.bf16.mxu0 0
      %744 = vmatpush1.bf16.msra.mxu0 0
      %745 = vmatprep.subr.bf16.mxu0 0
      %746 = vmatpush1.bf16.msra.mxu0 0
      %747 = vmatprep.subr.bf16.mxu0 0
      %748 = vmatpush1.bf16.msra.mxu0 0
      %749 = vmatprep.subr.bf16.mxu0 0
      %750 = vmatpush1.bf16.msra.mxu0 0
      %751 = vmatprep.subr.bf16.mxu0 0
      %752 = vmatpush1.bf16.msra.mxu0 0
      %753 = vmatprep.mubr.bf16.mxu0 0
      %754 = vmatmul.mubr.bf16.gmra.mrb[0].mxu0 %v704
      %v755 = vpop.f32.mrb[0].mxu0
      %v756 = vadd.f32 0.0, %v755
      %v757 = vpop.f32.mrb[0].mxu0
      %v758 = vpop.f32.mrb[0].mxu0
      %v759 = vadd.f32 0.0, %v758
      %v760 = vpop.f32.mrb[0].mxu0
      %761 = vmatprep.mubr.bf16.mxu0 0
      %762 = vmatmul.mubr.bf16.gmra.mrb[0].mxu0 %v707
      %v763 = vpop.f32.mrb[0].mxu0
      %v764 = vadd.f32 0.0, %v763
      %v765 = vpop.f32.mrb[0].mxu0
      %v766 = vpop.f32.mrb[0].mxu0
      %v767 = vadd.f32 0.0, %v766
      %v768 = vpop.f32.mrb[0].mxu0
      %769 = vmatprep.mubr.bf16.mxu0 0
      %770 = vmatmul.mubr.bf16.gmra.mrb[0].mxu0 %v710
      %v771 = vpop.f32.mrb[0].mxu0
      %v772 = vadd.f32 0.0, %v771
      %v773 = vpop.f32.mrb[0].mxu0
      %v774 = vpop.f32.mrb[0].mxu0
      %v775 = vadd.f32 0.0, %v774
      %v776 = vpop.f32.mrb[0].mxu0
      %777 = vmatprep.mubr.bf16.mxu0 0
      %778 = vmatmul.mubr.bf16.gmra.mrb[0].mxu0 %v713
      %v779 = vpop.f32.mrb[0].mxu0
      %v780 = vadd.f32 0.0, %v779
      %v781 = vpop.f32.mrb[0].mxu0
      %v782 = vpop.f32.mrb[0].mxu0
      %v783 = vadd.f32 0.0, %v782
      %v784 = vpop.f32.mrb[0].mxu0
      %785 = vmatprep.mubr.bf16.mxu0 0
      %786 = vmatmul.mubr.bf16.gmra.mrb[0].mxu0 %v716
      %v787 = vpop.f32.mrb[0].mxu0
      %v788 = vadd.f32 0.0, %v787
      %v789 = vpop.f32.mrb[0].mxu0
      %v790 = vpop.f32.mrb[0].mxu0
      %v791 = vpop.f32.mrb[0].mxu0
      %792 = vdwg.mxu0
      %v793 = vrcp.pop %v659
      %v794 = vrcp.pop %v662
      %v795 = vrcp.pop %v665
      %v796 = vrcp.pop %v668
      %v797 = vrcp.pop %v671
      %v798 = vrcp.pop %v674
      %v799 = vrcp.pop %v677
      %v800 = vrcp.pop %v680
      %v801 = vrcp.pop %v683
      %v802 = vmul.f32 %v756, %v793
      %v803 = vmul.f32 %v759, %v794
      %v804 = vmul.f32 %v764, %v795
      %v805 = vmul.f32 %v767, %v796
      %v806 = vmul.f32 %v772, %v797
      %v807 = vmul.f32 %v775, %v798
      %v808 = vmul.f32 %v780, %v799
      %v809 = vmul.f32 %v783, %v800
      %v810 = vmul.f32 %v788, %v801
      %820 = vrot.lane.b32.xlu0 %v802, 16
      %v821 = vpop.permute.xlu0 %820
      %822 = vrot.lane.b32.xlu0 %v803, 16
      %v823 = vpop.permute.xlu0 %822
      %824 = vrot.lane.b32.xlu0 %v804, 16
      %v825 = vpop.permute.xlu0 %824
      %826 = vrot.lane.b32.xlu0 %v805, 16
      %v827 = vpop.permute.xlu0 %826
      %828 = vrot.lane.b32.xlu0 %v806, 16
      %v829 = vpop.permute.xlu0 %828
      %830 = vrot.lane.b32.xlu0 %v807, 16
      %v831 = vpop.permute.xlu0 %830
      %832 = vrot.lane.b32.xlu0 %v808, 16
      %v833 = vpop.permute.xlu0 %832
      %834 = vrot.lane.b32.xlu0 %v809, 16
      %v835 = vpop.permute.xlu0 %834
      %836 = vrot.lane.b32.xlu0 %v810, 16
      %v837 = vpop.permute.xlu0 %836
      %v847 = vsel %vm147, %v463, %v821
      %v848 = vsel %vm147, %v464, %v823
      %v849 = vsel %vm147, %v465, %v825
      %v850 = vsel %vm147, %v466, %v827
      %v851 = vsel %vm147, %v467, %v829
      %v852 = vsel %vm147, %v468, %v831
      %v853 = vsel %vm147, %v469, %v833
      %v854 = vsel %vm147, %v470, %v835
      %v855 = vsel %vm147, %v471, %v837
      %vm856 = vcmask 261120
      %857 = vst.msk [vmem:[%s116] sm:$0xff] %vm856, %v847
      %858 = vst.msk [vmem:[%s116 + $0x8] sm:$0xff] %vm856, %v848
      %859 = vst.msk [vmem:[%s116 + $0x10] sm:$0xff] %vm856, %v849
      %860 = vst.msk [vmem:[%s116 + $0x18] sm:$0xff] %vm856, %v850
      %861 = vst.msk [vmem:[%s116 + $0x20] sm:$0xff] %vm856, %v851
      %862 = vst.msk [vmem:[%s116 + $0x28] sm:$0xff] %vm856, %v852
      %863 = vst.msk [vmem:[%s116 + $0x30] sm:$0xff] %vm856, %v853
      %864 = vst.msk [vmem:[%s116 + $0x38] sm:$0xff] %vm856, %v854
      %vm865 = vcmask 253952
      %866 = vst.msk [vmem:[%s116 + $0x40] sm:$0x1] %vm865, %v855
      %p867 = scmp.lt.s32.totalorder %s12, 1
      %s868 = scalar_select %p867, %s12, 1
      %s869 = smul.addr %s868, 9
      %s870 = smul.addr %s869, 8
      %s871 = scalar_lea.vmem %s1, %s870
      // Predicated region
      $region25: #{resnet50_vit_forward.38} parent=23 // pred_check
        %p872 = pneg %p56
      $region26: #{resnet50_vit_forward.38} parent=23 // pred_check_branch
        %874 = sbr.rel (%p872) target = $region28
      $region27: #{resnet50_vit_forward.38} parent=23 // pred_region
        _
      $region28: #{resnet50_vit_forward.38} parent=23 // pred_fallthru
        _
    $region24: #{resnet50_vit_forward.38} parent=5 // pred_fallthru
      _
    %p875 = scmp.le.s32.totalorder 2, %s7
    // Predicated region
    $region29: #{resnet50_vit_forward.38} parent=5 // pred_check
      %p876 = pneg %p875
    $region30: #{resnet50_vit_forward.38} parent=5 // pred_check_branch
      %878 = sbr.rel (%p876) target = $region32
    $region31: #{resnet50_vit_forward.38} parent=5 // pred_region
      %s879 = ssub.s32 %s7, 2
      // Predicated region
      $region33: #{resnet50_vit_forward.38} parent=31 // pred_check
        %p880 = pneg %p62
      $region34: #{resnet50_vit_forward.38} parent=31 // pred_check_branch
        %882 = sbr.rel (%p880) target = $region36
      $region35: #{resnet50_vit_forward.38} parent=31 // pred_region
        %p883 = scmp.lt.s32.totalorder %s13, 1
        %s884 = scalar_select %p883, %s13, 1
        %s885 = smul.addr %s884, 9
        %s886 = smul.addr %s885, 8
        %s887 = scalar_lea.vmem %s1, %s886
      $region36: #{resnet50_vit_forward.38} parent=31 // pred_fallthru
        _
    $region32: #{resnet50_vit_forward.38} parent=5 // pred_fallthru
      _
  $region6: #{resnet50_vit_forward.38} parent=0 // loop_footer
    %s11 = sadd.s32 1, %s7
  $region7: #{resnet50_vit_forward.38} parent=0 // loop_footer_branch
    %6 = sbr.rel target = $region3
  $region8: #{resnet50_vit_forward.38} parent=0 // loop_exit
    _

// kernel: resnet50_vit_forward.40
$region0: #{resnet50_vit_forward.40}
  #allocation0 [shape = 'u32[]', space=smem, size = 0x4, offset = 0x4, fixed_abs, tag = 'smem constant byte address 0x4 - core index']
  #allocation1 [shape = 'u32[144,128]{1,0:T(1,128)}', space=vmem, size = 0x12000, scoped, tag = 'internal scratch']
  %s0 = inlined_call_operand.vmem [shape: f32[136,64], index: 0, kind: input, shape index: {}]
  %s1 = inlined_call_operand.vmem [shape: bf16[64,128], index: 1, kind: input, shape index: {}]
  %s2 = inlined_call_operand.vmem [shape: f32[1,128], index: 2, kind: input, shape index: {}]
  %s3 = inlined_call_operand.vmem [shape: f32[136,128], index: 3, kind: output, shape index: {}]
  %s4 = sld [smem:[#allocation0]]
  $region22: #{resnet50_vit_forward.40} parent=0
    _
  %s6 = ssub.s32 1, %s4
  %s7 = scalar_select 0, %s6, %s4
  // Predicated region
  $region2: #{resnet50_vit_forward.40} parent=0 // pred_check
    _
  $region3: #{resnet50_vit_forward.40} parent=0 // pred_check_branch
    %9 = sbr.rel (0) target = $region5
  $region4: #{resnet50_vit_forward.40} parent=0 // pred_region
    _
  $region5: #{resnet50_vit_forward.40} parent=0 // pred_fallthru
    _
  // Predicated region
  $region6: #{resnet50_vit_forward.40} parent=0 // pred_check
    _
  $region7: #{resnet50_vit_forward.40} parent=0 // pred_check_branch
    %11 = sbr.rel (0) target = $region9
  $region8: #{resnet50_vit_forward.40} parent=0 // pred_region
    _
  $region9: #{resnet50_vit_forward.40} parent=0 // pred_fallthru
    _
  // Predicated region
  $region10: #{resnet50_vit_forward.40} parent=0 // pred_check
    _
  $region11: #{resnet50_vit_forward.40} parent=0 // pred_check_branch
    %13 = sbr.rel (0) target = $region13
  $region12: #{resnet50_vit_forward.40} parent=0 // pred_region
    _
  $region13: #{resnet50_vit_forward.40} parent=0 // pred_fallthru
    _
  %v15 = vld [vmem:[%s0] sm:$0xff]
  %v16 = vld [vmem:[%s0 + $0x8] sm:$0xff]
  %v17 = vld [vmem:[%s0 + $0x10] sm:$0xff]
  %v18 = vld [vmem:[%s0 + $0x18] sm:$0xff]
  %v19 = vld [vmem:[%s0 + $0x20] sm:$0xff]
  %v20 = vld [vmem:[%s0 + $0x28] sm:$0xff]
  %v21 = vld [vmem:[%s0 + $0x30] sm:$0xff]
  %v22 = vld [vmem:[%s0 + $0x38] sm:$0xff]
  %v23 = vld [vmem:[%s0 + $0x40] sm:$0xff]
  %v24 = vld [vmem:[%s0 + $0x48] sm:$0xff]
  %v25 = vld [vmem:[%s0 + $0x50] sm:$0xff]
  %v26 = vld [vmem:[%s0 + $0x58] sm:$0xff]
  %v27 = vld [vmem:[%s0 + $0x60] sm:$0xff]
  %v28 = vld [vmem:[%s0 + $0x68] sm:$0xff]
  %v29 = vld [vmem:[%s0 + $0x70] sm:$0xff]
  %v30 = vld [vmem:[%s0 + $0x78] sm:$0xff]
  %v31 = vld [vmem:[%s0 + $0x80] sm:$0xff]
  %v32 = vpack.c.bf16 %v16, %v15
  %v33 = vpack.c.bf16 %v18, %v17
  %v34 = vpack.c.bf16 %v20, %v19
  %v35 = vpack.c.bf16 %v22, %v21
  %v36 = vpack.c.bf16 %v24, %v23
  %v37 = vpack.c.bf16 %v26, %v25
  %v38 = vpack.c.bf16 %v28, %v27
  %v39 = vpack.c.bf16 %v30, %v29
  %v40 = vpack.c.bf16 %v31, %v31
  %v41 = vld [vmem:[%s1] sm:$0xf]
  %v42 = vld [vmem:[%s1 + $0x4] sm:$0xf]
  %v43 = vld [vmem:[%s1 + $0x8] sm:$0xf]
  %v44 = vld [vmem:[%s1 + $0xc] sm:$0xf]
  %v45 = vld [vmem:[%s1 + $0x10] sm:$0xf]
  %v46 = vld [vmem:[%s1 + $0x14] sm:$0xf]
  %v47 = vld [vmem:[%s1 + $0x18] sm:$0xf]
  %v48 = vld [vmem:[%s1 + $0x1c] sm:$0xf]
  %v49 = vld [vmem:[%s2] sm:$0x1]
  %v51 = vlaneseq
  %v52 = vshrl.u32 %v51, 7
  %v53 = vsub.s32 0, %v52
  %v54 = vrot.slane %v49, %v53
  %v64 = vunpack.c.l.b16 %v41
  %v65 = vunpack.c.l.b16 %v42
  %v66 = vunpack.c.l.b16 %v43
  %v67 = vunpack.c.l.b16 %v44
  %v68 = vunpack.c.l.b16 %v45
  %v69 = vunpack.c.l.b16 %v46
  %v70 = vunpack.c.l.b16 %v47
  %v71 = vunpack.c.l.b16 %v48
  %v72 = vpack.c.b16 %v65, %v64
  %v73 = vpack.c.b16 %v67, %v66
  %v74 = vpack.c.b16 %v69, %v68
  %v75 = vpack.c.b16 %v71, %v70
  %vm80 = vcmask 523264
  %v82 = vsel %vm80, %v32, 0
  %v85 = vsel %vm80, %v33, 0
  %v88 = vsel %vm80, %v34, 0
  %v91 = vsel %vm80, %v35, 0
  %v94 = vsel %vm80, %v36, 0
  %v97 = vsel %vm80, %v37, 0
  %v100 = vsel %vm80, %v38, 0
  %v103 = vsel %vm80, %v39, 0
  %v106 = vsel %vm80, %v40, 0
  %108 = vmatprep.subr.bf16.mxu0 0
  %109 = vmatpush1.bf16.msra.mxu0 %v72
  %110 = vmatprep.subr.bf16.mxu0 0
  %111 = vmatpush1.bf16.msra.mxu0 %v73
  %112 = vmatprep.subr.bf16.mxu0 0
  %113 = vmatpush1.bf16.msra.mxu0 %v74
  %114 = vmatprep.subr.bf16.mxu0 0
  %115 = vmatpush1.bf16.msra.mxu0 %v75
  %116 = vmatprep.subr.bf16.mxu0 0
  %117 = vmatpush1.bf16.msra.mxu0 0
  %118 = vmatprep.subr.bf16.mxu0 0
  %119 = vmatpush1.bf16.msra.mxu0 0
  %120 = vmatprep.subr.bf16.mxu0 0
  %121 = vmatpush1.bf16.msra.mxu0 0
  %122 = vmatprep.subr.bf16.mxu0 0
  %123 = vmatpush1.bf16.msra.mxu0 0
  %124 = vmatprep.subr.bf16.mxu0 0
  %125 = vmatpush1.bf16.msra.mxu0 0
  %126 = vmatprep.subr.bf16.mxu0 0
  %127 = vmatpush1.bf16.msra.mxu0 0
  %128 = vmatprep.subr.bf16.mxu0 0
  %129 = vmatpush1.bf16.msra.mxu0 0
  %130 = vmatprep.subr.bf16.mxu0 0
  %131 = vmatpush1.bf16.msra.mxu0 0
  %132 = vmatprep.subr.bf16.mxu0 0
  %133 = vmatpush1.bf16.msra.mxu0 0
  %134 = vmatprep.subr.bf16.mxu0 0
  %135 = vmatpush1.bf16.msra.mxu0 0
  %136 = vmatprep.subr.bf16.mxu0 0
  %137 = vmatpush1.bf16.msra.mxu0 0
  %138 = vmatprep.subr.bf16.mxu0 0
  %139 = vmatpush1.bf16.msra.mxu0 0
  %140 = vmatprep.mubr.bf16.mxu0 0
  %141 = vmatmul.mubr.bf16.gmra.mrb[0].mxu0 %v82
  %v142 = vpop.f32.mrb[0].mxu0
  %v143 = vadd.f32 %v54, %v142
  %v144 = vpop.f32.mrb[0].mxu0
  %v145 = vpop.f32.mrb[0].mxu0
  %v146 = vadd.f32 %v54, %v145
  %v147 = vpop.f32.mrb[0].mxu0
  %148 = vmatprep.mubr.bf16.mxu0 0
  %149 = vmatmul.mubr.bf16.gmra.mrb[0].mxu0 %v85
  %v150 = vpop.f32.mrb[0].mxu0
  %v151 = vadd.f32 %v54, %v150
  %v152 = vpop.f32.mrb[0].mxu0
  %v153 = vpop.f32.mrb[0].mxu0
  %v154 = vadd.f32 %v54, %v153
  %v155 = vpop.f32.mrb[0].mxu0
  %156 = vmatprep.mubr.bf16.mxu0 0
  %157 = vmatmul.mubr.bf16.gmra.mrb[0].mxu0 %v88
  %v158 = vpop.f32.mrb[0].mxu0
  %v159 = vadd.f32 %v54, %v158
  %v160 = vpop.f32.mrb[0].mxu0
  %v161 = vpop.f32.mrb[0].mxu0
  %v162 = vadd.f32 %v54, %v161
  %v163 = vpop.f32.mrb[0].mxu0
  %164 = vmatprep.mubr.bf16.mxu0 0
  %165 = vmatmul.mubr.bf16.gmra.mrb[0].mxu0 %v91
  %v166 = vpop.f32.mrb[0].mxu0
  %v167 = vadd.f32 %v54, %v166
  %v168 = vpop.f32.mrb[0].mxu0
  %v169 = vpop.f32.mrb[0].mxu0
  %v170 = vadd.f32 %v54, %v169
  %v171 = vpop.f32.mrb[0].mxu0
  %172 = vmatprep.mubr.bf16.mxu0 0
  %173 = vmatmul.mubr.bf16.gmra.mrb[0].mxu0 %v94
  %v174 = vpop.f32.mrb[0].mxu0
  %v175 = vadd.f32 %v54, %v174
  %v176 = vpop.f32.mrb[0].mxu0
  %v177 = vpop.f32.mrb[0].mxu0
  %v178 = vadd.f32 %v54, %v177
  %v179 = vpop.f32.mrb[0].mxu0
  %180 = vmatprep.mubr.bf16.mxu0 0
  %181 = vmatmul.mubr.bf16.gmra.mrb[0].mxu0 %v97
  %v182 = vpop.f32.mrb[0].mxu0
  %v183 = vadd.f32 %v54, %v182
  %v184 = vpop.f32.mrb[0].mxu0
  %v185 = vpop.f32.mrb[0].mxu0
  %v186 = vadd.f32 %v54, %v185
  %v187 = vpop.f32.mrb[0].mxu0
  %188 = vmatprep.mubr.bf16.mxu0 0
  %189 = vmatmul.mubr.bf16.gmra.mrb[0].mxu0 %v100
  %v190 = vpop.f32.mrb[0].mxu0
  %v191 = vadd.f32 %v54, %v190
  %v192 = vpop.f32.mrb[0].mxu0
  %v193 = vpop.f32.mrb[0].mxu0
  %v194 = vadd.f32 %v54, %v193
  %v195 = vpop.f32.mrb[0].mxu0
  %196 = vmatprep.mubr.bf16.mxu0 0
  %197 = vmatmul.mubr.bf16.gmra.mrb[0].mxu0 %v103
  %v198 = vpop.f32.mrb[0].mxu0
  %v199 = vadd.f32 %v54, %v198
  %v200 = vpop.f32.mrb[0].mxu0
  %v201 = vpop.f32.mrb[0].mxu0
  %v202 = vadd.f32 %v54, %v201
  %v203 = vpop.f32.mrb[0].mxu0
  %204 = vmatprep.mubr.bf16.mxu0 0
  %205 = vmatmul.mubr.bf16.gmra.mrb[0].mxu0 %v106
  %v206 = vpop.f32.mrb[0].mxu0
  %v207 = vadd.f32 %v54, %v206
  %v208 = vpop.f32.mrb[0].mxu0
  %v209 = vpop.f32.mrb[0].mxu0
  %v210 = vpop.f32.mrb[0].mxu0
  %211 = vdwg.mxu0
  %v212 = vmul.f32 %v143, %v143
  %v213 = vmul.f32 %v146, %v146
  %v214 = vmul.f32 %v151, %v151
  %v215 = vmul.f32 %v154, %v154
  %v216 = vmul.f32 %v159, %v159
  %v217 = vmul.f32 %v162, %v162
  %v218 = vmul.f32 %v167, %v167
  %v219 = vmul.f32 %v170, %v170
  %v220 = vmul.f32 %v175, %v175
  %v221 = vmul.f32 %v178, %v178
  %v222 = vmul.f32 %v183, %v183
  %v223 = vmul.f32 %v186, %v186
  %v224 = vmul.f32 %v191, %v191
  %v225 = vmul.f32 %v194, %v194
  %v226 = vmul.f32 %v199, %v199
  %v227 = vmul.f32 %v202, %v202
  %v228 = vmul.f32 %v207, %v207
  %v229 = vmul.f32 %v143, %v212
  %v230 = vmul.f32 %v146, %v213
  %v231 = vmul.f32 %v151, %v214
  %v232 = vmul.f32 %v154, %v215
  %v233 = vmul.f32 %v159, %v216
  %v234 = vmul.f32 %v162, %v217
  %v235 = vmul.f32 %v167, %v218
  %v236 = vmul.f32 %v170, %v219
  %v237 = vmul.f32 %v175, %v220
  %v238 = vmul.f32 %v178, %v221
  %v239 = vmul.f32 %v183, %v222
  %v240 = vmul.f32 %v186, %v223
  %v241 = vmul.f32 %v191, %v224
  %v242 = vmul.f32 %v194, %v225
  %v243 = vmul.f32 %v199, %v226
  %v244 = vmul.f32 %v202, %v227
  %v245 = vmul.f32 %v207, %v228
  %v246 = vmul.f32 %v229, 0.044715
  %v247 = vmul.f32 %v230, 0.044715
  %v248 = vmul.f32 %v231, 0.044715
  %v249 = vmul.f32 %v232, 0.044715
  %v250 = vmul.f32 %v233, 0.044715
  %v251 = vmul.f32 %v234, 0.044715
  %v252 = vmul.f32 %v235, 0.044715
  %v253 = vmul.f32 %v236, 0.044715
  %v254 = vmul.f32 %v237, 0.044715
  %v255 = vmul.f32 %v238, 0.044715
  %v256 = vmul.f32 %v239, 0.044715
  %v257 = vmul.f32 %v240, 0.044715
  %v258 = vmul.f32 %v241, 0.044715
  %v259 = vmul.f32 %v242, 0.044715
  %v260 = vmul.f32 %v243, 0.044715
  %v261 = vmul.f32 %v244, 0.044715
  %v262 = vmul.f32 %v245, 0.044715
  %v263 = vadd.f32 %v143, %v246
  %v264 = vadd.f32 %v146, %v247
  %v265 = vadd.f32 %v151, %v248
  %v266 = vadd.f32 %v154, %v249
  %v267 = vadd.f32 %v159, %v250
  %v268 = vadd.f32 %v162, %v251
  %v269 = vadd.f32 %v167, %v252
  %v270 = vadd.f32 %v170, %v253
  %v271 = vadd.f32 %v175, %v254
  %v272 = vadd.f32 %v178, %v255
  %v273 = vadd.f32 %v183, %v256
  %v274 = vadd.f32 %v186, %v257
  %v275 = vadd.f32 %v191, %v258
  %v276 = vadd.f32 %v194, %v259
  %v277 = vadd.f32 %v199, %v260
  %v278 = vadd.f32 %v202, %v261
  %v279 = vadd.f32 %v207, %v262
  %v280 = vmul.f32 %v263, 0.7978846
  %v281 = vmul.f32 %v264, 0.7978846
  %v282 = vmul.f32 %v265, 0.7978846
  %v283 = vmul.f32 %v266, 0.7978846
  %v284 = vmul.f32 %v267, 0.7978846
  %v285 = vmul.f32 %v268, 0.7978846
  %v286 = vmul.f32 %v269, 0.7978846
  %v287 = vmul.f32 %v270, 0.7978846
  %v288 = vmul.f32 %v271, 0.7978846
  %v289 = vmul.f32 %v272, 0.7978846
  %v290 = vmul.f32 %v273, 0.7978846
  %v291 = vmul.f32 %v274, 0.7978846
  %v292 = vmul.f32 %v275, 0.7978846
  %v293 = vmul.f32 %v276, 0.7978846
  %v294 = vmul.f32 %v277, 0.7978846
  %v295 = vmul.f32 %v278, 0.7978846
  %v296 = vmul.f32 %v279, 0.7978846
  %v297 = vtanh.pop %v280
  %v298 = vtanh.pop %v281
  %v299 = vtanh.pop %v282
  %v300 = vtanh.pop %v283
  %v301 = vtanh.pop %v284
  %v302 = vtanh.pop %v285
  %v303 = vtanh.pop %v286
  %v304 = vtanh.pop %v287
  %v305 = vtanh.pop %v288
  %v306 = vtanh.pop %v289
  %v307 = vtanh.pop %v290
  %v308 = vtanh.pop %v291
  %v309 = vtanh.pop %v292
  %v310 = vtanh.pop %v293
  %v311 = vtanh.pop %v294
  %v312 = vtanh.pop %v295
  %v313 = vtanh.pop %v296
  %v314 = vadd.f32 %v297, 1.0
  %v315 = vadd.f32 %v298, 1.0
  %v316 = vadd.f32 %v299, 1.0
  %v317 = vadd.f32 %v300, 1.0
  %v318 = vadd.f32 %v301, 1.0
  %v319 = vadd.f32 %v302, 1.0
  %v320 = vadd.f32 %v303, 1.0
  %v321 = vadd.f32 %v304, 1.0
  %v322 = vadd.f32 %v305, 1.0
  %v323 = vadd.f32 %v306, 1.0
  %v324 = vadd.f32 %v307, 1.0
  %v325 = vadd.f32 %v308, 1.0
  %v326 = vadd.f32 %v309, 1.0
  %v327 = vadd.f32 %v310, 1.0
  %v328 = vadd.f32 %v311, 1.0
  %v329 = vadd.f32 %v312, 1.0
  %v330 = vadd.f32 %v313, 1.0
  %v331 = vmul.f32 %v314, 0.5
  %v332 = vmul.f32 %v315, 0.5
  %v333 = vmul.f32 %v316, 0.5
  %v334 = vmul.f32 %v317, 0.5
  %v335 = vmul.f32 %v318, 0.5
  %v336 = vmul.f32 %v319, 0.5
  %v337 = vmul.f32 %v320, 0.5
  %v338 = vmul.f32 %v321, 0.5
  %v339 = vmul.f32 %v322, 0.5
  %v340 = vmul.f32 %v323, 0.5
  %v341 = vmul.f32 %v324, 0.5
  %v342 = vmul.f32 %v325, 0.5
  %v343 = vmul.f32 %v326, 0.5
  %v344 = vmul.f32 %v327, 0.5
  %v345 = vmul.f32 %v328, 0.5
  %v346 = vmul.f32 %v329, 0.5
  %v347 = vmul.f32 %v330, 0.5
  %v348 = vmul.f32 %v143, %v331
  %v349 = vmul.f32 %v146, %v332
  %v350 = vmul.f32 %v151, %v333
  %v351 = vmul.f32 %v154, %v334
  %v352 = vmul.f32 %v159, %v335
  %v353 = vmul.f32 %v162, %v336
  %v354 = vmul.f32 %v167, %v337
  %v355 = vmul.f32 %v170, %v338
  %v356 = vmul.f32 %v175, %v339
  %v357 = vmul.f32 %v178, %v340
  %v358 = vmul.f32 %v183, %v341
  %v359 = vmul.f32 %v186, %v342
  %v360 = vmul.f32 %v191, %v343
  %v361 = vmul.f32 %v194, %v344
  %v362 = vmul.f32 %v199, %v345
  %v363 = vmul.f32 %v202, %v346
  %v364 = vmul.f32 %v207, %v347
  %365 = vst [vmem:[%s3] sm:$0xff] %v348
  %366 = vst [vmem:[%s3 + $0x8] sm:$0xff] %v349
  %367 = vst [vmem:[%s3 + $0x10] sm:$0xff] %v350
  %368 = vst [vmem:[%s3 + $0x18] sm:$0xff] %v351
  %369 = vst [vmem:[%s3 + $0x20] sm:$0xff] %v352
  %370 = vst [vmem:[%s3 + $0x28] sm:$0xff] %v353
  %371 = vst [vmem:[%s3 + $0x30] sm:$0xff] %v354
  %372 = vst [vmem:[%s3 + $0x38] sm:$0xff] %v355
  %373 = vst [vmem:[%s3 + $0x40] sm:$0xff] %v356
  %374 = vst [vmem:[%s3 + $0x48] sm:$0xff] %v357
  %375 = vst [vmem:[%s3 + $0x50] sm:$0xff] %v358
  %376 = vst [vmem:[%s3 + $0x58] sm:$0xff] %v359
  %377 = vst [vmem:[%s3 + $0x60] sm:$0xff] %v360
  %378 = vst [vmem:[%s3 + $0x68] sm:$0xff] %v361
  %379 = vst [vmem:[%s3 + $0x70] sm:$0xff] %v362
  %380 = vst [vmem:[%s3 + $0x78] sm:$0xff] %v363
  %381 = vst [vmem:[%s3 + $0x80] sm:$0xff] %v364
  // Predicated region
  $region14: #{resnet50_vit_forward.40} parent=0 // pred_check
    _
  $region15: #{resnet50_vit_forward.40} parent=0 // pred_check_branch
    %383 = sbr.rel (0) target = $region17
  $region16: #{resnet50_vit_forward.40} parent=0 // pred_region
    _
  $region17: #{resnet50_vit_forward.40} parent=0 // pred_fallthru
    _
  // Predicated region
  $region18: #{resnet50_vit_forward.40} parent=0 // pred_check
    _
  $region19: #{resnet50_vit_forward.40} parent=0 // pred_check_branch
    %385 = sbr.rel (0) target = $region21
  $region20: #{resnet50_vit_forward.40} parent=0 // pred_region
    _
  $region21: #{resnet50_vit_forward.40} parent=0 // pred_fallthru
    _

// kernel: resnet50_vit_forward.39
$region0: #{resnet50_vit_forward.39}
  #allocation0 [shape = 'u32[]', space=smem, size = 0x4, offset = 0x4, fixed_abs, tag = 'smem constant byte address 0x4 - core index']
  #allocation1 [shape = 'u32[144,128]{1,0:T(1,128)}', space=vmem, size = 0x12000, scoped, tag = 'internal scratch']
  %s0 = inlined_call_operand.vmem [shape: f32[136,32], index: 0, kind: input, shape index: {}]
  %s1 = inlined_call_operand.vmem [shape: bf16[32,64], index: 1, kind: input, shape index: {}]
  %s2 = inlined_call_operand.vmem [shape: f32[1,64], index: 2, kind: input, shape index: {}]
  %s3 = inlined_call_operand.vmem [shape: f32[136,64], index: 3, kind: input, shape index: {}]
  %s4 = inlined_call_operand.vmem [shape: f32[1,64], index: 4, kind: input, shape index: {}]
  %s5 = inlined_call_operand.vmem [shape: f32[1,64], index: 5, kind: input, shape index: {}]
  %s6 = inlined_call_operand.vmem [shape: f32[136,64], index: 6, kind: output, shape index: {}]
  %s7 = sld [smem:[#allocation0]]
  $region34: #{resnet50_vit_forward.39} parent=0
    _
  %s9 = ssub.s32 1, %s7
  %s10 = scalar_select 0, %s9, %s7
  // Predicated region
  $region2: #{resnet50_vit_forward.39} parent=0 // pred_check
    _
  $region3: #{resnet50_vit_forward.39} parent=0 // pred_check_branch
    %12 = sbr.rel (0) target = $region5
  $region4: #{resnet50_vit_forward.39} parent=0 // pred_region
    _
  $region5: #{resnet50_vit_forward.39} parent=0 // pred_fallthru
    _
  // Predicated region
  $region6: #{resnet50_vit_forward.39} parent=0 // pred_check
    _
  $region7: #{resnet50_vit_forward.39} parent=0 // pred_check_branch
    %14 = sbr.rel (0) target = $region9
  $region8: #{resnet50_vit_forward.39} parent=0 // pred_region
    _
  $region9: #{resnet50_vit_forward.39} parent=0 // pred_fallthru
    _
  // Predicated region
  $region10: #{resnet50_vit_forward.39} parent=0 // pred_check
    _
  $region11: #{resnet50_vit_forward.39} parent=0 // pred_check_branch
    %16 = sbr.rel (0) target = $region13
  $region12: #{resnet50_vit_forward.39} parent=0 // pred_region
    _
  $region13: #{resnet50_vit_forward.39} parent=0 // pred_fallthru
    _
  // Predicated region
  $region14: #{resnet50_vit_forward.39} parent=0 // pred_check
    _
  $region15: #{resnet50_vit_forward.39} parent=0 // pred_check_branch
    %18 = sbr.rel (0) target = $region17
  $region16: #{resnet50_vit_forward.39} parent=0 // pred_region
    _
  $region17: #{resnet50_vit_forward.39} parent=0 // pred_fallthru
    _
  // Predicated region
  $region18: #{resnet50_vit_forward.39} parent=0 // pred_check
    _
  $region19: #{resnet50_vit_forward.39} parent=0 // pred_check_branch
    %20 = sbr.rel (0) target = $region21
  $region20: #{resnet50_vit_forward.39} parent=0 // pred_region
    _
  $region21: #{resnet50_vit_forward.39} parent=0 // pred_fallthru
    _
  // Predicated region
  $region22: #{resnet50_vit_forward.39} parent=0 // pred_check
    _
  $region23: #{resnet50_vit_forward.39} parent=0 // pred_check_branch
    %22 = sbr.rel (0) target = $region25
  $region24: #{resnet50_vit_forward.39} parent=0 // pred_region
    _
  $region25: #{resnet50_vit_forward.39} parent=0 // pred_fallthru
    _
  %v24 = vld [vmem:[%s0] sm:$0xff]
  %v25 = vld [vmem:[%s0 + $0x8] sm:$0xff]
  %v26 = vld [vmem:[%s0 + $0x10] sm:$0xff]
  %v27 = vld [vmem:[%s0 + $0x18] sm:$0xff]
  %v28 = vld [vmem:[%s0 + $0x20] sm:$0xff]
  %v29 = vld [vmem:[%s0 + $0x28] sm:$0xff]
  %v30 = vld [vmem:[%s0 + $0x30] sm:$0xff]
  %v31 = vld [vmem:[%s0 + $0x38] sm:$0xff]
  %v32 = vld [vmem:[%s0 + $0x40] sm:$0xff]
  %v33 = vld [vmem:[%s0 + $0x48] sm:$0xff]
  %v34 = vld [vmem:[%s0 + $0x50] sm:$0xff]
  %v35 = vld [vmem:[%s0 + $0x58] sm:$0xff]
  %v36 = vld [vmem:[%s0 + $0x60] sm:$0xff]
  %v37 = vld [vmem:[%s0 + $0x68] sm:$0xff]
  %v38 = vld [vmem:[%s0 + $0x70] sm:$0xff]
  %v39 = vld [vmem:[%s0 + $0x78] sm:$0xff]
  %v40 = vld [vmem:[%s0 + $0x80] sm:$0xff]
  %v41 = vpack.c.bf16 %v25, %v24
  %v42 = vpack.c.bf16 %v27, %v26
  %v43 = vpack.c.bf16 %v29, %v28
  %v44 = vpack.c.bf16 %v31, %v30
  %v45 = vpack.c.bf16 %v33, %v32
  %v46 = vpack.c.bf16 %v35, %v34
  %v47 = vpack.c.bf16 %v37, %v36
  %v48 = vpack.c.bf16 %v39, %v38
  %v49 = vpack.c.bf16 %v40, %v40
  %v50 = vld [vmem:[%s1] sm:$0xf]
  %v51 = vld [vmem:[%s1 + $0x4] sm:$0xf]
  %v52 = vld [vmem:[%s1 + $0x8] sm:$0xf]
  %v53 = vld [vmem:[%s1 + $0xc] sm:$0xf]
  %v54 = vld [vmem:[%s2] sm:$0x1]
  %v56 = vlaneseq
  %v57 = vshrl.u32 %v56, 7
  %v58 = vsub.s32 0, %v57
  %v59 = vrot.slane %v54, %v58
  %v65 = vunpack.c.l.b16 %v50
  %v66 = vunpack.c.l.b16 %v51
  %v67 = vunpack.c.l.b16 %v52
  %v68 = vunpack.c.l.b16 %v53
  %v69 = vpack.c.b16 %v66, %v65
  %v70 = vpack.c.b16 %v68, %v67
  %vm73 = vcmask 261120
  %v75 = vsel %vm73, %v41, 0
  %v78 = vsel %vm73, %v42, 0
  %v81 = vsel %vm73, %v43, 0
  %v84 = vsel %vm73, %v44, 0
  %v87 = vsel %vm73, %v45, 0
  %v90 = vsel %vm73, %v46, 0
  %v93 = vsel %vm73, %v47, 0
  %v96 = vsel %vm73, %v48, 0
  %v99 = vsel %vm73, %v49, 0
  %101 = vmatprep.subr.bf16.mxu0 0
  %102 = vmatpush1.bf16.msra.mxu0 %v69
  %103 = vmatprep.subr.bf16.mxu0 0
  %104 = vmatpush1.bf16.msra.mxu0 %v70
  %105 = vmatprep.subr.bf16.mxu0 0
  %106 = vmatpush1.bf16.msra.mxu0 0
  %107 = vmatprep.subr.bf16.mxu0 0
  %108 = vmatpush1.bf16.msra.mxu0 0
  %109 = vmatprep.subr.bf16.mxu0 0
  %110 = vmatpush1.bf16.msra.mxu0 0
  %111 = vmatprep.subr.bf16.mxu0 0
  %112 = vmatpush1.bf16.msra.mxu0 0
  %113 = vmatprep.subr.bf16.mxu0 0
  %114 = vmatpush1.bf16.msra.mxu0 0
  %115 = vmatprep.subr.bf16.mxu0 0
  %116 = vmatpush1.bf16.msra.mxu0 0
  %117 = vmatprep.subr.bf16.mxu0 0
  %118 = vmatpush1.bf16.msra.mxu0 0
  %119 = vmatprep.subr.bf16.mxu0 0
  %120 = vmatpush1.bf16.msra.mxu0 0
  %121 = vmatprep.subr.bf16.mxu0 0
  %122 = vmatpush1.bf16.msra.mxu0 0
  %123 = vmatprep.subr.bf16.mxu0 0
  %124 = vmatpush1.bf16.msra.mxu0 0
  %125 = vmatprep.subr.bf16.mxu0 0
  %126 = vmatpush1.bf16.msra.mxu0 0
  %127 = vmatprep.subr.bf16.mxu0 0
  %128 = vmatpush1.bf16.msra.mxu0 0
  %129 = vmatprep.subr.bf16.mxu0 0
  %130 = vmatpush1.bf16.msra.mxu0 0
  %131 = vmatprep.subr.bf16.mxu0 0
  %132 = vmatpush1.bf16.msra.mxu0 0
  %133 = vmatprep.mubr.bf16.mxu0 0
  %134 = vmatmul.mubr.bf16.gmra.mrb[0].mxu0 %v75
  %v135 = vpop.f32.mrb[0].mxu0
  %v136 = vadd.f32 %v59, %v135
  %v137 = vpop.f32.mrb[0].mxu0
  %v138 = vpop.f32.mrb[0].mxu0
  %v139 = vadd.f32 %v59, %v138
  %v140 = vpop.f32.mrb[0].mxu0
  %141 = vmatprep.mubr.bf16.mxu0 0
  %142 = vmatmul.mubr.bf16.gmra.mrb[0].mxu0 %v78
  %v143 = vpop.f32.mrb[0].mxu0
  %v144 = vadd.f32 %v59, %v143
  %v145 = vpop.f32.mrb[0].mxu0
  %v146 = vpop.f32.mrb[0].mxu0
  %v147 = vadd.f32 %v59, %v146
  %v148 = vpop.f32.mrb[0].mxu0
  %149 = vmatprep.mubr.bf16.mxu0 0
  %150 = vmatmul.mubr.bf16.gmra.mrb[0].mxu0 %v81
  %v151 = vpop.f32.mrb[0].mxu0
  %v152 = vadd.f32 %v59, %v151
  %v153 = vpop.f32.mrb[0].mxu0
  %v154 = vpop.f32.mrb[0].mxu0
  %v155 = vadd.f32 %v59, %v154
  %v156 = vpop.f32.mrb[0].mxu0
  %157 = vmatprep.mubr.bf16.mxu0 0
  %158 = vmatmul.mubr.bf16.gmra.mrb[0].mxu0 %v84
  %v159 = vpop.f32.mrb[0].mxu0
  %v160 = vadd.f32 %v59, %v159
  %v161 = vpop.f32.mrb[0].mxu0
  %v162 = vpop.f32.mrb[0].mxu0
  %v163 = vadd.f32 %v59, %v162
  %v164 = vpop.f32.mrb[0].mxu0
  %165 = vmatprep.mubr.bf16.mxu0 0
  %166 = vmatmul.mubr.bf16.gmra.mrb[0].mxu0 %v87
  %v167 = vpop.f32.mrb[0].mxu0
  %v168 = vadd.f32 %v59, %v167
  %v169 = vpop.f32.mrb[0].mxu0
  %v170 = vpop.f32.mrb[0].mxu0
  %v171 = vadd.f32 %v59, %v170
  %v172 = vpop.f32.mrb[0].mxu0
  %173 = vmatprep.mubr.bf16.mxu0 0
  %174 = vmatmul.mubr.bf16.gmra.mrb[0].mxu0 %v90
  %v175 = vpop.f32.mrb[0].mxu0
  %v176 = vadd.f32 %v59, %v175
  %v177 = vpop.f32.mrb[0].mxu0
  %v178 = vpop.f32.mrb[0].mxu0
  %v179 = vadd.f32 %v59, %v178
  %v180 = vpop.f32.mrb[0].mxu0
  %181 = vmatprep.mubr.bf16.mxu0 0
  %182 = vmatmul.mubr.bf16.gmra.mrb[0].mxu0 %v93
  %v183 = vpop.f32.mrb[0].mxu0
  %v184 = vadd.f32 %v59, %v183
  %v185 = vpop.f32.mrb[0].mxu0
  %v186 = vpop.f32.mrb[0].mxu0
  %v187 = vadd.f32 %v59, %v186
  %v188 = vpop.f32.mrb[0].mxu0
  %189 = vmatprep.mubr.bf16.mxu0 0
  %190 = vmatmul.mubr.bf16.gmra.mrb[0].mxu0 %v96
  %v191 = vpop.f32.mrb[0].mxu0
  %v192 = vadd.f32 %v59, %v191
  %v193 = vpop.f32.mrb[0].mxu0
  %v194 = vpop.f32.mrb[0].mxu0
  %v195 = vadd.f32 %v59, %v194
  %v196 = vpop.f32.mrb[0].mxu0
  %197 = vmatprep.mubr.bf16.mxu0 0
  %198 = vmatmul.mubr.bf16.gmra.mrb[0].mxu0 %v99
  %v199 = vpop.f32.mrb[0].mxu0
  %v200 = vadd.f32 %v59, %v199
  %v201 = vpop.f32.mrb[0].mxu0
  %v202 = vpop.f32.mrb[0].mxu0
  %v203 = vpop.f32.mrb[0].mxu0
  %204 = vdwg.mxu0
  %v205 = vld [vmem:[%s3] sm:$0xff]
  %v206 = vld [vmem:[%s3 + $0x8] sm:$0xff]
  %v207 = vld [vmem:[%s3 + $0x10] sm:$0xff]
  %v208 = vld [vmem:[%s3 + $0x18] sm:$0xff]
  %v209 = vld [vmem:[%s3 + $0x20] sm:$0xff]
  %v210 = vld [vmem:[%s3 + $0x28] sm:$0xff]
  %v211 = vld [vmem:[%s3 + $0x30] sm:$0xff]
  %v212 = vld [vmem:[%s3 + $0x38] sm:$0xff]
  %v213 = vld [vmem:[%s3 + $0x40] sm:$0xff]
  %v214 = vld [vmem:[%s3 + $0x48] sm:$0xff]
  %v215 = vld [vmem:[%s3 + $0x50] sm:$0xff]
  %v216 = vld [vmem:[%s3 + $0x58] sm:$0xff]
  %v217 = vld [vmem:[%s3 + $0x60] sm:$0xff]
  %v218 = vld [vmem:[%s3 + $0x68] sm:$0xff]
  %v219 = vld [vmem:[%s3 + $0x70] sm:$0xff]
  %v220 = vld [vmem:[%s3 + $0x78] sm:$0xff]
  %v221 = vld [vmem:[%s3 + $0x80] sm:$0xff]
  %v222 = vadd.f32 %v136, %v205
  %v223 = vadd.f32 %v139, %v206
  %v224 = vadd.f32 %v144, %v207
  %v225 = vadd.f32 %v147, %v208
  %v226 = vadd.f32 %v152, %v209
  %v227 = vadd.f32 %v155, %v210
  %v228 = vadd.f32 %v160, %v211
  %v229 = vadd.f32 %v163, %v212
  %v230 = vadd.f32 %v168, %v213
  %v231 = vadd.f32 %v171, %v214
  %v232 = vadd.f32 %v176, %v215
  %v233 = vadd.f32 %v179, %v216
  %v234 = vadd.f32 %v184, %v217
  %v235 = vadd.f32 %v187, %v218
  %v236 = vadd.f32 %v192, %v219
  %v237 = vadd.f32 %v195, %v220
  %v238 = vadd.f32 %v200, %v221
  %vm239 = vcmask 523264
  %v240 = vsel %vm239, %v222, 0.0
  %241 = vadd.xlane.f32.xlu0 %v240
  %v242 = vpop.xlane.xlu0 %241
  %v243 = vsel %vm239, %v223, 0.0
  %244 = vadd.xlane.f32.xlu0 %v243
  %v245 = vpop.xlane.xlu0 %244
  %v246 = vsel %vm239, %v224, 0.0
  %247 = vadd.xlane.f32.xlu0 %v246
  %v248 = vpop.xlane.xlu0 %247
  %v249 = vsel %vm239, %v225, 0.0
  %250 = vadd.xlane.f32.xlu0 %v249
  %v251 = vpop.xlane.xlu0 %250
  %v252 = vsel %vm239, %v226, 0.0
  %253 = vadd.xlane.f32.xlu0 %v252
  %v254 = vpop.xlane.xlu0 %253
  %v255 = vsel %vm239, %v227, 0.0
  %256 = vadd.xlane.f32.xlu0 %v255
  %v257 = vpop.xlane.xlu0 %256
  %v258 = vsel %vm239, %v228, 0.0
  %259 = vadd.xlane.f32.xlu0 %v258
  %v260 = vpop.xlane.xlu0 %259
  %v261 = vsel %vm239, %v229, 0.0
  %262 = vadd.xlane.f32.xlu0 %v261
  %v263 = vpop.xlane.xlu0 %262
  %v264 = vsel %vm239, %v230, 0.0
  %265 = vadd.xlane.f32.xlu0 %v264
  %v266 = vpop.xlane.xlu0 %265
  %v267 = vsel %vm239, %v231, 0.0
  %268 = vadd.xlane.f32.xlu0 %v267
  %v269 = vpop.xlane.xlu0 %268
  %v270 = vsel %vm239, %v232, 0.0
  %271 = vadd.xlane.f32.xlu0 %v270
  %v272 = vpop.xlane.xlu0 %271
  %v273 = vsel %vm239, %v233, 0.0
  %274 = vadd.xlane.f32.xlu0 %v273
  %v275 = vpop.xlane.xlu0 %274
  %v276 = vsel %vm239, %v234, 0.0
  %277 = vadd.xlane.f32.xlu0 %v276
  %v278 = vpop.xlane.xlu0 %277
  %v279 = vsel %vm239, %v235, 0.0
  %280 = vadd.xlane.f32.xlu0 %v279
  %v281 = vpop.xlane.xlu0 %280
  %v282 = vsel %vm239, %v236, 0.0
  %283 = vadd.xlane.f32.xlu0 %v282
  %v284 = vpop.xlane.xlu0 %283
  %v285 = vsel %vm239, %v237, 0.0
  %286 = vadd.xlane.f32.xlu0 %v285
  %v287 = vpop.xlane.xlu0 %286
  %v288 = vsel %vm239, %v238, 0.0
  %289 = vadd.xlane.f32.xlu0 %v288
  %v290 = vpop.xlane.xlu0 %289
  %v291 = vrcp.pop 64.0
  %v292 = vmul.f32 %v242, %v291
  %v293 = vmul.f32 %v245, %v291
  %v294 = vmul.f32 %v248, %v291
  %v295 = vmul.f32 %v251, %v291
  %v296 = vmul.f32 %v254, %v291
  %v297 = vmul.f32 %v257, %v291
  %v298 = vmul.f32 %v260, %v291
  %v299 = vmul.f32 %v263, %v291
  %v300 = vmul.f32 %v266, %v291
  %v301 = vmul.f32 %v269, %v291
  %v302 = vmul.f32 %v272, %v291
  %v303 = vmul.f32 %v275, %v291
  %v304 = vmul.f32 %v278, %v291
  %v305 = vmul.f32 %v281, %v291
  %v306 = vmul.f32 %v284, %v291
  %v307 = vmul.f32 %v287, %v291
  %v308 = vmul.f32 %v290, %v291
  %v309 = vsub.f32 %v222, %v292
  %v310 = vsub.f32 %v223, %v293
  %v311 = vsub.f32 %v224, %v294
  %v312 = vsub.f32 %v225, %v295
  %v313 = vsub.f32 %v226, %v296
  %v314 = vsub.f32 %v227, %v297
  %v315 = vsub.f32 %v228, %v298
  %v316 = vsub.f32 %v229, %v299
  %v317 = vsub.f32 %v230, %v300
  %v318 = vsub.f32 %v231, %v301
  %v319 = vsub.f32 %v232, %v302
  %v320 = vsub.f32 %v233, %v303
  %v321 = vsub.f32 %v234, %v304
  %v322 = vsub.f32 %v235, %v305
  %v323 = vsub.f32 %v236, %v306
  %v324 = vsub.f32 %v237, %v307
  %v325 = vsub.f32 %v238, %v308
  %v326 = vmul.f32 %v309, %v309
  %v327 = vmul.f32 %v310, %v310
  %v328 = vmul.f32 %v311, %v311
  %v329 = vmul.f32 %v312, %v312
  %v330 = vmul.f32 %v313, %v313
  %v331 = vmul.f32 %v314, %v314
  %v332 = vmul.f32 %v315, %v315
  %v333 = vmul.f32 %v316, %v316
  %v334 = vmul.f32 %v317, %v317
  %v335 = vmul.f32 %v318, %v318
  %v336 = vmul.f32 %v319, %v319
  %v337 = vmul.f32 %v320, %v320
  %v338 = vmul.f32 %v321, %v321
  %v339 = vmul.f32 %v322, %v322
  %v340 = vmul.f32 %v323, %v323
  %v341 = vmul.f32 %v324, %v324
  %v342 = vmul.f32 %v325, %v325
  %v343 = vsel %vm239, %v326, 0.0
  %344 = vadd.xlane.f32.xlu0 %v343
  %v345 = vpop.xlane.xlu0 %344
  %v346 = vsel %vm239, %v327, 0.0
  %347 = vadd.xlane.f32.xlu0 %v346
  %v348 = vpop.xlane.xlu0 %347
  %v349 = vsel %vm239, %v328, 0.0
  %350 = vadd.xlane.f32.xlu0 %v349
  %v351 = vpop.xlane.xlu0 %350
  %v352 = vsel %vm239, %v329, 0.0
  %353 = vadd.xlane.f32.xlu0 %v352
  %v354 = vpop.xlane.xlu0 %353
  %v355 = vsel %vm239, %v330, 0.0
  %356 = vadd.xlane.f32.xlu0 %v355
  %v357 = vpop.xlane.xlu0 %356
  %v358 = vsel %vm239, %v331, 0.0
  %359 = vadd.xlane.f32.xlu0 %v358
  %v360 = vpop.xlane.xlu0 %359
  %v361 = vsel %vm239, %v332, 0.0
  %362 = vadd.xlane.f32.xlu0 %v361
  %v363 = vpop.xlane.xlu0 %362
  %v364 = vsel %vm239, %v333, 0.0
  %365 = vadd.xlane.f32.xlu0 %v364
  %v366 = vpop.xlane.xlu0 %365
  %v367 = vsel %vm239, %v334, 0.0
  %368 = vadd.xlane.f32.xlu0 %v367
  %v369 = vpop.xlane.xlu0 %368
  %v370 = vsel %vm239, %v335, 0.0
  %371 = vadd.xlane.f32.xlu0 %v370
  %v372 = vpop.xlane.xlu0 %371
  %v373 = vsel %vm239, %v336, 0.0
  %374 = vadd.xlane.f32.xlu0 %v373
  %v375 = vpop.xlane.xlu0 %374
  %v376 = vsel %vm239, %v337, 0.0
  %377 = vadd.xlane.f32.xlu0 %v376
  %v378 = vpop.xlane.xlu0 %377
  %v379 = vsel %vm239, %v338, 0.0
  %380 = vadd.xlane.f32.xlu0 %v379
  %v381 = vpop.xlane.xlu0 %380
  %v382 = vsel %vm239, %v339, 0.0
  %383 = vadd.xlane.f32.xlu0 %v382
  %v384 = vpop.xlane.xlu0 %383
  %v385 = vsel %vm239, %v340, 0.0
  %386 = vadd.xlane.f32.xlu0 %v385
  %v387 = vpop.xlane.xlu0 %386
  %v388 = vsel %vm239, %v341, 0.0
  %389 = vadd.xlane.f32.xlu0 %v388
  %v390 = vpop.xlane.xlu0 %389
  %v391 = vsel %vm239, %v342, 0.0
  %392 = vadd.xlane.f32.xlu0 %v391
  %v393 = vpop.xlane.xlu0 %392
  %v394 = vmul.f32 %v345, %v291
  %v395 = vmul.f32 %v348, %v291
  %v396 = vmul.f32 %v351, %v291
  %v397 = vmul.f32 %v354, %v291
  %v398 = vmul.f32 %v357, %v291
  %v399 = vmul.f32 %v360, %v291
  %v400 = vmul.f32 %v363, %v291
  %v401 = vmul.f32 %v366, %v291
  %v402 = vmul.f32 %v369, %v291
  %v403 = vmul.f32 %v372, %v291
  %v404 = vmul.f32 %v375, %v291
  %v405 = vmul.f32 %v378, %v291
  %v406 = vmul.f32 %v381, %v291
  %v407 = vmul.f32 %v384, %v291
  %v408 = vmul.f32 %v387, %v291
  %v409 = vmul.f32 %v390, %v291
  %v410 = vmul.f32 %v393, %v291
  %v411 = vadd.f32 %v394, 1e-05
  %v412 = vadd.f32 %v395, 1e-05
  %v413 = vadd.f32 %v396, 1e-05
  %v414 = vadd.f32 %v397, 1e-05
  %v415 = vadd.f32 %v398, 1e-05
  %v416 = vadd.f32 %v399, 1e-05
  %v417 = vadd.f32 %v400, 1e-05
  %v418 = vadd.f32 %v401, 1e-05
  %v419 = vadd.f32 %v402, 1e-05
  %v420 = vadd.f32 %v403, 1e-05
  %v421 = vadd.f32 %v404, 1e-05
  %v422 = vadd.f32 %v405, 1e-05
  %v423 = vadd.f32 %v406, 1e-05
  %v424 = vadd.f32 %v407, 1e-05
  %v425 = vadd.f32 %v408, 1e-05
  %v426 = vadd.f32 %v409, 1e-05
  %v427 = vadd.f32 %v410, 1e-05
  %v428 = vrsqrt.pop %v411
  %v429 = vrsqrt.pop %v412
  %v430 = vrsqrt.pop %v413
  %v431 = vrsqrt.pop %v414
  %v432 = vrsqrt.pop %v415
  %v433 = vrsqrt.pop %v416
  %v434 = vrsqrt.pop %v417
  %v435 = vrsqrt.pop %v418
  %v436 = vrsqrt.pop %v419
  %v437 = vrsqrt.pop %v420
  %v438 = vrsqrt.pop %v421
  %v439 = vrsqrt.pop %v422
  %v440 = vrsqrt.pop %v423
  %v441 = vrsqrt.pop %v424
  %v442 = vrsqrt.pop %v425
  %v443 = vrsqrt.pop %v426
  %v444 = vrsqrt.pop %v427
  %v445 = vmul.f32 %v309, %v428
  %v446 = vmul.f32 %v310, %v429
  %v447 = vmul.f32 %v311, %v430
  %v448 = vmul.f32 %v312, %v431
  %v449 = vmul.f32 %v313, %v432
  %v450 = vmul.f32 %v314, %v433
  %v451 = vmul.f32 %v315, %v434
  %v452 = vmul.f32 %v316, %v435
  %v453 = vmul.f32 %v317, %v436
  %v454 = vmul.f32 %v318, %v437
  %v455 = vmul.f32 %v319, %v438
  %v456 = vmul.f32 %v320, %v439
  %v457 = vmul.f32 %v321, %v440
  %v458 = vmul.f32 %v322, %v441
  %v459 = vmul.f32 %v323, %v442
  %v460 = vmul.f32 %v324, %v443
  %v461 = vmul.f32 %v325, %v444
  %v462 = vld [vmem:[%s4] sm:$0x1]
  %v464 = vlaneseq
  %v465 = vshrl.u32 %v464, 7
  %v466 = vsub.s32 0, %v465
  %v467 = vrot.slane %v462, %v466
  %v469 = vmul.f32 %v445, %v467
  %v470 = vmul.f32 %v446, %v467
  %v471 = vmul.f32 %v447, %v467
  %v472 = vmul.f32 %v448, %v467
  %v473 = vmul.f32 %v449, %v467
  %v474 = vmul.f32 %v450, %v467
  %v475 = vmul.f32 %v451, %v467
  %v476 = vmul.f32 %v452, %v467
  %v477 = vmul.f32 %v453, %v467
  %v478 = vmul.f32 %v454, %v467
  %v479 = vmul.f32 %v455, %v467
  %v480 = vmul.f32 %v456, %v467
  %v481 = vmul.f32 %v457, %v467
  %v482 = vmul.f32 %v458, %v467
  %v483 = vmul.f32 %v459, %v467
  %v484 = vmul.f32 %v460, %v467
  %v485 = vmul.f32 %v461, %v467
  %v486 = vld [vmem:[%s5] sm:$0x1]
  %v488 = vlaneseq
  %v489 = vshrl.u32 %v488, 7
  %v490 = vsub.s32 0, %v489
  %v491 = vrot.slane %v486, %v490
  %v493 = vadd.f32 %v469, %v491
  %v494 = vadd.f32 %v470, %v491
  %v495 = vadd.f32 %v471, %v491
  %v496 = vadd.f32 %v472, %v491
  %v497 = vadd.f32 %v473, %v491
  %v498 = vadd.f32 %v474, %v491
  %v499 = vadd.f32 %v475, %v491
  %v500 = vadd.f32 %v476, %v491
  %v501 = vadd.f32 %v477, %v491
  %v502 = vadd.f32 %v478, %v491
  %v503 = vadd.f32 %v479, %v491
  %v504 = vadd.f32 %v480, %v491
  %v505 = vadd.f32 %v481, %v491
  %v506 = vadd.f32 %v482, %v491
  %v507 = vadd.f32 %v483, %v491
  %v508 = vadd.f32 %v484, %v491
  %v509 = vadd.f32 %v485, %v491
  %510 = vst.msk [vmem:[%s6] sm:$0xff] %vm239, %v493
  %511 = vst.msk [vmem:[%s6 + $0x8] sm:$0xff] %vm239, %v494
  %512 = vst.msk [vmem:[%s6 + $0x10] sm:$0xff] %vm239, %v495
  %513 = vst.msk [vmem:[%s6 + $0x18] sm:$0xff] %vm239, %v496
  %514 = vst.msk [vmem:[%s6 + $0x20] sm:$0xff] %vm239, %v497
  %515 = vst.msk [vmem:[%s6 + $0x28] sm:$0xff] %vm239, %v498
  %516 = vst.msk [vmem:[%s6 + $0x30] sm:$0xff] %vm239, %v499
  %517 = vst.msk [vmem:[%s6 + $0x38] sm:$0xff] %vm239, %v500
  %518 = vst.msk [vmem:[%s6 + $0x40] sm:$0xff] %vm239, %v501
  %519 = vst.msk [vmem:[%s6 + $0x48] sm:$0xff] %vm239, %v502
  %520 = vst.msk [vmem:[%s6 + $0x50] sm:$0xff] %vm239, %v503
  %521 = vst.msk [vmem:[%s6 + $0x58] sm:$0xff] %vm239, %v504
  %522 = vst.msk [vmem:[%s6 + $0x60] sm:$0xff] %vm239, %v505
  %523 = vst.msk [vmem:[%s6 + $0x68] sm:$0xff] %vm239, %v506
  %524 = vst.msk [vmem:[%s6 + $0x70] sm:$0xff] %vm239, %v507
  %525 = vst.msk [vmem:[%s6 + $0x78] sm:$0xff] %vm239, %v508
  %526 = vst.msk [vmem:[%s6 + $0x80] sm:$0xff] %vm239, %v509
  // Predicated region
  $region26: #{resnet50_vit_forward.39} parent=0 // pred_check
    _
  $region27: #{resnet50_vit_forward.39} parent=0 // pred_check_branch
    %528 = sbr.rel (0) target = $region29
  $region28: #{resnet50_vit_forward.39} parent=0 // pred_region
    _
  $region29: #{resnet50_vit_forward.39} parent=0 // pred_fallthru
    _
  // Predicated region
  $region30: #{resnet50_vit_forward.39} parent=0 // pred_check
    _
  $region31: #{resnet50_vit_forward.39} parent=0 // pred_check_branch
    %530 = sbr.rel (0) target = $region33
  $region32: #{resnet50_vit_forward.39} parent=0 // pred_region
    _
  $region33: #{resnet50_vit_forward.39} parent=0 // pred_fallthru
    _

// kernel: resnet50_vit_forward.47
$region0: #{resnet50_vit_forward.47}
  #allocation0 [shape = 'u32[]', space=smem, size = 0x4, offset = 0x4, fixed_abs, tag = 'smem constant byte address 0x4 - core index']
  #allocation1 [shape = 'u32[144,128]{1,0:T(1,128)}', space=vmem, size = 0x12000, scoped, tag = 'internal scratch']
  %s0 = inlined_call_operand.vmem [shape: f32[8,64], index: 0, kind: input, shape index: {}]
  %s1 = inlined_call_operand.vmem [shape: bf16[64,10], index: 1, kind: input, shape index: {}]
  %s2 = inlined_call_operand.vmem [shape: f32[1,10], index: 2, kind: input, shape index: {}]
  %s3 = inlined_call_operand.vmem [shape: f32[8,10], index: 3, kind: output, shape index: {}]
  %s4 = sld [smem:[#allocation0]]
  $region22: #{resnet50_vit_forward.47} parent=0
    _
  %s6 = ssub.s32 1, %s4
  %s7 = scalar_select 0, %s6, %s4
  // Predicated region
  $region2: #{resnet50_vit_forward.47} parent=0 // pred_check
    _
  $region3: #{resnet50_vit_forward.47} parent=0 // pred_check_branch
    %9 = sbr.rel (0) target = $region5
  $region4: #{resnet50_vit_forward.47} parent=0 // pred_region
    _
  $region5: #{resnet50_vit_forward.47} parent=0 // pred_fallthru
    _
  // Predicated region
  $region6: #{resnet50_vit_forward.47} parent=0 // pred_check
    _
  $region7: #{resnet50_vit_forward.47} parent=0 // pred_check_branch
    %11 = sbr.rel (0) target = $region9
  $region8: #{resnet50_vit_forward.47} parent=0 // pred_region
    _
  $region9: #{resnet50_vit_forward.47} parent=0 // pred_fallthru
    _
  // Predicated region
  $region10: #{resnet50_vit_forward.47} parent=0 // pred_check
    _
  $region11: #{resnet50_vit_forward.47} parent=0 // pred_check_branch
    %13 = sbr.rel (0) target = $region13
  $region12: #{resnet50_vit_forward.47} parent=0 // pred_region
    _
  $region13: #{resnet50_vit_forward.47} parent=0 // pred_fallthru
    _
  %v15 = vld [vmem:[%s0] sm:$0xff]
  %v16 = vpack.c.bf16 %v15, %v15
  %v17 = vld [vmem:[%s1] sm:$0xf]
  %v18 = vld [vmem:[%s1 + $0x4] sm:$0xf]
  %v19 = vld [vmem:[%s1 + $0x8] sm:$0xf]
  %v20 = vld [vmem:[%s1 + $0xc] sm:$0xf]
  %v21 = vld [vmem:[%s1 + $0x10] sm:$0xf]
  %v22 = vld [vmem:[%s1 + $0x14] sm:$0xf]
  %v23 = vld [vmem:[%s1 + $0x18] sm:$0xf]
  %v24 = vld [vmem:[%s1 + $0x1c] sm:$0xf]
  %v25 = vld [vmem:[%s2] sm:$0x1]
  %v27 = vlaneseq
  %v28 = vshrl.u32 %v27, 7
  %v29 = vsub.s32 0, %v28
  %v30 = vrot.slane %v25, %v29
  %v40 = vunpack.c.l.b16 %v17
  %v41 = vunpack.c.l.b16 %v18
  %v42 = vunpack.c.l.b16 %v19
  %v43 = vunpack.c.l.b16 %v20
  %v44 = vunpack.c.l.b16 %v21
  %v45 = vunpack.c.l.b16 %v22
  %v46 = vunpack.c.l.b16 %v23
  %v47 = vunpack.c.l.b16 %v24
  %v48 = vpack.c.b16 %v41, %v40
  %v49 = vpack.c.b16 %v43, %v42
  %v50 = vpack.c.b16 %v45, %v44
  %v51 = vpack.c.b16 %v47, %v46
  %vm56 = vcmask 523264
  %v58 = vsel %vm56, %v16, 0
  %60 = vmatprep.subr.bf16.mxu0 0
  %61 = vmatpush1.bf16.msra.mxu0 %v48
  %62 = vmatprep.subr.bf16.mxu0 0
  %63 = vmatpush1.bf16.msra.mxu0 %v49
  %64 = vmatprep.subr.bf16.mxu0 0
  %65 = vmatpush1.bf16.msra.mxu0 %v50
  %66 = vmatprep.subr.bf16.mxu0 0
  %67 = vmatpush1.bf16.msra.mxu0 %v51
  %68 = vmatprep.subr.bf16.mxu0 0
  %69 = vmatpush1.bf16.msra.mxu0 0
  %70 = vmatprep.subr.bf16.mxu0 0
  %71 = vmatpush1.bf16.msra.mxu0 0
  %72 = vmatprep.subr.bf16.mxu0 0
  %73 = vmatpush1.bf16.msra.mxu0 0
  %74 = vmatprep.subr.bf16.mxu0 0
  %75 = vmatpush1.bf16.msra.mxu0 0
  %76 = vmatprep.subr.bf16.mxu0 0
  %77 = vmatpush1.bf16.msra.mxu0 0
  %78 = vmatprep.subr.bf16.mxu0 0
  %79 = vmatpush1.bf16.msra.mxu0 0
  %80 = vmatprep.subr.bf16.mxu0 0
  %81 = vmatpush1.bf16.msra.mxu0 0
  %82 = vmatprep.subr.bf16.mxu0 0
  %83 = vmatpush1.bf16.msra.mxu0 0
  %84 = vmatprep.subr.bf16.mxu0 0
  %85 = vmatpush1.bf16.msra.mxu0 0
  %86 = vmatprep.subr.bf16.mxu0 0
  %87 = vmatpush1.bf16.msra.mxu0 0
  %88 = vmatprep.subr.bf16.mxu0 0
  %89 = vmatpush1.bf16.msra.mxu0 0
  %90 = vmatprep.subr.bf16.mxu0 0
  %91 = vmatpush1.bf16.msra.mxu0 0
  %92 = vmatprep.mubr.bf16.mxu0 0
  %93 = vmatmul.mubr.bf16.gmra.mrb[0].mxu0 %v58
  %v94 = vpop.f32.mrb[0].mxu0
  %v95 = vadd.f32 %v30, %v94
  %v96 = vpop.f32.mrb[0].mxu0
  %v97 = vpop.f32.mrb[0].mxu0
  %v98 = vpop.f32.mrb[0].mxu0
  %99 = vdwg.mxu0
  %vm100 = vcmask 80896
  %101 = vst.msk [vmem:[%s3] sm:$0xff] %vm100, %v95
  // Predicated region
  $region14: #{resnet50_vit_forward.47} parent=0 // pred_check
    _
  $region15: #{resnet50_vit_forward.47} parent=0 // pred_check_branch
    %103 = sbr.rel (0) target = $region17
  $region16: #{resnet50_vit_forward.47} parent=0 // pred_region
    _
  $region17: #{resnet50_vit_forward.47} parent=0 // pred_fallthru
    _
  // Predicated region
  $region18: #{resnet50_vit_forward.47} parent=0 // pred_check
    _
  $region19: #{resnet50_vit_forward.47} parent=0 // pred_check_branch
    %105 = sbr.rel (0) target = $region21
  $region20: #{resnet50_vit_forward.47} parent=0 // pred_region
    _
  $region21: #{resnet50_vit_forward.47} parent=0 // pred_fallthru
    _

// kernel: resnet50_vit_forward.41
$region0: #{resnet50_vit_forward.41}
  #allocation0 [shape = 'u32[]', space=smem, size = 0x4, offset = 0x4, fixed_abs, tag = 'smem constant byte address 0x4 - core index']
  #allocation1 [shape = 'u32[144,128]{1,0:T(1,128)}', space=vmem, size = 0x12000, scoped, tag = 'internal scratch']
  %s0 = inlined_call_operand.vmem [shape: f32[136,128], index: 0, kind: input, shape index: {}]
  %s1 = inlined_call_operand.vmem [shape: bf16[128,64], index: 1, kind: input, shape index: {}]
  %s2 = inlined_call_operand.vmem [shape: f32[1,64], index: 2, kind: input, shape index: {}]
  %s3 = inlined_call_operand.vmem [shape: f32[136,64], index: 3, kind: input, shape index: {}]
  %s4 = inlined_call_operand.vmem [shape: f32[1,64], index: 4, kind: input, shape index: {}]
  %s5 = inlined_call_operand.vmem [shape: f32[1,64], index: 5, kind: input, shape index: {}]
  %s6 = inlined_call_operand.vmem [shape: f32[136,64], index: 6, kind: output, shape index: {}]
  %s7 = sld [smem:[#allocation0]]
  $region34: #{resnet50_vit_forward.41} parent=0
    _
  %s9 = ssub.s32 1, %s7
  %s10 = scalar_select 0, %s9, %s7
  // Predicated region
  $region2: #{resnet50_vit_forward.41} parent=0 // pred_check
    _
  $region3: #{resnet50_vit_forward.41} parent=0 // pred_check_branch
    %12 = sbr.rel (0) target = $region5
  $region4: #{resnet50_vit_forward.41} parent=0 // pred_region
    _
  $region5: #{resnet50_vit_forward.41} parent=0 // pred_fallthru
    _
  // Predicated region
  $region6: #{resnet50_vit_forward.41} parent=0 // pred_check
    _
  $region7: #{resnet50_vit_forward.41} parent=0 // pred_check_branch
    %14 = sbr.rel (0) target = $region9
  $region8: #{resnet50_vit_forward.41} parent=0 // pred_region
    _
  $region9: #{resnet50_vit_forward.41} parent=0 // pred_fallthru
    _
  // Predicated region
  $region10: #{resnet50_vit_forward.41} parent=0 // pred_check
    _
  $region11: #{resnet50_vit_forward.41} parent=0 // pred_check_branch
    %16 = sbr.rel (0) target = $region13
  $region12: #{resnet50_vit_forward.41} parent=0 // pred_region
    _
  $region13: #{resnet50_vit_forward.41} parent=0 // pred_fallthru
    _
  // Predicated region
  $region14: #{resnet50_vit_forward.41} parent=0 // pred_check
    _
  $region15: #{resnet50_vit_forward.41} parent=0 // pred_check_branch
    %18 = sbr.rel (0) target = $region17
  $region16: #{resnet50_vit_forward.41} parent=0 // pred_region
    _
  $region17: #{resnet50_vit_forward.41} parent=0 // pred_fallthru
    _
  // Predicated region
  $region18: #{resnet50_vit_forward.41} parent=0 // pred_check
    _
  $region19: #{resnet50_vit_forward.41} parent=0 // pred_check_branch
    %20 = sbr.rel (0) target = $region21
  $region20: #{resnet50_vit_forward.41} parent=0 // pred_region
    _
  $region21: #{resnet50_vit_forward.41} parent=0 // pred_fallthru
    _
  // Predicated region
  $region22: #{resnet50_vit_forward.41} parent=0 // pred_check
    _
  $region23: #{resnet50_vit_forward.41} parent=0 // pred_check_branch
    %22 = sbr.rel (0) target = $region25
  $region24: #{resnet50_vit_forward.41} parent=0 // pred_region
    _
  $region25: #{resnet50_vit_forward.41} parent=0 // pred_fallthru
    _
  %v24 = vld [vmem:[%s0] sm:$0xff]
  %v25 = vld [vmem:[%s0 + $0x8] sm:$0xff]
  %v26 = vld [vmem:[%s0 + $0x10] sm:$0xff]
  %v27 = vld [vmem:[%s0 + $0x18] sm:$0xff]
  %v28 = vld [vmem:[%s0 + $0x20] sm:$0xff]
  %v29 = vld [vmem:[%s0 + $0x28] sm:$0xff]
  %v30 = vld [vmem:[%s0 + $0x30] sm:$0xff]
  %v31 = vld [vmem:[%s0 + $0x38] sm:$0xff]
  %v32 = vld [vmem:[%s0 + $0x40] sm:$0xff]
  %v33 = vld [vmem:[%s0 + $0x48] sm:$0xff]
  %v34 = vld [vmem:[%s0 + $0x50] sm:$0xff]
  %v35 = vld [vmem:[%s0 + $0x58] sm:$0xff]
  %v36 = vld [vmem:[%s0 + $0x60] sm:$0xff]
  %v37 = vld [vmem:[%s0 + $0x68] sm:$0xff]
  %v38 = vld [vmem:[%s0 + $0x70] sm:$0xff]
  %v39 = vld [vmem:[%s0 + $0x78] sm:$0xff]
  %v40 = vld [vmem:[%s0 + $0x80] sm:$0xff]
  %v41 = vpack.c.bf16 %v25, %v24
  %v42 = vpack.c.bf16 %v27, %v26
  %v43 = vpack.c.bf16 %v29, %v28
  %v44 = vpack.c.bf16 %v31, %v30
  %v45 = vpack.c.bf16 %v33, %v32
  %v46 = vpack.c.bf16 %v35, %v34
  %v47 = vpack.c.bf16 %v37, %v36
  %v48 = vpack.c.bf16 %v39, %v38
  %v49 = vpack.c.bf16 %v40, %v40
  %v50 = vld [vmem:[%s1] sm:$0xf]
  %v51 = vld [vmem:[%s1 + $0x4] sm:$0xf]
  %v52 = vld [vmem:[%s1 + $0x8] sm:$0xf]
  %v53 = vld [vmem:[%s1 + $0xc] sm:$0xf]
  %v54 = vld [vmem:[%s1 + $0x10] sm:$0xf]
  %v55 = vld [vmem:[%s1 + $0x14] sm:$0xf]
  %v56 = vld [vmem:[%s1 + $0x18] sm:$0xf]
  %v57 = vld [vmem:[%s1 + $0x1c] sm:$0xf]
  %v58 = vld [vmem:[%s1 + $0x20] sm:$0xf]
  %v59 = vld [vmem:[%s1 + $0x24] sm:$0xf]
  %v60 = vld [vmem:[%s1 + $0x28] sm:$0xf]
  %v61 = vld [vmem:[%s1 + $0x2c] sm:$0xf]
  %v62 = vld [vmem:[%s1 + $0x30] sm:$0xf]
  %v63 = vld [vmem:[%s1 + $0x34] sm:$0xf]
  %v64 = vld [vmem:[%s1 + $0x38] sm:$0xf]
  %v65 = vld [vmem:[%s1 + $0x3c] sm:$0xf]
  %v66 = vld [vmem:[%s2] sm:$0x1]
  %v68 = vlaneseq
  %v69 = vshrl.u32 %v68, 7
  %v70 = vsub.s32 0, %v69
  %v71 = vrot.slane %v66, %v70
  %v89 = vunpack.c.l.b16 %v50
  %v90 = vunpack.c.l.b16 %v51
  %v91 = vunpack.c.l.b16 %v52
  %v92 = vunpack.c.l.b16 %v53
  %v93 = vunpack.c.l.b16 %v54
  %v94 = vunpack.c.l.b16 %v55
  %v95 = vunpack.c.l.b16 %v56
  %v96 = vunpack.c.l.b16 %v57
  %v97 = vunpack.c.l.b16 %v58
  %v98 = vunpack.c.l.b16 %v59
  %v99 = vunpack.c.l.b16 %v60
  %v100 = vunpack.c.l.b16 %v61
  %v101 = vunpack.c.l.b16 %v62
  %v102 = vunpack.c.l.b16 %v63
  %v103 = vunpack.c.l.b16 %v64
  %v104 = vunpack.c.l.b16 %v65
  %v105 = vpack.c.b16 %v90, %v89
  %v106 = vpack.c.b16 %v92, %v91
  %v107 = vpack.c.b16 %v94, %v93
  %v108 = vpack.c.b16 %v96, %v95
  %v109 = vpack.c.b16 %v98, %v97
  %v110 = vpack.c.b16 %v100, %v99
  %v111 = vpack.c.b16 %v102, %v101
  %v112 = vpack.c.b16 %v104, %v103
  %121 = vmatprep.subr.bf16.mxu0 0
  %122 = vmatpush1.bf16.msra.mxu0 %v105
  %123 = vmatprep.subr.bf16.mxu0 0
  %124 = vmatpush1.bf16.msra.mxu0 %v106
  %125 = vmatprep.subr.bf16.mxu0 0
  %126 = vmatpush1.bf16.msra.mxu0 %v107
  %127 = vmatprep.subr.bf16.mxu0 0
  %128 = vmatpush1.bf16.msra.mxu0 %v108
  %129 = vmatprep.subr.bf16.mxu0 0
  %130 = vmatpush1.bf16.msra.mxu0 %v109
  %131 = vmatprep.subr.bf16.mxu0 0
  %132 = vmatpush1.bf16.msra.mxu0 %v110
  %133 = vmatprep.subr.bf16.mxu0 0
  %134 = vmatpush1.bf16.msra.mxu0 %v111
  %135 = vmatprep.subr.bf16.mxu0 0
  %136 = vmatpush1.bf16.msra.mxu0 %v112
  %137 = vmatprep.subr.bf16.mxu0 0
  %138 = vmatpush1.bf16.msra.mxu0 0
  %139 = vmatprep.subr.bf16.mxu0 0
  %140 = vmatpush1.bf16.msra.mxu0 0
  %141 = vmatprep.subr.bf16.mxu0 0
  %142 = vmatpush1.bf16.msra.mxu0 0
  %143 = vmatprep.subr.bf16.mxu0 0
  %144 = vmatpush1.bf16.msra.mxu0 0
  %145 = vmatprep.subr.bf16.mxu0 0
  %146 = vmatpush1.bf16.msra.mxu0 0
  %147 = vmatprep.subr.bf16.mxu0 0
  %148 = vmatpush1.bf16.msra.mxu0 0
  %149 = vmatprep.subr.bf16.mxu0 0
  %150 = vmatpush1.bf16.msra.mxu0 0
  %151 = vmatprep.subr.bf16.mxu0 0
  %152 = vmatpush1.bf16.msra.mxu0 0
  %153 = vmatprep.mubr.bf16.mxu0 0
  %154 = vmatmul.mubr.bf16.gmra.mrb[0].mxu0 %v41
  %v155 = vpop.f32.mrb[0].mxu0
  %v156 = vadd.f32 %v71, %v155
  %v157 = vpop.f32.mrb[0].mxu0
  %v158 = vpop.f32.mrb[0].mxu0
  %v159 = vadd.f32 %v71, %v158
  %v160 = vpop.f32.mrb[0].mxu0
  %161 = vmatprep.mubr.bf16.mxu0 0
  %162 = vmatmul.mubr.bf16.gmra.mrb[0].mxu0 %v42
  %v163 = vpop.f32.mrb[0].mxu0
  %v164 = vadd.f32 %v71, %v163
  %v165 = vpop.f32.mrb[0].mxu0
  %v166 = vpop.f32.mrb[0].mxu0
  %v167 = vadd.f32 %v71, %v166
  %v168 = vpop.f32.mrb[0].mxu0
  %169 = vmatprep.mubr.bf16.mxu0 0
  %170 = vmatmul.mubr.bf16.gmra.mrb[0].mxu0 %v43
  %v171 = vpop.f32.mrb[0].mxu0
  %v172 = vadd.f32 %v71, %v171
  %v173 = vpop.f32.mrb[0].mxu0
  %v174 = vpop.f32.mrb[0].mxu0
  %v175 = vadd.f32 %v71, %v174
  %v176 = vpop.f32.mrb[0].mxu0
  %177 = vmatprep.mubr.bf16.mxu0 0
  %178 = vmatmul.mubr.bf16.gmra.mrb[0].mxu0 %v44
  %v179 = vpop.f32.mrb[0].mxu0
  %v180 = vadd.f32 %v71, %v179
  %v181 = vpop.f32.mrb[0].mxu0
  %v182 = vpop.f32.mrb[0].mxu0
  %v183 = vadd.f32 %v71, %v182
  %v184 = vpop.f32.mrb[0].mxu0
  %185 = vmatprep.mubr.bf16.mxu0 0
  %186 = vmatmul.mubr.bf16.gmra.mrb[0].mxu0 %v45
  %v187 = vpop.f32.mrb[0].mxu0
  %v188 = vadd.f32 %v71, %v187
  %v189 = vpop.f32.mrb[0].mxu0
  %v190 = vpop.f32.mrb[0].mxu0
  %v191 = vadd.f32 %v71, %v190
  %v192 = vpop.f32.mrb[0].mxu0
  %193 = vmatprep.mubr.bf16.mxu0 0
  %194 = vmatmul.mubr.bf16.gmra.mrb[0].mxu0 %v46
  %v195 = vpop.f32.mrb[0].mxu0
  %v196 = vadd.f32 %v71, %v195
  %v197 = vpop.f32.mrb[0].mxu0
  %v198 = vpop.f32.mrb[0].mxu0
  %v199 = vadd.f32 %v71, %v198
  %v200 = vpop.f32.mrb[0].mxu0
  %201 = vmatprep.mubr.bf16.mxu0 0
  %202 = vmatmul.mubr.bf16.gmra.mrb[0].mxu0 %v47
  %v203 = vpop.f32.mrb[0].mxu0
  %v204 = vadd.f32 %v71, %v203
  %v205 = vpop.f32.mrb[0].mxu0
  %v206 = vpop.f32.mrb[0].mxu0
  %v207 = vadd.f32 %v71, %v206
  %v208 = vpop.f32.mrb[0].mxu0
  %209 = vmatprep.mubr.bf16.mxu0 0
  %210 = vmatmul.mubr.bf16.gmra.mrb[0].mxu0 %v48
  %v211 = vpop.f32.mrb[0].mxu0
  %v212 = vadd.f32 %v71, %v211
  %v213 = vpop.f32.mrb[0].mxu0
  %v214 = vpop.f32.mrb[0].mxu0
  %v215 = vadd.f32 %v71, %v214
  %v216 = vpop.f32.mrb[0].mxu0
  %217 = vmatprep.mubr.bf16.mxu0 0
  %218 = vmatmul.mubr.bf16.gmra.mrb[0].mxu0 %v49
  %v219 = vpop.f32.mrb[0].mxu0
  %v220 = vadd.f32 %v71, %v219
  %v221 = vpop.f32.mrb[0].mxu0
  %v222 = vpop.f32.mrb[0].mxu0
  %v223 = vpop.f32.mrb[0].mxu0
  %224 = vdwg.mxu0
  %v225 = vld [vmem:[%s3] sm:$0xff]
  %v226 = vld [vmem:[%s3 + $0x8] sm:$0xff]
  %v227 = vld [vmem:[%s3 + $0x10] sm:$0xff]
  %v228 = vld [vmem:[%s3 + $0x18] sm:$0xff]
  %v229 = vld [vmem:[%s3 + $0x20] sm:$0xff]
  %v230 = vld [vmem:[%s3 + $0x28] sm:$0xff]
  %v231 = vld [vmem:[%s3 + $0x30] sm:$0xff]
  %v232 = vld [vmem:[%s3 + $0x38] sm:$0xff]
  %v233 = vld [vmem:[%s3 + $0x40] sm:$0xff]
  %v234 = vld [vmem:[%s3 + $0x48] sm:$0xff]
  %v235 = vld [vmem:[%s3 + $0x50] sm:$0xff]
  %v236 = vld [vmem:[%s3 + $0x58] sm:$0xff]
  %v237 = vld [vmem:[%s3 + $0x60] sm:$0xff]
  %v238 = vld [vmem:[%s3 + $0x68] sm:$0xff]
  %v239 = vld [vmem:[%s3 + $0x70] sm:$0xff]
  %v240 = vld [vmem:[%s3 + $0x78] sm:$0xff]
  %v241 = vld [vmem:[%s3 + $0x80] sm:$0xff]
  %v242 = vadd.f32 %v156, %v225
  %v243 = vadd.f32 %v159, %v226
  %v244 = vadd.f32 %v164, %v227
  %v245 = vadd.f32 %v167, %v228
  %v246 = vadd.f32 %v172, %v229
  %v247 = vadd.f32 %v175, %v230
  %v248 = vadd.f32 %v180, %v231
  %v249 = vadd.f32 %v183, %v232
  %v250 = vadd.f32 %v188, %v233
  %v251 = vadd.f32 %v191, %v234
  %v252 = vadd.f32 %v196, %v235
  %v253 = vadd.f32 %v199, %v236
  %v254 = vadd.f32 %v204, %v237
  %v255 = vadd.f32 %v207, %v238
  %v256 = vadd.f32 %v212, %v239
  %v257 = vadd.f32 %v215, %v240
  %v258 = vadd.f32 %v220, %v241
  %vm259 = vcmask 523264
  %v260 = vsel %vm259, %v242, 0.0
  %261 = vadd.xlane.f32.xlu0 %v260
  %v262 = vpop.xlane.xlu0 %261
  %v263 = vsel %vm259, %v243, 0.0
  %264 = vadd.xlane.f32.xlu0 %v263
  %v265 = vpop.xlane.xlu0 %264
  %v266 = vsel %vm259, %v244, 0.0
  %267 = vadd.xlane.f32.xlu0 %v266
  %v268 = vpop.xlane.xlu0 %267
  %v269 = vsel %vm259, %v245, 0.0
  %270 = vadd.xlane.f32.xlu0 %v269
  %v271 = vpop.xlane.xlu0 %270
  %v272 = vsel %vm259, %v246, 0.0
  %273 = vadd.xlane.f32.xlu0 %v272
  %v274 = vpop.xlane.xlu0 %273
  %v275 = vsel %vm259, %v247, 0.0
  %276 = vadd.xlane.f32.xlu0 %v275
  %v277 = vpop.xlane.xlu0 %276
  %v278 = vsel %vm259, %v248, 0.0
  %279 = vadd.xlane.f32.xlu0 %v278
  %v280 = vpop.xlane.xlu0 %279
  %v281 = vsel %vm259, %v249, 0.0
  %282 = vadd.xlane.f32.xlu0 %v281
  %v283 = vpop.xlane.xlu0 %282
  %v284 = vsel %vm259, %v250, 0.0
  %285 = vadd.xlane.f32.xlu0 %v284
  %v286 = vpop.xlane.xlu0 %285
  %v287 = vsel %vm259, %v251, 0.0
  %288 = vadd.xlane.f32.xlu0 %v287
  %v289 = vpop.xlane.xlu0 %288
  %v290 = vsel %vm259, %v252, 0.0
  %291 = vadd.xlane.f32.xlu0 %v290
  %v292 = vpop.xlane.xlu0 %291
  %v293 = vsel %vm259, %v253, 0.0
  %294 = vadd.xlane.f32.xlu0 %v293
  %v295 = vpop.xlane.xlu0 %294
  %v296 = vsel %vm259, %v254, 0.0
  %297 = vadd.xlane.f32.xlu0 %v296
  %v298 = vpop.xlane.xlu0 %297
  %v299 = vsel %vm259, %v255, 0.0
  %300 = vadd.xlane.f32.xlu0 %v299
  %v301 = vpop.xlane.xlu0 %300
  %v302 = vsel %vm259, %v256, 0.0
  %303 = vadd.xlane.f32.xlu0 %v302
  %v304 = vpop.xlane.xlu0 %303
  %v305 = vsel %vm259, %v257, 0.0
  %306 = vadd.xlane.f32.xlu0 %v305
  %v307 = vpop.xlane.xlu0 %306
  %v308 = vsel %vm259, %v258, 0.0
  %309 = vadd.xlane.f32.xlu0 %v308
  %v310 = vpop.xlane.xlu0 %309
  %v311 = vrcp.pop 64.0
  %v312 = vmul.f32 %v262, %v311
  %v313 = vmul.f32 %v265, %v311
  %v314 = vmul.f32 %v268, %v311
  %v315 = vmul.f32 %v271, %v311
  %v316 = vmul.f32 %v274, %v311
  %v317 = vmul.f32 %v277, %v311
  %v318 = vmul.f32 %v280, %v311
  %v319 = vmul.f32 %v283, %v311
  %v320 = vmul.f32 %v286, %v311
  %v321 = vmul.f32 %v289, %v311
  %v322 = vmul.f32 %v292, %v311
  %v323 = vmul.f32 %v295, %v311
  %v324 = vmul.f32 %v298, %v311
  %v325 = vmul.f32 %v301, %v311
  %v326 = vmul.f32 %v304, %v311
  %v327 = vmul.f32 %v307, %v311
  %v328 = vmul.f32 %v310, %v311
  %v329 = vsub.f32 %v242, %v312
  %v330 = vsub.f32 %v243, %v313
  %v331 = vsub.f32 %v244, %v314
  %v332 = vsub.f32 %v245, %v315
  %v333 = vsub.f32 %v246, %v316
  %v334 = vsub.f32 %v247, %v317
  %v335 = vsub.f32 %v248, %v318
  %v336 = vsub.f32 %v249, %v319
  %v337 = vsub.f32 %v250, %v320
  %v338 = vsub.f32 %v251, %v321
  %v339 = vsub.f32 %v252, %v322
  %v340 = vsub.f32 %v253, %v323
  %v341 = vsub.f32 %v254, %v324
  %v342 = vsub.f32 %v255, %v325
  %v343 = vsub.f32 %v256, %v326
  %v344 = vsub.f32 %v257, %v327
  %v345 = vsub.f32 %v258, %v328
  %v346 = vmul.f32 %v329, %v329
  %v347 = vmul.f32 %v330, %v330
  %v348 = vmul.f32 %v331, %v331
  %v349 = vmul.f32 %v332, %v332
  %v350 = vmul.f32 %v333, %v333
  %v351 = vmul.f32 %v334, %v334
  %v352 = vmul.f32 %v335, %v335
  %v353 = vmul.f32 %v336, %v336
  %v354 = vmul.f32 %v337, %v337
  %v355 = vmul.f32 %v338, %v338
  %v356 = vmul.f32 %v339, %v339
  %v357 = vmul.f32 %v340, %v340
  %v358 = vmul.f32 %v341, %v341
  %v359 = vmul.f32 %v342, %v342
  %v360 = vmul.f32 %v343, %v343
  %v361 = vmul.f32 %v344, %v344
  %v362 = vmul.f32 %v345, %v345
  %v363 = vsel %vm259, %v346, 0.0
  %364 = vadd.xlane.f32.xlu0 %v363
  %v365 = vpop.xlane.xlu0 %364
  %v366 = vsel %vm259, %v347, 0.0
  %367 = vadd.xlane.f32.xlu0 %v366
  %v368 = vpop.xlane.xlu0 %367
  %v369 = vsel %vm259, %v348, 0.0
  %370 = vadd.xlane.f32.xlu0 %v369
  %v371 = vpop.xlane.xlu0 %370
  %v372 = vsel %vm259, %v349, 0.0
  %373 = vadd.xlane.f32.xlu0 %v372
  %v374 = vpop.xlane.xlu0 %373
  %v375 = vsel %vm259, %v350, 0.0
  %376 = vadd.xlane.f32.xlu0 %v375
  %v377 = vpop.xlane.xlu0 %376
  %v378 = vsel %vm259, %v351, 0.0
  %379 = vadd.xlane.f32.xlu0 %v378
  %v380 = vpop.xlane.xlu0 %379
  %v381 = vsel %vm259, %v352, 0.0
  %382 = vadd.xlane.f32.xlu0 %v381
  %v383 = vpop.xlane.xlu0 %382
  %v384 = vsel %vm259, %v353, 0.0
  %385 = vadd.xlane.f32.xlu0 %v384
  %v386 = vpop.xlane.xlu0 %385
  %v387 = vsel %vm259, %v354, 0.0
  %388 = vadd.xlane.f32.xlu0 %v387
  %v389 = vpop.xlane.xlu0 %388
  %v390 = vsel %vm259, %v355, 0.0
  %391 = vadd.xlane.f32.xlu0 %v390
  %v392 = vpop.xlane.xlu0 %391
  %v393 = vsel %vm259, %v356, 0.0
  %394 = vadd.xlane.f32.xlu0 %v393
  %v395 = vpop.xlane.xlu0 %394
  %v396 = vsel %vm259, %v357, 0.0
  %397 = vadd.xlane.f32.xlu0 %v396
  %v398 = vpop.xlane.xlu0 %397
  %v399 = vsel %vm259, %v358, 0.0
  %400 = vadd.xlane.f32.xlu0 %v399
  %v401 = vpop.xlane.xlu0 %400
  %v402 = vsel %vm259, %v359, 0.0
  %403 = vadd.xlane.f32.xlu0 %v402
  %v404 = vpop.xlane.xlu0 %403
  %v405 = vsel %vm259, %v360, 0.0
  %406 = vadd.xlane.f32.xlu0 %v405
  %v407 = vpop.xlane.xlu0 %406
  %v408 = vsel %vm259, %v361, 0.0
  %409 = vadd.xlane.f32.xlu0 %v408
  %v410 = vpop.xlane.xlu0 %409
  %v411 = vsel %vm259, %v362, 0.0
  %412 = vadd.xlane.f32.xlu0 %v411
  %v413 = vpop.xlane.xlu0 %412
  %v414 = vmul.f32 %v365, %v311
  %v415 = vmul.f32 %v368, %v311
  %v416 = vmul.f32 %v371, %v311
  %v417 = vmul.f32 %v374, %v311
  %v418 = vmul.f32 %v377, %v311
  %v419 = vmul.f32 %v380, %v311
  %v420 = vmul.f32 %v383, %v311
  %v421 = vmul.f32 %v386, %v311
  %v422 = vmul.f32 %v389, %v311
  %v423 = vmul.f32 %v392, %v311
  %v424 = vmul.f32 %v395, %v311
  %v425 = vmul.f32 %v398, %v311
  %v426 = vmul.f32 %v401, %v311
  %v427 = vmul.f32 %v404, %v311
  %v428 = vmul.f32 %v407, %v311
  %v429 = vmul.f32 %v410, %v311
  %v430 = vmul.f32 %v413, %v311
  %v431 = vadd.f32 %v414, 1e-05
  %v432 = vadd.f32 %v415, 1e-05
  %v433 = vadd.f32 %v416, 1e-05
  %v434 = vadd.f32 %v417, 1e-05
  %v435 = vadd.f32 %v418, 1e-05
  %v436 = vadd.f32 %v419, 1e-05
  %v437 = vadd.f32 %v420, 1e-05
  %v438 = vadd.f32 %v421, 1e-05
  %v439 = vadd.f32 %v422, 1e-05
  %v440 = vadd.f32 %v423, 1e-05
  %v441 = vadd.f32 %v424, 1e-05
  %v442 = vadd.f32 %v425, 1e-05
  %v443 = vadd.f32 %v426, 1e-05
  %v444 = vadd.f32 %v427, 1e-05
  %v445 = vadd.f32 %v428, 1e-05
  %v446 = vadd.f32 %v429, 1e-05
  %v447 = vadd.f32 %v430, 1e-05
  %v448 = vrsqrt.pop %v431
  %v449 = vrsqrt.pop %v432
  %v450 = vrsqrt.pop %v433
  %v451 = vrsqrt.pop %v434
  %v452 = vrsqrt.pop %v435
  %v453 = vrsqrt.pop %v436
  %v454 = vrsqrt.pop %v437
  %v455 = vrsqrt.pop %v438
  %v456 = vrsqrt.pop %v439
  %v457 = vrsqrt.pop %v440
  %v458 = vrsqrt.pop %v441
  %v459 = vrsqrt.pop %v442
  %v460 = vrsqrt.pop %v443
  %v461 = vrsqrt.pop %v444
  %v462 = vrsqrt.pop %v445
  %v463 = vrsqrt.pop %v446
  %v464 = vrsqrt.pop %v447
  %v465 = vmul.f32 %v329, %v448
  %v466 = vmul.f32 %v330, %v449
  %v467 = vmul.f32 %v331, %v450
  %v468 = vmul.f32 %v332, %v451
  %v469 = vmul.f32 %v333, %v452
  %v470 = vmul.f32 %v334, %v453
  %v471 = vmul.f32 %v335, %v454
  %v472 = vmul.f32 %v336, %v455
  %v473 = vmul.f32 %v337, %v456
  %v474 = vmul.f32 %v338, %v457
  %v475 = vmul.f32 %v339, %v458
  %v476 = vmul.f32 %v340, %v459
  %v477 = vmul.f32 %v341, %v460
  %v478 = vmul.f32 %v342, %v461
  %v479 = vmul.f32 %v343, %v462
  %v480 = vmul.f32 %v344, %v463
  %v481 = vmul.f32 %v345, %v464
  %v482 = vld [vmem:[%s4] sm:$0x1]
  %v484 = vlaneseq
  %v485 = vshrl.u32 %v484, 7
  %v486 = vsub.s32 0, %v485
  %v487 = vrot.slane %v482, %v486
  %v489 = vmul.f32 %v465, %v487
  %v490 = vmul.f32 %v466, %v487
  %v491 = vmul.f32 %v467, %v487
  %v492 = vmul.f32 %v468, %v487
  %v493 = vmul.f32 %v469, %v487
  %v494 = vmul.f32 %v470, %v487
  %v495 = vmul.f32 %v471, %v487
  %v496 = vmul.f32 %v472, %v487
  %v497 = vmul.f32 %v473, %v487
  %v498 = vmul.f32 %v474, %v487
  %v499 = vmul.f32 %v475, %v487
  %v500 = vmul.f32 %v476, %v487
  %v501 = vmul.f32 %v477, %v487
  %v502 = vmul.f32 %v478, %v487
  %v503 = vmul.f32 %v479, %v487
  %v504 = vmul.f32 %v480, %v487
  %v505 = vmul.f32 %v481, %v487
  %v506 = vld [vmem:[%s5] sm:$0x1]
  %v508 = vlaneseq
  %v509 = vshrl.u32 %v508, 7
  %v510 = vsub.s32 0, %v509
  %v511 = vrot.slane %v506, %v510
  %v513 = vadd.f32 %v489, %v511
  %v514 = vadd.f32 %v490, %v511
  %v515 = vadd.f32 %v491, %v511
  %v516 = vadd.f32 %v492, %v511
  %v517 = vadd.f32 %v493, %v511
  %v518 = vadd.f32 %v494, %v511
  %v519 = vadd.f32 %v495, %v511
  %v520 = vadd.f32 %v496, %v511
  %v521 = vadd.f32 %v497, %v511
  %v522 = vadd.f32 %v498, %v511
  %v523 = vadd.f32 %v499, %v511
  %v524 = vadd.f32 %v500, %v511
  %v525 = vadd.f32 %v501, %v511
  %v526 = vadd.f32 %v502, %v511
  %v527 = vadd.f32 %v503, %v511
  %v528 = vadd.f32 %v504, %v511
  %v529 = vadd.f32 %v505, %v511
  %530 = vst.msk [vmem:[%s6] sm:$0xff] %vm259, %v513
  %531 = vst.msk [vmem:[%s6 + $0x8] sm:$0xff] %vm259, %v514
  %532 = vst.msk [vmem:[%s6 + $0x10] sm:$0xff] %vm259, %v515
  %533 = vst.msk [vmem:[%s6 + $0x18] sm:$0xff] %vm259, %v516
  %534 = vst.msk [vmem:[%s6 + $0x20] sm:$0xff] %vm259, %v517
  %535 = vst.msk [vmem:[%s6 + $0x28] sm:$0xff] %vm259, %v518
  %536 = vst.msk [vmem:[%s6 + $0x30] sm:$0xff] %vm259, %v519
  %537 = vst.msk [vmem:[%s6 + $0x38] sm:$0xff] %vm259, %v520
  %538 = vst.msk [vmem:[%s6 + $0x40] sm:$0xff] %vm259, %v521
  %539 = vst.msk [vmem:[%s6 + $0x48] sm:$0xff] %vm259, %v522
  %540 = vst.msk [vmem:[%s6 + $0x50] sm:$0xff] %vm259, %v523
  %541 = vst.msk [vmem:[%s6 + $0x58] sm:$0xff] %vm259, %v524
  %542 = vst.msk [vmem:[%s6 + $0x60] sm:$0xff] %vm259, %v525
  %543 = vst.msk [vmem:[%s6 + $0x68] sm:$0xff] %vm259, %v526
  %544 = vst.msk [vmem:[%s6 + $0x70] sm:$0xff] %vm259, %v527
  %545 = vst.msk [vmem:[%s6 + $0x78] sm:$0xff] %vm259, %v528
  %546 = vst.msk [vmem:[%s6 + $0x80] sm:$0xff] %vm259, %v529
  // Predicated region
  $region26: #{resnet50_vit_forward.41} parent=0 // pred_check
    _
  $region27: #{resnet50_vit_forward.41} parent=0 // pred_check_branch
    %548 = sbr.rel (0) target = $region29
  $region28: #{resnet50_vit_forward.41} parent=0 // pred_region
    _
  $region29: #{resnet50_vit_forward.41} parent=0 // pred_fallthru
    _
  // Predicated region
  $region30: #{resnet50_vit_forward.41} parent=0 // pred_check
    _
  $region31: #{resnet50_vit_forward.41} parent=0 // pred_check_branch
    %550 = sbr.rel (0) target = $region33
  $region32: #{resnet50_vit_forward.41} parent=0 // pred_region
    _
  $region33: #{resnet50_vit_forward.41} parent=0 // pred_fallthru
    _

</llo_original>
